<compile_context>
chip_gen: v6e
topology: v6e:2x2x1
jax: 0.10.0
libtpu: 0.0.40
codegen_flags: <defaults>
</compile_context>

<pallas_src>
import functools

import jax
import jax.numpy as jnp
from jax.experimental import pallas as pl
from jax.experimental.pallas import tpu as pltpu


def _cross_attn_encoder_kernel(q_ref, k_ref,
                               wq_ref, bq_ref,
                               wkv_ref, bkv_ref,
                               wo_ref, bo_ref,
                               w1_ref, b1_ref,
                               w2_ref, b2_ref,
                               out_ref, o_scratch, *, nhead, n_tilde):
    f32 = jnp.float32
    cdt = wq_ref.dtype                     # MXU input dtype (bfloat16)

    m_rows, e = q_ref.shape                # M = block_b * N_tilde
    bb = m_rows // n_tilde                 # instances in this grid step
    n = k_ref.shape[0] // bb               # key tokens per instance
    d = e // nhead                         # head dim

    q2 = q_ref[...]                        # (M, E)      bf16 (cast in wrapper)
    k2 = k_ref[...]                        # (bb*N, E)   bf16

    # --- Dense in-projections (single MXU matmuls; 1/sqrt(D) folded into wq/bq,
    #     K and V weights stacked along the output lanes of one matmul). ---
    qp = jnp.dot(q2, wq_ref[...], preferred_element_type=f32) + bq_ref[...]     # (M, E)
    kvp = jnp.dot(k2, wkv_ref[...], preferred_element_type=f32) + bkv_ref[...]  # (bb*N, 2E)

    # --- Per-head attention.  Static (unrolled) loop; head split is a static
    #     lane slice, per-instance grouping is a lane-preserving reshape, and
    #     the head merge is a lane-slice store into VMEM scratch.  No
    #     broadcast_to, no transposes, no multi-batch-dim dot_generals. ---
    # TODO(synk): for long key sequences, tile N with an "arbitrary" grid axis
    # and an online-softmax accumulator instead of holding full (bb, Nt, N) scores.
    for hh in range(nhead):
        q_h = qp[:, hh * d:(hh + 1) * d].astype(cdt).reshape(bb, n_tilde, d)
        k_h = kvp[:, hh * d:(hh + 1) * d].astype(cdt).reshape(bb, n, d)
        v_h = kvp[:, e + hh * d:e + (hh + 1) * d].astype(cdt).reshape(bb, n, d)

        # Scores contract the last dims directly (no explicit transpose).
        s = jnp.einsum('bqd,bkd->bqk', q_h, k_h,
                       preferred_element_type=f32)            # (bb, Nt, N)
        s_max = jnp.max(s, axis=-1, keepdims=True)
        p = jnp.exp(s - s_max)
        l = jnp.sum(p, axis=-1, keepdims=True)
        o_h = jnp.einsum('bqk,bkd->bqd', p.astype(cdt), v_h,
                         preferred_element_type=f32)          # (bb, Nt, D)
        o_h = o_h * pl.reciprocal(l, approx=True)             # EUP slot, near-free

        # Merge heads back onto lanes via a static-slice scratch store.
        o_scratch[:, hh * d:(hh + 1) * d] = o_h.reshape(m_rows, d)

    o = o_scratch[...]                                         # (M, E) f32, heads on lanes

    # --- Output projection with the head merge folded in (depth-E MXU matmul). ---
    attn = jnp.dot(o.astype(cdt), wo_ref[...],
                   preferred_element_type=f32) + bo_ref[...]   # (M, E)

    # --- FFN: Linear -> ReLU -> Linear. ---
    h1 = jnp.dot(attn.astype(cdt), w1_ref[...],
                 preferred_element_type=f32) + b1_ref[...]
    h1 = jnp.maximum(h1, 0.0)
    y = jnp.dot(h1.astype(cdt), w2_ref[...],
                preferred_element_type=f32) + b2_ref[...]

    out_ref[...] = y.astype(out_ref.dtype)


def prepare_params(params, *, nhead, matmul_dtype=jnp.bfloat16):
    """One-time weight re-layout (hoisted out of the per-call path).

    torch layout -> x@W layout, K/V weights stacked along output lanes for a
    fused projection, attention scale folded into the query weights/bias,
    matmul weights cast to `matmul_dtype`.
    """
    e = params["wq"].shape[0]
    d = e // nhead
    scale = 1.0 / float(d) ** 0.5
    return {
        "wq": (params["wq"].T * scale).astype(matmul_dtype),                  # (E, E)
        "bq": (params["bq"] * scale).reshape(1, e).astype(jnp.float32),       # (1, E)
        "wkv": jnp.concatenate([params["wk"].T, params["wv"].T],
                               axis=1).astype(matmul_dtype),                  # (E, 2E)
        "bkv": jnp.concatenate([params["bk"], params["bv"]]
                               ).reshape(1, 2 * e).astype(jnp.float32),       # (1, 2E)
        "wo": params["wo"].T.astype(matmul_dtype),                            # (E, E)
        "bo": params["bo"].reshape(1, e).astype(jnp.float32),
        "w1": params["w1"].T.astype(matmul_dtype),                            # (E, F)
        "b1": params["b1"].reshape(1, -1).astype(jnp.float32),
        "w2": params["w2"].T.astype(matmul_dtype),                            # (F, E)
        "b2": params["b2"].reshape(1, e).astype(jnp.float32),
    }


def _choose_block_b(b, n_tilde, target_rows=256):
    """Largest divisor of b giving ~target_rows FFN rows per grid step while
    keeping >= 2 grid steps when possible (shards across v7x's two TCs)."""
    want = max(1, (target_rows + n_tilde - 1) // n_tilde)
    divisors = [x for x in range(1, b + 1) if b % x == 0]
    cands = [x for x in divisors if b // x >= 2] or divisors
    under = [x for x in cands if x <= want]
    return max(under) if under else min(cands)


def cross_attention_encoder_batched(query, key, prepared, *, nhead, block_b=None):
    """query: (B, N_tilde, E), key: (B, N, E) -> (B, N_tilde, E)."""
    b, n_tilde, e = query.shape
    _, n, _ = key.shape
    if block_b is None:
        block_b = _choose_block_b(b, n_tilde)
    if b % block_b != 0:
        block_b = b
    # Blocks must have sublane dims divisible by 8 unless they span the full array.
    if block_b != b and ((block_b * n_tilde) % 8 or (block_b * n) % 8):
        block_b = b
    grid_b = b // block_b

    cdt = prepared["wq"].dtype
    # Flat 2-D row slabs: zero in-kernel input/output relayout; bf16 inputs
    # halve HBM traffic (f32 accumulation unchanged).
    q2 = query.reshape(b * n_tilde, e).astype(cdt)
    k2 = key.reshape(b * n, e).astype(cdt)

    w_names = ("wq", "bq", "wkv", "bkv", "wo", "bo", "w1", "b1", "w2", "b2")
    w_args = tuple(prepared[name] for name in w_names)

    def resident(shape):
        # TODO(synk): for large E/F on v7x (64 MiB VMEM), single-buffer these
        # resident weights (pipeline_mode=pl.Buffered(1)) and set an explicit
        # vmem_limit_bytes; at these sizes the default double-buffering is free.
        nd = len(shape)
        return pl.BlockSpec(shape, lambda i, _nd=nd: (0,) * _nd)

    in_specs = [
        pl.BlockSpec((block_b * n_tilde, e), lambda i: (i, 0)),
        pl.BlockSpec((block_b * n, e), lambda i: (i, 0)),
    ] + [resident(w.shape) for w in w_args]

    grid_spec = pltpu.PrefetchScalarGridSpec(
        num_scalar_prefetch=0,
        grid=(grid_b,),
        in_specs=in_specs,
        out_specs=pl.BlockSpec((block_b * n_tilde, e), lambda i: (i, 0)),
        scratch_shapes=[pltpu.VMEM((block_b * n_tilde, e), jnp.float32)],
    )

    out = pl.pallas_call(
        functools.partial(_cross_attn_encoder_kernel, nhead=nhead, n_tilde=n_tilde),
        out_shape=jax.ShapeDtypeStruct((b * n_tilde, e), query.dtype),
        grid_spec=grid_spec,
        compiler_params=pltpu.CompilerParams(
            dimension_semantics=("parallel",)),
    )(q2, k2, *w_args)
    return out.reshape(b, n_tilde, e)


def cross_attention_encoder(query, key, prepared, *, nhead):
    """Single-instance API matching the PyTorch module: (N_tilde, E), (N, E)."""
    out = cross_attention_encoder_batched(query[None], key[None], prepared,
                                          nhead=nhead, block_b=1)
    return out[0]


def _reference(query, key, params, *, nhead):
    """Pure-JAX f32 reference mirroring torch.nn.MultiheadAttention + FFN."""
    e = query.shape[-1]
    d = e // nhead
    qp = query @ params["wq"].T + params["bq"]
    kp = key @ params["wk"].T + params["bk"]
    vp = key @ params["wv"].T + params["bv"]

    def heads(x):
        return x.reshape(x.shape[0], nhead, d).transpose(1, 0, 2)  # (H, L, D)

    qh, kh, vh = heads(qp), heads(kp), heads(vp)
    s = jnp.einsum("hqd,hkd->hqk", qh, kh) / jnp.sqrt(d)
    p = jax.nn.softmax(s, axis=-1)
    a = jnp.einsum("hqk,hkd->hqd", p, vh)                 # (H, Nt, D)
    a = a.transpose(1, 0, 2).reshape(query.shape[0], e)   # (Nt, E)
    a = a @ params["wo"].T + params["bo"]
    h1 = jnp.maximum(a @ params["w1"].T + params["b1"], 0.0)
    return h1 @ params["w2"].T + params["b2"]


def init_params(key, embedding_dim, nhead, dim_feedforward):
    e, f = embedding_dim, dim_feedforward
    ks = jax.random.split(key, 8)
    scale_e = 1.0 / jnp.sqrt(e)
    scale_f = 1.0 / jnp.sqrt(f)
    # in_proj_weight of nn.MultiheadAttention is (3E, E); split into q/k/v.
    in_proj = jax.random.normal(ks[0], (3 * e, e), jnp.float32) * scale_e
    in_proj_b = jax.random.normal(ks[1], (3 * e,), jnp.float32) * 0.02
    return {
        "wq": in_proj[0 * e:1 * e],
        "wk": in_proj[1 * e:2 * e],
        "wv": in_proj[2 * e:3 * e],
        "bq": in_proj_b[0 * e:1 * e],
        "bk": in_proj_b[1 * e:2 * e],
        "bv": in_proj_b[2 * e:3 * e],
        "wo": jax.random.normal(ks[2], (e, e), jnp.float32) * scale_e,
        "bo": jax.random.normal(ks[3], (e,), jnp.float32) * 0.02,
        "w1": jax.random.normal(ks[4], (f, e), jnp.float32) * scale_e,
        "b1": jax.random.normal(ks[5], (f,), jnp.float32) * 0.02,
        "w2": jax.random.normal(ks[6], (e, f), jnp.float32) * scale_f,
        "b2": jax.random.normal(ks[7], (e,), jnp.float32) * 0.02,
    }


if __name__ == "__main__":
    EMBEDDING_DIM = 32
    NHEAD = 4
    DIM_FEEDFORWARD = 64
    N_TILDE = 8      # query tokens per instance
    N = 16           # key/value tokens per instance
    BATCH = 32       # independent (query, key) instances per pallas_call

    root = jax.random.PRNGKey(0)
    k_q, k_k, k_p = jax.random.split(root, 3)
    queries = jax.random.normal(k_q, (BATCH, N_TILDE, EMBEDDING_DIM), jnp.float32)
    keys = jax.random.normal(k_k, (BATCH, N, EMBEDDING_DIM), jnp.float32)
    params = init_params(k_p, EMBEDDING_DIM, NHEAD, DIM_FEEDFORWARD)
    prepared = prepare_params(params, nhead=NHEAD)   # one-time weight re-layout

    # block_b heuristic -> 16 here: 128 FFN rows per step, grid=(2,) "parallel"
    # so both v7x TensorCores get work.
    out = cross_attention_encoder_batched(queries, keys, prepared,
                                          nhead=NHEAD, block_b=None)
    out = jax.block_until_ready(out)

    ref = jax.vmap(lambda q, k: _reference(q, k, params, nhead=NHEAD))(queries, keys)
    assert out.shape == (BATCH, N_TILDE, EMBEDDING_DIM)
    # bf16 MXU inputs with f32 accumulation: compare to the f32 reference with a
    # bf16-level tolerance (structural errors would be O(1), far above this).
    assert jnp.allclose(out, ref, atol=8e-2, rtol=8e-2), (
        "mismatch vs reference: max abs err = "
        f"{float(jnp.max(jnp.abs(out - ref)))}")

    print("KERNEL_OK")
</pallas_src>

<mosaic_0001>
module attributes {stable_mosaic.version = 11 : i64} {
  func.func @_cross_attn_encoder_kernel(%arg0: i32, %arg1: memref<128x32xbf16, #tpu.memory_space<vmem>>, %arg2: memref<256x32xbf16, #tpu.memory_space<vmem>>, %arg3: memref<32x32xbf16, #tpu.memory_space<vmem>>, %arg4: memref<1x32xf32, #tpu.memory_space<vmem>>, %arg5: memref<32x64xbf16, #tpu.memory_space<vmem>>, %arg6: memref<1x64xf32, #tpu.memory_space<vmem>>, %arg7: memref<32x32xbf16, #tpu.memory_space<vmem>>, %arg8: memref<1x32xf32, #tpu.memory_space<vmem>>, %arg9: memref<32x64xbf16, #tpu.memory_space<vmem>>, %arg10: memref<1x64xf32, #tpu.memory_space<vmem>>, %arg11: memref<64x32xbf16, #tpu.memory_space<vmem>>, %arg12: memref<1x32xf32, #tpu.memory_space<vmem>>, %arg13: memref<128x32xf32, #tpu.memory_space<vmem>>, %arg14: memref<128x32xf32, #tpu.memory_space<vmem>>) attributes {dimension_semantics = [#tpu.dimension_semantics<parallel>], iteration_bounds = array<i64: 2>, scalar_prefetch = 0 : i64, scratch_operands = 1 : i64, tpu.core_type = #tpu.core_type<tc>, window_params = [{transform_indices = @transform_0, window_bounds = array<i64: 128, 32>}, {transform_indices = @transform_1, window_bounds = array<i64: 256, 32>}, {pipeline_mode = #tpu.pipeline_mode<synchronous>, transform_indices = @transform_2, window_bounds = array<i64: 32, 32>}, {pipeline_mode = #tpu.pipeline_mode<synchronous>, transform_indices = @transform_3, window_bounds = array<i64: 1, 32>}, {pipeline_mode = #tpu.pipeline_mode<synchronous>, transform_indices = @transform_4, window_bounds = array<i64: 32, 64>}, {pipeline_mode = #tpu.pipeline_mode<synchronous>, transform_indices = @transform_5, window_bounds = array<i64: 1, 64>}, {pipeline_mode = #tpu.pipeline_mode<synchronous>, transform_indices = @transform_6, window_bounds = array<i64: 32, 32>}, {pipeline_mode = #tpu.pipeline_mode<synchronous>, transform_indices = @transform_7, window_bounds = array<i64: 1, 32>}, {pipeline_mode = #tpu.pipeline_mode<synchronous>, transform_indices = @transform_8, window_bounds = array<i64: 32, 64>}, {pipeline_mode = #tpu.pipeline_mode<synchronous>, transform_indices = @transform_9, window_bounds = array<i64: 1, 64>}, {pipeline_mode = #tpu.pipeline_mode<synchronous>, transform_indices = @transform_10, window_bounds = array<i64: 64, 32>}, {pipeline_mode = #tpu.pipeline_mode<synchronous>, transform_indices = @transform_11, window_bounds = array<i64: 1, 32>}, {transform_indices = @transform_12, window_bounds = array<i64: 128, 32>}]} {
    %c0 = arith.constant 0 : index
    %c0_0 = arith.constant 0 : index
    %0 = vector.load %arg1[%c0, %c0_0] : memref<128x32xbf16, #tpu.memory_space<vmem>>, vector<128x32xbf16>
    %c0_1 = arith.constant 0 : index
    %c0_2 = arith.constant 0 : index
    %1 = vector.load %arg2[%c0_1, %c0_2] : memref<256x32xbf16, #tpu.memory_space<vmem>>, vector<256x32xbf16>
    %c0_3 = arith.constant 0 : index
    %c0_4 = arith.constant 0 : index
    %2 = vector.load %arg3[%c0_3, %c0_4] : memref<32x32xbf16, #tpu.memory_space<vmem>>, vector<32x32xbf16>
    %cst = arith.constant dense<0.000000e+00> : vector<128x32xf32>
    %3 = tpu.matmul %0, %2, %cst {dimension_numbers = #tpu.dot_dimension_numbers<[1], [0], [0], [1], [0, 0, 1, 1], [], []>} : vector<128x32xbf16>, vector<32x32xbf16>, vector<128x32xf32> -> vector<128x32xf32>
    %c0_5 = arith.constant 0 : index
    %c0_6 = arith.constant 0 : index
    %4 = vector.load %arg4[%c0_5, %c0_6] : memref<1x32xf32, #tpu.memory_space<vmem>>, vector<1x32xf32>
    %5 = vector.broadcast %4 : vector<1x32xf32> to vector<128x32xf32>
    %6 = arith.addf %3, %5 : vector<128x32xf32>
    %c0_7 = arith.constant 0 : index
    %c0_8 = arith.constant 0 : index
    %7 = vector.load %arg5[%c0_7, %c0_8] : memref<32x64xbf16, #tpu.memory_space<vmem>>, vector<32x64xbf16>
    %cst_9 = arith.constant dense<0.000000e+00> : vector<256x64xf32>
    %8 = tpu.matmul %1, %7, %cst_9 {dimension_numbers = #tpu.dot_dimension_numbers<[1], [0], [0], [1], [0, 0, 1, 1], [], []>} : vector<256x32xbf16>, vector<32x64xbf16>, vector<256x64xf32> -> vector<256x64xf32>
    %c0_10 = arith.constant 0 : index
    %c0_11 = arith.constant 0 : index
    %9 = vector.load %arg6[%c0_10, %c0_11] : memref<1x64xf32, #tpu.memory_space<vmem>>, vector<1x64xf32>
    %10 = vector.broadcast %9 : vector<1x64xf32> to vector<256x64xf32>
    %11 = arith.addf %8, %10 : vector<256x64xf32>
    %12 = vector.extract_strided_slice %6 {offsets = [0, 0], sizes = [128, 8], strides = [1, 1]} : vector<128x32xf32> to vector<128x8xf32>
    %13 = arith.truncf %12 : vector<128x8xf32> to vector<128x8xbf16>
    %14 = vector.shape_cast %13 : vector<128x8xbf16> to vector<16x8x8xbf16>
    %15 = vector.extract_strided_slice %11 {offsets = [0, 0], sizes = [256, 8], strides = [1, 1]} : vector<256x64xf32> to vector<256x8xf32>
    %16 = arith.truncf %15 : vector<256x8xf32> to vector<256x8xbf16>
    %17 = vector.shape_cast %16 : vector<256x8xbf16> to vector<16x16x8xbf16>
    %18 = vector.extract_strided_slice %11 {offsets = [0, 32], sizes = [256, 8], strides = [1, 1]} : vector<256x64xf32> to vector<256x8xf32>
    %19 = arith.truncf %18 : vector<256x8xf32> to vector<256x8xbf16>
    %20 = vector.shape_cast %19 : vector<256x8xbf16> to vector<16x16x8xbf16>
    "tpu.trace_start"() <{level = 10 : i32, message = "bqd,bkd->bqk"}> : () -> ()
    %cst_12 = arith.constant dense<0.000000e+00> : vector<16x8x16xf32>
    %21 = tpu.matmul %14, %17, %cst_12 {dimension_numbers = #tpu.dot_dimension_numbers<[2], [2], [1], [1], [0, 0, 0, 1, 1, 1], [0], [0]>} : vector<16x8x8xbf16>, vector<16x16x8xbf16>, vector<16x8x16xf32> -> vector<16x8x16xf32>
    "tpu.trace_stop"() : () -> ()
    %cst_13 = arith.constant dense<0xFF800000> : vector<16x8xf32>
    %22 = vector.multi_reduction <maximumf>, %21, %cst_13 [2] : vector<16x8x16xf32> to vector<16x8xf32>
    %23 = vector.shape_cast %22 : vector<16x8xf32> to vector<16x8x1xf32>
    %24 = vector.broadcast %23 : vector<16x8x1xf32> to vector<16x8x16xf32>
    %25 = arith.subf %21, %24 : vector<16x8x16xf32>
    %26 = math.exp %25 : vector<16x8x16xf32>
    %cst_14 = arith.constant dense<0.000000e+00> : vector<16x8xf32>
    %27 = vector.multi_reduction <add>, %26, %cst_14 [2] : vector<16x8x16xf32> to vector<16x8xf32>
    %28 = vector.shape_cast %27 : vector<16x8xf32> to vector<16x8x1xf32>
    %29 = arith.truncf %26 : vector<16x8x16xf32> to vector<16x8x16xbf16>
    "tpu.trace_start"() <{level = 10 : i32, message = "bqk,bkd->bqd"}> : () -> ()
    %cst_15 = arith.constant dense<0.000000e+00> : vector<16x8x8xf32>
    %30 = tpu.matmul %29, %20, %cst_15 {dimension_numbers = #tpu.dot_dimension_numbers<[2], [1], [1], [2], [0, 0, 0, 1, 1, 2], [0], [0]>} : vector<16x8x16xbf16>, vector<16x16x8xbf16>, vector<16x8x8xf32> -> vector<16x8x8xf32>
    "tpu.trace_stop"() : () -> ()
    %31 = tpu.reciprocal %28 {approx = true} : vector<16x8x1xf32> -> vector<16x8x1xf32>
    %32 = vector.broadcast %31 : vector<16x8x1xf32> to vector<16x8x8xf32>
    %33 = arith.mulf %30, %32 : vector<16x8x8xf32>
    %34 = vector.shape_cast %33 : vector<16x8x8xf32> to vector<128x8xf32>
    %c0_16 = arith.constant 0 : index
    %c0_17 = arith.constant 0 : index
    %35 = vector.load %arg14[%c0_16, %c0_17] : memref<128x32xf32, #tpu.memory_space<vmem>>, vector<128x8xf32>
    tpu.vector_store %arg14[%c0_16, %c0_17], %34 {strides = array<i32>} : memref<128x32xf32, #tpu.memory_space<vmem>>, vector<128x8xf32>,
    %36 = vector.extract_strided_slice %6 {offsets = [0, 8], sizes = [128, 8], strides = [1, 1]} : vector<128x32xf32> to vector<128x8xf32>
    %37 = arith.truncf %36 : vector<128x8xf32> to vector<128x8xbf16>
    %38 = vector.shape_cast %37 : vector<128x8xbf16> to vector<16x8x8xbf16>
    %39 = vector.extract_strided_slice %11 {offsets = [0, 8], sizes = [256, 8], strides = [1, 1]} : vector<256x64xf32> to vector<256x8xf32>
    %40 = arith.truncf %39 : vector<256x8xf32> to vector<256x8xbf16>
    %41 = vector.shape_cast %40 : vector<256x8xbf16> to vector<16x16x8xbf16>
    %42 = vector.extract_strided_slice %11 {offsets = [0, 40], sizes = [256, 8], strides = [1, 1]} : vector<256x64xf32> to vector<256x8xf32>
    %43 = arith.truncf %42 : vector<256x8xf32> to vector<256x8xbf16>
    %44 = vector.shape_cast %43 : vector<256x8xbf16> to vector<16x16x8xbf16>
    "tpu.trace_start"() <{level = 10 : i32, message = "bqd,bkd->bqk"}> : () -> ()
    %cst_18 = arith.constant dense<0.000000e+00> : vector<16x8x16xf32>
    %45 = tpu.matmul %38, %41, %cst_18 {dimension_numbers = #tpu.dot_dimension_numbers<[2], [2], [1], [1], [0, 0, 0, 1, 1, 1], [0], [0]>} : vector<16x8x8xbf16>, vector<16x16x8xbf16>, vector<16x8x16xf32> -> vector<16x8x16xf32>
    "tpu.trace_stop"() : () -> ()
    %cst_19 = arith.constant dense<0xFF800000> : vector<16x8xf32>
    %46 = vector.multi_reduction <maximumf>, %45, %cst_19 [2] : vector<16x8x16xf32> to vector<16x8xf32>
    %47 = vector.shape_cast %46 : vector<16x8xf32> to vector<16x8x1xf32>
    %48 = vector.broadcast %47 : vector<16x8x1xf32> to vector<16x8x16xf32>
    %49 = arith.subf %45, %48 : vector<16x8x16xf32>
    %50 = math.exp %49 : vector<16x8x16xf32>
    %cst_20 = arith.constant dense<0.000000e+00> : vector<16x8xf32>
    %51 = vector.multi_reduction <add>, %50, %cst_20 [2] : vector<16x8x16xf32> to vector<16x8xf32>
    %52 = vector.shape_cast %51 : vector<16x8xf32> to vector<16x8x1xf32>
    %53 = arith.truncf %50 : vector<16x8x16xf32> to vector<16x8x16xbf16>
    "tpu.trace_start"() <{level = 10 : i32, message = "bqk,bkd->bqd"}> : () -> ()
    %cst_21 = arith.constant dense<0.000000e+00> : vector<16x8x8xf32>
    %54 = tpu.matmul %53, %44, %cst_21 {dimension_numbers = #tpu.dot_dimension_numbers<[2], [1], [1], [2], [0, 0, 0, 1, 1, 2], [0], [0]>} : vector<16x8x16xbf16>, vector<16x16x8xbf16>, vector<16x8x8xf32> -> vector<16x8x8xf32>
    "tpu.trace_stop"() : () -> ()
    %55 = tpu.reciprocal %52 {approx = true} : vector<16x8x1xf32> -> vector<16x8x1xf32>
    %56 = vector.broadcast %55 : vector<16x8x1xf32> to vector<16x8x8xf32>
    %57 = arith.mulf %54, %56 : vector<16x8x8xf32>
    %58 = vector.shape_cast %57 : vector<16x8x8xf32> to vector<128x8xf32>
    %c0_22 = arith.constant 0 : index
    %c8 = arith.constant 8 : index
    %59 = vector.load %arg14[%c0_22, %c8] : memref<128x32xf32, #tpu.memory_space<vmem>>, vector<128x8xf32>
    tpu.vector_store %arg14[%c0_22, %c8], %58 {strides = array<i32>} : memref<128x32xf32, #tpu.memory_space<vmem>>, vector<128x8xf32>,
    %60 = vector.extract_strided_slice %6 {offsets = [0, 16], sizes = [128, 8], strides = [1, 1]} : vector<128x32xf32> to vector<128x8xf32>
    %61 = arith.truncf %60 : vector<128x8xf32> to vector<128x8xbf16>
    %62 = vector.shape_cast %61 : vector<128x8xbf16> to vector<16x8x8xbf16>
    %63 = vector.extract_strided_slice %11 {offsets = [0, 16], sizes = [256, 8], strides = [1, 1]} : vector<256x64xf32> to vector<256x8xf32>
    %64 = arith.truncf %63 : vector<256x8xf32> to vector<256x8xbf16>
    %65 = vector.shape_cast %64 : vector<256x8xbf16> to vector<16x16x8xbf16>
    %66 = vector.extract_strided_slice %11 {offsets = [0, 48], sizes = [256, 8], strides = [1, 1]} : vector<256x64xf32> to vector<256x8xf32>
    %67 = arith.truncf %66 : vector<256x8xf32> to vector<256x8xbf16>
    %68 = vector.shape_cast %67 : vector<256x8xbf16> to vector<16x16x8xbf16>
    "tpu.trace_start"() <{level = 10 : i32, message = "bqd,bkd->bqk"}> : () -> ()
    %cst_23 = arith.constant dense<0.000000e+00> : vector<16x8x16xf32>
    %69 = tpu.matmul %62, %65, %cst_23 {dimension_numbers = #tpu.dot_dimension_numbers<[2], [2], [1], [1], [0, 0, 0, 1, 1, 1], [0], [0]>} : vector<16x8x8xbf16>, vector<16x16x8xbf16>, vector<16x8x16xf32> -> vector<16x8x16xf32>
    "tpu.trace_stop"() : () -> ()
    %cst_24 = arith.constant dense<0xFF800000> : vector<16x8xf32>
    %70 = vector.multi_reduction <maximumf>, %69, %cst_24 [2] : vector<16x8x16xf32> to vector<16x8xf32>
    %71 = vector.shape_cast %70 : vector<16x8xf32> to vector<16x8x1xf32>
    %72 = vector.broadcast %71 : vector<16x8x1xf32> to vector<16x8x16xf32>
    %73 = arith.subf %69, %72 : vector<16x8x16xf32>
    %74 = math.exp %73 : vector<16x8x16xf32>
    %cst_25 = arith.constant dense<0.000000e+00> : vector<16x8xf32>
    %75 = vector.multi_reduction <add>, %74, %cst_25 [2] : vector<16x8x16xf32> to vector<16x8xf32>
    %76 = vector.shape_cast %75 : vector<16x8xf32> to vector<16x8x1xf32>
    %77 = arith.truncf %74 : vector<16x8x16xf32> to vector<16x8x16xbf16>
    "tpu.trace_start"() <{level = 10 : i32, message = "bqk,bkd->bqd"}> : () -> ()
    %cst_26 = arith.constant dense<0.000000e+00> : vector<16x8x8xf32>
    %78 = tpu.matmul %77, %68, %cst_26 {dimension_numbers = #tpu.dot_dimension_numbers<[2], [1], [1], [2], [0, 0, 0, 1, 1, 2], [0], [0]>} : vector<16x8x16xbf16>, vector<16x16x8xbf16>, vector<16x8x8xf32> -> vector<16x8x8xf32>
    "tpu.trace_stop"() : () -> ()
    %79 = tpu.reciprocal %76 {approx = true} : vector<16x8x1xf32> -> vector<16x8x1xf32>
    %80 = vector.broadcast %79 : vector<16x8x1xf32> to vector<16x8x8xf32>
    %81 = arith.mulf %78, %80 : vector<16x8x8xf32>
    %82 = vector.shape_cast %81 : vector<16x8x8xf32> to vector<128x8xf32>
    %c0_27 = arith.constant 0 : index
    %c16 = arith.constant 16 : index
    %83 = vector.load %arg14[%c0_27, %c16] : memref<128x32xf32, #tpu.memory_space<vmem>>, vector<128x8xf32>
    tpu.vector_store %arg14[%c0_27, %c16], %82 {strides = array<i32>} : memref<128x32xf32, #tpu.memory_space<vmem>>, vector<128x8xf32>,
    %84 = vector.extract_strided_slice %6 {offsets = [0, 24], sizes = [128, 8], strides = [1, 1]} : vector<128x32xf32> to vector<128x8xf32>
    %85 = arith.truncf %84 : vector<128x8xf32> to vector<128x8xbf16>
    %86 = vector.shape_cast %85 : vector<128x8xbf16> to vector<16x8x8xbf16>
    %87 = vector.extract_strided_slice %11 {offsets = [0, 24], sizes = [256, 8], strides = [1, 1]} : vector<256x64xf32> to vector<256x8xf32>
    %88 = arith.truncf %87 : vector<256x8xf32> to vector<256x8xbf16>
    %89 = vector.shape_cast %88 : vector<256x8xbf16> to vector<16x16x8xbf16>
    %90 = vector.extract_strided_slice %11 {offsets = [0, 56], sizes = [256, 8], strides = [1, 1]} : vector<256x64xf32> to vector<256x8xf32>
    %91 = arith.truncf %90 : vector<256x8xf32> to vector<256x8xbf16>
    %92 = vector.shape_cast %91 : vector<256x8xbf16> to vector<16x16x8xbf16>
    "tpu.trace_start"() <{level = 10 : i32, message = "bqd,bkd->bqk"}> : () -> ()
    %cst_28 = arith.constant dense<0.000000e+00> : vector<16x8x16xf32>
    %93 = tpu.matmul %86, %89, %cst_28 {dimension_numbers = #tpu.dot_dimension_numbers<[2], [2], [1], [1], [0, 0, 0, 1, 1, 1], [0], [0]>} : vector<16x8x8xbf16>, vector<16x16x8xbf16>, vector<16x8x16xf32> -> vector<16x8x16xf32>
    "tpu.trace_stop"() : () -> ()
    %cst_29 = arith.constant dense<0xFF800000> : vector<16x8xf32>
    %94 = vector.multi_reduction <maximumf>, %93, %cst_29 [2] : vector<16x8x16xf32> to vector<16x8xf32>
    %95 = vector.shape_cast %94 : vector<16x8xf32> to vector<16x8x1xf32>
    %96 = vector.broadcast %95 : vector<16x8x1xf32> to vector<16x8x16xf32>
    %97 = arith.subf %93, %96 : vector<16x8x16xf32>
    %98 = math.exp %97 : vector<16x8x16xf32>
    %cst_30 = arith.constant dense<0.000000e+00> : vector<16x8xf32>
    %99 = vector.multi_reduction <add>, %98, %cst_30 [2] : vector<16x8x16xf32> to vector<16x8xf32>
    %100 = vector.shape_cast %99 : vector<16x8xf32> to vector<16x8x1xf32>
    %101 = arith.truncf %98 : vector<16x8x16xf32> to vector<16x8x16xbf16>
    "tpu.trace_start"() <{level = 10 : i32, message = "bqk,bkd->bqd"}> : () -> ()
    %cst_31 = arith.constant dense<0.000000e+00> : vector<16x8x8xf32>
    %102 = tpu.matmul %101, %92, %cst_31 {dimension_numbers = #tpu.dot_dimension_numbers<[2], [1], [1], [2], [0, 0, 0, 1, 1, 2], [0], [0]>} : vector<16x8x16xbf16>, vector<16x16x8xbf16>, vector<16x8x8xf32> -> vector<16x8x8xf32>
    "tpu.trace_stop"() : () -> ()
    %103 = tpu.reciprocal %100 {approx = true} : vector<16x8x1xf32> -> vector<16x8x1xf32>
    %104 = vector.broadcast %103 : vector<16x8x1xf32> to vector<16x8x8xf32>
    %105 = arith.mulf %102, %104 : vector<16x8x8xf32>
    %106 = vector.shape_cast %105 : vector<16x8x8xf32> to vector<128x8xf32>
    %c0_32 = arith.constant 0 : index
    %c24 = arith.constant 24 : index
    %107 = vector.load %arg14[%c0_32, %c24] : memref<128x32xf32, #tpu.memory_space<vmem>>, vector<128x8xf32>
    tpu.vector_store %arg14[%c0_32, %c24], %106 {strides = array<i32>} : memref<128x32xf32, #tpu.memory_space<vmem>>, vector<128x8xf32>,
    %c0_33 = arith.constant 0 : index
    %c0_34 = arith.constant 0 : index
    %108 = vector.load %arg14[%c0_33, %c0_34] : memref<128x32xf32, #tpu.memory_space<vmem>>, vector<128x32xf32>
    %109 = arith.truncf %108 : vector<128x32xf32> to vector<128x32xbf16>
    %c0_35 = arith.constant 0 : index
    %c0_36 = arith.constant 0 : index
    %110 = vector.load %arg7[%c0_35, %c0_36] : memref<32x32xbf16, #tpu.memory_space<vmem>>, vector<32x32xbf16>
    %cst_37 = arith.constant dense<0.000000e+00> : vector<128x32xf32>
    %111 = tpu.matmul %109, %110, %cst_37 {dimension_numbers = #tpu.dot_dimension_numbers<[1], [0], [0], [1], [0, 0, 1, 1], [], []>} : vector<128x32xbf16>, vector<32x32xbf16>, vector<128x32xf32> -> vector<128x32xf32>
    %c0_38 = arith.constant 0 : index
    %c0_39 = arith.constant 0 : index
    %112 = vector.load %arg8[%c0_38, %c0_39] : memref<1x32xf32, #tpu.memory_space<vmem>>, vector<1x32xf32>
    %113 = vector.broadcast %112 : vector<1x32xf32> to vector<128x32xf32>
    %114 = arith.addf %111, %113 : vector<128x32xf32>
    %115 = arith.truncf %114 : vector<128x32xf32> to vector<128x32xbf16>
    %c0_40 = arith.constant 0 : index
    %c0_41 = arith.constant 0 : index
    %116 = vector.load %arg9[%c0_40, %c0_41] : memref<32x64xbf16, #tpu.memory_space<vmem>>, vector<32x64xbf16>
    %cst_42 = arith.constant dense<0.000000e+00> : vector<128x64xf32>
    %117 = tpu.matmul %115, %116, %cst_42 {dimension_numbers = #tpu.dot_dimension_numbers<[1], [0], [0], [1], [0, 0, 1, 1], [], []>} : vector<128x32xbf16>, vector<32x64xbf16>, vector<128x64xf32> -> vector<128x64xf32>
    %c0_43 = arith.constant 0 : index
    %c0_44 = arith.constant 0 : index
    %118 = vector.load %arg10[%c0_43, %c0_44] : memref<1x64xf32, #tpu.memory_space<vmem>>, vector<1x64xf32>
    %119 = vector.broadcast %118 : vector<1x64xf32> to vector<128x64xf32>
    %120 = arith.addf %117, %119 : vector<128x64xf32>
    %cst_45 = arith.constant 0.000000e+00 : f32
    %121 = vector.broadcast %cst_45 : f32 to vector<128x64xf32>
    %122 = arith.maximumf %120, %121 : vector<128x64xf32>
    %123 = arith.truncf %122 : vector<128x64xf32> to vector<128x64xbf16>
    %c0_46 = arith.constant 0 : index
    %c0_47 = arith.constant 0 : index
    %124 = vector.load %arg11[%c0_46, %c0_47] : memref<64x32xbf16, #tpu.memory_space<vmem>>, vector<64x32xbf16>
    %cst_48 = arith.constant dense<0.000000e+00> : vector<128x32xf32>
    %125 = tpu.matmul %123, %124, %cst_48 {dimension_numbers = #tpu.dot_dimension_numbers<[1], [0], [0], [1], [0, 0, 1, 1], [], []>} : vector<128x64xbf16>, vector<64x32xbf16>, vector<128x32xf32> -> vector<128x32xf32>
    %c0_49 = arith.constant 0 : index
    %c0_50 = arith.constant 0 : index
    %126 = vector.load %arg12[%c0_49, %c0_50] : memref<1x32xf32, #tpu.memory_space<vmem>>, vector<1x32xf32>
    %127 = vector.broadcast %126 : vector<1x32xf32> to vector<128x32xf32>
    %128 = arith.addf %125, %127 : vector<128x32xf32>
    %c0_51 = arith.constant 0 : index
    %c0_52 = arith.constant 0 : index
    %129 = vector.load %arg13[%c0_51, %c0_52] : memref<128x32xf32, #tpu.memory_space<vmem>>, vector<128x32xf32>
    tpu.vector_store %arg13[%c0_51, %c0_52], %128 {strides = array<i32>} : memref<128x32xf32, #tpu.memory_space<vmem>>, vector<128x32xf32>,
    return
  }
  func.func @transform_0(%arg0: i32) -> (i32, i32) {
    %c0_i32 = arith.constant 0 : i32
    %c0_i32_0 = arith.constant 0 : i32
    return %arg0, %c0_i32 : i32, i32
  }
  func.func @transform_1(%arg0: i32) -> (i32, i32) {
    %c0_i32 = arith.constant 0 : i32
    %c0_i32_0 = arith.constant 0 : i32
    return %arg0, %c0_i32 : i32, i32
  }
  func.func @transform_2(%arg0: i32) -> (i32, i32) {
    %c0_i32 = arith.constant 0 : i32
    %c0_i32_0 = arith.constant 0 : i32
    %c0_i32_1 = arith.constant 0 : i32
    return %c0_i32, %c0_i32_0 : i32, i32
  }
  func.func @transform_3(%arg0: i32) -> (i32, i32) {
    %c0_i32 = arith.constant 0 : i32
    %c0_i32_0 = arith.constant 0 : i32
    %c0_i32_1 = arith.constant 0 : i32
    return %c0_i32, %c0_i32_0 : i32, i32
  }
  func.func @transform_4(%arg0: i32) -> (i32, i32) {
    %c0_i32 = arith.constant 0 : i32
    %c0_i32_0 = arith.constant 0 : i32
    %c0_i32_1 = arith.constant 0 : i32
    return %c0_i32, %c0_i32_0 : i32, i32
  }
  func.func @transform_5(%arg0: i32) -> (i32, i32) {
    %c0_i32 = arith.constant 0 : i32
    %c0_i32_0 = arith.constant 0 : i32
    %c0_i32_1 = arith.constant 0 : i32
    return %c0_i32, %c0_i32_0 : i32, i32
  }
  func.func @transform_6(%arg0: i32) -> (i32, i32) {
    %c0_i32 = arith.constant 0 : i32
    %c0_i32_0 = arith.constant 0 : i32
    %c0_i32_1 = arith.constant 0 : i32
    return %c0_i32, %c0_i32_0 : i32, i32
  }
  func.func @transform_7(%arg0: i32) -> (i32, i32) {
    %c0_i32 = arith.constant 0 : i32
    %c0_i32_0 = arith.constant 0 : i32
    %c0_i32_1 = arith.constant 0 : i32
    return %c0_i32, %c0_i32_0 : i32, i32
  }
  func.func @transform_8(%arg0: i32) -> (i32, i32) {
    %c0_i32 = arith.constant 0 : i32
    %c0_i32_0 = arith.constant 0 : i32
    %c0_i32_1 = arith.constant 0 : i32
    return %c0_i32, %c0_i32_0 : i32, i32
  }
  func.func @transform_9(%arg0: i32) -> (i32, i32) {
    %c0_i32 = arith.constant 0 : i32
    %c0_i32_0 = arith.constant 0 : i32
    %c0_i32_1 = arith.constant 0 : i32
    return %c0_i32, %c0_i32_0 : i32, i32
  }
  func.func @transform_10(%arg0: i32) -> (i32, i32) {
    %c0_i32 = arith.constant 0 : i32
    %c0_i32_0 = arith.constant 0 : i32
    %c0_i32_1 = arith.constant 0 : i32
    return %c0_i32, %c0_i32_0 : i32, i32
  }
  func.func @transform_11(%arg0: i32) -> (i32, i32) {
    %c0_i32 = arith.constant 0 : i32
    %c0_i32_0 = arith.constant 0 : i32
    %c0_i32_1 = arith.constant 0 : i32
    return %c0_i32, %c0_i32_0 : i32, i32
  }
  func.func @transform_12(%arg0: i32) -> (i32, i32) {
    %c0_i32 = arith.constant 0 : i32
    %c0_i32_0 = arith.constant 0 : i32
    return %arg0, %c0_i32 : i32, i32
  }
}

</mosaic_0001>

<llo_original>
// kernel: tpu_custom_call.1
$region0: #{tpu_custom_call.1}
  #allocation0 [shape = 'u32[]', space=smem, size = 0x4, offset = 0x4, fixed_abs, tag = 'smem constant byte address 0x4 - core index']
  #allocation1 [shape = 'u32[144,128]{1,0:T(1,128)}', space=vmem, size = 0x12000, scoped, tag = 'internal scratch']
  #allocation2 [shape = 'f32[128,32]{1,0:T(8,128)}', space=vmem, size = 0x10000, scoped, tag = 'scratch operand']
  %s0 = inlined_call_operand.vmem [shape: bf16[256,32], index: 0, kind: input, shape index: {}]
  %s1 = inlined_call_operand.vmem [shape: bf16[512,32], index: 1, kind: input, shape index: {}]
  %s2 = inlined_call_operand.vmem [shape: bf16[32,32], index: 2, kind: input, shape index: {}]
  %s3 = inlined_call_operand.vmem [shape: f32[1,32], index: 3, kind: input, shape index: {}]
  %s4 = inlined_call_operand.vmem [shape: bf16[32,64], index: 4, kind: input, shape index: {}]
  %s5 = inlined_call_operand.vmem [shape: f32[1,64], index: 5, kind: input, shape index: {}]
  %s6 = inlined_call_operand.vmem [shape: bf16[32,32], index: 6, kind: input, shape index: {}]
  %s7 = inlined_call_operand.vmem [shape: f32[1,32], index: 7, kind: input, shape index: {}]
  %s8 = inlined_call_operand.vmem [shape: bf16[32,64], index: 8, kind: input, shape index: {}]
  %s9 = inlined_call_operand.vmem [shape: f32[1,64], index: 9, kind: input, shape index: {}]
  %s10 = inlined_call_operand.vmem [shape: bf16[64,32], index: 10, kind: input, shape index: {}]
  %s11 = inlined_call_operand.vmem [shape: f32[1,32], index: 11, kind: input, shape index: {}]
  %s12 = inlined_call_operand.vmem [shape: f32[256,32], index: 12, kind: output, shape index: {}]
  %s13 = sld [smem:[#allocation0]]
  $region81: #{tpu_custom_call.1} parent=0
    _
  %s15 = ssub.s32 1, %s13
  %s16 = scalar_select 0, %s15, %s13
  loop: start=0, step=1, limit=4
  $region2: #{tpu_custom_call.1} parent=0 // loop_pre_header
    _
  $region3: #{tpu_custom_call.1} parent=0 // loop_header
    %s18 = sphi 0, %s22
    %p19 = scmp.ge.s32.totalorder %s18, 4
    %s28 = sphi 0, %s30
    %s31 = sphi 0, %s28
    %s32 = sphi 0, %s31
    %s48 = sphi 0, %s32
    %s54 = sphi 0, %s56
    %s57 = sphi 0, %s54
    %s58 = sphi 0, %s57
    %s74 = sphi 0, %s58
    %s78 = sphi 0, %s78
    %s80 = sphi 0, %s78
    %s81 = sphi 0, %s80
    %s95 = sphi 0, %s81
    %s99 = sphi 0, %s99
    %s101 = sphi 0, %s99
    %s102 = sphi 0, %s101
    %s116 = sphi 0, %s102
    %s120 = sphi 0, %s120
    %s122 = sphi 0, %s120
    %s123 = sphi 0, %s122
    %s137 = sphi 0, %s123
    %s141 = sphi 0, %s141
    %s143 = sphi 0, %s141
    %s144 = sphi 0, %s143
    %s158 = sphi 0, %s144
    %s162 = sphi 0, %s162
    %s164 = sphi 0, %s162
    %s165 = sphi 0, %s164
    %s179 = sphi 0, %s165
    %s183 = sphi 0, %s183
    %s185 = sphi 0, %s183
    %s186 = sphi 0, %s185
    %s200 = sphi 0, %s186
    %s204 = sphi 0, %s204
    %s206 = sphi 0, %s204
    %s207 = sphi 0, %s206
    %s221 = sphi 0, %s207
    %s225 = sphi 0, %s225
    %s227 = sphi 0, %s225
    %s228 = sphi 0, %s227
    %s242 = sphi 0, %s228
    %s246 = sphi 0, %s246
    %s248 = sphi 0, %s246
    %s249 = sphi 0, %s248
    %s263 = sphi 0, %s249
    %s267 = sphi 0, %s267
    %s269 = sphi 0, %s267
    %s270 = sphi 0, %s269
    %s284 = sphi 0, %s270
    %s290 = sphi 0, %s292
    %s293 = sphi 0, %s290
    %s294 = sphi 0, %s293
    %s310 = sphi 0, %s294
  $region4: #{tpu_custom_call.1} parent=0 // loop_header_branch
    %21 = sbr.rel (%p19) target = $region8
  $region5: #{tpu_custom_call.1} parent=0 // loop_body
    %s23 = ssub.s32 %s18, 1
    %s24 = ssub.s32 %s18, 2
    %s25 = sadd.s32 %s18, 1
    %s26 = ssub.s32 %s18, %s25
    %p27 = scmp.eq.s32.totalorder %s26, 0
    %s29 = sadd.s32 %s28, 1
    %s30 = scalar_select %p27, %s28, %s29
    %p33 = pneg %p27
    %p34 = scmp.eq.s32.totalorder %s18, 1
    %p35 = por %p33, %p34
    %p36 = scmp.ne.s32.totalorder %s28, %s31
    %p37 = scmp.eq.s32.totalorder %s18, 0
    %p38 = por %p36, %p37
    %p39 = scmp.ne.s32.totalorder %s28, %s31
    %p40 = scmp.eq.s32.totalorder %s23, 1
    %p41 = por %p39, %p40
    %p42 = scmp.ne.s32.totalorder %s31, %s32
    %p43 = scmp.eq.s32.totalorder %s23, 0
    %p44 = por %p42, %p43
    %p45 = scmp.ne.s32.totalorder %s31, %s32
    %p46 = scmp.eq.s32.totalorder %s24, 1
    %p47 = por %p45, %p46
    %p49 = scmp.ne.s32.totalorder %s32, %s48
    %p50 = scmp.eq.s32.totalorder %s24, 0
    %p51 = por %p49, %p50
    %s52 = ssub.s32 %s18, %s25
    %p53 = scmp.eq.s32.totalorder %s52, 0
    %s55 = sadd.s32 %s54, 1
    %s56 = scalar_select %p53, %s54, %s55
    %p59 = pneg %p53
    %p60 = scmp.eq.s32.totalorder %s18, 1
    %p61 = por %p59, %p60
    %p62 = scmp.ne.s32.totalorder %s54, %s57
    %p63 = scmp.eq.s32.totalorder %s18, 0
    %p64 = por %p62, %p63
    %p65 = scmp.ne.s32.totalorder %s54, %s57
    %p66 = scmp.eq.s32.totalorder %s23, 1
    %p67 = por %p65, %p66
    %p68 = scmp.ne.s32.totalorder %s57, %s58
    %p69 = scmp.eq.s32.totalorder %s23, 0
    %p70 = por %p68, %p69
    %p71 = scmp.ne.s32.totalorder %s57, %s58
    %p72 = scmp.eq.s32.totalorder %s24, 1
    %p73 = por %p71, %p72
    %p75 = scmp.ne.s32.totalorder %s58, %s74
    %p76 = scmp.eq.s32.totalorder %s24, 0
    %p77 = por %p75, %p76
    %s79 = sadd.s32 %s78, 1
    %p82 = scmp.eq.s32.totalorder %s18, 1
    %p83 = scmp.ne.s32.totalorder %s78, %s80
    %p84 = scmp.eq.s32.totalorder %s18, 0
    %p85 = por %p83, %p84
    %p86 = scmp.ne.s32.totalorder %s78, %s80
    %p87 = scmp.eq.s32.totalorder %s23, 1
    %p88 = por %p86, %p87
    %p89 = scmp.ne.s32.totalorder %s80, %s81
    %p90 = scmp.eq.s32.totalorder %s23, 0
    %p91 = por %p89, %p90
    %p92 = scmp.ne.s32.totalorder %s80, %s81
    %p93 = scmp.eq.s32.totalorder %s24, 1
    %p94 = por %p92, %p93
    %p96 = scmp.ne.s32.totalorder %s81, %s95
    %p97 = scmp.eq.s32.totalorder %s24, 0
    %p98 = por %p96, %p97
    %s100 = sadd.s32 %s99, 1
    %p103 = scmp.eq.s32.totalorder %s18, 1
    %p104 = scmp.ne.s32.totalorder %s99, %s101
    %p105 = scmp.eq.s32.totalorder %s18, 0
    %p106 = por %p104, %p105
    %p107 = scmp.ne.s32.totalorder %s99, %s101
    %p108 = scmp.eq.s32.totalorder %s23, 1
    %p109 = por %p107, %p108
    %p110 = scmp.ne.s32.totalorder %s101, %s102
    %p111 = scmp.eq.s32.totalorder %s23, 0
    %p112 = por %p110, %p111
    %p113 = scmp.ne.s32.totalorder %s101, %s102
    %p114 = scmp.eq.s32.totalorder %s24, 1
    %p115 = por %p113, %p114
    %p117 = scmp.ne.s32.totalorder %s102, %s116
    %p118 = scmp.eq.s32.totalorder %s24, 0
    %p119 = por %p117, %p118
    %s121 = sadd.s32 %s120, 1
    %p124 = scmp.eq.s32.totalorder %s18, 1
    %p125 = scmp.ne.s32.totalorder %s120, %s122
    %p126 = scmp.eq.s32.totalorder %s18, 0
    %p127 = por %p125, %p126
    %p128 = scmp.ne.s32.totalorder %s120, %s122
    %p129 = scmp.eq.s32.totalorder %s23, 1
    %p130 = por %p128, %p129
    %p131 = scmp.ne.s32.totalorder %s122, %s123
    %p132 = scmp.eq.s32.totalorder %s23, 0
    %p133 = por %p131, %p132
    %p134 = scmp.ne.s32.totalorder %s122, %s123
    %p135 = scmp.eq.s32.totalorder %s24, 1
    %p136 = por %p134, %p135
    %p138 = scmp.ne.s32.totalorder %s123, %s137
    %p139 = scmp.eq.s32.totalorder %s24, 0
    %p140 = por %p138, %p139
    %s142 = sadd.s32 %s141, 1
    %p145 = scmp.eq.s32.totalorder %s18, 1
    %p146 = scmp.ne.s32.totalorder %s141, %s143
    %p147 = scmp.eq.s32.totalorder %s18, 0
    %p148 = por %p146, %p147
    %p149 = scmp.ne.s32.totalorder %s141, %s143
    %p150 = scmp.eq.s32.totalorder %s23, 1
    %p151 = por %p149, %p150
    %p152 = scmp.ne.s32.totalorder %s143, %s144
    %p153 = scmp.eq.s32.totalorder %s23, 0
    %p154 = por %p152, %p153
    %p155 = scmp.ne.s32.totalorder %s143, %s144
    %p156 = scmp.eq.s32.totalorder %s24, 1
    %p157 = por %p155, %p156
    %p159 = scmp.ne.s32.totalorder %s144, %s158
    %p160 = scmp.eq.s32.totalorder %s24, 0
    %p161 = por %p159, %p160
    %s163 = sadd.s32 %s162, 1
    %p166 = scmp.eq.s32.totalorder %s18, 1
    %p167 = scmp.ne.s32.totalorder %s162, %s164
    %p168 = scmp.eq.s32.totalorder %s18, 0
    %p169 = por %p167, %p168
    %p170 = scmp.ne.s32.totalorder %s162, %s164
    %p171 = scmp.eq.s32.totalorder %s23, 1
    %p172 = por %p170, %p171
    %p173 = scmp.ne.s32.totalorder %s164, %s165
    %p174 = scmp.eq.s32.totalorder %s23, 0
    %p175 = por %p173, %p174
    %p176 = scmp.ne.s32.totalorder %s164, %s165
    %p177 = scmp.eq.s32.totalorder %s24, 1
    %p178 = por %p176, %p177
    %p180 = scmp.ne.s32.totalorder %s165, %s179
    %p181 = scmp.eq.s32.totalorder %s24, 0
    %p182 = por %p180, %p181
    %s184 = sadd.s32 %s183, 1
    %p187 = scmp.eq.s32.totalorder %s18, 1
    %p188 = scmp.ne.s32.totalorder %s183, %s185
    %p189 = scmp.eq.s32.totalorder %s18, 0
    %p190 = por %p188, %p189
    %p191 = scmp.ne.s32.totalorder %s183, %s185
    %p192 = scmp.eq.s32.totalorder %s23, 1
    %p193 = por %p191, %p192
    %p194 = scmp.ne.s32.totalorder %s185, %s186
    %p195 = scmp.eq.s32.totalorder %s23, 0
    %p196 = por %p194, %p195
    %p197 = scmp.ne.s32.totalorder %s185, %s186
    %p198 = scmp.eq.s32.totalorder %s24, 1
    %p199 = por %p197, %p198
    %p201 = scmp.ne.s32.totalorder %s186, %s200
    %p202 = scmp.eq.s32.totalorder %s24, 0
    %p203 = por %p201, %p202
    %s205 = sadd.s32 %s204, 1
    %p208 = scmp.eq.s32.totalorder %s18, 1
    %p209 = scmp.ne.s32.totalorder %s204, %s206
    %p210 = scmp.eq.s32.totalorder %s18, 0
    %p211 = por %p209, %p210
    %p212 = scmp.ne.s32.totalorder %s204, %s206
    %p213 = scmp.eq.s32.totalorder %s23, 1
    %p214 = por %p212, %p213
    %p215 = scmp.ne.s32.totalorder %s206, %s207
    %p216 = scmp.eq.s32.totalorder %s23, 0
    %p217 = por %p215, %p216
    %p218 = scmp.ne.s32.totalorder %s206, %s207
    %p219 = scmp.eq.s32.totalorder %s24, 1
    %p220 = por %p218, %p219
    %p222 = scmp.ne.s32.totalorder %s207, %s221
    %p223 = scmp.eq.s32.totalorder %s24, 0
    %p224 = por %p222, %p223
    %s226 = sadd.s32 %s225, 1
    %p229 = scmp.eq.s32.totalorder %s18, 1
    %p230 = scmp.ne.s32.totalorder %s225, %s227
    %p231 = scmp.eq.s32.totalorder %s18, 0
    %p232 = por %p230, %p231
    %p233 = scmp.ne.s32.totalorder %s225, %s227
    %p234 = scmp.eq.s32.totalorder %s23, 1
    %p235 = por %p233, %p234
    %p236 = scmp.ne.s32.totalorder %s227, %s228
    %p237 = scmp.eq.s32.totalorder %s23, 0
    %p238 = por %p236, %p237
    %p239 = scmp.ne.s32.totalorder %s227, %s228
    %p240 = scmp.eq.s32.totalorder %s24, 1
    %p241 = por %p239, %p240
    %p243 = scmp.ne.s32.totalorder %s228, %s242
    %p244 = scmp.eq.s32.totalorder %s24, 0
    %p245 = por %p243, %p244
    %s247 = sadd.s32 %s246, 1
    %p250 = scmp.eq.s32.totalorder %s18, 1
    %p251 = scmp.ne.s32.totalorder %s246, %s248
    %p252 = scmp.eq.s32.totalorder %s18, 0
    %p253 = por %p251, %p252
    %p254 = scmp.ne.s32.totalorder %s246, %s248
    %p255 = scmp.eq.s32.totalorder %s23, 1
    %p256 = por %p254, %p255
    %p257 = scmp.ne.s32.totalorder %s248, %s249
    %p258 = scmp.eq.s32.totalorder %s23, 0
    %p259 = por %p257, %p258
    %p260 = scmp.ne.s32.totalorder %s248, %s249
    %p261 = scmp.eq.s32.totalorder %s24, 1
    %p262 = por %p260, %p261
    %p264 = scmp.ne.s32.totalorder %s249, %s263
    %p265 = scmp.eq.s32.totalorder %s24, 0
    %p266 = por %p264, %p265
    %s268 = sadd.s32 %s267, 1
    %p271 = scmp.eq.s32.totalorder %s18, 1
    %p272 = scmp.ne.s32.totalorder %s267, %s269
    %p273 = scmp.eq.s32.totalorder %s18, 0
    %p274 = por %p272, %p273
    %p275 = scmp.ne.s32.totalorder %s267, %s269
    %p276 = scmp.eq.s32.totalorder %s23, 1
    %p277 = por %p275, %p276
    %p278 = scmp.ne.s32.totalorder %s269, %s270
    %p279 = scmp.eq.s32.totalorder %s23, 0
    %p280 = por %p278, %p279
    %p281 = scmp.ne.s32.totalorder %s269, %s270
    %p282 = scmp.eq.s32.totalorder %s24, 1
    %p283 = por %p281, %p282
    %p285 = scmp.ne.s32.totalorder %s270, %s284
    %p286 = scmp.eq.s32.totalorder %s24, 0
    %p287 = por %p285, %p286
    %s288 = ssub.s32 %s18, %s25
    %p289 = scmp.eq.s32.totalorder %s288, 0
    %s291 = sadd.s32 %s290, 1
    %s292 = scalar_select %p289, %s290, %s291
    %p295 = pneg %p289
    %p296 = scmp.eq.s32.totalorder %s18, 1
    %p297 = por %p295, %p296
    %p298 = scmp.ne.s32.totalorder %s290, %s293
    %p299 = scmp.eq.s32.totalorder %s18, 0
    %p300 = por %p298, %p299
    %p301 = scmp.ne.s32.totalorder %s290, %s293
    %p302 = scmp.eq.s32.totalorder %s23, 1
    %p303 = por %p301, %p302
    %p304 = scmp.ne.s32.totalorder %s293, %s294
    %p305 = scmp.eq.s32.totalorder %s23, 0
    %p306 = por %p304, %p305
    %p307 = scmp.ne.s32.totalorder %s293, %s294
    %p308 = scmp.eq.s32.totalorder %s24, 1
    %p309 = por %p307, %p308
    %p311 = scmp.ne.s32.totalorder %s294, %s310
    %p312 = scmp.eq.s32.totalorder %s24, 0
    %p313 = por %p311, %p312
    %p314 = scmp.le.s32.totalorder 1, %s18
    %p315 = scmp.lt.s32.totalorder %s18, 3
    %p316 = pnand %p314, %p315
    %p317 = pneg %p316
    // Predicated region
    $region9: #{tpu_custom_call.1} parent=5 // pred_check
      _
    $region10: #{tpu_custom_call.1} parent=5 // pred_check_branch
      %319 = sbr.rel (%p316) target = $region12
    $region11: #{tpu_custom_call.1} parent=5 // pred_region
      %s320 = ssub.s32 %s18, 1
      // Predicated region
      $region13: #{tpu_custom_call.1} parent=11 // pred_check
        %p321 = pneg %p91
      $region14: #{tpu_custom_call.1} parent=11 // pred_check_branch
        %323 = sbr.rel (%p321) target = $region16
      $region15: #{tpu_custom_call.1} parent=11 // pred_region
        _
      $region16: #{tpu_custom_call.1} parent=11 // pred_fallthru
        _
      // Predicated region
      $region17: #{tpu_custom_call.1} parent=11 // pred_check
        %p324 = pneg %p112
      $region18: #{tpu_custom_call.1} parent=11 // pred_check_branch
        %326 = sbr.rel (%p324) target = $region20
      $region19: #{tpu_custom_call.1} parent=11 // pred_region
        _
      $region20: #{tpu_custom_call.1} parent=11 // pred_fallthru
        _
      // Predicated region
      $region21: #{tpu_custom_call.1} parent=11 // pred_check
        %p327 = pneg %p133
      $region22: #{tpu_custom_call.1} parent=11 // pred_check_branch
        %329 = sbr.rel (%p327) target = $region24
      $region23: #{tpu_custom_call.1} parent=11 // pred_region
        _
      $region24: #{tpu_custom_call.1} parent=11 // pred_fallthru
        _
      // Predicated region
      $region25: #{tpu_custom_call.1} parent=11 // pred_check
        %p330 = pneg %p154
      $region26: #{tpu_custom_call.1} parent=11 // pred_check_branch
        %332 = sbr.rel (%p330) target = $region28
      $region27: #{tpu_custom_call.1} parent=11 // pred_region
        _
      $region28: #{tpu_custom_call.1} parent=11 // pred_fallthru
        _
      // Predicated region
      $region29: #{tpu_custom_call.1} parent=11 // pred_check
        %p333 = pneg %p175
      $region30: #{tpu_custom_call.1} parent=11 // pred_check_branch
        %335 = sbr.rel (%p333) target = $region32
      $region31: #{tpu_custom_call.1} parent=11 // pred_region
        _
      $region32: #{tpu_custom_call.1} parent=11 // pred_fallthru
        _
      // Predicated region
      $region33: #{tpu_custom_call.1} parent=11 // pred_check
        %p336 = pneg %p196
      $region34: #{tpu_custom_call.1} parent=11 // pred_check_branch
        %338 = sbr.rel (%p336) target = $region36
      $region35: #{tpu_custom_call.1} parent=11 // pred_region
        _
      $region36: #{tpu_custom_call.1} parent=11 // pred_fallthru
        _
      // Predicated region
      $region37: #{tpu_custom_call.1} parent=11 // pred_check
        %p339 = pneg %p217
      $region38: #{tpu_custom_call.1} parent=11 // pred_check_branch
        %341 = sbr.rel (%p339) target = $region40
      $region39: #{tpu_custom_call.1} parent=11 // pred_region
        _
      $region40: #{tpu_custom_call.1} parent=11 // pred_fallthru
        _
      // Predicated region
      $region41: #{tpu_custom_call.1} parent=11 // pred_check
        %p342 = pneg %p238
      $region42: #{tpu_custom_call.1} parent=11 // pred_check_branch
        %344 = sbr.rel (%p342) target = $region44
      $region43: #{tpu_custom_call.1} parent=11 // pred_region
        _
      $region44: #{tpu_custom_call.1} parent=11 // pred_fallthru
        _
      // Predicated region
      $region45: #{tpu_custom_call.1} parent=11 // pred_check
        %p345 = pneg %p259
      $region46: #{tpu_custom_call.1} parent=11 // pred_check_branch
        %347 = sbr.rel (%p345) target = $region48
      $region47: #{tpu_custom_call.1} parent=11 // pred_region
        _
      $region48: #{tpu_custom_call.1} parent=11 // pred_fallthru
        _
      // Predicated region
      $region49: #{tpu_custom_call.1} parent=11 // pred_check
        %p348 = pneg %p280
      $region50: #{tpu_custom_call.1} parent=11 // pred_check_branch
        %350 = sbr.rel (%p348) target = $region52
      $region51: #{tpu_custom_call.1} parent=11 // pred_region
        _
      $region52: #{tpu_custom_call.1} parent=11 // pred_fallthru
        _
    $region12: #{tpu_custom_call.1} parent=5 // pred_fallthru
      _
    %p351 = scmp.lt.s32.totalorder %s18, 2
    // Predicated region
    $region53: #{tpu_custom_call.1} parent=5 // pred_check
      %p352 = pneg %p351
    $region54: #{tpu_custom_call.1} parent=5 // pred_check_branch
      %354 = sbr.rel (%p352) target = $region56
    $region55: #{tpu_custom_call.1} parent=5 // pred_region
      // Predicated region
      $region57: #{tpu_custom_call.1} parent=55 // pred_check
        %p355 = pneg %p38
      $region58: #{tpu_custom_call.1} parent=55 // pred_check_branch
        %357 = sbr.rel (%p355) target = $region60
      $region59: #{tpu_custom_call.1} parent=55 // pred_region
        %s358 = smul.u32 16, %s18
        %p359 = scmp.lt.s32.totalorder %s358, 31
        %s360 = scalar_select %p359, %s358, 31
        %s361 = smul.addr %s360, 4
        %s362 = scalar_lea.vmem %s0, %s361
        %s363 = smul.u32 16, %s18
      $region60: #{tpu_custom_call.1} parent=55 // pred_fallthru
        _
      // Predicated region
      $region61: #{tpu_custom_call.1} parent=55 // pred_check
        %p364 = pneg %p64
      $region62: #{tpu_custom_call.1} parent=55 // pred_check_branch
        %366 = sbr.rel (%p364) target = $region64
      $region63: #{tpu_custom_call.1} parent=55 // pred_region
        %s367 = smul.u32 32, %s18
        %p368 = scmp.lt.s32.totalorder %s367, 63
        %s369 = scalar_select %p368, %s367, 63
        %s370 = smul.addr %s369, 4
        %s371 = scalar_lea.vmem %s1, %s370
        %s372 = smul.u32 32, %s18
      $region64: #{tpu_custom_call.1} parent=55 // pred_fallthru
        _
    $region56: #{tpu_custom_call.1} parent=5 // pred_fallthru
      _
    %p373 = scmp.le.s32.totalorder 1, %s18
    %p374 = scmp.lt.s32.totalorder %s18, 3
    %p375 = pnand %p373, %p374
    %p376 = pneg %p375
    // Predicated region
    $region65: #{tpu_custom_call.1} parent=5 // pred_check
      _
    $region66: #{tpu_custom_call.1} parent=5 // pred_check_branch
      %378 = sbr.rel (%p375) target = $region68
    $region67: #{tpu_custom_call.1} parent=5 // pred_region
      %s379 = ssub.s32 %s18, 1
      %s380 = smul.u32 16, %s23
      %p381 = scmp.lt.s32.totalorder %s380, 31
      %s382 = scalar_select %p381, %s380, 31
      %s383 = smul.addr %s382, 4
      %s384 = scalar_lea.vmem %s0, %s383
      %p385 = pneg %p44
      %p386 = pneg %p41
      %s387 = smul.u32 32, %s23
      %p388 = scmp.lt.s32.totalorder %s387, 63
      %s389 = scalar_select %p388, %s387, 63
      %s390 = smul.addr %s389, 4
      %s391 = scalar_lea.vmem %s1, %s390
      %p392 = pneg %p70
      %p393 = pneg %p67
      %p394 = pneg %p91
      %p395 = pneg %p88
      %p396 = pneg %p112
      %p397 = pneg %p109
      %p398 = pneg %p133
      %p399 = pneg %p130
      %p400 = pneg %p154
      %p401 = pneg %p151
      %p402 = pneg %p175
      %p403 = pneg %p172
      %p404 = pneg %p196
      %p405 = pneg %p193
      %p406 = pneg %p217
      %p407 = pneg %p214
      %p408 = pneg %p238
      %p409 = pneg %p235
      %p410 = pneg %p259
      %p411 = pneg %p256
      %p412 = pneg %p280
      %p413 = pneg %p277
      %p414 = pneg %p306
      %p415 = pneg %p303
      %s416 = smul.u32 16, %s23
      %p417 = scmp.lt.s32.totalorder %s416, 31
      %s418 = scalar_select %p417, %s416, 31
      %s419 = smul.addr %s418, 8
      %s420 = scalar_lea.vmem %s12, %s419
      %s421 = smul.u32 16, %s23
      %p422 = scmp.lt.s32.totalorder %s421, 31
      %s423 = scalar_select %p422, %s421, 31
      %s424 = smul.addr %s423, 4
      %s425 = scalar_lea.vmem %s0, %s424
      %s426 = smul.u32 16, %s23
      %s427 = smul.u32 32, %s23
      %p428 = scmp.lt.s32.totalorder %s427, 63
      %s429 = scalar_select %p428, %s427, 63
      %s430 = smul.addr %s429, 4
      %s431 = scalar_lea.vmem %s1, %s430
      %s432 = smul.u32 32, %s23
      %s433 = smul.u32 16, %s23
      %p434 = scmp.lt.s32.totalorder %s433, 31
      %s435 = scalar_select %p434, %s433, 31
      %s436 = smul.addr %s435, 8
      %s437 = scalar_lea.vmem %s12, %s436
      %s438 = smul.u32 16, %s23
      %v440 = vld [vmem:[%s425] sm:$0xf]
      %v441 = vld [vmem:[%s425 + $0x4] sm:$0xf]
      %v442 = vld [vmem:[%s425 + $0x8] sm:$0xf]
      %v443 = vld [vmem:[%s425 + $0xc] sm:$0xf]
      %v444 = vld [vmem:[%s425 + $0x10] sm:$0xf]
      %v445 = vld [vmem:[%s425 + $0x14] sm:$0xf]
      %v446 = vld [vmem:[%s425 + $0x18] sm:$0xf]
      %v447 = vld [vmem:[%s425 + $0x1c] sm:$0xf]
      %v448 = vld [vmem:[%s425 + $0x20] sm:$0xf]
      %v449 = vld [vmem:[%s425 + $0x24] sm:$0xf]
      %v450 = vld [vmem:[%s425 + $0x28] sm:$0xf]
      %v451 = vld [vmem:[%s425 + $0x2c] sm:$0xf]
      %v452 = vld [vmem:[%s425 + $0x30] sm:$0xf]
      %v453 = vld [vmem:[%s425 + $0x34] sm:$0xf]
      %v454 = vld [vmem:[%s425 + $0x38] sm:$0xf]
      %v455 = vld [vmem:[%s425 + $0x3c] sm:$0xf]
      %v456 = vld [vmem:[%s431] sm:$0xf]
      %v457 = vld [vmem:[%s431 + $0x4] sm:$0xf]
      %v458 = vld [vmem:[%s431 + $0x8] sm:$0xf]
      %v459 = vld [vmem:[%s431 + $0xc] sm:$0xf]
      %v460 = vld [vmem:[%s431 + $0x10] sm:$0xf]
      %v461 = vld [vmem:[%s431 + $0x14] sm:$0xf]
      %v462 = vld [vmem:[%s431 + $0x18] sm:$0xf]
      %v463 = vld [vmem:[%s431 + $0x1c] sm:$0xf]
      %v464 = vld [vmem:[%s431 + $0x20] sm:$0xf]
      %v465 = vld [vmem:[%s431 + $0x24] sm:$0xf]
      %v466 = vld [vmem:[%s431 + $0x28] sm:$0xf]
      %v467 = vld [vmem:[%s431 + $0x2c] sm:$0xf]
      %v468 = vld [vmem:[%s431 + $0x30] sm:$0xf]
      %v469 = vld [vmem:[%s431 + $0x34] sm:$0xf]
      %v470 = vld [vmem:[%s431 + $0x38] sm:$0xf]
      %v471 = vld [vmem:[%s431 + $0x3c] sm:$0xf]
      %v472 = vld [vmem:[%s431 + $0x40] sm:$0xf]
      %v473 = vld [vmem:[%s431 + $0x44] sm:$0xf]
      %v474 = vld [vmem:[%s431 + $0x48] sm:$0xf]
      %v475 = vld [vmem:[%s431 + $0x4c] sm:$0xf]
      %v476 = vld [vmem:[%s431 + $0x50] sm:$0xf]
      %v477 = vld [vmem:[%s431 + $0x54] sm:$0xf]
      %v478 = vld [vmem:[%s431 + $0x58] sm:$0xf]
      %v479 = vld [vmem:[%s431 + $0x5c] sm:$0xf]
      %v480 = vld [vmem:[%s431 + $0x60] sm:$0xf]
      %v481 = vld [vmem:[%s431 + $0x64] sm:$0xf]
      %v482 = vld [vmem:[%s431 + $0x68] sm:$0xf]
      %v483 = vld [vmem:[%s431 + $0x6c] sm:$0xf]
      %v484 = vld [vmem:[%s431 + $0x70] sm:$0xf]
      %v485 = vld [vmem:[%s431 + $0x74] sm:$0xf]
      %v486 = vld [vmem:[%s431 + $0x78] sm:$0xf]
      %v487 = vld [vmem:[%s431 + $0x7c] sm:$0xf]
      %v488 = vld [vmem:[%s2] sm:$0xf]
      %v489 = vld [vmem:[%s2 + $0x4] sm:$0xf]
      %v490 = vld [vmem:[%s2 + $0x8] sm:$0xf]
      %v491 = vld [vmem:[%s2 + $0xc] sm:$0xf]
      %v492 = vld [vmem:[%s3] sm:$0x1]
      %v494 = vlaneseq
      %v495 = vshrl.u32 %v494, 7
      %v496 = vsub.s32 0, %v495
      %v497 = vrot.slane %v492, %v496
      %v515 = vunpack.c.l.b16 %v440
      %v516 = vunpack.c.l.b16 %v441
      %v517 = vunpack.c.l.b16 %v442
      %v518 = vunpack.c.l.b16 %v443
      %v519 = vunpack.c.l.b16 %v444
      %v520 = vunpack.c.l.b16 %v445
      %v521 = vunpack.c.l.b16 %v446
      %v522 = vunpack.c.l.b16 %v447
      %v523 = vunpack.c.l.b16 %v448
      %v524 = vunpack.c.l.b16 %v449
      %v525 = vunpack.c.l.b16 %v450
      %v526 = vunpack.c.l.b16 %v451
      %v527 = vunpack.c.l.b16 %v452
      %v528 = vunpack.c.l.b16 %v453
      %v529 = vunpack.c.l.b16 %v454
      %v530 = vunpack.c.l.b16 %v455
      %v531 = vpack.c.b16 %v516, %v515
      %v532 = vpack.c.b16 %v518, %v517
      %v533 = vpack.c.b16 %v520, %v519
      %v534 = vpack.c.b16 %v522, %v521
      %v535 = vpack.c.b16 %v524, %v523
      %v536 = vpack.c.b16 %v526, %v525
      %v537 = vpack.c.b16 %v528, %v527
      %v538 = vpack.c.b16 %v530, %v529
      %v543 = vunpack.c.l.b16 %v488
      %v544 = vunpack.c.l.b16 %v489
      %v545 = vunpack.c.l.b16 %v490
      %v546 = vunpack.c.l.b16 %v491
      %v547 = vpack.c.b16 %v544, %v543
      %v548 = vpack.c.b16 %v546, %v545
      %vm551 = vcmask 261120
      %v553 = vsel %vm551, %v531, 0
      %v556 = vsel %vm551, %v532, 0
      %v559 = vsel %vm551, %v533, 0
      %v562 = vsel %vm551, %v534, 0
      %v565 = vsel %vm551, %v535, 0
      %v568 = vsel %vm551, %v536, 0
      %v571 = vsel %vm551, %v537, 0
      %v574 = vsel %vm551, %v538, 0
      %576 = vmatprep.subr.bf16.mxu0 0
      %577 = vmatpush1.bf16.msra.mxu0 0
      %578 = vmatprep.subr.bf16.mxu0 0
      %579 = vmatpush1.bf16.msra.mxu0 0
      %580 = vmatprep.subr.bf16.mxu0 0
      %581 = vmatpush1.bf16.msra.mxu0 0
      %582 = vmatprep.subr.bf16.mxu0 0
      %583 = vmatpush1.bf16.msra.mxu0 0
      %584 = vmatprep.subr.bf16.mxu0 0
      %585 = vmatpush1.bf16.msra.mxu0 0
      %586 = vmatprep.subr.bf16.mxu0 0
      %587 = vmatpush1.bf16.msra.mxu0 0
      %588 = vmatprep.subr.bf16.mxu0 0
      %589 = vmatpush1.bf16.msra.mxu0 %v548
      %590 = vmatprep.subr.bf16.mxu0 0
      %591 = vmatpush1.bf16.msra.mxu0 %v547
      %592 = vmatprep.subr.bf16.mxu0 0
      %593 = vmatpush2.bf16.msra.mxu0 0
      %594 = vmatprep.subr.bf16.mxu0 0
      %595 = vmatpush2.bf16.msra.mxu0 0
      %596 = vmatprep.subr.bf16.mxu0 0
      %597 = vmatpush2.bf16.msra.mxu0 0
      %598 = vmatprep.subr.bf16.mxu0 0
      %599 = vmatpush2.bf16.msra.mxu0 0
      %600 = vmatprep.subr.bf16.mxu0 0
      %601 = vmatpush2.bf16.msra.mxu0 0
      %602 = vmatprep.subr.bf16.mxu0 0
      %603 = vmatpush2.bf16.msra.mxu0 0
      %604 = vmatprep.subr.bf16.mxu0 0
      %605 = vmatpush2.bf16.msra.mxu0 0
      %606 = vmatprep.subr.bf16.mxu0 0
      %607 = vmatpush2.bf16.msra.mxu0 0
      %608 = vmatprep.mubr.bf16.mxu0 0
      %609 = vmatmul.mubr.bf16.gmra.mxu0 %v553
      %v610 = vpop.f32.mrf.mxu0
      %v611 = vadd.f32 %v497, %v610
      %v612 = vpop.f32.mrf.mxu0
      %v613 = vpop.f32.mrf.mxu0
      %v614 = vadd.f32 %v497, %v613
      %v615 = vpop.f32.mrf.mxu0
      %616 = vmatprep.mubr.bf16.mxu0 0
      %617 = vmatmul.mubr.bf16.gmra.mxu0 %v556
      %v618 = vpop.f32.mrf.mxu0
      %v619 = vadd.f32 %v497, %v618
      %v620 = vpop.f32.mrf.mxu0
      %v621 = vpop.f32.mrf.mxu0
      %v622 = vadd.f32 %v497, %v621
      %v623 = vpop.f32.mrf.mxu0
      %624 = vmatprep.mubr.bf16.mxu0 0
      %625 = vmatmul.mubr.bf16.gmra.mxu0 %v559
      %v626 = vpop.f32.mrf.mxu0
      %v627 = vadd.f32 %v497, %v626
      %v628 = vpop.f32.mrf.mxu0
      %v629 = vpop.f32.mrf.mxu0
      %v630 = vadd.f32 %v497, %v629
      %v631 = vpop.f32.mrf.mxu0
      %632 = vmatprep.mubr.bf16.mxu0 0
      %633 = vmatmul.mubr.bf16.gmra.mxu0 %v562
      %v634 = vpop.f32.mrf.mxu0
      %v635 = vadd.f32 %v497, %v634
      %v636 = vpop.f32.mrf.mxu0
      %v637 = vpop.f32.mrf.mxu0
      %v638 = vadd.f32 %v497, %v637
      %v639 = vpop.f32.mrf.mxu0
      %640 = vmatprep.mubr.bf16.mxu0 0
      %641 = vmatmul.mubr.bf16.gmra.mxu0 %v565
      %v642 = vpop.f32.mrf.mxu0
      %v643 = vadd.f32 %v497, %v642
      %v644 = vpop.f32.mrf.mxu0
      %v645 = vpop.f32.mrf.mxu0
      %v646 = vadd.f32 %v497, %v645
      %v647 = vpop.f32.mrf.mxu0
      %648 = vmatprep.mubr.bf16.mxu0 0
      %649 = vmatmul.mubr.bf16.gmra.mxu0 %v568
      %v650 = vpop.f32.mrf.mxu0
      %v651 = vadd.f32 %v497, %v650
      %v652 = vpop.f32.mrf.mxu0
      %v653 = vpop.f32.mrf.mxu0
      %v654 = vadd.f32 %v497, %v653
      %v655 = vpop.f32.mrf.mxu0
      %656 = vmatprep.mubr.bf16.mxu0 0
      %657 = vmatmul.mubr.bf16.gmra.mxu0 %v571
      %v658 = vpop.f32.mrf.mxu0
      %v659 = vadd.f32 %v497, %v658
      %v660 = vpop.f32.mrf.mxu0
      %v661 = vpop.f32.mrf.mxu0
      %v662 = vadd.f32 %v497, %v661
      %v663 = vpop.f32.mrf.mxu0
      %664 = vmatprep.mubr.bf16.mxu0 0
      %665 = vmatmul.mubr.bf16.gmra.mxu0 %v574
      %v666 = vpop.f32.mrf.mxu0
      %v667 = vadd.f32 %v497, %v666
      %v668 = vpop.f32.mrf.mxu0
      %v669 = vpop.f32.mrf.mxu0
      %v670 = vadd.f32 %v497, %v669
      %v671 = vpop.f32.mrf.mxu0
      %672 = vdwg.mxu0
      %v673 = vld [vmem:[%s4] sm:$0xf]
      %v674 = vld [vmem:[%s4 + $0x4] sm:$0xf]
      %v675 = vld [vmem:[%s4 + $0x8] sm:$0xf]
      %v676 = vld [vmem:[%s4 + $0xc] sm:$0xf]
      %v677 = vld [vmem:[%s5] sm:$0x1]
      %v679 = vlaneseq
      %v680 = vshrl.u32 %v679, 7
      %v681 = vsub.s32 0, %v680
      %v682 = vrot.slane %v677, %v681
      %v716 = vunpack.c.l.b16 %v456
      %v717 = vunpack.c.l.b16 %v457
      %v718 = vunpack.c.l.b16 %v458
      %v719 = vunpack.c.l.b16 %v459
      %v720 = vunpack.c.l.b16 %v460
      %v721 = vunpack.c.l.b16 %v461
      %v722 = vunpack.c.l.b16 %v462
      %v723 = vunpack.c.l.b16 %v463
      %v724 = vunpack.c.l.b16 %v464
      %v725 = vunpack.c.l.b16 %v465
      %v726 = vunpack.c.l.b16 %v466
      %v727 = vunpack.c.l.b16 %v467
      %v728 = vunpack.c.l.b16 %v468
      %v729 = vunpack.c.l.b16 %v469
      %v730 = vunpack.c.l.b16 %v470
      %v731 = vunpack.c.l.b16 %v471
      %v732 = vunpack.c.l.b16 %v472
      %v733 = vunpack.c.l.b16 %v473
      %v734 = vunpack.c.l.b16 %v474
      %v735 = vunpack.c.l.b16 %v475
      %v736 = vunpack.c.l.b16 %v476
      %v737 = vunpack.c.l.b16 %v477
      %v738 = vunpack.c.l.b16 %v478
      %v739 = vunpack.c.l.b16 %v479
      %v740 = vunpack.c.l.b16 %v480
      %v741 = vunpack.c.l.b16 %v481
      %v742 = vunpack.c.l.b16 %v482
      %v743 = vunpack.c.l.b16 %v483
      %v744 = vunpack.c.l.b16 %v484
      %v745 = vunpack.c.l.b16 %v485
      %v746 = vunpack.c.l.b16 %v486
      %v747 = vunpack.c.l.b16 %v487
      %v748 = vpack.c.b16 %v717, %v716
      %v749 = vpack.c.b16 %v719, %v718
      %v750 = vpack.c.b16 %v721, %v720
      %v751 = vpack.c.b16 %v723, %v722
      %v752 = vpack.c.b16 %v725, %v724
      %v753 = vpack.c.b16 %v727, %v726
      %v754 = vpack.c.b16 %v729, %v728
      %v755 = vpack.c.b16 %v731, %v730
      %v756 = vpack.c.b16 %v733, %v732
      %v757 = vpack.c.b16 %v735, %v734
      %v758 = vpack.c.b16 %v737, %v736
      %v759 = vpack.c.b16 %v739, %v738
      %v760 = vpack.c.b16 %v741, %v740
      %v761 = vpack.c.b16 %v743, %v742
      %v762 = vpack.c.b16 %v745, %v744
      %v763 = vpack.c.b16 %v747, %v746
      %v768 = vunpack.c.l.b16 %v673
      %v769 = vunpack.c.l.b16 %v674
      %v770 = vunpack.c.l.b16 %v675
      %v771 = vunpack.c.l.b16 %v676
      %v772 = vpack.c.b16 %v769, %v768
      %v773 = vpack.c.b16 %v771, %v770
      %v777 = vsel %vm551, %v748, 0
      %v780 = vsel %vm551, %v749, 0
      %v783 = vsel %vm551, %v750, 0
      %v786 = vsel %vm551, %v751, 0
      %v789 = vsel %vm551, %v752, 0
      %v792 = vsel %vm551, %v753, 0
      %v795 = vsel %vm551, %v754, 0
      %v798 = vsel %vm551, %v755, 0
      %v801 = vsel %vm551, %v756, 0
      %v804 = vsel %vm551, %v757, 0
      %v807 = vsel %vm551, %v758, 0
      %v810 = vsel %vm551, %v759, 0
      %v813 = vsel %vm551, %v760, 0
      %v816 = vsel %vm551, %v761, 0
      %v819 = vsel %vm551, %v762, 0
      %v822 = vsel %vm551, %v763, 0
      %824 = vmatprep.subr.bf16.mxu0 0
      %825 = vmatpush1.bf16.msra.mxu0 0
      %826 = vmatprep.subr.bf16.mxu0 0
      %827 = vmatpush1.bf16.msra.mxu0 0
      %828 = vmatprep.subr.bf16.mxu0 0
      %829 = vmatpush1.bf16.msra.mxu0 0
      %830 = vmatprep.subr.bf16.mxu0 0
      %831 = vmatpush1.bf16.msra.mxu0 0
      %832 = vmatprep.subr.bf16.mxu0 0
      %833 = vmatpush1.bf16.msra.mxu0 0
      %834 = vmatprep.subr.bf16.mxu0 0
      %835 = vmatpush1.bf16.msra.mxu0 0
      %836 = vmatprep.subr.bf16.mxu0 0
      %837 = vmatpush1.bf16.msra.mxu0 %v773
      %838 = vmatprep.subr.bf16.mxu0 0
      %839 = vmatpush1.bf16.msra.mxu0 %v772
      %840 = vmatprep.subr.bf16.mxu0 0
      %841 = vmatpush2.bf16.msra.mxu0 0
      %842 = vmatprep.subr.bf16.mxu0 0
      %843 = vmatpush2.bf16.msra.mxu0 0
      %844 = vmatprep.subr.bf16.mxu0 0
      %845 = vmatpush2.bf16.msra.mxu0 0
      %846 = vmatprep.subr.bf16.mxu0 0
      %847 = vmatpush2.bf16.msra.mxu0 0
      %848 = vmatprep.subr.bf16.mxu0 0
      %849 = vmatpush2.bf16.msra.mxu0 0
      %850 = vmatprep.subr.bf16.mxu0 0
      %851 = vmatpush2.bf16.msra.mxu0 0
      %852 = vmatprep.subr.bf16.mxu0 0
      %853 = vmatpush2.bf16.msra.mxu0 0
      %854 = vmatprep.subr.bf16.mxu0 0
      %855 = vmatpush2.bf16.msra.mxu0 0
      %856 = vmatprep.mubr.bf16.mxu0 0
      %857 = vmatmul.mubr.bf16.gmra.mxu0 %v777
      %v858 = vpop.f32.mrf.mxu0
      %v859 = vadd.f32 %v682, %v858
      %v860 = vpop.f32.mrf.mxu0
      %v861 = vpop.f32.mrf.mxu0
      %v862 = vadd.f32 %v682, %v861
      %v863 = vpop.f32.mrf.mxu0
      %864 = vmatprep.mubr.bf16.mxu0 0
      %865 = vmatmul.mubr.bf16.gmra.mxu0 %v780
      %v866 = vpop.f32.mrf.mxu0
      %v867 = vadd.f32 %v682, %v866
      %v868 = vpop.f32.mrf.mxu0
      %v869 = vpop.f32.mrf.mxu0
      %v870 = vadd.f32 %v682, %v869
      %v871 = vpop.f32.mrf.mxu0
      %872 = vmatprep.mubr.bf16.mxu0 0
      %873 = vmatmul.mubr.bf16.gmra.mxu0 %v783
      %v874 = vpop.f32.mrf.mxu0
      %v875 = vadd.f32 %v682, %v874
      %v876 = vpop.f32.mrf.mxu0
      %v877 = vpop.f32.mrf.mxu0
      %v878 = vadd.f32 %v682, %v877
      %v879 = vpop.f32.mrf.mxu0
      %880 = vmatprep.mubr.bf16.mxu0 0
      %881 = vmatmul.mubr.bf16.gmra.mxu0 %v786
      %v882 = vpop.f32.mrf.mxu0
      %v883 = vadd.f32 %v682, %v882
      %v884 = vpop.f32.mrf.mxu0
      %v885 = vpop.f32.mrf.mxu0
      %v886 = vadd.f32 %v682, %v885
      %v887 = vpop.f32.mrf.mxu0
      %888 = vmatprep.mubr.bf16.mxu0 0
      %889 = vmatmul.mubr.bf16.gmra.mxu0 %v789
      %v890 = vpop.f32.mrf.mxu0
      %v891 = vadd.f32 %v682, %v890
      %v892 = vpop.f32.mrf.mxu0
      %v893 = vpop.f32.mrf.mxu0
      %v894 = vadd.f32 %v682, %v893
      %v895 = vpop.f32.mrf.mxu0
      %896 = vmatprep.mubr.bf16.mxu0 0
      %897 = vmatmul.mubr.bf16.gmra.mxu0 %v792
      %v898 = vpop.f32.mrf.mxu0
      %v899 = vadd.f32 %v682, %v898
      %v900 = vpop.f32.mrf.mxu0
      %v901 = vpop.f32.mrf.mxu0
      %v902 = vadd.f32 %v682, %v901
      %v903 = vpop.f32.mrf.mxu0
      %904 = vmatprep.mubr.bf16.mxu0 0
      %905 = vmatmul.mubr.bf16.gmra.mxu0 %v795
      %v906 = vpop.f32.mrf.mxu0
      %v907 = vadd.f32 %v682, %v906
      %v908 = vpop.f32.mrf.mxu0
      %v909 = vpop.f32.mrf.mxu0
      %v910 = vadd.f32 %v682, %v909
      %v911 = vpop.f32.mrf.mxu0
      %912 = vmatprep.mubr.bf16.mxu0 0
      %913 = vmatmul.mubr.bf16.gmra.mxu0 %v798
      %v914 = vpop.f32.mrf.mxu0
      %v915 = vadd.f32 %v682, %v914
      %v916 = vpop.f32.mrf.mxu0
      %v917 = vpop.f32.mrf.mxu0
      %v918 = vadd.f32 %v682, %v917
      %v919 = vpop.f32.mrf.mxu0
      %920 = vmatprep.mubr.bf16.mxu0 0
      %921 = vmatmul.mubr.bf16.gmra.mxu0 %v801
      %v922 = vpop.f32.mrf.mxu0
      %v923 = vadd.f32 %v682, %v922
      %v924 = vpop.f32.mrf.mxu0
      %v925 = vpop.f32.mrf.mxu0
      %v926 = vadd.f32 %v682, %v925
      %v927 = vpop.f32.mrf.mxu0
      %928 = vmatprep.mubr.bf16.mxu0 0
      %929 = vmatmul.mubr.bf16.gmra.mxu0 %v804
      %v930 = vpop.f32.mrf.mxu0
      %v931 = vadd.f32 %v682, %v930
      %v932 = vpop.f32.mrf.mxu0
      %v933 = vpop.f32.mrf.mxu0
      %v934 = vadd.f32 %v682, %v933
      %v935 = vpop.f32.mrf.mxu0
      %936 = vmatprep.mubr.bf16.mxu0 0
      %937 = vmatmul.mubr.bf16.gmra.mxu0 %v807
      %v938 = vpop.f32.mrf.mxu0
      %v939 = vadd.f32 %v682, %v938
      %v940 = vpop.f32.mrf.mxu0
      %v941 = vpop.f32.mrf.mxu0
      %v942 = vadd.f32 %v682, %v941
      %v943 = vpop.f32.mrf.mxu0
      %944 = vmatprep.mubr.bf16.mxu0 0
      %945 = vmatmul.mubr.bf16.gmra.mxu0 %v810
      %v946 = vpop.f32.mrf.mxu0
      %v947 = vadd.f32 %v682, %v946
      %v948 = vpop.f32.mrf.mxu0
      %v949 = vpop.f32.mrf.mxu0
      %v950 = vadd.f32 %v682, %v949
      %v951 = vpop.f32.mrf.mxu0
      %952 = vmatprep.mubr.bf16.mxu0 0
      %953 = vmatmul.mubr.bf16.gmra.mxu0 %v813
      %v954 = vpop.f32.mrf.mxu0
      %v955 = vadd.f32 %v682, %v954
      %v956 = vpop.f32.mrf.mxu0
      %v957 = vpop.f32.mrf.mxu0
      %v958 = vadd.f32 %v682, %v957
      %v959 = vpop.f32.mrf.mxu0
      %960 = vmatprep.mubr.bf16.mxu0 0
      %961 = vmatmul.mubr.bf16.gmra.mxu0 %v816
      %v962 = vpop.f32.mrf.mxu0
      %v963 = vadd.f32 %v682, %v962
      %v964 = vpop.f32.mrf.mxu0
      %v965 = vpop.f32.mrf.mxu0
      %v966 = vadd.f32 %v682, %v965
      %v967 = vpop.f32.mrf.mxu0
      %968 = vmatprep.mubr.bf16.mxu0 0
      %969 = vmatmul.mubr.bf16.gmra.mxu0 %v819
      %v970 = vpop.f32.mrf.mxu0
      %v971 = vadd.f32 %v682, %v970
      %v972 = vpop.f32.mrf.mxu0
      %v973 = vpop.f32.mrf.mxu0
      %v974 = vadd.f32 %v682, %v973
      %v975 = vpop.f32.mrf.mxu0
      %976 = vmatprep.mubr.bf16.mxu0 0
      %977 = vmatmul.mubr.bf16.gmra.mxu0 %v822
      %v978 = vpop.f32.mrf.mxu0
      %v979 = vadd.f32 %v682, %v978
      %v980 = vpop.f32.mrf.mxu0
      %v981 = vpop.f32.mrf.mxu0
      %v982 = vadd.f32 %v682, %v981
      %v983 = vpop.f32.mrf.mxu0
      %984 = vdwg.mxu0
      %v985 = vpack.c.bf16 %v614, %v611
      %v986 = vpack.c.bf16 %v622, %v619
      %v987 = vpack.c.bf16 %v630, %v627
      %v988 = vpack.c.bf16 %v638, %v635
      %v989 = vpack.c.bf16 %v646, %v643
      %v990 = vpack.c.bf16 %v654, %v651
      %v991 = vpack.c.bf16 %v662, %v659
      %v992 = vpack.c.bf16 %v670, %v667
      %v1001 = vunpack.c.l.b16 %v985
      %v1002 = vunpack.c.h.b16 %v985
      %v1003 = vunpack.c.l.b16 %v986
      %v1004 = vunpack.c.h.b16 %v986
      %v1005 = vunpack.c.l.b16 %v987
      %v1006 = vunpack.c.h.b16 %v987
      %v1007 = vunpack.c.l.b16 %v988
      %v1008 = vunpack.c.h.b16 %v988
      %v1009 = vunpack.c.l.b16 %v989
      %v1010 = vunpack.c.h.b16 %v989
      %v1011 = vunpack.c.l.b16 %v990
      %v1012 = vunpack.c.h.b16 %v990
      %v1013 = vunpack.c.l.b16 %v991
      %v1014 = vunpack.c.h.b16 %v991
      %v1015 = vunpack.c.l.b16 %v992
      %v1016 = vunpack.c.h.b16 %v992
      %v1017 = vpack.c.b16 %v1001, %v1001
      %v1018 = vpack.c.b16 %v1002, %v1002
      %v1019 = vpack.c.b16 %v1003, %v1003
      %v1020 = vpack.c.b16 %v1004, %v1004
      %v1021 = vpack.c.b16 %v1005, %v1005
      %v1022 = vpack.c.b16 %v1006, %v1006
      %v1023 = vpack.c.b16 %v1007, %v1007
      %v1024 = vpack.c.b16 %v1008, %v1008
      %v1025 = vpack.c.b16 %v1009, %v1009
      %v1026 = vpack.c.b16 %v1010, %v1010
      %v1027 = vpack.c.b16 %v1011, %v1011
      %v1028 = vpack.c.b16 %v1012, %v1012
      %v1029 = vpack.c.b16 %v1013, %v1013
      %v1030 = vpack.c.b16 %v1014, %v1014
      %v1031 = vpack.c.b16 %v1015, %v1015
      %v1032 = vpack.c.b16 %v1016, %v1016
      %v1033 = vpack.c.bf16 %v862, %v859
      %v1034 = vpack.c.bf16 %v870, %v867
      %v1035 = vpack.c.bf16 %v878, %v875
      %v1036 = vpack.c.bf16 %v886, %v883
      %v1037 = vpack.c.bf16 %v894, %v891
      %v1038 = vpack.c.bf16 %v902, %v899
      %v1039 = vpack.c.bf16 %v910, %v907
      %v1040 = vpack.c.bf16 %v918, %v915
      %v1041 = vpack.c.bf16 %v926, %v923
      %v1042 = vpack.c.bf16 %v934, %v931
      %v1043 = vpack.c.bf16 %v942, %v939
      %v1044 = vpack.c.bf16 %v950, %v947
      %v1045 = vpack.c.bf16 %v958, %v955
      %v1046 = vpack.c.bf16 %v966, %v963
      %v1047 = vpack.c.bf16 %v974, %v971
      %v1048 = vpack.c.bf16 %v982, %v979
      %vm1049 = vcmask 64512
      %v1051 = vsel %vm1049, %v1017, 0
      %v1054 = vsel %vm1049, %v1033, 0
      %1056 = vmatprep.subr.bf16.mxu0 0
      %1057 = vmatpush1.bf16.xpose.msra.mxu0 0
      %1058 = vmatprep.subr.bf16.mxu0 0
      %1059 = vmatpush1.bf16.xpose.msra.mxu0 0
      %1060 = vmatprep.subr.bf16.mxu0 0
      %1061 = vmatpush1.bf16.xpose.msra.mxu0 0
      %1062 = vmatprep.subr.bf16.mxu0 0
      %1063 = vmatpush1.bf16.xpose.msra.mxu0 0
      %1064 = vmatprep.subr.bf16.mxu0 0
      %1065 = vmatpush1.bf16.xpose.msra.mxu0 0
      %1066 = vmatprep.subr.bf16.mxu0 0
      %1067 = vmatpush1.bf16.xpose.msra.mxu0 0
      %1068 = vmatprep.subr.bf16.mxu0 0
      %1069 = vmatpush1.bf16.xpose.msra.mxu0 0
      %1070 = vmatprep.subr.bf16.mxu0 0
      %1071 = vmatpush1.bf16.xpose.msra.mxu0 %v1054
      %1072 = vmatprep.subr.bf16.mxu0 0
      %1073 = vmatpush2.bf16.xpose.msra.mxu0 0
      %1074 = vmatprep.subr.bf16.mxu0 0
      %1075 = vmatpush2.bf16.xpose.msra.mxu0 0
      %1076 = vmatprep.subr.bf16.mxu0 0
      %1077 = vmatpush2.bf16.xpose.msra.mxu0 0
      %1078 = vmatprep.subr.bf16.mxu0 0
      %1079 = vmatpush2.bf16.xpose.msra.mxu0 0
      %1080 = vmatprep.subr.bf16.mxu0 0
      %1081 = vmatpush2.bf16.xpose.msra.mxu0 0
      %1082 = vmatprep.subr.bf16.mxu0 0
      %1083 = vmatpush2.bf16.xpose.msra.mxu0 0
      %1084 = vmatprep.subr.bf16.mxu0 0
      %1085 = vmatpush2.bf16.xpose.msra.mxu0 0
      %1086 = vmatprep.subr.bf16.mxu0 0
      %1087 = vmatpush2.bf16.xpose.msra.mxu0 0
      %1088 = vmatprep.mubr.bf16.mxu0 0
      %1089 = vmatmul.mubr.bf16.gmra.mxu0 %v1051
      %v1090 = vpop.f32.mrf.mxu0
      %v1091 = vadd.f32 0.0, %v1090
      %v1092 = vpop.f32.mrf.mxu0
      %v1093 = vpop.f32.mrf.mxu0
      %v1094 = vpop.f32.mrf.mxu0
      %1095 = vdwg.mxu0
      %v1097 = vsel %vm1049, %v1018, 0
      %v1100 = vsel %vm1049, %v1034, 0
      %1102 = vmatprep.subr.bf16.mxu0 0
      %1103 = vmatpush1.bf16.xpose.msra.mxu0 0
      %1104 = vmatprep.subr.bf16.mxu0 0
      %1105 = vmatpush1.bf16.xpose.msra.mxu0 0
      %1106 = vmatprep.subr.bf16.mxu0 0
      %1107 = vmatpush1.bf16.xpose.msra.mxu0 0
      %1108 = vmatprep.subr.bf16.mxu0 0
      %1109 = vmatpush1.bf16.xpose.msra.mxu0 0
      %1110 = vmatprep.subr.bf16.mxu0 0
      %1111 = vmatpush1.bf16.xpose.msra.mxu0 0
      %1112 = vmatprep.subr.bf16.mxu0 0
      %1113 = vmatpush1.bf16.xpose.msra.mxu0 0
      %1114 = vmatprep.subr.bf16.mxu0 0
      %1115 = vmatpush1.bf16.xpose.msra.mxu0 0
      %1116 = vmatprep.subr.bf16.mxu0 0
      %1117 = vmatpush1.bf16.xpose.msra.mxu0 %v1100
      %1118 = vmatprep.subr.bf16.mxu0 0
      %1119 = vmatpush2.bf16.xpose.msra.mxu0 0
      %1120 = vmatprep.subr.bf16.mxu0 0
      %1121 = vmatpush2.bf16.xpose.msra.mxu0 0
      %1122 = vmatprep.subr.bf16.mxu0 0
      %1123 = vmatpush2.bf16.xpose.msra.mxu0 0
      %1124 = vmatprep.subr.bf16.mxu0 0
      %1125 = vmatpush2.bf16.xpose.msra.mxu0 0
      %1126 = vmatprep.subr.bf16.mxu0 0
      %1127 = vmatpush2.bf16.xpose.msra.mxu0 0
      %1128 = vmatprep.subr.bf16.mxu0 0
      %1129 = vmatpush2.bf16.xpose.msra.mxu0 0
      %1130 = vmatprep.subr.bf16.mxu0 0
      %1131 = vmatpush2.bf16.xpose.msra.mxu0 0
      %1132 = vmatprep.subr.bf16.mxu0 0
      %1133 = vmatpush2.bf16.xpose.msra.mxu0 0
      %1134 = vmatprep.mubr.bf16.mxu0 0
      %1135 = vmatmul.mubr.bf16.gmra.mxu0 %v1097
      %v1136 = vpop.f32.mrf.mxu0
      %v1137 = vadd.f32 0.0, %v1136
      %v1138 = vpop.f32.mrf.mxu0
      %v1139 = vpop.f32.mrf.mxu0
      %v1140 = vpop.f32.mrf.mxu0
      %1141 = vdwg.mxu0
      %v1143 = vsel %vm1049, %v1019, 0
      %v1146 = vsel %vm1049, %v1035, 0
      %1148 = vmatprep.subr.bf16.mxu0 0
      %1149 = vmatpush1.bf16.xpose.msra.mxu0 0
      %1150 = vmatprep.subr.bf16.mxu0 0
      %1151 = vmatpush1.bf16.xpose.msra.mxu0 0
      %1152 = vmatprep.subr.bf16.mxu0 0
      %1153 = vmatpush1.bf16.xpose.msra.mxu0 0
      %1154 = vmatprep.subr.bf16.mxu0 0
      %1155 = vmatpush1.bf16.xpose.msra.mxu0 0
      %1156 = vmatprep.subr.bf16.mxu0 0
      %1157 = vmatpush1.bf16.xpose.msra.mxu0 0
      %1158 = vmatprep.subr.bf16.mxu0 0
      %1159 = vmatpush1.bf16.xpose.msra.mxu0 0
      %1160 = vmatprep.subr.bf16.mxu0 0
      %1161 = vmatpush1.bf16.xpose.msra.mxu0 0
      %1162 = vmatprep.subr.bf16.mxu0 0
      %1163 = vmatpush1.bf16.xpose.msra.mxu0 %v1146
      %1164 = vmatprep.subr.bf16.mxu0 0
      %1165 = vmatpush2.bf16.xpose.msra.mxu0 0
      %1166 = vmatprep.subr.bf16.mxu0 0
      %1167 = vmatpush2.bf16.xpose.msra.mxu0 0
      %1168 = vmatprep.subr.bf16.mxu0 0
      %1169 = vmatpush2.bf16.xpose.msra.mxu0 0
      %1170 = vmatprep.subr.bf16.mxu0 0
      %1171 = vmatpush2.bf16.xpose.msra.mxu0 0
      %1172 = vmatprep.subr.bf16.mxu0 0
      %1173 = vmatpush2.bf16.xpose.msra.mxu0 0
      %1174 = vmatprep.subr.bf16.mxu0 0
      %1175 = vmatpush2.bf16.xpose.msra.mxu0 0
      %1176 = vmatprep.subr.bf16.mxu0 0
      %1177 = vmatpush2.bf16.xpose.msra.mxu0 0
      %1178 = vmatprep.subr.bf16.mxu0 0
      %1179 = vmatpush2.bf16.xpose.msra.mxu0 0
      %1180 = vmatprep.mubr.bf16.mxu0 0
      %1181 = vmatmul.mubr.bf16.gmra.mxu0 %v1143
      %v1182 = vpop.f32.mrf.mxu0
      %v1183 = vadd.f32 0.0, %v1182
      %v1184 = vpop.f32.mrf.mxu0
      %v1185 = vpop.f32.mrf.mxu0
      %v1186 = vpop.f32.mrf.mxu0
      %1187 = vdwg.mxu0
      %v1189 = vsel %vm1049, %v1020, 0
      %v1192 = vsel %vm1049, %v1036, 0
      %1194 = vmatprep.subr.bf16.mxu0 0
      %1195 = vmatpush1.bf16.xpose.msra.mxu0 0
      %1196 = vmatprep.subr.bf16.mxu0 0
      %1197 = vmatpush1.bf16.xpose.msra.mxu0 0
      %1198 = vmatprep.subr.bf16.mxu0 0
      %1199 = vmatpush1.bf16.xpose.msra.mxu0 0
      %1200 = vmatprep.subr.bf16.mxu0 0
      %1201 = vmatpush1.bf16.xpose.msra.mxu0 0
      %1202 = vmatprep.subr.bf16.mxu0 0
      %1203 = vmatpush1.bf16.xpose.msra.mxu0 0
      %1204 = vmatprep.subr.bf16.mxu0 0
      %1205 = vmatpush1.bf16.xpose.msra.mxu0 0
      %1206 = vmatprep.subr.bf16.mxu0 0
      %1207 = vmatpush1.bf16.xpose.msra.mxu0 0
      %1208 = vmatprep.subr.bf16.mxu0 0
      %1209 = vmatpush1.bf16.xpose.msra.mxu0 %v1192
      %1210 = vmatprep.subr.bf16.mxu0 0
      %1211 = vmatpush2.bf16.xpose.msra.mxu0 0
      %1212 = vmatprep.subr.bf16.mxu0 0
      %1213 = vmatpush2.bf16.xpose.msra.mxu0 0
      %1214 = vmatprep.subr.bf16.mxu0 0
      %1215 = vmatpush2.bf16.xpose.msra.mxu0 0
      %1216 = vmatprep.subr.bf16.mxu0 0
      %1217 = vmatpush2.bf16.xpose.msra.mxu0 0
      %1218 = vmatprep.subr.bf16.mxu0 0
      %1219 = vmatpush2.bf16.xpose.msra.mxu0 0
      %1220 = vmatprep.subr.bf16.mxu0 0
      %1221 = vmatpush2.bf16.xpose.msra.mxu0 0
      %1222 = vmatprep.subr.bf16.mxu0 0
      %1223 = vmatpush2.bf16.xpose.msra.mxu0 0
      %1224 = vmatprep.subr.bf16.mxu0 0
      %1225 = vmatpush2.bf16.xpose.msra.mxu0 0
      %1226 = vmatprep.mubr.bf16.mxu0 0
      %1227 = vmatmul.mubr.bf16.gmra.mxu0 %v1189
      %v1228 = vpop.f32.mrf.mxu0
      %v1229 = vadd.f32 0.0, %v1228
      %v1230 = vpop.f32.mrf.mxu0
      %v1231 = vpop.f32.mrf.mxu0
      %v1232 = vpop.f32.mrf.mxu0
      %1233 = vdwg.mxu0
      %v1235 = vsel %vm1049, %v1021, 0
      %v1238 = vsel %vm1049, %v1037, 0
      %1240 = vmatprep.subr.bf16.mxu0 0
      %1241 = vmatpush1.bf16.xpose.msra.mxu0 0
      %1242 = vmatprep.subr.bf16.mxu0 0
      %1243 = vmatpush1.bf16.xpose.msra.mxu0 0
      %1244 = vmatprep.subr.bf16.mxu0 0
      %1245 = vmatpush1.bf16.xpose.msra.mxu0 0
      %1246 = vmatprep.subr.bf16.mxu0 0
      %1247 = vmatpush1.bf16.xpose.msra.mxu0 0
      %1248 = vmatprep.subr.bf16.mxu0 0
      %1249 = vmatpush1.bf16.xpose.msra.mxu0 0
      %1250 = vmatprep.subr.bf16.mxu0 0
      %1251 = vmatpush1.bf16.xpose.msra.mxu0 0
      %1252 = vmatprep.subr.bf16.mxu0 0
      %1253 = vmatpush1.bf16.xpose.msra.mxu0 0
      %1254 = vmatprep.subr.bf16.mxu0 0
      %1255 = vmatpush1.bf16.xpose.msra.mxu0 %v1238
      %1256 = vmatprep.subr.bf16.mxu0 0
      %1257 = vmatpush2.bf16.xpose.msra.mxu0 0
      %1258 = vmatprep.subr.bf16.mxu0 0
      %1259 = vmatpush2.bf16.xpose.msra.mxu0 0
      %1260 = vmatprep.subr.bf16.mxu0 0
      %1261 = vmatpush2.bf16.xpose.msra.mxu0 0
      %1262 = vmatprep.subr.bf16.mxu0 0
      %1263 = vmatpush2.bf16.xpose.msra.mxu0 0
      %1264 = vmatprep.subr.bf16.mxu0 0
      %1265 = vmatpush2.bf16.xpose.msra.mxu0 0
      %1266 = vmatprep.subr.bf16.mxu0 0
      %1267 = vmatpush2.bf16.xpose.msra.mxu0 0
      %1268 = vmatprep.subr.bf16.mxu0 0
      %1269 = vmatpush2.bf16.xpose.msra.mxu0 0
      %1270 = vmatprep.subr.bf16.mxu0 0
      %1271 = vmatpush2.bf16.xpose.msra.mxu0 0
      %1272 = vmatprep.mubr.bf16.mxu0 0
      %1273 = vmatmul.mubr.bf16.gmra.mxu0 %v1235
      %v1274 = vpop.f32.mrf.mxu0
      %v1275 = vadd.f32 0.0, %v1274
      %v1276 = vpop.f32.mrf.mxu0
      %v1277 = vpop.f32.mrf.mxu0
      %v1278 = vpop.f32.mrf.mxu0
      %1279 = vdwg.mxu0
      %v1281 = vsel %vm1049, %v1022, 0
      %v1284 = vsel %vm1049, %v1038, 0
      %1286 = vmatprep.subr.bf16.mxu0 0
      %1287 = vmatpush1.bf16.xpose.msra.mxu0 0
      %1288 = vmatprep.subr.bf16.mxu0 0
      %1289 = vmatpush1.bf16.xpose.msra.mxu0 0
      %1290 = vmatprep.subr.bf16.mxu0 0
      %1291 = vmatpush1.bf16.xpose.msra.mxu0 0
      %1292 = vmatprep.subr.bf16.mxu0 0
      %1293 = vmatpush1.bf16.xpose.msra.mxu0 0
      %1294 = vmatprep.subr.bf16.mxu0 0
      %1295 = vmatpush1.bf16.xpose.msra.mxu0 0
      %1296 = vmatprep.subr.bf16.mxu0 0
      %1297 = vmatpush1.bf16.xpose.msra.mxu0 0
      %1298 = vmatprep.subr.bf16.mxu0 0
      %1299 = vmatpush1.bf16.xpose.msra.mxu0 0
      %1300 = vmatprep.subr.bf16.mxu0 0
      %1301 = vmatpush1.bf16.xpose.msra.mxu0 %v1284
      %1302 = vmatprep.subr.bf16.mxu0 0
      %1303 = vmatpush2.bf16.xpose.msra.mxu0 0
      %1304 = vmatprep.subr.bf16.mxu0 0
      %1305 = vmatpush2.bf16.xpose.msra.mxu0 0
      %1306 = vmatprep.subr.bf16.mxu0 0
      %1307 = vmatpush2.bf16.xpose.msra.mxu0 0
      %1308 = vmatprep.subr.bf16.mxu0 0
      %1309 = vmatpush2.bf16.xpose.msra.mxu0 0
      %1310 = vmatprep.subr.bf16.mxu0 0
      %1311 = vmatpush2.bf16.xpose.msra.mxu0 0
      %1312 = vmatprep.subr.bf16.mxu0 0
      %1313 = vmatpush2.bf16.xpose.msra.mxu0 0
      %1314 = vmatprep.subr.bf16.mxu0 0
      %1315 = vmatpush2.bf16.xpose.msra.mxu0 0
      %1316 = vmatprep.subr.bf16.mxu0 0
      %1317 = vmatpush2.bf16.xpose.msra.mxu0 0
      %1318 = vmatprep.mubr.bf16.mxu0 0
      %1319 = vmatmul.mubr.bf16.gmra.mxu0 %v1281
      %v1320 = vpop.f32.mrf.mxu0
      %v1321 = vadd.f32 0.0, %v1320
      %v1322 = vpop.f32.mrf.mxu0
      %v1323 = vpop.f32.mrf.mxu0
      %v1324 = vpop.f32.mrf.mxu0
      %1325 = vdwg.mxu0
      %v1327 = vsel %vm1049, %v1023, 0
      %v1330 = vsel %vm1049, %v1039, 0
      %1332 = vmatprep.subr.bf16.mxu0 0
      %1333 = vmatpush1.bf16.xpose.msra.mxu0 0
      %1334 = vmatprep.subr.bf16.mxu0 0
      %1335 = vmatpush1.bf16.xpose.msra.mxu0 0
      %1336 = vmatprep.subr.bf16.mxu0 0
      %1337 = vmatpush1.bf16.xpose.msra.mxu0 0
      %1338 = vmatprep.subr.bf16.mxu0 0
      %1339 = vmatpush1.bf16.xpose.msra.mxu0 0
      %1340 = vmatprep.subr.bf16.mxu0 0
      %1341 = vmatpush1.bf16.xpose.msra.mxu0 0
      %1342 = vmatprep.subr.bf16.mxu0 0
      %1343 = vmatpush1.bf16.xpose.msra.mxu0 0
      %1344 = vmatprep.subr.bf16.mxu0 0
      %1345 = vmatpush1.bf16.xpose.msra.mxu0 0
      %1346 = vmatprep.subr.bf16.mxu0 0
      %1347 = vmatpush1.bf16.xpose.msra.mxu0 %v1330
      %1348 = vmatprep.subr.bf16.mxu0 0
      %1349 = vmatpush2.bf16.xpose.msra.mxu0 0
      %1350 = vmatprep.subr.bf16.mxu0 0
      %1351 = vmatpush2.bf16.xpose.msra.mxu0 0
      %1352 = vmatprep.subr.bf16.mxu0 0
      %1353 = vmatpush2.bf16.xpose.msra.mxu0 0
      %1354 = vmatprep.subr.bf16.mxu0 0
      %1355 = vmatpush2.bf16.xpose.msra.mxu0 0
      %1356 = vmatprep.subr.bf16.mxu0 0
      %1357 = vmatpush2.bf16.xpose.msra.mxu0 0
      %1358 = vmatprep.subr.bf16.mxu0 0
      %1359 = vmatpush2.bf16.xpose.msra.mxu0 0
      %1360 = vmatprep.subr.bf16.mxu0 0
      %1361 = vmatpush2.bf16.xpose.msra.mxu0 0
      %1362 = vmatprep.subr.bf16.mxu0 0
      %1363 = vmatpush2.bf16.xpose.msra.mxu0 0
      %1364 = vmatprep.mubr.bf16.mxu0 0
      %1365 = vmatmul.mubr.bf16.gmra.mxu0 %v1327
      %v1366 = vpop.f32.mrf.mxu0
      %v1367 = vadd.f32 0.0, %v1366
      %v1368 = vpop.f32.mrf.mxu0
      %v1369 = vpop.f32.mrf.mxu0
      %v1370 = vpop.f32.mrf.mxu0
      %1371 = vdwg.mxu0
      %v1373 = vsel %vm1049, %v1024, 0
      %v1376 = vsel %vm1049, %v1040, 0
      %1378 = vmatprep.subr.bf16.mxu0 0
      %1379 = vmatpush1.bf16.xpose.msra.mxu0 0
      %1380 = vmatprep.subr.bf16.mxu0 0
      %1381 = vmatpush1.bf16.xpose.msra.mxu0 0
      %1382 = vmatprep.subr.bf16.mxu0 0
      %1383 = vmatpush1.bf16.xpose.msra.mxu0 0
      %1384 = vmatprep.subr.bf16.mxu0 0
      %1385 = vmatpush1.bf16.xpose.msra.mxu0 0
      %1386 = vmatprep.subr.bf16.mxu0 0
      %1387 = vmatpush1.bf16.xpose.msra.mxu0 0
      %1388 = vmatprep.subr.bf16.mxu0 0
      %1389 = vmatpush1.bf16.xpose.msra.mxu0 0
      %1390 = vmatprep.subr.bf16.mxu0 0
      %1391 = vmatpush1.bf16.xpose.msra.mxu0 0
      %1392 = vmatprep.subr.bf16.mxu0 0
      %1393 = vmatpush1.bf16.xpose.msra.mxu0 %v1376
      %1394 = vmatprep.subr.bf16.mxu0 0
      %1395 = vmatpush2.bf16.xpose.msra.mxu0 0
      %1396 = vmatprep.subr.bf16.mxu0 0
      %1397 = vmatpush2.bf16.xpose.msra.mxu0 0
      %1398 = vmatprep.subr.bf16.mxu0 0
      %1399 = vmatpush2.bf16.xpose.msra.mxu0 0
      %1400 = vmatprep.subr.bf16.mxu0 0
      %1401 = vmatpush2.bf16.xpose.msra.mxu0 0
      %1402 = vmatprep.subr.bf16.mxu0 0
      %1403 = vmatpush2.bf16.xpose.msra.mxu0 0
      %1404 = vmatprep.subr.bf16.mxu0 0
      %1405 = vmatpush2.bf16.xpose.msra.mxu0 0
      %1406 = vmatprep.subr.bf16.mxu0 0
      %1407 = vmatpush2.bf16.xpose.msra.mxu0 0
      %1408 = vmatprep.subr.bf16.mxu0 0
      %1409 = vmatpush2.bf16.xpose.msra.mxu0 0
      %1410 = vmatprep.mubr.bf16.mxu0 0
      %1411 = vmatmul.mubr.bf16.gmra.mxu0 %v1373
      %v1412 = vpop.f32.mrf.mxu0
      %v1413 = vadd.f32 0.0, %v1412
      %v1414 = vpop.f32.mrf.mxu0
      %v1415 = vpop.f32.mrf.mxu0
      %v1416 = vpop.f32.mrf.mxu0
      %1417 = vdwg.mxu0
      %v1419 = vsel %vm1049, %v1025, 0
      %v1422 = vsel %vm1049, %v1041, 0
      %1424 = vmatprep.subr.bf16.mxu0 0
      %1425 = vmatpush1.bf16.xpose.msra.mxu0 0
      %1426 = vmatprep.subr.bf16.mxu0 0
      %1427 = vmatpush1.bf16.xpose.msra.mxu0 0
      %1428 = vmatprep.subr.bf16.mxu0 0
      %1429 = vmatpush1.bf16.xpose.msra.mxu0 0
      %1430 = vmatprep.subr.bf16.mxu0 0
      %1431 = vmatpush1.bf16.xpose.msra.mxu0 0
      %1432 = vmatprep.subr.bf16.mxu0 0
      %1433 = vmatpush1.bf16.xpose.msra.mxu0 0
      %1434 = vmatprep.subr.bf16.mxu0 0
      %1435 = vmatpush1.bf16.xpose.msra.mxu0 0
      %1436 = vmatprep.subr.bf16.mxu0 0
      %1437 = vmatpush1.bf16.xpose.msra.mxu0 0
      %1438 = vmatprep.subr.bf16.mxu0 0
      %1439 = vmatpush1.bf16.xpose.msra.mxu0 %v1422
      %1440 = vmatprep.subr.bf16.mxu0 0
      %1441 = vmatpush2.bf16.xpose.msra.mxu0 0
      %1442 = vmatprep.subr.bf16.mxu0 0
      %1443 = vmatpush2.bf16.xpose.msra.mxu0 0
      %1444 = vmatprep.subr.bf16.mxu0 0
      %1445 = vmatpush2.bf16.xpose.msra.mxu0 0
      %1446 = vmatprep.subr.bf16.mxu0 0
      %1447 = vmatpush2.bf16.xpose.msra.mxu0 0
      %1448 = vmatprep.subr.bf16.mxu0 0
      %1449 = vmatpush2.bf16.xpose.msra.mxu0 0
      %1450 = vmatprep.subr.bf16.mxu0 0
      %1451 = vmatpush2.bf16.xpose.msra.mxu0 0
      %1452 = vmatprep.subr.bf16.mxu0 0
      %1453 = vmatpush2.bf16.xpose.msra.mxu0 0
      %1454 = vmatprep.subr.bf16.mxu0 0
      %1455 = vmatpush2.bf16.xpose.msra.mxu0 0
      %1456 = vmatprep.mubr.bf16.mxu0 0
      %1457 = vmatmul.mubr.bf16.gmra.mxu0 %v1419
      %v1458 = vpop.f32.mrf.mxu0
      %v1459 = vadd.f32 0.0, %v1458
      %v1460 = vpop.f32.mrf.mxu0
      %v1461 = vpop.f32.mrf.mxu0
      %v1462 = vpop.f32.mrf.mxu0
      %1463 = vdwg.mxu0
      %v1465 = vsel %vm1049, %v1026, 0
      %v1468 = vsel %vm1049, %v1042, 0
      %1470 = vmatprep.subr.bf16.mxu0 0
      %1471 = vmatpush1.bf16.xpose.msra.mxu0 0
      %1472 = vmatprep.subr.bf16.mxu0 0
      %1473 = vmatpush1.bf16.xpose.msra.mxu0 0
      %1474 = vmatprep.subr.bf16.mxu0 0
      %1475 = vmatpush1.bf16.xpose.msra.mxu0 0
      %1476 = vmatprep.subr.bf16.mxu0 0
      %1477 = vmatpush1.bf16.xpose.msra.mxu0 0
      %1478 = vmatprep.subr.bf16.mxu0 0
      %1479 = vmatpush1.bf16.xpose.msra.mxu0 0
      %1480 = vmatprep.subr.bf16.mxu0 0
      %1481 = vmatpush1.bf16.xpose.msra.mxu0 0
      %1482 = vmatprep.subr.bf16.mxu0 0
      %1483 = vmatpush1.bf16.xpose.msra.mxu0 0
      %1484 = vmatprep.subr.bf16.mxu0 0
      %1485 = vmatpush1.bf16.xpose.msra.mxu0 %v1468
      %1486 = vmatprep.subr.bf16.mxu0 0
      %1487 = vmatpush2.bf16.xpose.msra.mxu0 0
      %1488 = vmatprep.subr.bf16.mxu0 0
      %1489 = vmatpush2.bf16.xpose.msra.mxu0 0
      %1490 = vmatprep.subr.bf16.mxu0 0
      %1491 = vmatpush2.bf16.xpose.msra.mxu0 0
      %1492 = vmatprep.subr.bf16.mxu0 0
      %1493 = vmatpush2.bf16.xpose.msra.mxu0 0
      %1494 = vmatprep.subr.bf16.mxu0 0
      %1495 = vmatpush2.bf16.xpose.msra.mxu0 0
      %1496 = vmatprep.subr.bf16.mxu0 0
      %1497 = vmatpush2.bf16.xpose.msra.mxu0 0
      %1498 = vmatprep.subr.bf16.mxu0 0
      %1499 = vmatpush2.bf16.xpose.msra.mxu0 0
      %1500 = vmatprep.subr.bf16.mxu0 0
      %1501 = vmatpush2.bf16.xpose.msra.mxu0 0
      %1502 = vmatprep.mubr.bf16.mxu0 0
      %1503 = vmatmul.mubr.bf16.gmra.mxu0 %v1465
      %v1504 = vpop.f32.mrf.mxu0
      %v1505 = vadd.f32 0.0, %v1504
      %v1506 = vpop.f32.mrf.mxu0
      %v1507 = vpop.f32.mrf.mxu0
      %v1508 = vpop.f32.mrf.mxu0
      %1509 = vdwg.mxu0
      %v1511 = vsel %vm1049, %v1027, 0
      %v1514 = vsel %vm1049, %v1043, 0
      %1516 = vmatprep.subr.bf16.mxu0 0
      %1517 = vmatpush1.bf16.xpose.msra.mxu0 0
      %1518 = vmatprep.subr.bf16.mxu0 0
      %1519 = vmatpush1.bf16.xpose.msra.mxu0 0
      %1520 = vmatprep.subr.bf16.mxu0 0
      %1521 = vmatpush1.bf16.xpose.msra.mxu0 0
      %1522 = vmatprep.subr.bf16.mxu0 0
      %1523 = vmatpush1.bf16.xpose.msra.mxu0 0
      %1524 = vmatprep.subr.bf16.mxu0 0
      %1525 = vmatpush1.bf16.xpose.msra.mxu0 0
      %1526 = vmatprep.subr.bf16.mxu0 0
      %1527 = vmatpush1.bf16.xpose.msra.mxu0 0
      %1528 = vmatprep.subr.bf16.mxu0 0
      %1529 = vmatpush1.bf16.xpose.msra.mxu0 0
      %1530 = vmatprep.subr.bf16.mxu0 0
      %1531 = vmatpush1.bf16.xpose.msra.mxu0 %v1514
      %1532 = vmatprep.subr.bf16.mxu0 0
      %1533 = vmatpush2.bf16.xpose.msra.mxu0 0
      %1534 = vmatprep.subr.bf16.mxu0 0
      %1535 = vmatpush2.bf16.xpose.msra.mxu0 0
      %1536 = vmatprep.subr.bf16.mxu0 0
      %1537 = vmatpush2.bf16.xpose.msra.mxu0 0
      %1538 = vmatprep.subr.bf16.mxu0 0
      %1539 = vmatpush2.bf16.xpose.msra.mxu0 0
      %1540 = vmatprep.subr.bf16.mxu0 0
      %1541 = vmatpush2.bf16.xpose.msra.mxu0 0
      %1542 = vmatprep.subr.bf16.mxu0 0
      %1543 = vmatpush2.bf16.xpose.msra.mxu0 0
      %1544 = vmatprep.subr.bf16.mxu0 0
      %1545 = vmatpush2.bf16.xpose.msra.mxu0 0
      %1546 = vmatprep.subr.bf16.mxu0 0
      %1547 = vmatpush2.bf16.xpose.msra.mxu0 0
      %1548 = vmatprep.mubr.bf16.mxu0 0
      %1549 = vmatmul.mubr.bf16.gmra.mxu0 %v1511
      %v1550 = vpop.f32.mrf.mxu0
      %v1551 = vadd.f32 0.0, %v1550
      %v1552 = vpop.f32.mrf.mxu0
      %v1553 = vpop.f32.mrf.mxu0
      %v1554 = vpop.f32.mrf.mxu0
      %1555 = vdwg.mxu0
      %v1557 = vsel %vm1049, %v1028, 0
      %v1560 = vsel %vm1049, %v1044, 0
      %1562 = vmatprep.subr.bf16.mxu0 0
      %1563 = vmatpush1.bf16.xpose.msra.mxu0 0
      %1564 = vmatprep.subr.bf16.mxu0 0
      %1565 = vmatpush1.bf16.xpose.msra.mxu0 0
      %1566 = vmatprep.subr.bf16.mxu0 0
      %1567 = vmatpush1.bf16.xpose.msra.mxu0 0
      %1568 = vmatprep.subr.bf16.mxu0 0
      %1569 = vmatpush1.bf16.xpose.msra.mxu0 0
      %1570 = vmatprep.subr.bf16.mxu0 0
      %1571 = vmatpush1.bf16.xpose.msra.mxu0 0
      %1572 = vmatprep.subr.bf16.mxu0 0
      %1573 = vmatpush1.bf16.xpose.msra.mxu0 0
      %1574 = vmatprep.subr.bf16.mxu0 0
      %1575 = vmatpush1.bf16.xpose.msra.mxu0 0
      %1576 = vmatprep.subr.bf16.mxu0 0
      %1577 = vmatpush1.bf16.xpose.msra.mxu0 %v1560
      %1578 = vmatprep.subr.bf16.mxu0 0
      %1579 = vmatpush2.bf16.xpose.msra.mxu0 0
      %1580 = vmatprep.subr.bf16.mxu0 0
      %1581 = vmatpush2.bf16.xpose.msra.mxu0 0
      %1582 = vmatprep.subr.bf16.mxu0 0
      %1583 = vmatpush2.bf16.xpose.msra.mxu0 0
      %1584 = vmatprep.subr.bf16.mxu0 0
      %1585 = vmatpush2.bf16.xpose.msra.mxu0 0
      %1586 = vmatprep.subr.bf16.mxu0 0
      %1587 = vmatpush2.bf16.xpose.msra.mxu0 0
      %1588 = vmatprep.subr.bf16.mxu0 0
      %1589 = vmatpush2.bf16.xpose.msra.mxu0 0
      %1590 = vmatprep.subr.bf16.mxu0 0
      %1591 = vmatpush2.bf16.xpose.msra.mxu0 0
      %1592 = vmatprep.subr.bf16.mxu0 0
      %1593 = vmatpush2.bf16.xpose.msra.mxu0 0
      %1594 = vmatprep.mubr.bf16.mxu0 0
      %1595 = vmatmul.mubr.bf16.gmra.mxu0 %v1557
      %v1596 = vpop.f32.mrf.mxu0
      %v1597 = vadd.f32 0.0, %v1596
      %v1598 = vpop.f32.mrf.mxu0
      %v1599 = vpop.f32.mrf.mxu0
      %v1600 = vpop.f32.mrf.mxu0
      %1601 = vdwg.mxu0
      %v1603 = vsel %vm1049, %v1029, 0
      %v1606 = vsel %vm1049, %v1045, 0
      %1608 = vmatprep.subr.bf16.mxu0 0
      %1609 = vmatpush1.bf16.xpose.msra.mxu0 0
      %1610 = vmatprep.subr.bf16.mxu0 0
      %1611 = vmatpush1.bf16.xpose.msra.mxu0 0
      %1612 = vmatprep.subr.bf16.mxu0 0
      %1613 = vmatpush1.bf16.xpose.msra.mxu0 0
      %1614 = vmatprep.subr.bf16.mxu0 0
      %1615 = vmatpush1.bf16.xpose.msra.mxu0 0
      %1616 = vmatprep.subr.bf16.mxu0 0
      %1617 = vmatpush1.bf16.xpose.msra.mxu0 0
      %1618 = vmatprep.subr.bf16.mxu0 0
      %1619 = vmatpush1.bf16.xpose.msra.mxu0 0
      %1620 = vmatprep.subr.bf16.mxu0 0
      %1621 = vmatpush1.bf16.xpose.msra.mxu0 0
      %1622 = vmatprep.subr.bf16.mxu0 0
      %1623 = vmatpush1.bf16.xpose.msra.mxu0 %v1606
      %1624 = vmatprep.subr.bf16.mxu0 0
      %1625 = vmatpush2.bf16.xpose.msra.mxu0 0
      %1626 = vmatprep.subr.bf16.mxu0 0
      %1627 = vmatpush2.bf16.xpose.msra.mxu0 0
      %1628 = vmatprep.subr.bf16.mxu0 0
      %1629 = vmatpush2.bf16.xpose.msra.mxu0 0
      %1630 = vmatprep.subr.bf16.mxu0 0
      %1631 = vmatpush2.bf16.xpose.msra.mxu0 0
      %1632 = vmatprep.subr.bf16.mxu0 0
      %1633 = vmatpush2.bf16.xpose.msra.mxu0 0
      %1634 = vmatprep.subr.bf16.mxu0 0
      %1635 = vmatpush2.bf16.xpose.msra.mxu0 0
      %1636 = vmatprep.subr.bf16.mxu0 0
      %1637 = vmatpush2.bf16.xpose.msra.mxu0 0
      %1638 = vmatprep.subr.bf16.mxu0 0
      %1639 = vmatpush2.bf16.xpose.msra.mxu0 0
      %1640 = vmatprep.mubr.bf16.mxu0 0
      %1641 = vmatmul.mubr.bf16.gmra.mxu0 %v1603
      %v1642 = vpop.f32.mrf.mxu0
      %v1643 = vadd.f32 0.0, %v1642
      %v1644 = vpop.f32.mrf.mxu0
      %v1645 = vpop.f32.mrf.mxu0
      %v1646 = vpop.f32.mrf.mxu0
      %1647 = vdwg.mxu0
      %v1649 = vsel %vm1049, %v1030, 0
      %v1652 = vsel %vm1049, %v1046, 0
      %1654 = vmatprep.subr.bf16.mxu0 0
      %1655 = vmatpush1.bf16.xpose.msra.mxu0 0
      %1656 = vmatprep.subr.bf16.mxu0 0
      %1657 = vmatpush1.bf16.xpose.msra.mxu0 0
      %1658 = vmatprep.subr.bf16.mxu0 0
      %1659 = vmatpush1.bf16.xpose.msra.mxu0 0
      %1660 = vmatprep.subr.bf16.mxu0 0
      %1661 = vmatpush1.bf16.xpose.msra.mxu0 0
      %1662 = vmatprep.subr.bf16.mxu0 0
      %1663 = vmatpush1.bf16.xpose.msra.mxu0 0
      %1664 = vmatprep.subr.bf16.mxu0 0
      %1665 = vmatpush1.bf16.xpose.msra.mxu0 0
      %1666 = vmatprep.subr.bf16.mxu0 0
      %1667 = vmatpush1.bf16.xpose.msra.mxu0 0
      %1668 = vmatprep.subr.bf16.mxu0 0
      %1669 = vmatpush1.bf16.xpose.msra.mxu0 %v1652
      %1670 = vmatprep.subr.bf16.mxu0 0
      %1671 = vmatpush2.bf16.xpose.msra.mxu0 0
      %1672 = vmatprep.subr.bf16.mxu0 0
      %1673 = vmatpush2.bf16.xpose.msra.mxu0 0
      %1674 = vmatprep.subr.bf16.mxu0 0
      %1675 = vmatpush2.bf16.xpose.msra.mxu0 0
      %1676 = vmatprep.subr.bf16.mxu0 0
      %1677 = vmatpush2.bf16.xpose.msra.mxu0 0
      %1678 = vmatprep.subr.bf16.mxu0 0
      %1679 = vmatpush2.bf16.xpose.msra.mxu0 0
      %1680 = vmatprep.subr.bf16.mxu0 0
      %1681 = vmatpush2.bf16.xpose.msra.mxu0 0
      %1682 = vmatprep.subr.bf16.mxu0 0
      %1683 = vmatpush2.bf16.xpose.msra.mxu0 0
      %1684 = vmatprep.subr.bf16.mxu0 0
      %1685 = vmatpush2.bf16.xpose.msra.mxu0 0
      %1686 = vmatprep.mubr.bf16.mxu0 0
      %1687 = vmatmul.mubr.bf16.gmra.mxu0 %v1649
      %v1688 = vpop.f32.mrf.mxu0
      %v1689 = vadd.f32 0.0, %v1688
      %v1690 = vpop.f32.mrf.mxu0
      %v1691 = vpop.f32.mrf.mxu0
      %v1692 = vpop.f32.mrf.mxu0
      %1693 = vdwg.mxu0
      %v1695 = vsel %vm1049, %v1031, 0
      %v1698 = vsel %vm1049, %v1047, 0
      %1700 = vmatprep.subr.bf16.mxu0 0
      %1701 = vmatpush1.bf16.xpose.msra.mxu0 0
      %1702 = vmatprep.subr.bf16.mxu0 0
      %1703 = vmatpush1.bf16.xpose.msra.mxu0 0
      %1704 = vmatprep.subr.bf16.mxu0 0
      %1705 = vmatpush1.bf16.xpose.msra.mxu0 0
      %1706 = vmatprep.subr.bf16.mxu0 0
      %1707 = vmatpush1.bf16.xpose.msra.mxu0 0
      %1708 = vmatprep.subr.bf16.mxu0 0
      %1709 = vmatpush1.bf16.xpose.msra.mxu0 0
      %1710 = vmatprep.subr.bf16.mxu0 0
      %1711 = vmatpush1.bf16.xpose.msra.mxu0 0
      %1712 = vmatprep.subr.bf16.mxu0 0
      %1713 = vmatpush1.bf16.xpose.msra.mxu0 0
      %1714 = vmatprep.subr.bf16.mxu0 0
      %1715 = vmatpush1.bf16.xpose.msra.mxu0 %v1698
      %1716 = vmatprep.subr.bf16.mxu0 0
      %1717 = vmatpush2.bf16.xpose.msra.mxu0 0
      %1718 = vmatprep.subr.bf16.mxu0 0
      %1719 = vmatpush2.bf16.xpose.msra.mxu0 0
      %1720 = vmatprep.subr.bf16.mxu0 0
      %1721 = vmatpush2.bf16.xpose.msra.mxu0 0
      %1722 = vmatprep.subr.bf16.mxu0 0
      %1723 = vmatpush2.bf16.xpose.msra.mxu0 0
      %1724 = vmatprep.subr.bf16.mxu0 0
      %1725 = vmatpush2.bf16.xpose.msra.mxu0 0
      %1726 = vmatprep.subr.bf16.mxu0 0
      %1727 = vmatpush2.bf16.xpose.msra.mxu0 0
      %1728 = vmatprep.subr.bf16.mxu0 0
      %1729 = vmatpush2.bf16.xpose.msra.mxu0 0
      %1730 = vmatprep.subr.bf16.mxu0 0
      %1731 = vmatpush2.bf16.xpose.msra.mxu0 0
      %1732 = vmatprep.mubr.bf16.mxu0 0
      %1733 = vmatmul.mubr.bf16.gmra.mxu0 %v1695
      %v1734 = vpop.f32.mrf.mxu0
      %v1735 = vadd.f32 0.0, %v1734
      %v1736 = vpop.f32.mrf.mxu0
      %v1737 = vpop.f32.mrf.mxu0
      %v1738 = vpop.f32.mrf.mxu0
      %1739 = vdwg.mxu0
      %v1741 = vsel %vm1049, %v1032, 0
      %v1744 = vsel %vm1049, %v1048, 0
      %1746 = vmatprep.subr.bf16.mxu0 0
      %1747 = vmatpush1.bf16.xpose.msra.mxu0 0
      %1748 = vmatprep.subr.bf16.mxu0 0
      %1749 = vmatpush1.bf16.xpose.msra.mxu0 0
      %1750 = vmatprep.subr.bf16.mxu0 0
      %1751 = vmatpush1.bf16.xpose.msra.mxu0 0
      %1752 = vmatprep.subr.bf16.mxu0 0
      %1753 = vmatpush1.bf16.xpose.msra.mxu0 0
      %1754 = vmatprep.subr.bf16.mxu0 0
      %1755 = vmatpush1.bf16.xpose.msra.mxu0 0
      %1756 = vmatprep.subr.bf16.mxu0 0
      %1757 = vmatpush1.bf16.xpose.msra.mxu0 0
      %1758 = vmatprep.subr.bf16.mxu0 0
      %1759 = vmatpush1.bf16.xpose.msra.mxu0 0
      %1760 = vmatprep.subr.bf16.mxu0 0
      %1761 = vmatpush1.bf16.xpose.msra.mxu0 %v1744
      %1762 = vmatprep.subr.bf16.mxu0 0
      %1763 = vmatpush2.bf16.xpose.msra.mxu0 0
      %1764 = vmatprep.subr.bf16.mxu0 0
      %1765 = vmatpush2.bf16.xpose.msra.mxu0 0
      %1766 = vmatprep.subr.bf16.mxu0 0
      %1767 = vmatpush2.bf16.xpose.msra.mxu0 0
      %1768 = vmatprep.subr.bf16.mxu0 0
      %1769 = vmatpush2.bf16.xpose.msra.mxu0 0
      %1770 = vmatprep.subr.bf16.mxu0 0
      %1771 = vmatpush2.bf16.xpose.msra.mxu0 0
      %1772 = vmatprep.subr.bf16.mxu0 0
      %1773 = vmatpush2.bf16.xpose.msra.mxu0 0
      %1774 = vmatprep.subr.bf16.mxu0 0
      %1775 = vmatpush2.bf16.xpose.msra.mxu0 0
      %1776 = vmatprep.subr.bf16.mxu0 0
      %1777 = vmatpush2.bf16.xpose.msra.mxu0 0
      %1778 = vmatprep.mubr.bf16.mxu0 0
      %1779 = vmatmul.mubr.bf16.gmra.mxu0 %v1741
      %v1780 = vpop.f32.mrf.mxu0
      %v1781 = vadd.f32 0.0, %v1780
      %v1782 = vpop.f32.mrf.mxu0
      %v1783 = vpop.f32.mrf.mxu0
      %v1784 = vpop.f32.mrf.mxu0
      %1785 = vdwg.mxu0
      %vm1786 = vcmask 130048
      %v1787 = vsel %vm1786, %v1091, -inf
      %1788 = vmax.xlane.f32.xlu0 %v1787
      %v1789 = vpop.xlane.xlu0 %1788
      %v1790 = vsel %vm1786, %v1137, -inf
      %1791 = vmax.xlane.f32.xlu0 %v1790
      %v1792 = vpop.xlane.xlu0 %1791
      %v1793 = vsel %vm1786, %v1183, -inf
      %1794 = vmax.xlane.f32.xlu0 %v1793
      %v1795 = vpop.xlane.xlu0 %1794
      %v1796 = vsel %vm1786, %v1229, -inf
      %1797 = vmax.xlane.f32.xlu0 %v1796
      %v1798 = vpop.xlane.xlu0 %1797
      %v1799 = vsel %vm1786, %v1275, -inf
      %1800 = vmax.xlane.f32.xlu0 %v1799
      %v1801 = vpop.xlane.xlu0 %1800
      %v1802 = vsel %vm1786, %v1321, -inf
      %1803 = vmax.xlane.f32.xlu0 %v1802
      %v1804 = vpop.xlane.xlu0 %1803
      %v1805 = vsel %vm1786, %v1367, -inf
      %1806 = vmax.xlane.f32.xlu0 %v1805
      %v1807 = vpop.xlane.xlu0 %1806
      %v1808 = vsel %vm1786, %v1413, -inf
      %1809 = vmax.xlane.f32.xlu0 %v1808
      %v1810 = vpop.xlane.xlu0 %1809
      %v1811 = vsel %vm1786, %v1459, -inf
      %1812 = vmax.xlane.f32.xlu0 %v1811
      %v1813 = vpop.xlane.xlu0 %1812
      %v1814 = vsel %vm1786, %v1505, -inf
      %1815 = vmax.xlane.f32.xlu0 %v1814
      %v1816 = vpop.xlane.xlu0 %1815
      %v1817 = vsel %vm1786, %v1551, -inf
      %1818 = vmax.xlane.f32.xlu0 %v1817
      %v1819 = vpop.xlane.xlu0 %1818
      %v1820 = vsel %vm1786, %v1597, -inf
      %1821 = vmax.xlane.f32.xlu0 %v1820
      %v1822 = vpop.xlane.xlu0 %1821
      %v1823 = vsel %vm1786, %v1643, -inf
      %1824 = vmax.xlane.f32.xlu0 %v1823
      %v1825 = vpop.xlane.xlu0 %1824
      %v1826 = vsel %vm1786, %v1689, -inf
      %1827 = vmax.xlane.f32.xlu0 %v1826
      %v1828 = vpop.xlane.xlu0 %1827
      %v1829 = vsel %vm1786, %v1735, -inf
      %1830 = vmax.xlane.f32.xlu0 %v1829
      %v1831 = vpop.xlane.xlu0 %1830
      %v1832 = vsel %vm1786, %v1781, -inf
      %1833 = vmax.xlane.f32.xlu0 %v1832
      %v1834 = vpop.xlane.xlu0 %1833
      %v1835 = vsub.f32 %v1091, %v1789
      %v1836 = vsub.f32 %v1137, %v1792
      %v1837 = vsub.f32 %v1183, %v1795
      %v1838 = vsub.f32 %v1229, %v1798
      %v1839 = vsub.f32 %v1275, %v1801
      %v1840 = vsub.f32 %v1321, %v1804
      %v1841 = vsub.f32 %v1367, %v1807
      %v1842 = vsub.f32 %v1413, %v1810
      %v1843 = vsub.f32 %v1459, %v1813
      %v1844 = vsub.f32 %v1505, %v1816
      %v1845 = vsub.f32 %v1551, %v1819
      %v1846 = vsub.f32 %v1597, %v1822
      %v1847 = vsub.f32 %v1643, %v1825
      %v1848 = vsub.f32 %v1689, %v1828
      %v1849 = vsub.f32 %v1735, %v1831
      %v1850 = vsub.f32 %v1781, %v1834
      %v1851 = vmul.f32 %v1835, 1.442695
      %v1852 = vpow.pop %v1851
      %v1853 = vmul.f32 %v1836, 1.442695
      %v1854 = vpow.pop %v1853
      %v1855 = vmul.f32 %v1837, 1.442695
      %v1856 = vpow.pop %v1855
      %v1857 = vmul.f32 %v1838, 1.442695
      %v1858 = vpow.pop %v1857
      %v1859 = vmul.f32 %v1839, 1.442695
      %v1860 = vpow.pop %v1859
      %v1861 = vmul.f32 %v1840, 1.442695
      %v1862 = vpow.pop %v1861
      %v1863 = vmul.f32 %v1841, 1.442695
      %v1864 = vpow.pop %v1863
      %v1865 = vmul.f32 %v1842, 1.442695
      %v1866 = vpow.pop %v1865
      %v1867 = vmul.f32 %v1843, 1.442695
      %v1868 = vpow.pop %v1867
      %v1869 = vmul.f32 %v1844, 1.442695
      %v1870 = vpow.pop %v1869
      %v1871 = vmul.f32 %v1845, 1.442695
      %v1872 = vpow.pop %v1871
      %v1873 = vmul.f32 %v1846, 1.442695
      %v1874 = vpow.pop %v1873
      %v1875 = vmul.f32 %v1847, 1.442695
      %v1876 = vpow.pop %v1875
      %v1877 = vmul.f32 %v1848, 1.442695
      %v1878 = vpow.pop %v1877
      %v1879 = vmul.f32 %v1849, 1.442695
      %v1880 = vpow.pop %v1879
      %v1881 = vmul.f32 %v1850, 1.442695
      %v1882 = vpow.pop %v1881
      %v1883 = vsel %vm1786, %v1852, 0.0
      %1884 = vadd.xlane.f32.xlu0 %v1883
      %v1885 = vpop.xlane.xlu0 %1884
      %v1886 = vsel %vm1786, %v1854, 0.0
      %1887 = vadd.xlane.f32.xlu0 %v1886
      %v1888 = vpop.xlane.xlu0 %1887
      %v1889 = vsel %vm1786, %v1856, 0.0
      %1890 = vadd.xlane.f32.xlu0 %v1889
      %v1891 = vpop.xlane.xlu0 %1890
      %v1892 = vsel %vm1786, %v1858, 0.0
      %1893 = vadd.xlane.f32.xlu0 %v1892
      %v1894 = vpop.xlane.xlu0 %1893
      %v1895 = vsel %vm1786, %v1860, 0.0
      %1896 = vadd.xlane.f32.xlu0 %v1895
      %v1897 = vpop.xlane.xlu0 %1896
      %v1898 = vsel %vm1786, %v1862, 0.0
      %1899 = vadd.xlane.f32.xlu0 %v1898
      %v1900 = vpop.xlane.xlu0 %1899
      %v1901 = vsel %vm1786, %v1864, 0.0
      %1902 = vadd.xlane.f32.xlu0 %v1901
      %v1903 = vpop.xlane.xlu0 %1902
      %v1904 = vsel %vm1786, %v1866, 0.0
      %1905 = vadd.xlane.f32.xlu0 %v1904
      %v1906 = vpop.xlane.xlu0 %1905
      %v1907 = vsel %vm1786, %v1868, 0.0
      %1908 = vadd.xlane.f32.xlu0 %v1907
      %v1909 = vpop.xlane.xlu0 %1908
      %v1910 = vsel %vm1786, %v1870, 0.0
      %1911 = vadd.xlane.f32.xlu0 %v1910
      %v1912 = vpop.xlane.xlu0 %1911
      %v1913 = vsel %vm1786, %v1872, 0.0
      %1914 = vadd.xlane.f32.xlu0 %v1913
      %v1915 = vpop.xlane.xlu0 %1914
      %v1916 = vsel %vm1786, %v1874, 0.0
      %1917 = vadd.xlane.f32.xlu0 %v1916
      %v1918 = vpop.xlane.xlu0 %1917
      %v1919 = vsel %vm1786, %v1876, 0.0
      %1920 = vadd.xlane.f32.xlu0 %v1919
      %v1921 = vpop.xlane.xlu0 %1920
      %v1922 = vsel %vm1786, %v1878, 0.0
      %1923 = vadd.xlane.f32.xlu0 %v1922
      %v1924 = vpop.xlane.xlu0 %1923
      %v1925 = vsel %vm1786, %v1880, 0.0
      %1926 = vadd.xlane.f32.xlu0 %v1925
      %v1927 = vpop.xlane.xlu0 %1926
      %v1928 = vsel %vm1786, %v1882, 0.0
      %1929 = vadd.xlane.f32.xlu0 %v1928
      %v1930 = vpop.xlane.xlu0 %1929
      %v1931 = vpack.c.bf16 %v1852, %v1852
      %v1932 = vpack.c.bf16 %v1854, %v1854
      %v1933 = vpack.c.bf16 %v1856, %v1856
      %v1934 = vpack.c.bf16 %v1858, %v1858
      %v1935 = vpack.c.bf16 %v1860, %v1860
      %v1936 = vpack.c.bf16 %v1862, %v1862
      %v1937 = vpack.c.bf16 %v1864, %v1864
      %v1938 = vpack.c.bf16 %v1866, %v1866
      %v1939 = vpack.c.bf16 %v1868, %v1868
      %v1940 = vpack.c.bf16 %v1870, %v1870
      %v1941 = vpack.c.bf16 %v1872, %v1872
      %v1942 = vpack.c.bf16 %v1874, %v1874
      %v1943 = vpack.c.bf16 %v1876, %v1876
      %v1944 = vpack.c.bf16 %v1878, %v1878
      %v1945 = vpack.c.bf16 %v1880, %v1880
      %v1946 = vpack.c.bf16 %v1882, %v1882
      %1948 = vrot.lane.b32.xlu0 %v1033, 96
      %v1949 = vpop.permute.xlu0 %1948
      %v1952 = vsel %vm1786, %v1931, 0
      %1954 = vmatprep.subr.bf16.mxu0 0
      %1955 = vmatpush1.bf16.msra.mxu0 0
      %1956 = vmatprep.subr.bf16.mxu0 0
      %1957 = vmatpush1.bf16.msra.mxu0 0
      %1958 = vmatprep.subr.bf16.mxu0 0
      %1959 = vmatpush1.bf16.msra.mxu0 0
      %1960 = vmatprep.subr.bf16.mxu0 0
      %1961 = vmatpush1.bf16.msra.mxu0 0
      %1962 = vmatprep.subr.bf16.mxu0 0
      %1963 = vmatpush1.bf16.msra.mxu0 0
      %1964 = vmatprep.subr.bf16.mxu0 0
      %1965 = vmatpush1.bf16.msra.mxu0 0
      %1966 = vmatprep.subr.bf16.mxu0 0
      %1967 = vmatpush1.bf16.msra.mxu0 0
      %1968 = vmatprep.subr.bf16.mxu0 0
      %1969 = vmatpush1.bf16.msra.mxu0 %v1949
      %1970 = vmatprep.subr.bf16.mxu0 0
      %1971 = vmatpush2.bf16.msra.mxu0 0
      %1972 = vmatprep.subr.bf16.mxu0 0
      %1973 = vmatpush2.bf16.msra.mxu0 0
      %1974 = vmatprep.subr.bf16.mxu0 0
      %1975 = vmatpush2.bf16.msra.mxu0 0
      %1976 = vmatprep.subr.bf16.mxu0 0
      %1977 = vmatpush2.bf16.msra.mxu0 0
      %1978 = vmatprep.subr.bf16.mxu0 0
      %1979 = vmatpush2.bf16.msra.mxu0 0
      %1980 = vmatprep.subr.bf16.mxu0 0
      %1981 = vmatpush2.bf16.msra.mxu0 0
      %1982 = vmatprep.subr.bf16.mxu0 0
      %1983 = vmatpush2.bf16.msra.mxu0 0
      %1984 = vmatprep.subr.bf16.mxu0 0
      %1985 = vmatpush2.bf16.msra.mxu0 0
      %1986 = vmatprep.mubr.bf16.mxu0 0
      %1987 = vmatmul.mubr.bf16.gmra.mxu0 %v1952
      %v1988 = vpop.f32.mrf.mxu0
      %v1989 = vadd.f32 0.0, %v1988
      %v1990 = vpop.f32.mrf.mxu0
      %v1991 = vpop.f32.mrf.mxu0
      %v1992 = vpop.f32.mrf.mxu0
      %1993 = vdwg.mxu0
      %1995 = vrot.lane.b32.xlu0 %v1034, 96
      %v1996 = vpop.permute.xlu0 %1995
      %v1999 = vsel %vm1786, %v1932, 0
      %2001 = vmatprep.subr.bf16.mxu0 0
      %2002 = vmatpush1.bf16.msra.mxu0 0
      %2003 = vmatprep.subr.bf16.mxu0 0
      %2004 = vmatpush1.bf16.msra.mxu0 0
      %2005 = vmatprep.subr.bf16.mxu0 0
      %2006 = vmatpush1.bf16.msra.mxu0 0
      %2007 = vmatprep.subr.bf16.mxu0 0
      %2008 = vmatpush1.bf16.msra.mxu0 0
      %2009 = vmatprep.subr.bf16.mxu0 0
      %2010 = vmatpush1.bf16.msra.mxu0 0
      %2011 = vmatprep.subr.bf16.mxu0 0
      %2012 = vmatpush1.bf16.msra.mxu0 0
      %2013 = vmatprep.subr.bf16.mxu0 0
      %2014 = vmatpush1.bf16.msra.mxu0 0
      %2015 = vmatprep.subr.bf16.mxu0 0
      %2016 = vmatpush1.bf16.msra.mxu0 %v1996
      %2017 = vmatprep.subr.bf16.mxu0 0
      %2018 = vmatpush2.bf16.msra.mxu0 0
      %2019 = vmatprep.subr.bf16.mxu0 0
      %2020 = vmatpush2.bf16.msra.mxu0 0
      %2021 = vmatprep.subr.bf16.mxu0 0
      %2022 = vmatpush2.bf16.msra.mxu0 0
      %2023 = vmatprep.subr.bf16.mxu0 0
      %2024 = vmatpush2.bf16.msra.mxu0 0
      %2025 = vmatprep.subr.bf16.mxu0 0
      %2026 = vmatpush2.bf16.msra.mxu0 0
      %2027 = vmatprep.subr.bf16.mxu0 0
      %2028 = vmatpush2.bf16.msra.mxu0 0
      %2029 = vmatprep.subr.bf16.mxu0 0
      %2030 = vmatpush2.bf16.msra.mxu0 0
      %2031 = vmatprep.subr.bf16.mxu0 0
      %2032 = vmatpush2.bf16.msra.mxu0 0
      %2033 = vmatprep.mubr.bf16.mxu0 0
      %2034 = vmatmul.mubr.bf16.gmra.mxu0 %v1999
      %v2035 = vpop.f32.mrf.mxu0
      %v2036 = vadd.f32 0.0, %v2035
      %v2037 = vpop.f32.mrf.mxu0
      %v2038 = vpop.f32.mrf.mxu0
      %v2039 = vpop.f32.mrf.mxu0
      %2040 = vdwg.mxu0
      %2042 = vrot.lane.b32.xlu0 %v1035, 96
      %v2043 = vpop.permute.xlu0 %2042
      %v2046 = vsel %vm1786, %v1933, 0
      %2048 = vmatprep.subr.bf16.mxu0 0
      %2049 = vmatpush1.bf16.msra.mxu0 0
      %2050 = vmatprep.subr.bf16.mxu0 0
      %2051 = vmatpush1.bf16.msra.mxu0 0
      %2052 = vmatprep.subr.bf16.mxu0 0
      %2053 = vmatpush1.bf16.msra.mxu0 0
      %2054 = vmatprep.subr.bf16.mxu0 0
      %2055 = vmatpush1.bf16.msra.mxu0 0
      %2056 = vmatprep.subr.bf16.mxu0 0
      %2057 = vmatpush1.bf16.msra.mxu0 0
      %2058 = vmatprep.subr.bf16.mxu0 0
      %2059 = vmatpush1.bf16.msra.mxu0 0
      %2060 = vmatprep.subr.bf16.mxu0 0
      %2061 = vmatpush1.bf16.msra.mxu0 0
      %2062 = vmatprep.subr.bf16.mxu0 0
      %2063 = vmatpush1.bf16.msra.mxu0 %v2043
      %2064 = vmatprep.subr.bf16.mxu0 0
      %2065 = vmatpush2.bf16.msra.mxu0 0
      %2066 = vmatprep.subr.bf16.mxu0 0
      %2067 = vmatpush2.bf16.msra.mxu0 0
      %2068 = vmatprep.subr.bf16.mxu0 0
      %2069 = vmatpush2.bf16.msra.mxu0 0
      %2070 = vmatprep.subr.bf16.mxu0 0
      %2071 = vmatpush2.bf16.msra.mxu0 0
      %2072 = vmatprep.subr.bf16.mxu0 0
      %2073 = vmatpush2.bf16.msra.mxu0 0
      %2074 = vmatprep.subr.bf16.mxu0 0
      %2075 = vmatpush2.bf16.msra.mxu0 0
      %2076 = vmatprep.subr.bf16.mxu0 0
      %2077 = vmatpush2.bf16.msra.mxu0 0
      %2078 = vmatprep.subr.bf16.mxu0 0
      %2079 = vmatpush2.bf16.msra.mxu0 0
      %2080 = vmatprep.mubr.bf16.mxu0 0
      %2081 = vmatmul.mubr.bf16.gmra.mxu0 %v2046
      %v2082 = vpop.f32.mrf.mxu0
      %v2083 = vadd.f32 0.0, %v2082
      %v2084 = vpop.f32.mrf.mxu0
      %v2085 = vpop.f32.mrf.mxu0
      %v2086 = vpop.f32.mrf.mxu0
      %2087 = vdwg.mxu0
      %2089 = vrot.lane.b32.xlu0 %v1036, 96
      %v2090 = vpop.permute.xlu0 %2089
      %v2093 = vsel %vm1786, %v1934, 0
      %2095 = vmatprep.subr.bf16.mxu0 0
      %2096 = vmatpush1.bf16.msra.mxu0 0
      %2097 = vmatprep.subr.bf16.mxu0 0
      %2098 = vmatpush1.bf16.msra.mxu0 0
      %2099 = vmatprep.subr.bf16.mxu0 0
      %2100 = vmatpush1.bf16.msra.mxu0 0
      %2101 = vmatprep.subr.bf16.mxu0 0
      %2102 = vmatpush1.bf16.msra.mxu0 0
      %2103 = vmatprep.subr.bf16.mxu0 0
      %2104 = vmatpush1.bf16.msra.mxu0 0
      %2105 = vmatprep.subr.bf16.mxu0 0
      %2106 = vmatpush1.bf16.msra.mxu0 0
      %2107 = vmatprep.subr.bf16.mxu0 0
      %2108 = vmatpush1.bf16.msra.mxu0 0
      %2109 = vmatprep.subr.bf16.mxu0 0
      %2110 = vmatpush1.bf16.msra.mxu0 %v2090
      %2111 = vmatprep.subr.bf16.mxu0 0
      %2112 = vmatpush2.bf16.msra.mxu0 0
      %2113 = vmatprep.subr.bf16.mxu0 0
      %2114 = vmatpush2.bf16.msra.mxu0 0
      %2115 = vmatprep.subr.bf16.mxu0 0
      %2116 = vmatpush2.bf16.msra.mxu0 0
      %2117 = vmatprep.subr.bf16.mxu0 0
      %2118 = vmatpush2.bf16.msra.mxu0 0
      %2119 = vmatprep.subr.bf16.mxu0 0
      %2120 = vmatpush2.bf16.msra.mxu0 0
      %2121 = vmatprep.subr.bf16.mxu0 0
      %2122 = vmatpush2.bf16.msra.mxu0 0
      %2123 = vmatprep.subr.bf16.mxu0 0
      %2124 = vmatpush2.bf16.msra.mxu0 0
      %2125 = vmatprep.subr.bf16.mxu0 0
      %2126 = vmatpush2.bf16.msra.mxu0 0
      %2127 = vmatprep.mubr.bf16.mxu0 0
      %2128 = vmatmul.mubr.bf16.gmra.mxu0 %v2093
      %v2129 = vpop.f32.mrf.mxu0
      %v2130 = vadd.f32 0.0, %v2129
      %v2131 = vpop.f32.mrf.mxu0
      %v2132 = vpop.f32.mrf.mxu0
      %v2133 = vpop.f32.mrf.mxu0
      %2134 = vdwg.mxu0
      %2136 = vrot.lane.b32.xlu0 %v1037, 96
      %v2137 = vpop.permute.xlu0 %2136
      %v2140 = vsel %vm1786, %v1935, 0
      %2142 = vmatprep.subr.bf16.mxu0 0
      %2143 = vmatpush1.bf16.msra.mxu0 0
      %2144 = vmatprep.subr.bf16.mxu0 0
      %2145 = vmatpush1.bf16.msra.mxu0 0
      %2146 = vmatprep.subr.bf16.mxu0 0
      %2147 = vmatpush1.bf16.msra.mxu0 0
      %2148 = vmatprep.subr.bf16.mxu0 0
      %2149 = vmatpush1.bf16.msra.mxu0 0
      %2150 = vmatprep.subr.bf16.mxu0 0
      %2151 = vmatpush1.bf16.msra.mxu0 0
      %2152 = vmatprep.subr.bf16.mxu0 0
      %2153 = vmatpush1.bf16.msra.mxu0 0
      %2154 = vmatprep.subr.bf16.mxu0 0
      %2155 = vmatpush1.bf16.msra.mxu0 0
      %2156 = vmatprep.subr.bf16.mxu0 0
      %2157 = vmatpush1.bf16.msra.mxu0 %v2137
      %2158 = vmatprep.subr.bf16.mxu0 0
      %2159 = vmatpush2.bf16.msra.mxu0 0
      %2160 = vmatprep.subr.bf16.mxu0 0
      %2161 = vmatpush2.bf16.msra.mxu0 0
      %2162 = vmatprep.subr.bf16.mxu0 0
      %2163 = vmatpush2.bf16.msra.mxu0 0
      %2164 = vmatprep.subr.bf16.mxu0 0
      %2165 = vmatpush2.bf16.msra.mxu0 0
      %2166 = vmatprep.subr.bf16.mxu0 0
      %2167 = vmatpush2.bf16.msra.mxu0 0
      %2168 = vmatprep.subr.bf16.mxu0 0
      %2169 = vmatpush2.bf16.msra.mxu0 0
      %2170 = vmatprep.subr.bf16.mxu0 0
      %2171 = vmatpush2.bf16.msra.mxu0 0
      %2172 = vmatprep.subr.bf16.mxu0 0
      %2173 = vmatpush2.bf16.msra.mxu0 0
      %2174 = vmatprep.mubr.bf16.mxu0 0
      %2175 = vmatmul.mubr.bf16.gmra.mxu0 %v2140
      %v2176 = vpop.f32.mrf.mxu0
      %v2177 = vadd.f32 0.0, %v2176
      %v2178 = vpop.f32.mrf.mxu0
      %v2179 = vpop.f32.mrf.mxu0
      %v2180 = vpop.f32.mrf.mxu0
      %2181 = vdwg.mxu0
      %2183 = vrot.lane.b32.xlu0 %v1038, 96
      %v2184 = vpop.permute.xlu0 %2183
      %v2187 = vsel %vm1786, %v1936, 0
      %2189 = vmatprep.subr.bf16.mxu0 0
      %2190 = vmatpush1.bf16.msra.mxu0 0
      %2191 = vmatprep.subr.bf16.mxu0 0
      %2192 = vmatpush1.bf16.msra.mxu0 0
      %2193 = vmatprep.subr.bf16.mxu0 0
      %2194 = vmatpush1.bf16.msra.mxu0 0
      %2195 = vmatprep.subr.bf16.mxu0 0
      %2196 = vmatpush1.bf16.msra.mxu0 0
      %2197 = vmatprep.subr.bf16.mxu0 0
      %2198 = vmatpush1.bf16.msra.mxu0 0
      %2199 = vmatprep.subr.bf16.mxu0 0
      %2200 = vmatpush1.bf16.msra.mxu0 0
      %2201 = vmatprep.subr.bf16.mxu0 0
      %2202 = vmatpush1.bf16.msra.mxu0 0
      %2203 = vmatprep.subr.bf16.mxu0 0
      %2204 = vmatpush1.bf16.msra.mxu0 %v2184
      %2205 = vmatprep.subr.bf16.mxu0 0
      %2206 = vmatpush2.bf16.msra.mxu0 0
      %2207 = vmatprep.subr.bf16.mxu0 0
      %2208 = vmatpush2.bf16.msra.mxu0 0
      %2209 = vmatprep.subr.bf16.mxu0 0
      %2210 = vmatpush2.bf16.msra.mxu0 0
      %2211 = vmatprep.subr.bf16.mxu0 0
      %2212 = vmatpush2.bf16.msra.mxu0 0
      %2213 = vmatprep.subr.bf16.mxu0 0
      %2214 = vmatpush2.bf16.msra.mxu0 0
      %2215 = vmatprep.subr.bf16.mxu0 0
      %2216 = vmatpush2.bf16.msra.mxu0 0
      %2217 = vmatprep.subr.bf16.mxu0 0
      %2218 = vmatpush2.bf16.msra.mxu0 0
      %2219 = vmatprep.subr.bf16.mxu0 0
      %2220 = vmatpush2.bf16.msra.mxu0 0
      %2221 = vmatprep.mubr.bf16.mxu0 0
      %2222 = vmatmul.mubr.bf16.gmra.mxu0 %v2187
      %v2223 = vpop.f32.mrf.mxu0
      %v2224 = vadd.f32 0.0, %v2223
      %v2225 = vpop.f32.mrf.mxu0
      %v2226 = vpop.f32.mrf.mxu0
      %v2227 = vpop.f32.mrf.mxu0
      %2228 = vdwg.mxu0
      %2230 = vrot.lane.b32.xlu0 %v1039, 96
      %v2231 = vpop.permute.xlu0 %2230
      %v2234 = vsel %vm1786, %v1937, 0
      %2236 = vmatprep.subr.bf16.mxu0 0
      %2237 = vmatpush1.bf16.msra.mxu0 0
      %2238 = vmatprep.subr.bf16.mxu0 0
      %2239 = vmatpush1.bf16.msra.mxu0 0
      %2240 = vmatprep.subr.bf16.mxu0 0
      %2241 = vmatpush1.bf16.msra.mxu0 0
      %2242 = vmatprep.subr.bf16.mxu0 0
      %2243 = vmatpush1.bf16.msra.mxu0 0
      %2244 = vmatprep.subr.bf16.mxu0 0
      %2245 = vmatpush1.bf16.msra.mxu0 0
      %2246 = vmatprep.subr.bf16.mxu0 0
      %2247 = vmatpush1.bf16.msra.mxu0 0
      %2248 = vmatprep.subr.bf16.mxu0 0
      %2249 = vmatpush1.bf16.msra.mxu0 0
      %2250 = vmatprep.subr.bf16.mxu0 0
      %2251 = vmatpush1.bf16.msra.mxu0 %v2231
      %2252 = vmatprep.subr.bf16.mxu0 0
      %2253 = vmatpush2.bf16.msra.mxu0 0
      %2254 = vmatprep.subr.bf16.mxu0 0
      %2255 = vmatpush2.bf16.msra.mxu0 0
      %2256 = vmatprep.subr.bf16.mxu0 0
      %2257 = vmatpush2.bf16.msra.mxu0 0
      %2258 = vmatprep.subr.bf16.mxu0 0
      %2259 = vmatpush2.bf16.msra.mxu0 0
      %2260 = vmatprep.subr.bf16.mxu0 0
      %2261 = vmatpush2.bf16.msra.mxu0 0
      %2262 = vmatprep.subr.bf16.mxu0 0
      %2263 = vmatpush2.bf16.msra.mxu0 0
      %2264 = vmatprep.subr.bf16.mxu0 0
      %2265 = vmatpush2.bf16.msra.mxu0 0
      %2266 = vmatprep.subr.bf16.mxu0 0
      %2267 = vmatpush2.bf16.msra.mxu0 0
      %2268 = vmatprep.mubr.bf16.mxu0 0
      %2269 = vmatmul.mubr.bf16.gmra.mxu0 %v2234
      %v2270 = vpop.f32.mrf.mxu0
      %v2271 = vadd.f32 0.0, %v2270
      %v2272 = vpop.f32.mrf.mxu0
      %v2273 = vpop.f32.mrf.mxu0
      %v2274 = vpop.f32.mrf.mxu0
      %2275 = vdwg.mxu0
      %2277 = vrot.lane.b32.xlu0 %v1040, 96
      %v2278 = vpop.permute.xlu0 %2277
      %v2281 = vsel %vm1786, %v1938, 0
      %2283 = vmatprep.subr.bf16.mxu0 0
      %2284 = vmatpush1.bf16.msra.mxu0 0
      %2285 = vmatprep.subr.bf16.mxu0 0
      %2286 = vmatpush1.bf16.msra.mxu0 0
      %2287 = vmatprep.subr.bf16.mxu0 0
      %2288 = vmatpush1.bf16.msra.mxu0 0
      %2289 = vmatprep.subr.bf16.mxu0 0
      %2290 = vmatpush1.bf16.msra.mxu0 0
      %2291 = vmatprep.subr.bf16.mxu0 0
      %2292 = vmatpush1.bf16.msra.mxu0 0
      %2293 = vmatprep.subr.bf16.mxu0 0
      %2294 = vmatpush1.bf16.msra.mxu0 0
      %2295 = vmatprep.subr.bf16.mxu0 0
      %2296 = vmatpush1.bf16.msra.mxu0 0
      %2297 = vmatprep.subr.bf16.mxu0 0
      %2298 = vmatpush1.bf16.msra.mxu0 %v2278
      %2299 = vmatprep.subr.bf16.mxu0 0
      %2300 = vmatpush2.bf16.msra.mxu0 0
      %2301 = vmatprep.subr.bf16.mxu0 0
      %2302 = vmatpush2.bf16.msra.mxu0 0
      %2303 = vmatprep.subr.bf16.mxu0 0
      %2304 = vmatpush2.bf16.msra.mxu0 0
      %2305 = vmatprep.subr.bf16.mxu0 0
      %2306 = vmatpush2.bf16.msra.mxu0 0
      %2307 = vmatprep.subr.bf16.mxu0 0
      %2308 = vmatpush2.bf16.msra.mxu0 0
      %2309 = vmatprep.subr.bf16.mxu0 0
      %2310 = vmatpush2.bf16.msra.mxu0 0
      %2311 = vmatprep.subr.bf16.mxu0 0
      %2312 = vmatpush2.bf16.msra.mxu0 0
      %2313 = vmatprep.subr.bf16.mxu0 0
      %2314 = vmatpush2.bf16.msra.mxu0 0
      %2315 = vmatprep.mubr.bf16.mxu0 0
      %2316 = vmatmul.mubr.bf16.gmra.mxu0 %v2281
      %v2317 = vpop.f32.mrf.mxu0
      %v2318 = vadd.f32 0.0, %v2317
      %v2319 = vpop.f32.mrf.mxu0
      %v2320 = vpop.f32.mrf.mxu0
      %v2321 = vpop.f32.mrf.mxu0
      %2322 = vdwg.mxu0
      %2324 = vrot.lane.b32.xlu0 %v1041, 96
      %v2325 = vpop.permute.xlu0 %2324
      %v2328 = vsel %vm1786, %v1939, 0
      %2330 = vmatprep.subr.bf16.mxu0 0
      %2331 = vmatpush1.bf16.msra.mxu0 0
      %2332 = vmatprep.subr.bf16.mxu0 0
      %2333 = vmatpush1.bf16.msra.mxu0 0
      %2334 = vmatprep.subr.bf16.mxu0 0
      %2335 = vmatpush1.bf16.msra.mxu0 0
      %2336 = vmatprep.subr.bf16.mxu0 0
      %2337 = vmatpush1.bf16.msra.mxu0 0
      %2338 = vmatprep.subr.bf16.mxu0 0
      %2339 = vmatpush1.bf16.msra.mxu0 0
      %2340 = vmatprep.subr.bf16.mxu0 0
      %2341 = vmatpush1.bf16.msra.mxu0 0
      %2342 = vmatprep.subr.bf16.mxu0 0
      %2343 = vmatpush1.bf16.msra.mxu0 0
      %2344 = vmatprep.subr.bf16.mxu0 0
      %2345 = vmatpush1.bf16.msra.mxu0 %v2325
      %2346 = vmatprep.subr.bf16.mxu0 0
      %2347 = vmatpush2.bf16.msra.mxu0 0
      %2348 = vmatprep.subr.bf16.mxu0 0
      %2349 = vmatpush2.bf16.msra.mxu0 0
      %2350 = vmatprep.subr.bf16.mxu0 0
      %2351 = vmatpush2.bf16.msra.mxu0 0
      %2352 = vmatprep.subr.bf16.mxu0 0
      %2353 = vmatpush2.bf16.msra.mxu0 0
      %2354 = vmatprep.subr.bf16.mxu0 0
      %2355 = vmatpush2.bf16.msra.mxu0 0
      %2356 = vmatprep.subr.bf16.mxu0 0
      %2357 = vmatpush2.bf16.msra.mxu0 0
      %2358 = vmatprep.subr.bf16.mxu0 0
      %2359 = vmatpush2.bf16.msra.mxu0 0
      %2360 = vmatprep.subr.bf16.mxu0 0
      %2361 = vmatpush2.bf16.msra.mxu0 0
      %2362 = vmatprep.mubr.bf16.mxu0 0
      %2363 = vmatmul.mubr.bf16.gmra.mxu0 %v2328
      %v2364 = vpop.f32.mrf.mxu0
      %v2365 = vadd.f32 0.0, %v2364
      %v2366 = vpop.f32.mrf.mxu0
      %v2367 = vpop.f32.mrf.mxu0
      %v2368 = vpop.f32.mrf.mxu0
      %2369 = vdwg.mxu0
      %2371 = vrot.lane.b32.xlu0 %v1042, 96
      %v2372 = vpop.permute.xlu0 %2371
      %v2375 = vsel %vm1786, %v1940, 0
      %2377 = vmatprep.subr.bf16.mxu0 0
      %2378 = vmatpush1.bf16.msra.mxu0 0
      %2379 = vmatprep.subr.bf16.mxu0 0
      %2380 = vmatpush1.bf16.msra.mxu0 0
      %2381 = vmatprep.subr.bf16.mxu0 0
      %2382 = vmatpush1.bf16.msra.mxu0 0
      %2383 = vmatprep.subr.bf16.mxu0 0
      %2384 = vmatpush1.bf16.msra.mxu0 0
      %2385 = vmatprep.subr.bf16.mxu0 0
      %2386 = vmatpush1.bf16.msra.mxu0 0
      %2387 = vmatprep.subr.bf16.mxu0 0
      %2388 = vmatpush1.bf16.msra.mxu0 0
      %2389 = vmatprep.subr.bf16.mxu0 0
      %2390 = vmatpush1.bf16.msra.mxu0 0
      %2391 = vmatprep.subr.bf16.mxu0 0
      %2392 = vmatpush1.bf16.msra.mxu0 %v2372
      %2393 = vmatprep.subr.bf16.mxu0 0
      %2394 = vmatpush2.bf16.msra.mxu0 0
      %2395 = vmatprep.subr.bf16.mxu0 0
      %2396 = vmatpush2.bf16.msra.mxu0 0
      %2397 = vmatprep.subr.bf16.mxu0 0
      %2398 = vmatpush2.bf16.msra.mxu0 0
      %2399 = vmatprep.subr.bf16.mxu0 0
      %2400 = vmatpush2.bf16.msra.mxu0 0
      %2401 = vmatprep.subr.bf16.mxu0 0
      %2402 = vmatpush2.bf16.msra.mxu0 0
      %2403 = vmatprep.subr.bf16.mxu0 0
      %2404 = vmatpush2.bf16.msra.mxu0 0
      %2405 = vmatprep.subr.bf16.mxu0 0
      %2406 = vmatpush2.bf16.msra.mxu0 0
      %2407 = vmatprep.subr.bf16.mxu0 0
      %2408 = vmatpush2.bf16.msra.mxu0 0
      %2409 = vmatprep.mubr.bf16.mxu0 0
      %2410 = vmatmul.mubr.bf16.gmra.mxu0 %v2375
      %v2411 = vpop.f32.mrf.mxu0
      %v2412 = vadd.f32 0.0, %v2411
      %v2413 = vpop.f32.mrf.mxu0
      %v2414 = vpop.f32.mrf.mxu0
      %v2415 = vpop.f32.mrf.mxu0
      %2416 = vdwg.mxu0
      %2418 = vrot.lane.b32.xlu0 %v1043, 96
      %v2419 = vpop.permute.xlu0 %2418
      %v2422 = vsel %vm1786, %v1941, 0
      %2424 = vmatprep.subr.bf16.mxu0 0
      %2425 = vmatpush1.bf16.msra.mxu0 0
      %2426 = vmatprep.subr.bf16.mxu0 0
      %2427 = vmatpush1.bf16.msra.mxu0 0
      %2428 = vmatprep.subr.bf16.mxu0 0
      %2429 = vmatpush1.bf16.msra.mxu0 0
      %2430 = vmatprep.subr.bf16.mxu0 0
      %2431 = vmatpush1.bf16.msra.mxu0 0
      %2432 = vmatprep.subr.bf16.mxu0 0
      %2433 = vmatpush1.bf16.msra.mxu0 0
      %2434 = vmatprep.subr.bf16.mxu0 0
      %2435 = vmatpush1.bf16.msra.mxu0 0
      %2436 = vmatprep.subr.bf16.mxu0 0
      %2437 = vmatpush1.bf16.msra.mxu0 0
      %2438 = vmatprep.subr.bf16.mxu0 0
      %2439 = vmatpush1.bf16.msra.mxu0 %v2419
      %2440 = vmatprep.subr.bf16.mxu0 0
      %2441 = vmatpush2.bf16.msra.mxu0 0
      %2442 = vmatprep.subr.bf16.mxu0 0
      %2443 = vmatpush2.bf16.msra.mxu0 0
      %2444 = vmatprep.subr.bf16.mxu0 0
      %2445 = vmatpush2.bf16.msra.mxu0 0
      %2446 = vmatprep.subr.bf16.mxu0 0
      %2447 = vmatpush2.bf16.msra.mxu0 0
      %2448 = vmatprep.subr.bf16.mxu0 0
      %2449 = vmatpush2.bf16.msra.mxu0 0
      %2450 = vmatprep.subr.bf16.mxu0 0
      %2451 = vmatpush2.bf16.msra.mxu0 0
      %2452 = vmatprep.subr.bf16.mxu0 0
      %2453 = vmatpush2.bf16.msra.mxu0 0
      %2454 = vmatprep.subr.bf16.mxu0 0
      %2455 = vmatpush2.bf16.msra.mxu0 0
      %2456 = vmatprep.mubr.bf16.mxu0 0
      %2457 = vmatmul.mubr.bf16.gmra.mxu0 %v2422
      %v2458 = vpop.f32.mrf.mxu0
      %v2459 = vadd.f32 0.0, %v2458
      %v2460 = vpop.f32.mrf.mxu0
      %v2461 = vpop.f32.mrf.mxu0
      %v2462 = vpop.f32.mrf.mxu0
      %2463 = vdwg.mxu0
      %2465 = vrot.lane.b32.xlu0 %v1044, 96
      %v2466 = vpop.permute.xlu0 %2465
      %v2469 = vsel %vm1786, %v1942, 0
      %2471 = vmatprep.subr.bf16.mxu0 0
      %2472 = vmatpush1.bf16.msra.mxu0 0
      %2473 = vmatprep.subr.bf16.mxu0 0
      %2474 = vmatpush1.bf16.msra.mxu0 0
      %2475 = vmatprep.subr.bf16.mxu0 0
      %2476 = vmatpush1.bf16.msra.mxu0 0
      %2477 = vmatprep.subr.bf16.mxu0 0
      %2478 = vmatpush1.bf16.msra.mxu0 0
      %2479 = vmatprep.subr.bf16.mxu0 0
      %2480 = vmatpush1.bf16.msra.mxu0 0
      %2481 = vmatprep.subr.bf16.mxu0 0
      %2482 = vmatpush1.bf16.msra.mxu0 0
      %2483 = vmatprep.subr.bf16.mxu0 0
      %2484 = vmatpush1.bf16.msra.mxu0 0
      %2485 = vmatprep.subr.bf16.mxu0 0
      %2486 = vmatpush1.bf16.msra.mxu0 %v2466
      %2487 = vmatprep.subr.bf16.mxu0 0
      %2488 = vmatpush2.bf16.msra.mxu0 0
      %2489 = vmatprep.subr.bf16.mxu0 0
      %2490 = vmatpush2.bf16.msra.mxu0 0
      %2491 = vmatprep.subr.bf16.mxu0 0
      %2492 = vmatpush2.bf16.msra.mxu0 0
      %2493 = vmatprep.subr.bf16.mxu0 0
      %2494 = vmatpush2.bf16.msra.mxu0 0
      %2495 = vmatprep.subr.bf16.mxu0 0
      %2496 = vmatpush2.bf16.msra.mxu0 0
      %2497 = vmatprep.subr.bf16.mxu0 0
      %2498 = vmatpush2.bf16.msra.mxu0 0
      %2499 = vmatprep.subr.bf16.mxu0 0
      %2500 = vmatpush2.bf16.msra.mxu0 0
      %2501 = vmatprep.subr.bf16.mxu0 0
      %2502 = vmatpush2.bf16.msra.mxu0 0
      %2503 = vmatprep.mubr.bf16.mxu0 0
      %2504 = vmatmul.mubr.bf16.gmra.mxu0 %v2469
      %v2505 = vpop.f32.mrf.mxu0
      %v2506 = vadd.f32 0.0, %v2505
      %v2507 = vpop.f32.mrf.mxu0
      %v2508 = vpop.f32.mrf.mxu0
      %v2509 = vpop.f32.mrf.mxu0
      %2510 = vdwg.mxu0
      %2512 = vrot.lane.b32.xlu0 %v1045, 96
      %v2513 = vpop.permute.xlu0 %2512
      %v2516 = vsel %vm1786, %v1943, 0
      %2518 = vmatprep.subr.bf16.mxu0 0
      %2519 = vmatpush1.bf16.msra.mxu0 0
      %2520 = vmatprep.subr.bf16.mxu0 0
      %2521 = vmatpush1.bf16.msra.mxu0 0
      %2522 = vmatprep.subr.bf16.mxu0 0
      %2523 = vmatpush1.bf16.msra.mxu0 0
      %2524 = vmatprep.subr.bf16.mxu0 0
      %2525 = vmatpush1.bf16.msra.mxu0 0
      %2526 = vmatprep.subr.bf16.mxu0 0
      %2527 = vmatpush1.bf16.msra.mxu0 0
      %2528 = vmatprep.subr.bf16.mxu0 0
      %2529 = vmatpush1.bf16.msra.mxu0 0
      %2530 = vmatprep.subr.bf16.mxu0 0
      %2531 = vmatpush1.bf16.msra.mxu0 0
      %2532 = vmatprep.subr.bf16.mxu0 0
      %2533 = vmatpush1.bf16.msra.mxu0 %v2513
      %2534 = vmatprep.subr.bf16.mxu0 0
      %2535 = vmatpush2.bf16.msra.mxu0 0
      %2536 = vmatprep.subr.bf16.mxu0 0
      %2537 = vmatpush2.bf16.msra.mxu0 0
      %2538 = vmatprep.subr.bf16.mxu0 0
      %2539 = vmatpush2.bf16.msra.mxu0 0
      %2540 = vmatprep.subr.bf16.mxu0 0
      %2541 = vmatpush2.bf16.msra.mxu0 0
      %2542 = vmatprep.subr.bf16.mxu0 0
      %2543 = vmatpush2.bf16.msra.mxu0 0
      %2544 = vmatprep.subr.bf16.mxu0 0
      %2545 = vmatpush2.bf16.msra.mxu0 0
      %2546 = vmatprep.subr.bf16.mxu0 0
      %2547 = vmatpush2.bf16.msra.mxu0 0
      %2548 = vmatprep.subr.bf16.mxu0 0
      %2549 = vmatpush2.bf16.msra.mxu0 0
      %2550 = vmatprep.mubr.bf16.mxu0 0
      %2551 = vmatmul.mubr.bf16.gmra.mxu0 %v2516
      %v2552 = vpop.f32.mrf.mxu0
      %v2553 = vadd.f32 0.0, %v2552
      %v2554 = vpop.f32.mrf.mxu0
      %v2555 = vpop.f32.mrf.mxu0
      %v2556 = vpop.f32.mrf.mxu0
      %2557 = vdwg.mxu0
      %2559 = vrot.lane.b32.xlu0 %v1046, 96
      %v2560 = vpop.permute.xlu0 %2559
      %v2563 = vsel %vm1786, %v1944, 0
      %2565 = vmatprep.subr.bf16.mxu0 0
      %2566 = vmatpush1.bf16.msra.mxu0 0
      %2567 = vmatprep.subr.bf16.mxu0 0
      %2568 = vmatpush1.bf16.msra.mxu0 0
      %2569 = vmatprep.subr.bf16.mxu0 0
      %2570 = vmatpush1.bf16.msra.mxu0 0
      %2571 = vmatprep.subr.bf16.mxu0 0
      %2572 = vmatpush1.bf16.msra.mxu0 0
      %2573 = vmatprep.subr.bf16.mxu0 0
      %2574 = vmatpush1.bf16.msra.mxu0 0
      %2575 = vmatprep.subr.bf16.mxu0 0
      %2576 = vmatpush1.bf16.msra.mxu0 0
      %2577 = vmatprep.subr.bf16.mxu0 0
      %2578 = vmatpush1.bf16.msra.mxu0 0
      %2579 = vmatprep.subr.bf16.mxu0 0
      %2580 = vmatpush1.bf16.msra.mxu0 %v2560
      %2581 = vmatprep.subr.bf16.mxu0 0
      %2582 = vmatpush2.bf16.msra.mxu0 0
      %2583 = vmatprep.subr.bf16.mxu0 0
      %2584 = vmatpush2.bf16.msra.mxu0 0
      %2585 = vmatprep.subr.bf16.mxu0 0
      %2586 = vmatpush2.bf16.msra.mxu0 0
      %2587 = vmatprep.subr.bf16.mxu0 0
      %2588 = vmatpush2.bf16.msra.mxu0 0
      %2589 = vmatprep.subr.bf16.mxu0 0
      %2590 = vmatpush2.bf16.msra.mxu0 0
      %2591 = vmatprep.subr.bf16.mxu0 0
      %2592 = vmatpush2.bf16.msra.mxu0 0
      %2593 = vmatprep.subr.bf16.mxu0 0
      %2594 = vmatpush2.bf16.msra.mxu0 0
      %2595 = vmatprep.subr.bf16.mxu0 0
      %2596 = vmatpush2.bf16.msra.mxu0 0
      %2597 = vmatprep.mubr.bf16.mxu0 0
      %2598 = vmatmul.mubr.bf16.gmra.mxu0 %v2563
      %v2599 = vpop.f32.mrf.mxu0
      %v2600 = vadd.f32 0.0, %v2599
      %v2601 = vpop.f32.mrf.mxu0
      %v2602 = vpop.f32.mrf.mxu0
      %v2603 = vpop.f32.mrf.mxu0
      %2604 = vdwg.mxu0
      %2606 = vrot.lane.b32.xlu0 %v1047, 96
      %v2607 = vpop.permute.xlu0 %2606
      %v2610 = vsel %vm1786, %v1945, 0
      %2612 = vmatprep.subr.bf16.mxu0 0
      %2613 = vmatpush1.bf16.msra.mxu0 0
      %2614 = vmatprep.subr.bf16.mxu0 0
      %2615 = vmatpush1.bf16.msra.mxu0 0
      %2616 = vmatprep.subr.bf16.mxu0 0
      %2617 = vmatpush1.bf16.msra.mxu0 0
      %2618 = vmatprep.subr.bf16.mxu0 0
      %2619 = vmatpush1.bf16.msra.mxu0 0
      %2620 = vmatprep.subr.bf16.mxu0 0
      %2621 = vmatpush1.bf16.msra.mxu0 0
      %2622 = vmatprep.subr.bf16.mxu0 0
      %2623 = vmatpush1.bf16.msra.mxu0 0
      %2624 = vmatprep.subr.bf16.mxu0 0
      %2625 = vmatpush1.bf16.msra.mxu0 0
      %2626 = vmatprep.subr.bf16.mxu0 0
      %2627 = vmatpush1.bf16.msra.mxu0 %v2607
      %2628 = vmatprep.subr.bf16.mxu0 0
      %2629 = vmatpush2.bf16.msra.mxu0 0
      %2630 = vmatprep.subr.bf16.mxu0 0
      %2631 = vmatpush2.bf16.msra.mxu0 0
      %2632 = vmatprep.subr.bf16.mxu0 0
      %2633 = vmatpush2.bf16.msra.mxu0 0
      %2634 = vmatprep.subr.bf16.mxu0 0
      %2635 = vmatpush2.bf16.msra.mxu0 0
      %2636 = vmatprep.subr.bf16.mxu0 0
      %2637 = vmatpush2.bf16.msra.mxu0 0
      %2638 = vmatprep.subr.bf16.mxu0 0
      %2639 = vmatpush2.bf16.msra.mxu0 0
      %2640 = vmatprep.subr.bf16.mxu0 0
      %2641 = vmatpush2.bf16.msra.mxu0 0
      %2642 = vmatprep.subr.bf16.mxu0 0
      %2643 = vmatpush2.bf16.msra.mxu0 0
      %2644 = vmatprep.mubr.bf16.mxu0 0
      %2645 = vmatmul.mubr.bf16.gmra.mxu0 %v2610
      %v2646 = vpop.f32.mrf.mxu0
      %v2647 = vadd.f32 0.0, %v2646
      %v2648 = vpop.f32.mrf.mxu0
      %v2649 = vpop.f32.mrf.mxu0
      %v2650 = vpop.f32.mrf.mxu0
      %2651 = vdwg.mxu0
      %2653 = vrot.lane.b32.xlu0 %v1048, 96
      %v2654 = vpop.permute.xlu0 %2653
      %v2657 = vsel %vm1786, %v1946, 0
      %2659 = vmatprep.subr.bf16.mxu0 0
      %2660 = vmatpush1.bf16.msra.mxu0 0
      %2661 = vmatprep.subr.bf16.mxu0 0
      %2662 = vmatpush1.bf16.msra.mxu0 0
      %2663 = vmatprep.subr.bf16.mxu0 0
      %2664 = vmatpush1.bf16.msra.mxu0 0
      %2665 = vmatprep.subr.bf16.mxu0 0
      %2666 = vmatpush1.bf16.msra.mxu0 0
      %2667 = vmatprep.subr.bf16.mxu0 0
      %2668 = vmatpush1.bf16.msra.mxu0 0
      %2669 = vmatprep.subr.bf16.mxu0 0
      %2670 = vmatpush1.bf16.msra.mxu0 0
      %2671 = vmatprep.subr.bf16.mxu0 0
      %2672 = vmatpush1.bf16.msra.mxu0 0
      %2673 = vmatprep.subr.bf16.mxu0 0
      %2674 = vmatpush1.bf16.msra.mxu0 %v2654
      %2675 = vmatprep.subr.bf16.mxu0 0
      %2676 = vmatpush2.bf16.msra.mxu0 0
      %2677 = vmatprep.subr.bf16.mxu0 0
      %2678 = vmatpush2.bf16.msra.mxu0 0
      %2679 = vmatprep.subr.bf16.mxu0 0
      %2680 = vmatpush2.bf16.msra.mxu0 0
      %2681 = vmatprep.subr.bf16.mxu0 0
      %2682 = vmatpush2.bf16.msra.mxu0 0
      %2683 = vmatprep.subr.bf16.mxu0 0
      %2684 = vmatpush2.bf16.msra.mxu0 0
      %2685 = vmatprep.subr.bf16.mxu0 0
      %2686 = vmatpush2.bf16.msra.mxu0 0
      %2687 = vmatprep.subr.bf16.mxu0 0
      %2688 = vmatpush2.bf16.msra.mxu0 0
      %2689 = vmatprep.subr.bf16.mxu0 0
      %2690 = vmatpush2.bf16.msra.mxu0 0
      %2691 = vmatprep.mubr.bf16.mxu0 0
      %2692 = vmatmul.mubr.bf16.gmra.mxu0 %v2657
      %v2693 = vpop.f32.mrf.mxu0
      %v2694 = vadd.f32 0.0, %v2693
      %v2695 = vpop.f32.mrf.mxu0
      %v2696 = vpop.f32.mrf.mxu0
      %v2697 = vpop.f32.mrf.mxu0
      %2698 = vdwg.mxu0
      %v2699 = vrcp.pop %v1885
      %v2700 = vrcp.pop %v1888
      %v2701 = vrcp.pop %v1891
      %v2702 = vrcp.pop %v1894
      %v2703 = vrcp.pop %v1897
      %v2704 = vrcp.pop %v1900
      %v2705 = vrcp.pop %v1903
      %v2706 = vrcp.pop %v1906
      %v2707 = vrcp.pop %v1909
      %v2708 = vrcp.pop %v1912
      %v2709 = vrcp.pop %v1915
      %v2710 = vrcp.pop %v1918
      %v2711 = vrcp.pop %v1921
      %v2712 = vrcp.pop %v1924
      %v2713 = vrcp.pop %v1927
      %v2714 = vrcp.pop %v1930
      %v2715 = vmul.f32 %v1989, %v2699
      %v2716 = vmul.f32 %v2036, %v2700
      %v2717 = vmul.f32 %v2083, %v2701
      %v2718 = vmul.f32 %v2130, %v2702
      %v2719 = vmul.f32 %v2177, %v2703
      %v2720 = vmul.f32 %v2224, %v2704
      %v2721 = vmul.f32 %v2271, %v2705
      %v2722 = vmul.f32 %v2318, %v2706
      %v2723 = vmul.f32 %v2365, %v2707
      %v2724 = vmul.f32 %v2412, %v2708
      %v2725 = vmul.f32 %v2459, %v2709
      %v2726 = vmul.f32 %v2506, %v2710
      %v2727 = vmul.f32 %v2553, %v2711
      %v2728 = vmul.f32 %v2600, %v2712
      %v2729 = vmul.f32 %v2647, %v2713
      %v2730 = vmul.f32 %v2694, %v2714
      %2731 = vst.msk [vmem:[#allocation2] sm:$0xff] %vm1049, %v2715
      %2732 = vst.msk [vmem:[#allocation2 + $0x8] sm:$0xff] %vm1049, %v2716
      %2733 = vst.msk [vmem:[#allocation2 + $0x10] sm:$0xff] %vm1049, %v2717
      %2734 = vst.msk [vmem:[#allocation2 + $0x18] sm:$0xff] %vm1049, %v2718
      %2735 = vst.msk [vmem:[#allocation2 + $0x20] sm:$0xff] %vm1049, %v2719
      %2736 = vst.msk [vmem:[#allocation2 + $0x28] sm:$0xff] %vm1049, %v2720
      %2737 = vst.msk [vmem:[#allocation2 + $0x30] sm:$0xff] %vm1049, %v2721
      %2738 = vst.msk [vmem:[#allocation2 + $0x38] sm:$0xff] %vm1049, %v2722
      %2739 = vst.msk [vmem:[#allocation2 + $0x40] sm:$0xff] %vm1049, %v2723
      %2740 = vst.msk [vmem:[#allocation2 + $0x48] sm:$0xff] %vm1049, %v2724
      %2741 = vst.msk [vmem:[#allocation2 + $0x50] sm:$0xff] %vm1049, %v2725
      %2742 = vst.msk [vmem:[#allocation2 + $0x58] sm:$0xff] %vm1049, %v2726
      %2743 = vst.msk [vmem:[#allocation2 + $0x60] sm:$0xff] %vm1049, %v2727
      %2744 = vst.msk [vmem:[#allocation2 + $0x68] sm:$0xff] %vm1049, %v2728
      %2745 = vst.msk [vmem:[#allocation2 + $0x70] sm:$0xff] %vm1049, %v2729
      %2746 = vst.msk [vmem:[#allocation2 + $0x78] sm:$0xff] %vm1049, %v2730
      %2747 = vrot.lane.b32.xlu0 %v1017, 120
      %v2748 = vpop.permute.xlu0 %2747
      %2749 = vrot.lane.b32.xlu0 %v1033, 120
      %v2750 = vpop.permute.xlu0 %2749
      %v2752 = vsel %vm1049, %v2748, 0
      %v2755 = vsel %vm1049, %v2750, 0
      %2757 = vmatprep.subr.bf16.mxu0 0
      %2758 = vmatpush1.bf16.xpose.msra.mxu0 0
      %2759 = vmatprep.subr.bf16.mxu0 0
      %2760 = vmatpush1.bf16.xpose.msra.mxu0 0
      %2761 = vmatprep.subr.bf16.mxu0 0
      %2762 = vmatpush1.bf16.xpose.msra.mxu0 0
      %2763 = vmatprep.subr.bf16.mxu0 0
      %2764 = vmatpush1.bf16.xpose.msra.mxu0 0
      %2765 = vmatprep.subr.bf16.mxu0 0
      %2766 = vmatpush1.bf16.xpose.msra.mxu0 0
      %2767 = vmatprep.subr.bf16.mxu0 0
      %2768 = vmatpush1.bf16.xpose.msra.mxu0 0
      %2769 = vmatprep.subr.bf16.mxu0 0
      %2770 = vmatpush1.bf16.xpose.msra.mxu0 0
      %2771 = vmatprep.subr.bf16.mxu0 0
      %2772 = vmatpush1.bf16.xpose.msra.mxu0 %v2755
      %2773 = vmatprep.subr.bf16.mxu0 0
      %2774 = vmatpush2.bf16.xpose.msra.mxu0 0
      %2775 = vmatprep.subr.bf16.mxu0 0
      %2776 = vmatpush2.bf16.xpose.msra.mxu0 0
      %2777 = vmatprep.subr.bf16.mxu0 0
      %2778 = vmatpush2.bf16.xpose.msra.mxu0 0
      %2779 = vmatprep.subr.bf16.mxu0 0
      %2780 = vmatpush2.bf16.xpose.msra.mxu0 0
      %2781 = vmatprep.subr.bf16.mxu0 0
      %2782 = vmatpush2.bf16.xpose.msra.mxu0 0
      %2783 = vmatprep.subr.bf16.mxu0 0
      %2784 = vmatpush2.bf16.xpose.msra.mxu0 0
      %2785 = vmatprep.subr.bf16.mxu0 0
      %2786 = vmatpush2.bf16.xpose.msra.mxu0 0
      %2787 = vmatprep.subr.bf16.mxu0 0
      %2788 = vmatpush2.bf16.xpose.msra.mxu0 0
      %2789 = vmatprep.mubr.bf16.mxu0 0
      %2790 = vmatmul.mubr.bf16.gmra.mxu0 %v2752
      %v2791 = vpop.f32.mrf.mxu0
      %v2792 = vadd.f32 0.0, %v2791
      %v2793 = vpop.f32.mrf.mxu0
      %v2794 = vpop.f32.mrf.mxu0
      %v2795 = vpop.f32.mrf.mxu0
      %2796 = vdwg.mxu0
      %2797 = vrot.lane.b32.xlu0 %v1018, 120
      %v2798 = vpop.permute.xlu0 %2797
      %2799 = vrot.lane.b32.xlu0 %v1034, 120
      %v2800 = vpop.permute.xlu0 %2799
      %v2802 = vsel %vm1049, %v2798, 0
      %v2805 = vsel %vm1049, %v2800, 0
      %2807 = vmatprep.subr.bf16.mxu0 0
      %2808 = vmatpush1.bf16.xpose.msra.mxu0 0
      %2809 = vmatprep.subr.bf16.mxu0 0
      %2810 = vmatpush1.bf16.xpose.msra.mxu0 0
      %2811 = vmatprep.subr.bf16.mxu0 0
      %2812 = vmatpush1.bf16.xpose.msra.mxu0 0
      %2813 = vmatprep.subr.bf16.mxu0 0
      %2814 = vmatpush1.bf16.xpose.msra.mxu0 0
      %2815 = vmatprep.subr.bf16.mxu0 0
      %2816 = vmatpush1.bf16.xpose.msra.mxu0 0
      %2817 = vmatprep.subr.bf16.mxu0 0
      %2818 = vmatpush1.bf16.xpose.msra.mxu0 0
      %2819 = vmatprep.subr.bf16.mxu0 0
      %2820 = vmatpush1.bf16.xpose.msra.mxu0 0
      %2821 = vmatprep.subr.bf16.mxu0 0
      %2822 = vmatpush1.bf16.xpose.msra.mxu0 %v2805
      %2823 = vmatprep.subr.bf16.mxu0 0
      %2824 = vmatpush2.bf16.xpose.msra.mxu0 0
      %2825 = vmatprep.subr.bf16.mxu0 0
      %2826 = vmatpush2.bf16.xpose.msra.mxu0 0
      %2827 = vmatprep.subr.bf16.mxu0 0
      %2828 = vmatpush2.bf16.xpose.msra.mxu0 0
      %2829 = vmatprep.subr.bf16.mxu0 0
      %2830 = vmatpush2.bf16.xpose.msra.mxu0 0
      %2831 = vmatprep.subr.bf16.mxu0 0
      %2832 = vmatpush2.bf16.xpose.msra.mxu0 0
      %2833 = vmatprep.subr.bf16.mxu0 0
      %2834 = vmatpush2.bf16.xpose.msra.mxu0 0
      %2835 = vmatprep.subr.bf16.mxu0 0
      %2836 = vmatpush2.bf16.xpose.msra.mxu0 0
      %2837 = vmatprep.subr.bf16.mxu0 0
      %2838 = vmatpush2.bf16.xpose.msra.mxu0 0
      %2839 = vmatprep.mubr.bf16.mxu0 0
      %2840 = vmatmul.mubr.bf16.gmra.mxu0 %v2802
      %v2841 = vpop.f32.mrf.mxu0
      %v2842 = vadd.f32 0.0, %v2841
      %v2843 = vpop.f32.mrf.mxu0
      %v2844 = vpop.f32.mrf.mxu0
      %v2845 = vpop.f32.mrf.mxu0
      %2846 = vdwg.mxu0
      %2847 = vrot.lane.b32.xlu0 %v1019, 120
      %v2848 = vpop.permute.xlu0 %2847
      %2849 = vrot.lane.b32.xlu0 %v1035, 120
      %v2850 = vpop.permute.xlu0 %2849
      %v2852 = vsel %vm1049, %v2848, 0
      %v2855 = vsel %vm1049, %v2850, 0
      %2857 = vmatprep.subr.bf16.mxu0 0
      %2858 = vmatpush1.bf16.xpose.msra.mxu0 0
      %2859 = vmatprep.subr.bf16.mxu0 0
      %2860 = vmatpush1.bf16.xpose.msra.mxu0 0
      %2861 = vmatprep.subr.bf16.mxu0 0
      %2862 = vmatpush1.bf16.xpose.msra.mxu0 0
      %2863 = vmatprep.subr.bf16.mxu0 0
      %2864 = vmatpush1.bf16.xpose.msra.mxu0 0
      %2865 = vmatprep.subr.bf16.mxu0 0
      %2866 = vmatpush1.bf16.xpose.msra.mxu0 0
      %2867 = vmatprep.subr.bf16.mxu0 0
      %2868 = vmatpush1.bf16.xpose.msra.mxu0 0
      %2869 = vmatprep.subr.bf16.mxu0 0
      %2870 = vmatpush1.bf16.xpose.msra.mxu0 0
      %2871 = vmatprep.subr.bf16.mxu0 0
      %2872 = vmatpush1.bf16.xpose.msra.mxu0 %v2855
      %2873 = vmatprep.subr.bf16.mxu0 0
      %2874 = vmatpush2.bf16.xpose.msra.mxu0 0
      %2875 = vmatprep.subr.bf16.mxu0 0
      %2876 = vmatpush2.bf16.xpose.msra.mxu0 0
      %2877 = vmatprep.subr.bf16.mxu0 0
      %2878 = vmatpush2.bf16.xpose.msra.mxu0 0
      %2879 = vmatprep.subr.bf16.mxu0 0
      %2880 = vmatpush2.bf16.xpose.msra.mxu0 0
      %2881 = vmatprep.subr.bf16.mxu0 0
      %2882 = vmatpush2.bf16.xpose.msra.mxu0 0
      %2883 = vmatprep.subr.bf16.mxu0 0
      %2884 = vmatpush2.bf16.xpose.msra.mxu0 0
      %2885 = vmatprep.subr.bf16.mxu0 0
      %2886 = vmatpush2.bf16.xpose.msra.mxu0 0
      %2887 = vmatprep.subr.bf16.mxu0 0
      %2888 = vmatpush2.bf16.xpose.msra.mxu0 0
      %2889 = vmatprep.mubr.bf16.mxu0 0
      %2890 = vmatmul.mubr.bf16.gmra.mxu0 %v2852
      %v2891 = vpop.f32.mrf.mxu0
      %v2892 = vadd.f32 0.0, %v2891
      %v2893 = vpop.f32.mrf.mxu0
      %v2894 = vpop.f32.mrf.mxu0
      %v2895 = vpop.f32.mrf.mxu0
      %2896 = vdwg.mxu0
      %2897 = vrot.lane.b32.xlu0 %v1020, 120
      %v2898 = vpop.permute.xlu0 %2897
      %2899 = vrot.lane.b32.xlu0 %v1036, 120
      %v2900 = vpop.permute.xlu0 %2899
      %v2902 = vsel %vm1049, %v2898, 0
      %v2905 = vsel %vm1049, %v2900, 0
      %2907 = vmatprep.subr.bf16.mxu0 0
      %2908 = vmatpush1.bf16.xpose.msra.mxu0 0
      %2909 = vmatprep.subr.bf16.mxu0 0
      %2910 = vmatpush1.bf16.xpose.msra.mxu0 0
      %2911 = vmatprep.subr.bf16.mxu0 0
      %2912 = vmatpush1.bf16.xpose.msra.mxu0 0
      %2913 = vmatprep.subr.bf16.mxu0 0
      %2914 = vmatpush1.bf16.xpose.msra.mxu0 0
      %2915 = vmatprep.subr.bf16.mxu0 0
      %2916 = vmatpush1.bf16.xpose.msra.mxu0 0
      %2917 = vmatprep.subr.bf16.mxu0 0
      %2918 = vmatpush1.bf16.xpose.msra.mxu0 0
      %2919 = vmatprep.subr.bf16.mxu0 0
      %2920 = vmatpush1.bf16.xpose.msra.mxu0 0
      %2921 = vmatprep.subr.bf16.mxu0 0
      %2922 = vmatpush1.bf16.xpose.msra.mxu0 %v2905
      %2923 = vmatprep.subr.bf16.mxu0 0
      %2924 = vmatpush2.bf16.xpose.msra.mxu0 0
      %2925 = vmatprep.subr.bf16.mxu0 0
      %2926 = vmatpush2.bf16.xpose.msra.mxu0 0
      %2927 = vmatprep.subr.bf16.mxu0 0
      %2928 = vmatpush2.bf16.xpose.msra.mxu0 0
      %2929 = vmatprep.subr.bf16.mxu0 0
      %2930 = vmatpush2.bf16.xpose.msra.mxu0 0
      %2931 = vmatprep.subr.bf16.mxu0 0
      %2932 = vmatpush2.bf16.xpose.msra.mxu0 0
      %2933 = vmatprep.subr.bf16.mxu0 0
      %2934 = vmatpush2.bf16.xpose.msra.mxu0 0
      %2935 = vmatprep.subr.bf16.mxu0 0
      %2936 = vmatpush2.bf16.xpose.msra.mxu0 0
      %2937 = vmatprep.subr.bf16.mxu0 0
      %2938 = vmatpush2.bf16.xpose.msra.mxu0 0
      %2939 = vmatprep.mubr.bf16.mxu0 0
      %2940 = vmatmul.mubr.bf16.gmra.mxu0 %v2902
      %v2941 = vpop.f32.mrf.mxu0
      %v2942 = vadd.f32 0.0, %v2941
      %v2943 = vpop.f32.mrf.mxu0
      %v2944 = vpop.f32.mrf.mxu0
      %v2945 = vpop.f32.mrf.mxu0
      %2946 = vdwg.mxu0
      %2947 = vrot.lane.b32.xlu0 %v1021, 120
      %v2948 = vpop.permute.xlu0 %2947
      %2949 = vrot.lane.b32.xlu0 %v1037, 120
      %v2950 = vpop.permute.xlu0 %2949
      %v2952 = vsel %vm1049, %v2948, 0
      %v2955 = vsel %vm1049, %v2950, 0
      %2957 = vmatprep.subr.bf16.mxu0 0
      %2958 = vmatpush1.bf16.xpose.msra.mxu0 0
      %2959 = vmatprep.subr.bf16.mxu0 0
      %2960 = vmatpush1.bf16.xpose.msra.mxu0 0
      %2961 = vmatprep.subr.bf16.mxu0 0
      %2962 = vmatpush1.bf16.xpose.msra.mxu0 0
      %2963 = vmatprep.subr.bf16.mxu0 0
      %2964 = vmatpush1.bf16.xpose.msra.mxu0 0
      %2965 = vmatprep.subr.bf16.mxu0 0
      %2966 = vmatpush1.bf16.xpose.msra.mxu0 0
      %2967 = vmatprep.subr.bf16.mxu0 0
      %2968 = vmatpush1.bf16.xpose.msra.mxu0 0
      %2969 = vmatprep.subr.bf16.mxu0 0
      %2970 = vmatpush1.bf16.xpose.msra.mxu0 0
      %2971 = vmatprep.subr.bf16.mxu0 0
      %2972 = vmatpush1.bf16.xpose.msra.mxu0 %v2955
      %2973 = vmatprep.subr.bf16.mxu0 0
      %2974 = vmatpush2.bf16.xpose.msra.mxu0 0
      %2975 = vmatprep.subr.bf16.mxu0 0
      %2976 = vmatpush2.bf16.xpose.msra.mxu0 0
      %2977 = vmatprep.subr.bf16.mxu0 0
      %2978 = vmatpush2.bf16.xpose.msra.mxu0 0
      %2979 = vmatprep.subr.bf16.mxu0 0
      %2980 = vmatpush2.bf16.xpose.msra.mxu0 0
      %2981 = vmatprep.subr.bf16.mxu0 0
      %2982 = vmatpush2.bf16.xpose.msra.mxu0 0
      %2983 = vmatprep.subr.bf16.mxu0 0
      %2984 = vmatpush2.bf16.xpose.msra.mxu0 0
      %2985 = vmatprep.subr.bf16.mxu0 0
      %2986 = vmatpush2.bf16.xpose.msra.mxu0 0
      %2987 = vmatprep.subr.bf16.mxu0 0
      %2988 = vmatpush2.bf16.xpose.msra.mxu0 0
      %2989 = vmatprep.mubr.bf16.mxu0 0
      %2990 = vmatmul.mubr.bf16.gmra.mxu0 %v2952
      %v2991 = vpop.f32.mrf.mxu0
      %v2992 = vadd.f32 0.0, %v2991
      %v2993 = vpop.f32.mrf.mxu0
      %v2994 = vpop.f32.mrf.mxu0
      %v2995 = vpop.f32.mrf.mxu0
      %2996 = vdwg.mxu0
      %2997 = vrot.lane.b32.xlu0 %v1022, 120
      %v2998 = vpop.permute.xlu0 %2997
      %2999 = vrot.lane.b32.xlu0 %v1038, 120
      %v3000 = vpop.permute.xlu0 %2999
      %v3002 = vsel %vm1049, %v2998, 0
      %v3005 = vsel %vm1049, %v3000, 0
      %3007 = vmatprep.subr.bf16.mxu0 0
      %3008 = vmatpush1.bf16.xpose.msra.mxu0 0
      %3009 = vmatprep.subr.bf16.mxu0 0
      %3010 = vmatpush1.bf16.xpose.msra.mxu0 0
      %3011 = vmatprep.subr.bf16.mxu0 0
      %3012 = vmatpush1.bf16.xpose.msra.mxu0 0
      %3013 = vmatprep.subr.bf16.mxu0 0
      %3014 = vmatpush1.bf16.xpose.msra.mxu0 0
      %3015 = vmatprep.subr.bf16.mxu0 0
      %3016 = vmatpush1.bf16.xpose.msra.mxu0 0
      %3017 = vmatprep.subr.bf16.mxu0 0
      %3018 = vmatpush1.bf16.xpose.msra.mxu0 0
      %3019 = vmatprep.subr.bf16.mxu0 0
      %3020 = vmatpush1.bf16.xpose.msra.mxu0 0
      %3021 = vmatprep.subr.bf16.mxu0 0
      %3022 = vmatpush1.bf16.xpose.msra.mxu0 %v3005
      %3023 = vmatprep.subr.bf16.mxu0 0
      %3024 = vmatpush2.bf16.xpose.msra.mxu0 0
      %3025 = vmatprep.subr.bf16.mxu0 0
      %3026 = vmatpush2.bf16.xpose.msra.mxu0 0
      %3027 = vmatprep.subr.bf16.mxu0 0
      %3028 = vmatpush2.bf16.xpose.msra.mxu0 0
      %3029 = vmatprep.subr.bf16.mxu0 0
      %3030 = vmatpush2.bf16.xpose.msra.mxu0 0
      %3031 = vmatprep.subr.bf16.mxu0 0
      %3032 = vmatpush2.bf16.xpose.msra.mxu0 0
      %3033 = vmatprep.subr.bf16.mxu0 0
      %3034 = vmatpush2.bf16.xpose.msra.mxu0 0
      %3035 = vmatprep.subr.bf16.mxu0 0
      %3036 = vmatpush2.bf16.xpose.msra.mxu0 0
      %3037 = vmatprep.subr.bf16.mxu0 0
      %3038 = vmatpush2.bf16.xpose.msra.mxu0 0
      %3039 = vmatprep.mubr.bf16.mxu0 0
      %3040 = vmatmul.mubr.bf16.gmra.mxu0 %v3002
      %v3041 = vpop.f32.mrf.mxu0
      %v3042 = vadd.f32 0.0, %v3041
      %v3043 = vpop.f32.mrf.mxu0
      %v3044 = vpop.f32.mrf.mxu0
      %v3045 = vpop.f32.mrf.mxu0
      %3046 = vdwg.mxu0
      %3047 = vrot.lane.b32.xlu0 %v1023, 120
      %v3048 = vpop.permute.xlu0 %3047
      %3049 = vrot.lane.b32.xlu0 %v1039, 120
      %v3050 = vpop.permute.xlu0 %3049
      %v3052 = vsel %vm1049, %v3048, 0
      %v3055 = vsel %vm1049, %v3050, 0
      %3057 = vmatprep.subr.bf16.mxu0 0
      %3058 = vmatpush1.bf16.xpose.msra.mxu0 0
      %3059 = vmatprep.subr.bf16.mxu0 0
      %3060 = vmatpush1.bf16.xpose.msra.mxu0 0
      %3061 = vmatprep.subr.bf16.mxu0 0
      %3062 = vmatpush1.bf16.xpose.msra.mxu0 0
      %3063 = vmatprep.subr.bf16.mxu0 0
      %3064 = vmatpush1.bf16.xpose.msra.mxu0 0
      %3065 = vmatprep.subr.bf16.mxu0 0
      %3066 = vmatpush1.bf16.xpose.msra.mxu0 0
      %3067 = vmatprep.subr.bf16.mxu0 0
      %3068 = vmatpush1.bf16.xpose.msra.mxu0 0
      %3069 = vmatprep.subr.bf16.mxu0 0
      %3070 = vmatpush1.bf16.xpose.msra.mxu0 0
      %3071 = vmatprep.subr.bf16.mxu0 0
      %3072 = vmatpush1.bf16.xpose.msra.mxu0 %v3055
      %3073 = vmatprep.subr.bf16.mxu0 0
      %3074 = vmatpush2.bf16.xpose.msra.mxu0 0
      %3075 = vmatprep.subr.bf16.mxu0 0
      %3076 = vmatpush2.bf16.xpose.msra.mxu0 0
      %3077 = vmatprep.subr.bf16.mxu0 0
      %3078 = vmatpush2.bf16.xpose.msra.mxu0 0
      %3079 = vmatprep.subr.bf16.mxu0 0
      %3080 = vmatpush2.bf16.xpose.msra.mxu0 0
      %3081 = vmatprep.subr.bf16.mxu0 0
      %3082 = vmatpush2.bf16.xpose.msra.mxu0 0
      %3083 = vmatprep.subr.bf16.mxu0 0
      %3084 = vmatpush2.bf16.xpose.msra.mxu0 0
      %3085 = vmatprep.subr.bf16.mxu0 0
      %3086 = vmatpush2.bf16.xpose.msra.mxu0 0
      %3087 = vmatprep.subr.bf16.mxu0 0
      %3088 = vmatpush2.bf16.xpose.msra.mxu0 0
      %3089 = vmatprep.mubr.bf16.mxu0 0
      %3090 = vmatmul.mubr.bf16.gmra.mxu0 %v3052
      %v3091 = vpop.f32.mrf.mxu0
      %v3092 = vadd.f32 0.0, %v3091
      %v3093 = vpop.f32.mrf.mxu0
      %v3094 = vpop.f32.mrf.mxu0
      %v3095 = vpop.f32.mrf.mxu0
      %3096 = vdwg.mxu0
      %3097 = vrot.lane.b32.xlu0 %v1024, 120
      %v3098 = vpop.permute.xlu0 %3097
      %3099 = vrot.lane.b32.xlu0 %v1040, 120
      %v3100 = vpop.permute.xlu0 %3099
      %v3102 = vsel %vm1049, %v3098, 0
      %v3105 = vsel %vm1049, %v3100, 0
      %3107 = vmatprep.subr.bf16.mxu0 0
      %3108 = vmatpush1.bf16.xpose.msra.mxu0 0
      %3109 = vmatprep.subr.bf16.mxu0 0
      %3110 = vmatpush1.bf16.xpose.msra.mxu0 0
      %3111 = vmatprep.subr.bf16.mxu0 0
      %3112 = vmatpush1.bf16.xpose.msra.mxu0 0
      %3113 = vmatprep.subr.bf16.mxu0 0
      %3114 = vmatpush1.bf16.xpose.msra.mxu0 0
      %3115 = vmatprep.subr.bf16.mxu0 0
      %3116 = vmatpush1.bf16.xpose.msra.mxu0 0
      %3117 = vmatprep.subr.bf16.mxu0 0
      %3118 = vmatpush1.bf16.xpose.msra.mxu0 0
      %3119 = vmatprep.subr.bf16.mxu0 0
      %3120 = vmatpush1.bf16.xpose.msra.mxu0 0
      %3121 = vmatprep.subr.bf16.mxu0 0
      %3122 = vmatpush1.bf16.xpose.msra.mxu0 %v3105
      %3123 = vmatprep.subr.bf16.mxu0 0
      %3124 = vmatpush2.bf16.xpose.msra.mxu0 0
      %3125 = vmatprep.subr.bf16.mxu0 0
      %3126 = vmatpush2.bf16.xpose.msra.mxu0 0
      %3127 = vmatprep.subr.bf16.mxu0 0
      %3128 = vmatpush2.bf16.xpose.msra.mxu0 0
      %3129 = vmatprep.subr.bf16.mxu0 0
      %3130 = vmatpush2.bf16.xpose.msra.mxu0 0
      %3131 = vmatprep.subr.bf16.mxu0 0
      %3132 = vmatpush2.bf16.xpose.msra.mxu0 0
      %3133 = vmatprep.subr.bf16.mxu0 0
      %3134 = vmatpush2.bf16.xpose.msra.mxu0 0
      %3135 = vmatprep.subr.bf16.mxu0 0
      %3136 = vmatpush2.bf16.xpose.msra.mxu0 0
      %3137 = vmatprep.subr.bf16.mxu0 0
      %3138 = vmatpush2.bf16.xpose.msra.mxu0 0
      %3139 = vmatprep.mubr.bf16.mxu0 0
      %3140 = vmatmul.mubr.bf16.gmra.mxu0 %v3102
      %v3141 = vpop.f32.mrf.mxu0
      %v3142 = vadd.f32 0.0, %v3141
      %v3143 = vpop.f32.mrf.mxu0
      %v3144 = vpop.f32.mrf.mxu0
      %v3145 = vpop.f32.mrf.mxu0
      %3146 = vdwg.mxu0
      %3147 = vrot.lane.b32.xlu0 %v1025, 120
      %v3148 = vpop.permute.xlu0 %3147
      %3149 = vrot.lane.b32.xlu0 %v1041, 120
      %v3150 = vpop.permute.xlu0 %3149
      %v3152 = vsel %vm1049, %v3148, 0
      %v3155 = vsel %vm1049, %v3150, 0
      %3157 = vmatprep.subr.bf16.mxu0 0
      %3158 = vmatpush1.bf16.xpose.msra.mxu0 0
      %3159 = vmatprep.subr.bf16.mxu0 0
      %3160 = vmatpush1.bf16.xpose.msra.mxu0 0
      %3161 = vmatprep.subr.bf16.mxu0 0
      %3162 = vmatpush1.bf16.xpose.msra.mxu0 0
      %3163 = vmatprep.subr.bf16.mxu0 0
      %3164 = vmatpush1.bf16.xpose.msra.mxu0 0
      %3165 = vmatprep.subr.bf16.mxu0 0
      %3166 = vmatpush1.bf16.xpose.msra.mxu0 0
      %3167 = vmatprep.subr.bf16.mxu0 0
      %3168 = vmatpush1.bf16.xpose.msra.mxu0 0
      %3169 = vmatprep.subr.bf16.mxu0 0
      %3170 = vmatpush1.bf16.xpose.msra.mxu0 0
      %3171 = vmatprep.subr.bf16.mxu0 0
      %3172 = vmatpush1.bf16.xpose.msra.mxu0 %v3155
      %3173 = vmatprep.subr.bf16.mxu0 0
      %3174 = vmatpush2.bf16.xpose.msra.mxu0 0
      %3175 = vmatprep.subr.bf16.mxu0 0
      %3176 = vmatpush2.bf16.xpose.msra.mxu0 0
      %3177 = vmatprep.subr.bf16.mxu0 0
      %3178 = vmatpush2.bf16.xpose.msra.mxu0 0
      %3179 = vmatprep.subr.bf16.mxu0 0
      %3180 = vmatpush2.bf16.xpose.msra.mxu0 0
      %3181 = vmatprep.subr.bf16.mxu0 0
      %3182 = vmatpush2.bf16.xpose.msra.mxu0 0
      %3183 = vmatprep.subr.bf16.mxu0 0
      %3184 = vmatpush2.bf16.xpose.msra.mxu0 0
      %3185 = vmatprep.subr.bf16.mxu0 0
      %3186 = vmatpush2.bf16.xpose.msra.mxu0 0
      %3187 = vmatprep.subr.bf16.mxu0 0
      %3188 = vmatpush2.bf16.xpose.msra.mxu0 0
      %3189 = vmatprep.mubr.bf16.mxu0 0
      %3190 = vmatmul.mubr.bf16.gmra.mxu0 %v3152
      %v3191 = vpop.f32.mrf.mxu0
      %v3192 = vadd.f32 0.0, %v3191
      %v3193 = vpop.f32.mrf.mxu0
      %v3194 = vpop.f32.mrf.mxu0
      %v3195 = vpop.f32.mrf.mxu0
      %3196 = vdwg.mxu0
      %3197 = vrot.lane.b32.xlu0 %v1026, 120
      %v3198 = vpop.permute.xlu0 %3197
      %3199 = vrot.lane.b32.xlu0 %v1042, 120
      %v3200 = vpop.permute.xlu0 %3199
      %v3202 = vsel %vm1049, %v3198, 0
      %v3205 = vsel %vm1049, %v3200, 0
      %3207 = vmatprep.subr.bf16.mxu0 0
      %3208 = vmatpush1.bf16.xpose.msra.mxu0 0
      %3209 = vmatprep.subr.bf16.mxu0 0
      %3210 = vmatpush1.bf16.xpose.msra.mxu0 0
      %3211 = vmatprep.subr.bf16.mxu0 0
      %3212 = vmatpush1.bf16.xpose.msra.mxu0 0
      %3213 = vmatprep.subr.bf16.mxu0 0
      %3214 = vmatpush1.bf16.xpose.msra.mxu0 0
      %3215 = vmatprep.subr.bf16.mxu0 0
      %3216 = vmatpush1.bf16.xpose.msra.mxu0 0
      %3217 = vmatprep.subr.bf16.mxu0 0
      %3218 = vmatpush1.bf16.xpose.msra.mxu0 0
      %3219 = vmatprep.subr.bf16.mxu0 0
      %3220 = vmatpush1.bf16.xpose.msra.mxu0 0
      %3221 = vmatprep.subr.bf16.mxu0 0
      %3222 = vmatpush1.bf16.xpose.msra.mxu0 %v3205
      %3223 = vmatprep.subr.bf16.mxu0 0
      %3224 = vmatpush2.bf16.xpose.msra.mxu0 0
      %3225 = vmatprep.subr.bf16.mxu0 0
      %3226 = vmatpush2.bf16.xpose.msra.mxu0 0
      %3227 = vmatprep.subr.bf16.mxu0 0
      %3228 = vmatpush2.bf16.xpose.msra.mxu0 0
      %3229 = vmatprep.subr.bf16.mxu0 0
      %3230 = vmatpush2.bf16.xpose.msra.mxu0 0
      %3231 = vmatprep.subr.bf16.mxu0 0
      %3232 = vmatpush2.bf16.xpose.msra.mxu0 0
      %3233 = vmatprep.subr.bf16.mxu0 0
      %3234 = vmatpush2.bf16.xpose.msra.mxu0 0
      %3235 = vmatprep.subr.bf16.mxu0 0
      %3236 = vmatpush2.bf16.xpose.msra.mxu0 0
      %3237 = vmatprep.subr.bf16.mxu0 0
      %3238 = vmatpush2.bf16.xpose.msra.mxu0 0
      %3239 = vmatprep.mubr.bf16.mxu0 0
      %3240 = vmatmul.mubr.bf16.gmra.mxu0 %v3202
      %v3241 = vpop.f32.mrf.mxu0
      %v3242 = vadd.f32 0.0, %v3241
      %v3243 = vpop.f32.mrf.mxu0
      %v3244 = vpop.f32.mrf.mxu0
      %v3245 = vpop.f32.mrf.mxu0
      %3246 = vdwg.mxu0
      %3247 = vrot.lane.b32.xlu0 %v1027, 120
      %v3248 = vpop.permute.xlu0 %3247
      %3249 = vrot.lane.b32.xlu0 %v1043, 120
      %v3250 = vpop.permute.xlu0 %3249
      %v3252 = vsel %vm1049, %v3248, 0
      %v3255 = vsel %vm1049, %v3250, 0
      %3257 = vmatprep.subr.bf16.mxu0 0
      %3258 = vmatpush1.bf16.xpose.msra.mxu0 0
      %3259 = vmatprep.subr.bf16.mxu0 0
      %3260 = vmatpush1.bf16.xpose.msra.mxu0 0
      %3261 = vmatprep.subr.bf16.mxu0 0
      %3262 = vmatpush1.bf16.xpose.msra.mxu0 0
      %3263 = vmatprep.subr.bf16.mxu0 0
      %3264 = vmatpush1.bf16.xpose.msra.mxu0 0
      %3265 = vmatprep.subr.bf16.mxu0 0
      %3266 = vmatpush1.bf16.xpose.msra.mxu0 0
      %3267 = vmatprep.subr.bf16.mxu0 0
      %3268 = vmatpush1.bf16.xpose.msra.mxu0 0
      %3269 = vmatprep.subr.bf16.mxu0 0
      %3270 = vmatpush1.bf16.xpose.msra.mxu0 0
      %3271 = vmatprep.subr.bf16.mxu0 0
      %3272 = vmatpush1.bf16.xpose.msra.mxu0 %v3255
      %3273 = vmatprep.subr.bf16.mxu0 0
      %3274 = vmatpush2.bf16.xpose.msra.mxu0 0
      %3275 = vmatprep.subr.bf16.mxu0 0
      %3276 = vmatpush2.bf16.xpose.msra.mxu0 0
      %3277 = vmatprep.subr.bf16.mxu0 0
      %3278 = vmatpush2.bf16.xpose.msra.mxu0 0
      %3279 = vmatprep.subr.bf16.mxu0 0
      %3280 = vmatpush2.bf16.xpose.msra.mxu0 0
      %3281 = vmatprep.subr.bf16.mxu0 0
      %3282 = vmatpush2.bf16.xpose.msra.mxu0 0
      %3283 = vmatprep.subr.bf16.mxu0 0
      %3284 = vmatpush2.bf16.xpose.msra.mxu0 0
      %3285 = vmatprep.subr.bf16.mxu0 0
      %3286 = vmatpush2.bf16.xpose.msra.mxu0 0
      %3287 = vmatprep.subr.bf16.mxu0 0
      %3288 = vmatpush2.bf16.xpose.msra.mxu0 0
      %3289 = vmatprep.mubr.bf16.mxu0 0
      %3290 = vmatmul.mubr.bf16.gmra.mxu0 %v3252
      %v3291 = vpop.f32.mrf.mxu0
      %v3292 = vadd.f32 0.0, %v3291
      %v3293 = vpop.f32.mrf.mxu0
      %v3294 = vpop.f32.mrf.mxu0
      %v3295 = vpop.f32.mrf.mxu0
      %3296 = vdwg.mxu0
      %3297 = vrot.lane.b32.xlu0 %v1028, 120
      %v3298 = vpop.permute.xlu0 %3297
      %3299 = vrot.lane.b32.xlu0 %v1044, 120
      %v3300 = vpop.permute.xlu0 %3299
      %v3302 = vsel %vm1049, %v3298, 0
      %v3305 = vsel %vm1049, %v3300, 0
      %3307 = vmatprep.subr.bf16.mxu0 0
      %3308 = vmatpush1.bf16.xpose.msra.mxu0 0
      %3309 = vmatprep.subr.bf16.mxu0 0
      %3310 = vmatpush1.bf16.xpose.msra.mxu0 0
      %3311 = vmatprep.subr.bf16.mxu0 0
      %3312 = vmatpush1.bf16.xpose.msra.mxu0 0
      %3313 = vmatprep.subr.bf16.mxu0 0
      %3314 = vmatpush1.bf16.xpose.msra.mxu0 0
      %3315 = vmatprep.subr.bf16.mxu0 0
      %3316 = vmatpush1.bf16.xpose.msra.mxu0 0
      %3317 = vmatprep.subr.bf16.mxu0 0
      %3318 = vmatpush1.bf16.xpose.msra.mxu0 0
      %3319 = vmatprep.subr.bf16.mxu0 0
      %3320 = vmatpush1.bf16.xpose.msra.mxu0 0
      %3321 = vmatprep.subr.bf16.mxu0 0
      %3322 = vmatpush1.bf16.xpose.msra.mxu0 %v3305
      %3323 = vmatprep.subr.bf16.mxu0 0
      %3324 = vmatpush2.bf16.xpose.msra.mxu0 0
      %3325 = vmatprep.subr.bf16.mxu0 0
      %3326 = vmatpush2.bf16.xpose.msra.mxu0 0
      %3327 = vmatprep.subr.bf16.mxu0 0
      %3328 = vmatpush2.bf16.xpose.msra.mxu0 0
      %3329 = vmatprep.subr.bf16.mxu0 0
      %3330 = vmatpush2.bf16.xpose.msra.mxu0 0
      %3331 = vmatprep.subr.bf16.mxu0 0
      %3332 = vmatpush2.bf16.xpose.msra.mxu0 0
      %3333 = vmatprep.subr.bf16.mxu0 0
      %3334 = vmatpush2.bf16.xpose.msra.mxu0 0
      %3335 = vmatprep.subr.bf16.mxu0 0
      %3336 = vmatpush2.bf16.xpose.msra.mxu0 0
      %3337 = vmatprep.subr.bf16.mxu0 0
      %3338 = vmatpush2.bf16.xpose.msra.mxu0 0
      %3339 = vmatprep.mubr.bf16.mxu0 0
      %3340 = vmatmul.mubr.bf16.gmra.mxu0 %v3302
      %v3341 = vpop.f32.mrf.mxu0
      %v3342 = vadd.f32 0.0, %v3341
      %v3343 = vpop.f32.mrf.mxu0
      %v3344 = vpop.f32.mrf.mxu0
      %v3345 = vpop.f32.mrf.mxu0
      %3346 = vdwg.mxu0
      %3347 = vrot.lane.b32.xlu0 %v1029, 120
      %v3348 = vpop.permute.xlu0 %3347
      %3349 = vrot.lane.b32.xlu0 %v1045, 120
      %v3350 = vpop.permute.xlu0 %3349
      %v3352 = vsel %vm1049, %v3348, 0
      %v3355 = vsel %vm1049, %v3350, 0
      %3357 = vmatprep.subr.bf16.mxu0 0
      %3358 = vmatpush1.bf16.xpose.msra.mxu0 0
      %3359 = vmatprep.subr.bf16.mxu0 0
      %3360 = vmatpush1.bf16.xpose.msra.mxu0 0
      %3361 = vmatprep.subr.bf16.mxu0 0
      %3362 = vmatpush1.bf16.xpose.msra.mxu0 0
      %3363 = vmatprep.subr.bf16.mxu0 0
      %3364 = vmatpush1.bf16.xpose.msra.mxu0 0
      %3365 = vmatprep.subr.bf16.mxu0 0
      %3366 = vmatpush1.bf16.xpose.msra.mxu0 0
      %3367 = vmatprep.subr.bf16.mxu0 0
      %3368 = vmatpush1.bf16.xpose.msra.mxu0 0
      %3369 = vmatprep.subr.bf16.mxu0 0
      %3370 = vmatpush1.bf16.xpose.msra.mxu0 0
      %3371 = vmatprep.subr.bf16.mxu0 0
      %3372 = vmatpush1.bf16.xpose.msra.mxu0 %v3355
      %3373 = vmatprep.subr.bf16.mxu0 0
      %3374 = vmatpush2.bf16.xpose.msra.mxu0 0
      %3375 = vmatprep.subr.bf16.mxu0 0
      %3376 = vmatpush2.bf16.xpose.msra.mxu0 0
      %3377 = vmatprep.subr.bf16.mxu0 0
      %3378 = vmatpush2.bf16.xpose.msra.mxu0 0
      %3379 = vmatprep.subr.bf16.mxu0 0
      %3380 = vmatpush2.bf16.xpose.msra.mxu0 0
      %3381 = vmatprep.subr.bf16.mxu0 0
      %3382 = vmatpush2.bf16.xpose.msra.mxu0 0
      %3383 = vmatprep.subr.bf16.mxu0 0
      %3384 = vmatpush2.bf16.xpose.msra.mxu0 0
      %3385 = vmatprep.subr.bf16.mxu0 0
      %3386 = vmatpush2.bf16.xpose.msra.mxu0 0
      %3387 = vmatprep.subr.bf16.mxu0 0
      %3388 = vmatpush2.bf16.xpose.msra.mxu0 0
      %3389 = vmatprep.mubr.bf16.mxu0 0
      %3390 = vmatmul.mubr.bf16.gmra.mxu0 %v3352
      %v3391 = vpop.f32.mrf.mxu0
      %v3392 = vadd.f32 0.0, %v3391
      %v3393 = vpop.f32.mrf.mxu0
      %v3394 = vpop.f32.mrf.mxu0
      %v3395 = vpop.f32.mrf.mxu0
      %3396 = vdwg.mxu0
      %3397 = vrot.lane.b32.xlu0 %v1030, 120
      %v3398 = vpop.permute.xlu0 %3397
      %3399 = vrot.lane.b32.xlu0 %v1046, 120
      %v3400 = vpop.permute.xlu0 %3399
      %v3402 = vsel %vm1049, %v3398, 0
      %v3405 = vsel %vm1049, %v3400, 0
      %3407 = vmatprep.subr.bf16.mxu0 0
      %3408 = vmatpush1.bf16.xpose.msra.mxu0 0
      %3409 = vmatprep.subr.bf16.mxu0 0
      %3410 = vmatpush1.bf16.xpose.msra.mxu0 0
      %3411 = vmatprep.subr.bf16.mxu0 0
      %3412 = vmatpush1.bf16.xpose.msra.mxu0 0
      %3413 = vmatprep.subr.bf16.mxu0 0
      %3414 = vmatpush1.bf16.xpose.msra.mxu0 0
      %3415 = vmatprep.subr.bf16.mxu0 0
      %3416 = vmatpush1.bf16.xpose.msra.mxu0 0
      %3417 = vmatprep.subr.bf16.mxu0 0
      %3418 = vmatpush1.bf16.xpose.msra.mxu0 0
      %3419 = vmatprep.subr.bf16.mxu0 0
      %3420 = vmatpush1.bf16.xpose.msra.mxu0 0
      %3421 = vmatprep.subr.bf16.mxu0 0
      %3422 = vmatpush1.bf16.xpose.msra.mxu0 %v3405
      %3423 = vmatprep.subr.bf16.mxu0 0
      %3424 = vmatpush2.bf16.xpose.msra.mxu0 0
      %3425 = vmatprep.subr.bf16.mxu0 0
      %3426 = vmatpush2.bf16.xpose.msra.mxu0 0
      %3427 = vmatprep.subr.bf16.mxu0 0
      %3428 = vmatpush2.bf16.xpose.msra.mxu0 0
      %3429 = vmatprep.subr.bf16.mxu0 0
      %3430 = vmatpush2.bf16.xpose.msra.mxu0 0
      %3431 = vmatprep.subr.bf16.mxu0 0
      %3432 = vmatpush2.bf16.xpose.msra.mxu0 0
      %3433 = vmatprep.subr.bf16.mxu0 0
      %3434 = vmatpush2.bf16.xpose.msra.mxu0 0
      %3435 = vmatprep.subr.bf16.mxu0 0
      %3436 = vmatpush2.bf16.xpose.msra.mxu0 0
      %3437 = vmatprep.subr.bf16.mxu0 0
      %3438 = vmatpush2.bf16.xpose.msra.mxu0 0
      %3439 = vmatprep.mubr.bf16.mxu0 0
      %3440 = vmatmul.mubr.bf16.gmra.mxu0 %v3402
      %v3441 = vpop.f32.mrf.mxu0
      %v3442 = vadd.f32 0.0, %v3441
      %v3443 = vpop.f32.mrf.mxu0
      %v3444 = vpop.f32.mrf.mxu0
      %v3445 = vpop.f32.mrf.mxu0
      %3446 = vdwg.mxu0
      %3447 = vrot.lane.b32.xlu0 %v1031, 120
      %v3448 = vpop.permute.xlu0 %3447
      %3449 = vrot.lane.b32.xlu0 %v1047, 120
      %v3450 = vpop.permute.xlu0 %3449
      %v3452 = vsel %vm1049, %v3448, 0
      %v3455 = vsel %vm1049, %v3450, 0
      %3457 = vmatprep.subr.bf16.mxu0 0
      %3458 = vmatpush1.bf16.xpose.msra.mxu0 0
      %3459 = vmatprep.subr.bf16.mxu0 0
      %3460 = vmatpush1.bf16.xpose.msra.mxu0 0
      %3461 = vmatprep.subr.bf16.mxu0 0
      %3462 = vmatpush1.bf16.xpose.msra.mxu0 0
      %3463 = vmatprep.subr.bf16.mxu0 0
      %3464 = vmatpush1.bf16.xpose.msra.mxu0 0
      %3465 = vmatprep.subr.bf16.mxu0 0
      %3466 = vmatpush1.bf16.xpose.msra.mxu0 0
      %3467 = vmatprep.subr.bf16.mxu0 0
      %3468 = vmatpush1.bf16.xpose.msra.mxu0 0
      %3469 = vmatprep.subr.bf16.mxu0 0
      %3470 = vmatpush1.bf16.xpose.msra.mxu0 0
      %3471 = vmatprep.subr.bf16.mxu0 0
      %3472 = vmatpush1.bf16.xpose.msra.mxu0 %v3455
      %3473 = vmatprep.subr.bf16.mxu0 0
      %3474 = vmatpush2.bf16.xpose.msra.mxu0 0
      %3475 = vmatprep.subr.bf16.mxu0 0
      %3476 = vmatpush2.bf16.xpose.msra.mxu0 0
      %3477 = vmatprep.subr.bf16.mxu0 0
      %3478 = vmatpush2.bf16.xpose.msra.mxu0 0
      %3479 = vmatprep.subr.bf16.mxu0 0
      %3480 = vmatpush2.bf16.xpose.msra.mxu0 0
      %3481 = vmatprep.subr.bf16.mxu0 0
      %3482 = vmatpush2.bf16.xpose.msra.mxu0 0
      %3483 = vmatprep.subr.bf16.mxu0 0
      %3484 = vmatpush2.bf16.xpose.msra.mxu0 0
      %3485 = vmatprep.subr.bf16.mxu0 0
      %3486 = vmatpush2.bf16.xpose.msra.mxu0 0
      %3487 = vmatprep.subr.bf16.mxu0 0
      %3488 = vmatpush2.bf16.xpose.msra.mxu0 0
      %3489 = vmatprep.mubr.bf16.mxu0 0
      %3490 = vmatmul.mubr.bf16.gmra.mxu0 %v3452
      %v3491 = vpop.f32.mrf.mxu0
      %v3492 = vadd.f32 0.0, %v3491
      %v3493 = vpop.f32.mrf.mxu0
      %v3494 = vpop.f32.mrf.mxu0
      %v3495 = vpop.f32.mrf.mxu0
      %3496 = vdwg.mxu0
      %3497 = vrot.lane.b32.xlu0 %v1032, 120
      %v3498 = vpop.permute.xlu0 %3497
      %3499 = vrot.lane.b32.xlu0 %v1048, 120
      %v3500 = vpop.permute.xlu0 %3499
      %v3502 = vsel %vm1049, %v3498, 0
      %v3505 = vsel %vm1049, %v3500, 0
      %3507 = vmatprep.subr.bf16.mxu0 0
      %3508 = vmatpush1.bf16.xpose.msra.mxu0 0
      %3509 = vmatprep.subr.bf16.mxu0 0
      %3510 = vmatpush1.bf16.xpose.msra.mxu0 0
      %3511 = vmatprep.subr.bf16.mxu0 0
      %3512 = vmatpush1.bf16.xpose.msra.mxu0 0
      %3513 = vmatprep.subr.bf16.mxu0 0
      %3514 = vmatpush1.bf16.xpose.msra.mxu0 0
      %3515 = vmatprep.subr.bf16.mxu0 0
      %3516 = vmatpush1.bf16.xpose.msra.mxu0 0
      %3517 = vmatprep.subr.bf16.mxu0 0
      %3518 = vmatpush1.bf16.xpose.msra.mxu0 0
      %3519 = vmatprep.subr.bf16.mxu0 0
      %3520 = vmatpush1.bf16.xpose.msra.mxu0 0
      %3521 = vmatprep.subr.bf16.mxu0 0
      %3522 = vmatpush1.bf16.xpose.msra.mxu0 %v3505
      %3523 = vmatprep.subr.bf16.mxu0 0
      %3524 = vmatpush2.bf16.xpose.msra.mxu0 0
      %3525 = vmatprep.subr.bf16.mxu0 0
      %3526 = vmatpush2.bf16.xpose.msra.mxu0 0
      %3527 = vmatprep.subr.bf16.mxu0 0
      %3528 = vmatpush2.bf16.xpose.msra.mxu0 0
      %3529 = vmatprep.subr.bf16.mxu0 0
      %3530 = vmatpush2.bf16.xpose.msra.mxu0 0
      %3531 = vmatprep.subr.bf16.mxu0 0
      %3532 = vmatpush2.bf16.xpose.msra.mxu0 0
      %3533 = vmatprep.subr.bf16.mxu0 0
      %3534 = vmatpush2.bf16.xpose.msra.mxu0 0
      %3535 = vmatprep.subr.bf16.mxu0 0
      %3536 = vmatpush2.bf16.xpose.msra.mxu0 0
      %3537 = vmatprep.subr.bf16.mxu0 0
      %3538 = vmatpush2.bf16.xpose.msra.mxu0 0
      %3539 = vmatprep.mubr.bf16.mxu0 0
      %3540 = vmatmul.mubr.bf16.gmra.mxu0 %v3502
      %v3541 = vpop.f32.mrf.mxu0
      %v3542 = vadd.f32 0.0, %v3541
      %v3543 = vpop.f32.mrf.mxu0
      %v3544 = vpop.f32.mrf.mxu0
      %v3545 = vpop.f32.mrf.mxu0
      %3546 = vdwg.mxu0
      %v3547 = vsel %vm1786, %v2792, -inf
      %3548 = vmax.xlane.f32.xlu0 %v3547
      %v3549 = vpop.xlane.xlu0 %3548
      %v3550 = vsel %vm1786, %v2842, -inf
      %3551 = vmax.xlane.f32.xlu0 %v3550
      %v3552 = vpop.xlane.xlu0 %3551
      %v3553 = vsel %vm1786, %v2892, -inf
      %3554 = vmax.xlane.f32.xlu0 %v3553
      %v3555 = vpop.xlane.xlu0 %3554
      %v3556 = vsel %vm1786, %v2942, -inf
      %3557 = vmax.xlane.f32.xlu0 %v3556
      %v3558 = vpop.xlane.xlu0 %3557
      %v3559 = vsel %vm1786, %v2992, -inf
      %3560 = vmax.xlane.f32.xlu0 %v3559
      %v3561 = vpop.xlane.xlu0 %3560
      %v3562 = vsel %vm1786, %v3042, -inf
      %3563 = vmax.xlane.f32.xlu0 %v3562
      %v3564 = vpop.xlane.xlu0 %3563
      %v3565 = vsel %vm1786, %v3092, -inf
      %3566 = vmax.xlane.f32.xlu0 %v3565
      %v3567 = vpop.xlane.xlu0 %3566
      %v3568 = vsel %vm1786, %v3142, -inf
      %3569 = vmax.xlane.f32.xlu0 %v3568
      %v3570 = vpop.xlane.xlu0 %3569
      %v3571 = vsel %vm1786, %v3192, -inf
      %3572 = vmax.xlane.f32.xlu0 %v3571
      %v3573 = vpop.xlane.xlu0 %3572
      %v3574 = vsel %vm1786, %v3242, -inf
      %3575 = vmax.xlane.f32.xlu0 %v3574
      %v3576 = vpop.xlane.xlu0 %3575
      %v3577 = vsel %vm1786, %v3292, -inf
      %3578 = vmax.xlane.f32.xlu0 %v3577
      %v3579 = vpop.xlane.xlu0 %3578
      %v3580 = vsel %vm1786, %v3342, -inf
      %3581 = vmax.xlane.f32.xlu0 %v3580
      %v3582 = vpop.xlane.xlu0 %3581
      %v3583 = vsel %vm1786, %v3392, -inf
      %3584 = vmax.xlane.f32.xlu0 %v3583
      %v3585 = vpop.xlane.xlu0 %3584
      %v3586 = vsel %vm1786, %v3442, -inf
      %3587 = vmax.xlane.f32.xlu0 %v3586
      %v3588 = vpop.xlane.xlu0 %3587
      %v3589 = vsel %vm1786, %v3492, -inf
      %3590 = vmax.xlane.f32.xlu0 %v3589
      %v3591 = vpop.xlane.xlu0 %3590
      %v3592 = vsel %vm1786, %v3542, -inf
      %3593 = vmax.xlane.f32.xlu0 %v3592
      %v3594 = vpop.xlane.xlu0 %3593
      %v3595 = vsub.f32 %v2792, %v3549
      %v3596 = vsub.f32 %v2842, %v3552
      %v3597 = vsub.f32 %v2892, %v3555
      %v3598 = vsub.f32 %v2942, %v3558
      %v3599 = vsub.f32 %v2992, %v3561
      %v3600 = vsub.f32 %v3042, %v3564
      %v3601 = vsub.f32 %v3092, %v3567
      %v3602 = vsub.f32 %v3142, %v3570
      %v3603 = vsub.f32 %v3192, %v3573
      %v3604 = vsub.f32 %v3242, %v3576
      %v3605 = vsub.f32 %v3292, %v3579
      %v3606 = vsub.f32 %v3342, %v3582
      %v3607 = vsub.f32 %v3392, %v3585
      %v3608 = vsub.f32 %v3442, %v3588
      %v3609 = vsub.f32 %v3492, %v3591
      %v3610 = vsub.f32 %v3542, %v3594
      %v3611 = vmul.f32 %v3595, 1.442695
      %v3612 = vpow.pop %v3611
      %v3613 = vmul.f32 %v3596, 1.442695
      %v3614 = vpow.pop %v3613
      %v3615 = vmul.f32 %v3597, 1.442695
      %v3616 = vpow.pop %v3615
      %v3617 = vmul.f32 %v3598, 1.442695
      %v3618 = vpow.pop %v3617
      %v3619 = vmul.f32 %v3599, 1.442695
      %v3620 = vpow.pop %v3619
      %v3621 = vmul.f32 %v3600, 1.442695
      %v3622 = vpow.pop %v3621
      %v3623 = vmul.f32 %v3601, 1.442695
      %v3624 = vpow.pop %v3623
      %v3625 = vmul.f32 %v3602, 1.442695
      %v3626 = vpow.pop %v3625
      %v3627 = vmul.f32 %v3603, 1.442695
      %v3628 = vpow.pop %v3627
      %v3629 = vmul.f32 %v3604, 1.442695
      %v3630 = vpow.pop %v3629
      %v3631 = vmul.f32 %v3605, 1.442695
      %v3632 = vpow.pop %v3631
      %v3633 = vmul.f32 %v3606, 1.442695
      %v3634 = vpow.pop %v3633
      %v3635 = vmul.f32 %v3607, 1.442695
      %v3636 = vpow.pop %v3635
      %v3637 = vmul.f32 %v3608, 1.442695
      %v3638 = vpow.pop %v3637
      %v3639 = vmul.f32 %v3609, 1.442695
      %v3640 = vpow.pop %v3639
      %v3641 = vmul.f32 %v3610, 1.442695
      %v3642 = vpow.pop %v3641
      %v3643 = vsel %vm1786, %v3612, 0.0
      %3644 = vadd.xlane.f32.xlu0 %v3643
      %v3645 = vpop.xlane.xlu0 %3644
      %v3646 = vsel %vm1786, %v3614, 0.0
      %3647 = vadd.xlane.f32.xlu0 %v3646
      %v3648 = vpop.xlane.xlu0 %3647
      %v3649 = vsel %vm1786, %v3616, 0.0
      %3650 = vadd.xlane.f32.xlu0 %v3649
      %v3651 = vpop.xlane.xlu0 %3650
      %v3652 = vsel %vm1786, %v3618, 0.0
      %3653 = vadd.xlane.f32.xlu0 %v3652
      %v3654 = vpop.xlane.xlu0 %3653
      %v3655 = vsel %vm1786, %v3620, 0.0
      %3656 = vadd.xlane.f32.xlu0 %v3655
      %v3657 = vpop.xlane.xlu0 %3656
      %v3658 = vsel %vm1786, %v3622, 0.0
      %3659 = vadd.xlane.f32.xlu0 %v3658
      %v3660 = vpop.xlane.xlu0 %3659
      %v3661 = vsel %vm1786, %v3624, 0.0
      %3662 = vadd.xlane.f32.xlu0 %v3661
      %v3663 = vpop.xlane.xlu0 %3662
      %v3664 = vsel %vm1786, %v3626, 0.0
      %3665 = vadd.xlane.f32.xlu0 %v3664
      %v3666 = vpop.xlane.xlu0 %3665
      %v3667 = vsel %vm1786, %v3628, 0.0
      %3668 = vadd.xlane.f32.xlu0 %v3667
      %v3669 = vpop.xlane.xlu0 %3668
      %v3670 = vsel %vm1786, %v3630, 0.0
      %3671 = vadd.xlane.f32.xlu0 %v3670
      %v3672 = vpop.xlane.xlu0 %3671
      %v3673 = vsel %vm1786, %v3632, 0.0
      %3674 = vadd.xlane.f32.xlu0 %v3673
      %v3675 = vpop.xlane.xlu0 %3674
      %v3676 = vsel %vm1786, %v3634, 0.0
      %3677 = vadd.xlane.f32.xlu0 %v3676
      %v3678 = vpop.xlane.xlu0 %3677
      %v3679 = vsel %vm1786, %v3636, 0.0
      %3680 = vadd.xlane.f32.xlu0 %v3679
      %v3681 = vpop.xlane.xlu0 %3680
      %v3682 = vsel %vm1786, %v3638, 0.0
      %3683 = vadd.xlane.f32.xlu0 %v3682
      %v3684 = vpop.xlane.xlu0 %3683
      %v3685 = vsel %vm1786, %v3640, 0.0
      %3686 = vadd.xlane.f32.xlu0 %v3685
      %v3687 = vpop.xlane.xlu0 %3686
      %v3688 = vsel %vm1786, %v3642, 0.0
      %3689 = vadd.xlane.f32.xlu0 %v3688
      %v3690 = vpop.xlane.xlu0 %3689
      %v3691 = vpack.c.bf16 %v3612, %v3612
      %v3692 = vpack.c.bf16 %v3614, %v3614
      %v3693 = vpack.c.bf16 %v3616, %v3616
      %v3694 = vpack.c.bf16 %v3618, %v3618
      %v3695 = vpack.c.bf16 %v3620, %v3620
      %v3696 = vpack.c.bf16 %v3622, %v3622
      %v3697 = vpack.c.bf16 %v3624, %v3624
      %v3698 = vpack.c.bf16 %v3626, %v3626
      %v3699 = vpack.c.bf16 %v3628, %v3628
      %v3700 = vpack.c.bf16 %v3630, %v3630
      %v3701 = vpack.c.bf16 %v3632, %v3632
      %v3702 = vpack.c.bf16 %v3634, %v3634
      %v3703 = vpack.c.bf16 %v3636, %v3636
      %v3704 = vpack.c.bf16 %v3638, %v3638
      %v3705 = vpack.c.bf16 %v3640, %v3640
      %v3706 = vpack.c.bf16 %v3642, %v3642
      %3707 = vrot.lane.b32.xlu0 %v1033, 88
      %v3708 = vpop.permute.xlu0 %3707
      %v3711 = vsel %vm1786, %v3691, 0
      %3713 = vmatprep.subr.bf16.mxu0 0
      %3714 = vmatpush1.bf16.msra.mxu0 0
      %3715 = vmatprep.subr.bf16.mxu0 0
      %3716 = vmatpush1.bf16.msra.mxu0 0
      %3717 = vmatprep.subr.bf16.mxu0 0
      %3718 = vmatpush1.bf16.msra.mxu0 0
      %3719 = vmatprep.subr.bf16.mxu0 0
      %3720 = vmatpush1.bf16.msra.mxu0 0
      %3721 = vmatprep.subr.bf16.mxu0 0
      %3722 = vmatpush1.bf16.msra.mxu0 0
      %3723 = vmatprep.subr.bf16.mxu0 0
      %3724 = vmatpush1.bf16.msra.mxu0 0
      %3725 = vmatprep.subr.bf16.mxu0 0
      %3726 = vmatpush1.bf16.msra.mxu0 0
      %3727 = vmatprep.subr.bf16.mxu0 0
      %3728 = vmatpush1.bf16.msra.mxu0 %v3708
      %3729 = vmatprep.subr.bf16.mxu0 0
      %3730 = vmatpush2.bf16.msra.mxu0 0
      %3731 = vmatprep.subr.bf16.mxu0 0
      %3732 = vmatpush2.bf16.msra.mxu0 0
      %3733 = vmatprep.subr.bf16.mxu0 0
      %3734 = vmatpush2.bf16.msra.mxu0 0
      %3735 = vmatprep.subr.bf16.mxu0 0
      %3736 = vmatpush2.bf16.msra.mxu0 0
      %3737 = vmatprep.subr.bf16.mxu0 0
      %3738 = vmatpush2.bf16.msra.mxu0 0
      %3739 = vmatprep.subr.bf16.mxu0 0
      %3740 = vmatpush2.bf16.msra.mxu0 0
      %3741 = vmatprep.subr.bf16.mxu0 0
      %3742 = vmatpush2.bf16.msra.mxu0 0
      %3743 = vmatprep.subr.bf16.mxu0 0
      %3744 = vmatpush2.bf16.msra.mxu0 0
      %3745 = vmatprep.mubr.bf16.mxu0 0
      %3746 = vmatmul.mubr.bf16.gmra.mxu0 %v3711
      %v3747 = vpop.f32.mrf.mxu0
      %v3748 = vadd.f32 0.0, %v3747
      %v3749 = vpop.f32.mrf.mxu0
      %v3750 = vpop.f32.mrf.mxu0
      %v3751 = vpop.f32.mrf.mxu0
      %3752 = vdwg.mxu0
      %3753 = vrot.lane.b32.xlu0 %v1034, 88
      %v3754 = vpop.permute.xlu0 %3753
      %v3757 = vsel %vm1786, %v3692, 0
      %3759 = vmatprep.subr.bf16.mxu0 0
      %3760 = vmatpush1.bf16.msra.mxu0 0
      %3761 = vmatprep.subr.bf16.mxu0 0
      %3762 = vmatpush1.bf16.msra.mxu0 0
      %3763 = vmatprep.subr.bf16.mxu0 0
      %3764 = vmatpush1.bf16.msra.mxu0 0
      %3765 = vmatprep.subr.bf16.mxu0 0
      %3766 = vmatpush1.bf16.msra.mxu0 0
      %3767 = vmatprep.subr.bf16.mxu0 0
      %3768 = vmatpush1.bf16.msra.mxu0 0
      %3769 = vmatprep.subr.bf16.mxu0 0
      %3770 = vmatpush1.bf16.msra.mxu0 0
      %3771 = vmatprep.subr.bf16.mxu0 0
      %3772 = vmatpush1.bf16.msra.mxu0 0
      %3773 = vmatprep.subr.bf16.mxu0 0
      %3774 = vmatpush1.bf16.msra.mxu0 %v3754
      %3775 = vmatprep.subr.bf16.mxu0 0
      %3776 = vmatpush2.bf16.msra.mxu0 0
      %3777 = vmatprep.subr.bf16.mxu0 0
      %3778 = vmatpush2.bf16.msra.mxu0 0
      %3779 = vmatprep.subr.bf16.mxu0 0
      %3780 = vmatpush2.bf16.msra.mxu0 0
      %3781 = vmatprep.subr.bf16.mxu0 0
      %3782 = vmatpush2.bf16.msra.mxu0 0
      %3783 = vmatprep.subr.bf16.mxu0 0
      %3784 = vmatpush2.bf16.msra.mxu0 0
      %3785 = vmatprep.subr.bf16.mxu0 0
      %3786 = vmatpush2.bf16.msra.mxu0 0
      %3787 = vmatprep.subr.bf16.mxu0 0
      %3788 = vmatpush2.bf16.msra.mxu0 0
      %3789 = vmatprep.subr.bf16.mxu0 0
      %3790 = vmatpush2.bf16.msra.mxu0 0
      %3791 = vmatprep.mubr.bf16.mxu0 0
      %3792 = vmatmul.mubr.bf16.gmra.mxu0 %v3757
      %v3793 = vpop.f32.mrf.mxu0
      %v3794 = vadd.f32 0.0, %v3793
      %v3795 = vpop.f32.mrf.mxu0
      %v3796 = vpop.f32.mrf.mxu0
      %v3797 = vpop.f32.mrf.mxu0
      %3798 = vdwg.mxu0
      %3799 = vrot.lane.b32.xlu0 %v1035, 88
      %v3800 = vpop.permute.xlu0 %3799
      %v3803 = vsel %vm1786, %v3693, 0
      %3805 = vmatprep.subr.bf16.mxu0 0
      %3806 = vmatpush1.bf16.msra.mxu0 0
      %3807 = vmatprep.subr.bf16.mxu0 0
      %3808 = vmatpush1.bf16.msra.mxu0 0
      %3809 = vmatprep.subr.bf16.mxu0 0
      %3810 = vmatpush1.bf16.msra.mxu0 0
      %3811 = vmatprep.subr.bf16.mxu0 0
      %3812 = vmatpush1.bf16.msra.mxu0 0
      %3813 = vmatprep.subr.bf16.mxu0 0
      %3814 = vmatpush1.bf16.msra.mxu0 0
      %3815 = vmatprep.subr.bf16.mxu0 0
      %3816 = vmatpush1.bf16.msra.mxu0 0
      %3817 = vmatprep.subr.bf16.mxu0 0
      %3818 = vmatpush1.bf16.msra.mxu0 0
      %3819 = vmatprep.subr.bf16.mxu0 0
      %3820 = vmatpush1.bf16.msra.mxu0 %v3800
      %3821 = vmatprep.subr.bf16.mxu0 0
      %3822 = vmatpush2.bf16.msra.mxu0 0
      %3823 = vmatprep.subr.bf16.mxu0 0
      %3824 = vmatpush2.bf16.msra.mxu0 0
      %3825 = vmatprep.subr.bf16.mxu0 0
      %3826 = vmatpush2.bf16.msra.mxu0 0
      %3827 = vmatprep.subr.bf16.mxu0 0
      %3828 = vmatpush2.bf16.msra.mxu0 0
      %3829 = vmatprep.subr.bf16.mxu0 0
      %3830 = vmatpush2.bf16.msra.mxu0 0
      %3831 = vmatprep.subr.bf16.mxu0 0
      %3832 = vmatpush2.bf16.msra.mxu0 0
      %3833 = vmatprep.subr.bf16.mxu0 0
      %3834 = vmatpush2.bf16.msra.mxu0 0
      %3835 = vmatprep.subr.bf16.mxu0 0
      %3836 = vmatpush2.bf16.msra.mxu0 0
      %3837 = vmatprep.mubr.bf16.mxu0 0
      %3838 = vmatmul.mubr.bf16.gmra.mxu0 %v3803
      %v3839 = vpop.f32.mrf.mxu0
      %v3840 = vadd.f32 0.0, %v3839
      %v3841 = vpop.f32.mrf.mxu0
      %v3842 = vpop.f32.mrf.mxu0
      %v3843 = vpop.f32.mrf.mxu0
      %3844 = vdwg.mxu0
      %3845 = vrot.lane.b32.xlu0 %v1036, 88
      %v3846 = vpop.permute.xlu0 %3845
      %v3849 = vsel %vm1786, %v3694, 0
      %3851 = vmatprep.subr.bf16.mxu0 0
      %3852 = vmatpush1.bf16.msra.mxu0 0
      %3853 = vmatprep.subr.bf16.mxu0 0
      %3854 = vmatpush1.bf16.msra.mxu0 0
      %3855 = vmatprep.subr.bf16.mxu0 0
      %3856 = vmatpush1.bf16.msra.mxu0 0
      %3857 = vmatprep.subr.bf16.mxu0 0
      %3858 = vmatpush1.bf16.msra.mxu0 0
      %3859 = vmatprep.subr.bf16.mxu0 0
      %3860 = vmatpush1.bf16.msra.mxu0 0
      %3861 = vmatprep.subr.bf16.mxu0 0
      %3862 = vmatpush1.bf16.msra.mxu0 0
      %3863 = vmatprep.subr.bf16.mxu0 0
      %3864 = vmatpush1.bf16.msra.mxu0 0
      %3865 = vmatprep.subr.bf16.mxu0 0
      %3866 = vmatpush1.bf16.msra.mxu0 %v3846
      %3867 = vmatprep.subr.bf16.mxu0 0
      %3868 = vmatpush2.bf16.msra.mxu0 0
      %3869 = vmatprep.subr.bf16.mxu0 0
      %3870 = vmatpush2.bf16.msra.mxu0 0
      %3871 = vmatprep.subr.bf16.mxu0 0
      %3872 = vmatpush2.bf16.msra.mxu0 0
      %3873 = vmatprep.subr.bf16.mxu0 0
      %3874 = vmatpush2.bf16.msra.mxu0 0
      %3875 = vmatprep.subr.bf16.mxu0 0
      %3876 = vmatpush2.bf16.msra.mxu0 0
      %3877 = vmatprep.subr.bf16.mxu0 0
      %3878 = vmatpush2.bf16.msra.mxu0 0
      %3879 = vmatprep.subr.bf16.mxu0 0
      %3880 = vmatpush2.bf16.msra.mxu0 0
      %3881 = vmatprep.subr.bf16.mxu0 0
      %3882 = vmatpush2.bf16.msra.mxu0 0
      %3883 = vmatprep.mubr.bf16.mxu0 0
      %3884 = vmatmul.mubr.bf16.gmra.mxu0 %v3849
      %v3885 = vpop.f32.mrf.mxu0
      %v3886 = vadd.f32 0.0, %v3885
      %v3887 = vpop.f32.mrf.mxu0
      %v3888 = vpop.f32.mrf.mxu0
      %v3889 = vpop.f32.mrf.mxu0
      %3890 = vdwg.mxu0
      %3891 = vrot.lane.b32.xlu0 %v1037, 88
      %v3892 = vpop.permute.xlu0 %3891
      %v3895 = vsel %vm1786, %v3695, 0
      %3897 = vmatprep.subr.bf16.mxu0 0
      %3898 = vmatpush1.bf16.msra.mxu0 0
      %3899 = vmatprep.subr.bf16.mxu0 0
      %3900 = vmatpush1.bf16.msra.mxu0 0
      %3901 = vmatprep.subr.bf16.mxu0 0
      %3902 = vmatpush1.bf16.msra.mxu0 0
      %3903 = vmatprep.subr.bf16.mxu0 0
      %3904 = vmatpush1.bf16.msra.mxu0 0
      %3905 = vmatprep.subr.bf16.mxu0 0
      %3906 = vmatpush1.bf16.msra.mxu0 0
      %3907 = vmatprep.subr.bf16.mxu0 0
      %3908 = vmatpush1.bf16.msra.mxu0 0
      %3909 = vmatprep.subr.bf16.mxu0 0
      %3910 = vmatpush1.bf16.msra.mxu0 0
      %3911 = vmatprep.subr.bf16.mxu0 0
      %3912 = vmatpush1.bf16.msra.mxu0 %v3892
      %3913 = vmatprep.subr.bf16.mxu0 0
      %3914 = vmatpush2.bf16.msra.mxu0 0
      %3915 = vmatprep.subr.bf16.mxu0 0
      %3916 = vmatpush2.bf16.msra.mxu0 0
      %3917 = vmatprep.subr.bf16.mxu0 0
      %3918 = vmatpush2.bf16.msra.mxu0 0
      %3919 = vmatprep.subr.bf16.mxu0 0
      %3920 = vmatpush2.bf16.msra.mxu0 0
      %3921 = vmatprep.subr.bf16.mxu0 0
      %3922 = vmatpush2.bf16.msra.mxu0 0
      %3923 = vmatprep.subr.bf16.mxu0 0
      %3924 = vmatpush2.bf16.msra.mxu0 0
      %3925 = vmatprep.subr.bf16.mxu0 0
      %3926 = vmatpush2.bf16.msra.mxu0 0
      %3927 = vmatprep.subr.bf16.mxu0 0
      %3928 = vmatpush2.bf16.msra.mxu0 0
      %3929 = vmatprep.mubr.bf16.mxu0 0
      %3930 = vmatmul.mubr.bf16.gmra.mxu0 %v3895
      %v3931 = vpop.f32.mrf.mxu0
      %v3932 = vadd.f32 0.0, %v3931
      %v3933 = vpop.f32.mrf.mxu0
      %v3934 = vpop.f32.mrf.mxu0
      %v3935 = vpop.f32.mrf.mxu0
      %3936 = vdwg.mxu0
      %3937 = vrot.lane.b32.xlu0 %v1038, 88
      %v3938 = vpop.permute.xlu0 %3937
      %v3941 = vsel %vm1786, %v3696, 0
      %3943 = vmatprep.subr.bf16.mxu0 0
      %3944 = vmatpush1.bf16.msra.mxu0 0
      %3945 = vmatprep.subr.bf16.mxu0 0
      %3946 = vmatpush1.bf16.msra.mxu0 0
      %3947 = vmatprep.subr.bf16.mxu0 0
      %3948 = vmatpush1.bf16.msra.mxu0 0
      %3949 = vmatprep.subr.bf16.mxu0 0
      %3950 = vmatpush1.bf16.msra.mxu0 0
      %3951 = vmatprep.subr.bf16.mxu0 0
      %3952 = vmatpush1.bf16.msra.mxu0 0
      %3953 = vmatprep.subr.bf16.mxu0 0
      %3954 = vmatpush1.bf16.msra.mxu0 0
      %3955 = vmatprep.subr.bf16.mxu0 0
      %3956 = vmatpush1.bf16.msra.mxu0 0
      %3957 = vmatprep.subr.bf16.mxu0 0
      %3958 = vmatpush1.bf16.msra.mxu0 %v3938
      %3959 = vmatprep.subr.bf16.mxu0 0
      %3960 = vmatpush2.bf16.msra.mxu0 0
      %3961 = vmatprep.subr.bf16.mxu0 0
      %3962 = vmatpush2.bf16.msra.mxu0 0
      %3963 = vmatprep.subr.bf16.mxu0 0
      %3964 = vmatpush2.bf16.msra.mxu0 0
      %3965 = vmatprep.subr.bf16.mxu0 0
      %3966 = vmatpush2.bf16.msra.mxu0 0
      %3967 = vmatprep.subr.bf16.mxu0 0
      %3968 = vmatpush2.bf16.msra.mxu0 0
      %3969 = vmatprep.subr.bf16.mxu0 0
      %3970 = vmatpush2.bf16.msra.mxu0 0
      %3971 = vmatprep.subr.bf16.mxu0 0
      %3972 = vmatpush2.bf16.msra.mxu0 0
      %3973 = vmatprep.subr.bf16.mxu0 0
      %3974 = vmatpush2.bf16.msra.mxu0 0
      %3975 = vmatprep.mubr.bf16.mxu0 0
      %3976 = vmatmul.mubr.bf16.gmra.mxu0 %v3941
      %v3977 = vpop.f32.mrf.mxu0
      %v3978 = vadd.f32 0.0, %v3977
      %v3979 = vpop.f32.mrf.mxu0
      %v3980 = vpop.f32.mrf.mxu0
      %v3981 = vpop.f32.mrf.mxu0
      %3982 = vdwg.mxu0
      %3983 = vrot.lane.b32.xlu0 %v1039, 88
      %v3984 = vpop.permute.xlu0 %3983
      %v3987 = vsel %vm1786, %v3697, 0
      %3989 = vmatprep.subr.bf16.mxu0 0
      %3990 = vmatpush1.bf16.msra.mxu0 0
      %3991 = vmatprep.subr.bf16.mxu0 0
      %3992 = vmatpush1.bf16.msra.mxu0 0
      %3993 = vmatprep.subr.bf16.mxu0 0
      %3994 = vmatpush1.bf16.msra.mxu0 0
      %3995 = vmatprep.subr.bf16.mxu0 0
      %3996 = vmatpush1.bf16.msra.mxu0 0
      %3997 = vmatprep.subr.bf16.mxu0 0
      %3998 = vmatpush1.bf16.msra.mxu0 0
      %3999 = vmatprep.subr.bf16.mxu0 0
      %4000 = vmatpush1.bf16.msra.mxu0 0
      %4001 = vmatprep.subr.bf16.mxu0 0
      %4002 = vmatpush1.bf16.msra.mxu0 0
      %4003 = vmatprep.subr.bf16.mxu0 0
      %4004 = vmatpush1.bf16.msra.mxu0 %v3984
      %4005 = vmatprep.subr.bf16.mxu0 0
      %4006 = vmatpush2.bf16.msra.mxu0 0
      %4007 = vmatprep.subr.bf16.mxu0 0
      %4008 = vmatpush2.bf16.msra.mxu0 0
      %4009 = vmatprep.subr.bf16.mxu0 0
      %4010 = vmatpush2.bf16.msra.mxu0 0
      %4011 = vmatprep.subr.bf16.mxu0 0
      %4012 = vmatpush2.bf16.msra.mxu0 0
      %4013 = vmatprep.subr.bf16.mxu0 0
      %4014 = vmatpush2.bf16.msra.mxu0 0
      %4015 = vmatprep.subr.bf16.mxu0 0
      %4016 = vmatpush2.bf16.msra.mxu0 0
      %4017 = vmatprep.subr.bf16.mxu0 0
      %4018 = vmatpush2.bf16.msra.mxu0 0
      %4019 = vmatprep.subr.bf16.mxu0 0
      %4020 = vmatpush2.bf16.msra.mxu0 0
      %4021 = vmatprep.mubr.bf16.mxu0 0
      %4022 = vmatmul.mubr.bf16.gmra.mxu0 %v3987
      %v4023 = vpop.f32.mrf.mxu0
      %v4024 = vadd.f32 0.0, %v4023
      %v4025 = vpop.f32.mrf.mxu0
      %v4026 = vpop.f32.mrf.mxu0
      %v4027 = vpop.f32.mrf.mxu0
      %4028 = vdwg.mxu0
      %4029 = vrot.lane.b32.xlu0 %v1040, 88
      %v4030 = vpop.permute.xlu0 %4029
      %v4033 = vsel %vm1786, %v3698, 0
      %4035 = vmatprep.subr.bf16.mxu0 0
      %4036 = vmatpush1.bf16.msra.mxu0 0
      %4037 = vmatprep.subr.bf16.mxu0 0
      %4038 = vmatpush1.bf16.msra.mxu0 0
      %4039 = vmatprep.subr.bf16.mxu0 0
      %4040 = vmatpush1.bf16.msra.mxu0 0
      %4041 = vmatprep.subr.bf16.mxu0 0
      %4042 = vmatpush1.bf16.msra.mxu0 0
      %4043 = vmatprep.subr.bf16.mxu0 0
      %4044 = vmatpush1.bf16.msra.mxu0 0
      %4045 = vmatprep.subr.bf16.mxu0 0
      %4046 = vmatpush1.bf16.msra.mxu0 0
      %4047 = vmatprep.subr.bf16.mxu0 0
      %4048 = vmatpush1.bf16.msra.mxu0 0
      %4049 = vmatprep.subr.bf16.mxu0 0
      %4050 = vmatpush1.bf16.msra.mxu0 %v4030
      %4051 = vmatprep.subr.bf16.mxu0 0
      %4052 = vmatpush2.bf16.msra.mxu0 0
      %4053 = vmatprep.subr.bf16.mxu0 0
      %4054 = vmatpush2.bf16.msra.mxu0 0
      %4055 = vmatprep.subr.bf16.mxu0 0
      %4056 = vmatpush2.bf16.msra.mxu0 0
      %4057 = vmatprep.subr.bf16.mxu0 0
      %4058 = vmatpush2.bf16.msra.mxu0 0
      %4059 = vmatprep.subr.bf16.mxu0 0
      %4060 = vmatpush2.bf16.msra.mxu0 0
      %4061 = vmatprep.subr.bf16.mxu0 0
      %4062 = vmatpush2.bf16.msra.mxu0 0
      %4063 = vmatprep.subr.bf16.mxu0 0
      %4064 = vmatpush2.bf16.msra.mxu0 0
      %4065 = vmatprep.subr.bf16.mxu0 0
      %4066 = vmatpush2.bf16.msra.mxu0 0
      %4067 = vmatprep.mubr.bf16.mxu0 0
      %4068 = vmatmul.mubr.bf16.gmra.mxu0 %v4033
      %v4069 = vpop.f32.mrf.mxu0
      %v4070 = vadd.f32 0.0, %v4069
      %v4071 = vpop.f32.mrf.mxu0
      %v4072 = vpop.f32.mrf.mxu0
      %v4073 = vpop.f32.mrf.mxu0
      %4074 = vdwg.mxu0
      %4075 = vrot.lane.b32.xlu0 %v1041, 88
      %v4076 = vpop.permute.xlu0 %4075
      %v4079 = vsel %vm1786, %v3699, 0
      %4081 = vmatprep.subr.bf16.mxu0 0
      %4082 = vmatpush1.bf16.msra.mxu0 0
      %4083 = vmatprep.subr.bf16.mxu0 0
      %4084 = vmatpush1.bf16.msra.mxu0 0
      %4085 = vmatprep.subr.bf16.mxu0 0
      %4086 = vmatpush1.bf16.msra.mxu0 0
      %4087 = vmatprep.subr.bf16.mxu0 0
      %4088 = vmatpush1.bf16.msra.mxu0 0
      %4089 = vmatprep.subr.bf16.mxu0 0
      %4090 = vmatpush1.bf16.msra.mxu0 0
      %4091 = vmatprep.subr.bf16.mxu0 0
      %4092 = vmatpush1.bf16.msra.mxu0 0
      %4093 = vmatprep.subr.bf16.mxu0 0
      %4094 = vmatpush1.bf16.msra.mxu0 0
      %4095 = vmatprep.subr.bf16.mxu0 0
      %4096 = vmatpush1.bf16.msra.mxu0 %v4076
      %4097 = vmatprep.subr.bf16.mxu0 0
      %4098 = vmatpush2.bf16.msra.mxu0 0
      %4099 = vmatprep.subr.bf16.mxu0 0
      %4100 = vmatpush2.bf16.msra.mxu0 0
      %4101 = vmatprep.subr.bf16.mxu0 0
      %4102 = vmatpush2.bf16.msra.mxu0 0
      %4103 = vmatprep.subr.bf16.mxu0 0
      %4104 = vmatpush2.bf16.msra.mxu0 0
      %4105 = vmatprep.subr.bf16.mxu0 0
      %4106 = vmatpush2.bf16.msra.mxu0 0
      %4107 = vmatprep.subr.bf16.mxu0 0
      %4108 = vmatpush2.bf16.msra.mxu0 0
      %4109 = vmatprep.subr.bf16.mxu0 0
      %4110 = vmatpush2.bf16.msra.mxu0 0
      %4111 = vmatprep.subr.bf16.mxu0 0
      %4112 = vmatpush2.bf16.msra.mxu0 0
      %4113 = vmatprep.mubr.bf16.mxu0 0
      %4114 = vmatmul.mubr.bf16.gmra.mxu0 %v4079
      %v4115 = vpop.f32.mrf.mxu0
      %v4116 = vadd.f32 0.0, %v4115
      %v4117 = vpop.f32.mrf.mxu0
      %v4118 = vpop.f32.mrf.mxu0
      %v4119 = vpop.f32.mrf.mxu0
      %4120 = vdwg.mxu0
      %4121 = vrot.lane.b32.xlu0 %v1042, 88
      %v4122 = vpop.permute.xlu0 %4121
      %v4125 = vsel %vm1786, %v3700, 0
      %4127 = vmatprep.subr.bf16.mxu0 0
      %4128 = vmatpush1.bf16.msra.mxu0 0
      %4129 = vmatprep.subr.bf16.mxu0 0
      %4130 = vmatpush1.bf16.msra.mxu0 0
      %4131 = vmatprep.subr.bf16.mxu0 0
      %4132 = vmatpush1.bf16.msra.mxu0 0
      %4133 = vmatprep.subr.bf16.mxu0 0
      %4134 = vmatpush1.bf16.msra.mxu0 0
      %4135 = vmatprep.subr.bf16.mxu0 0
      %4136 = vmatpush1.bf16.msra.mxu0 0
      %4137 = vmatprep.subr.bf16.mxu0 0
      %4138 = vmatpush1.bf16.msra.mxu0 0
      %4139 = vmatprep.subr.bf16.mxu0 0
      %4140 = vmatpush1.bf16.msra.mxu0 0
      %4141 = vmatprep.subr.bf16.mxu0 0
      %4142 = vmatpush1.bf16.msra.mxu0 %v4122
      %4143 = vmatprep.subr.bf16.mxu0 0
      %4144 = vmatpush2.bf16.msra.mxu0 0
      %4145 = vmatprep.subr.bf16.mxu0 0
      %4146 = vmatpush2.bf16.msra.mxu0 0
      %4147 = vmatprep.subr.bf16.mxu0 0
      %4148 = vmatpush2.bf16.msra.mxu0 0
      %4149 = vmatprep.subr.bf16.mxu0 0
      %4150 = vmatpush2.bf16.msra.mxu0 0
      %4151 = vmatprep.subr.bf16.mxu0 0
      %4152 = vmatpush2.bf16.msra.mxu0 0
      %4153 = vmatprep.subr.bf16.mxu0 0
      %4154 = vmatpush2.bf16.msra.mxu0 0
      %4155 = vmatprep.subr.bf16.mxu0 0
      %4156 = vmatpush2.bf16.msra.mxu0 0
      %4157 = vmatprep.subr.bf16.mxu0 0
      %4158 = vmatpush2.bf16.msra.mxu0 0
      %4159 = vmatprep.mubr.bf16.mxu0 0
      %4160 = vmatmul.mubr.bf16.gmra.mxu0 %v4125
      %v4161 = vpop.f32.mrf.mxu0
      %v4162 = vadd.f32 0.0, %v4161
      %v4163 = vpop.f32.mrf.mxu0
      %v4164 = vpop.f32.mrf.mxu0
      %v4165 = vpop.f32.mrf.mxu0
      %4166 = vdwg.mxu0
      %4167 = vrot.lane.b32.xlu0 %v1043, 88
      %v4168 = vpop.permute.xlu0 %4167
      %v4171 = vsel %vm1786, %v3701, 0
      %4173 = vmatprep.subr.bf16.mxu0 0
      %4174 = vmatpush1.bf16.msra.mxu0 0
      %4175 = vmatprep.subr.bf16.mxu0 0
      %4176 = vmatpush1.bf16.msra.mxu0 0
      %4177 = vmatprep.subr.bf16.mxu0 0
      %4178 = vmatpush1.bf16.msra.mxu0 0
      %4179 = vmatprep.subr.bf16.mxu0 0
      %4180 = vmatpush1.bf16.msra.mxu0 0
      %4181 = vmatprep.subr.bf16.mxu0 0
      %4182 = vmatpush1.bf16.msra.mxu0 0
      %4183 = vmatprep.subr.bf16.mxu0 0
      %4184 = vmatpush1.bf16.msra.mxu0 0
      %4185 = vmatprep.subr.bf16.mxu0 0
      %4186 = vmatpush1.bf16.msra.mxu0 0
      %4187 = vmatprep.subr.bf16.mxu0 0
      %4188 = vmatpush1.bf16.msra.mxu0 %v4168
      %4189 = vmatprep.subr.bf16.mxu0 0
      %4190 = vmatpush2.bf16.msra.mxu0 0
      %4191 = vmatprep.subr.bf16.mxu0 0
      %4192 = vmatpush2.bf16.msra.mxu0 0
      %4193 = vmatprep.subr.bf16.mxu0 0
      %4194 = vmatpush2.bf16.msra.mxu0 0
      %4195 = vmatprep.subr.bf16.mxu0 0
      %4196 = vmatpush2.bf16.msra.mxu0 0
      %4197 = vmatprep.subr.bf16.mxu0 0
      %4198 = vmatpush2.bf16.msra.mxu0 0
      %4199 = vmatprep.subr.bf16.mxu0 0
      %4200 = vmatpush2.bf16.msra.mxu0 0
      %4201 = vmatprep.subr.bf16.mxu0 0
      %4202 = vmatpush2.bf16.msra.mxu0 0
      %4203 = vmatprep.subr.bf16.mxu0 0
      %4204 = vmatpush2.bf16.msra.mxu0 0
      %4205 = vmatprep.mubr.bf16.mxu0 0
      %4206 = vmatmul.mubr.bf16.gmra.mxu0 %v4171
      %v4207 = vpop.f32.mrf.mxu0
      %v4208 = vadd.f32 0.0, %v4207
      %v4209 = vpop.f32.mrf.mxu0
      %v4210 = vpop.f32.mrf.mxu0
      %v4211 = vpop.f32.mrf.mxu0
      %4212 = vdwg.mxu0
      %4213 = vrot.lane.b32.xlu0 %v1044, 88
      %v4214 = vpop.permute.xlu0 %4213
      %v4217 = vsel %vm1786, %v3702, 0
      %4219 = vmatprep.subr.bf16.mxu0 0
      %4220 = vmatpush1.bf16.msra.mxu0 0
      %4221 = vmatprep.subr.bf16.mxu0 0
      %4222 = vmatpush1.bf16.msra.mxu0 0
      %4223 = vmatprep.subr.bf16.mxu0 0
      %4224 = vmatpush1.bf16.msra.mxu0 0
      %4225 = vmatprep.subr.bf16.mxu0 0
      %4226 = vmatpush1.bf16.msra.mxu0 0
      %4227 = vmatprep.subr.bf16.mxu0 0
      %4228 = vmatpush1.bf16.msra.mxu0 0
      %4229 = vmatprep.subr.bf16.mxu0 0
      %4230 = vmatpush1.bf16.msra.mxu0 0
      %4231 = vmatprep.subr.bf16.mxu0 0
      %4232 = vmatpush1.bf16.msra.mxu0 0
      %4233 = vmatprep.subr.bf16.mxu0 0
      %4234 = vmatpush1.bf16.msra.mxu0 %v4214
      %4235 = vmatprep.subr.bf16.mxu0 0
      %4236 = vmatpush2.bf16.msra.mxu0 0
      %4237 = vmatprep.subr.bf16.mxu0 0
      %4238 = vmatpush2.bf16.msra.mxu0 0
      %4239 = vmatprep.subr.bf16.mxu0 0
      %4240 = vmatpush2.bf16.msra.mxu0 0
      %4241 = vmatprep.subr.bf16.mxu0 0
      %4242 = vmatpush2.bf16.msra.mxu0 0
      %4243 = vmatprep.subr.bf16.mxu0 0
      %4244 = vmatpush2.bf16.msra.mxu0 0
      %4245 = vmatprep.subr.bf16.mxu0 0
      %4246 = vmatpush2.bf16.msra.mxu0 0
      %4247 = vmatprep.subr.bf16.mxu0 0
      %4248 = vmatpush2.bf16.msra.mxu0 0
      %4249 = vmatprep.subr.bf16.mxu0 0
      %4250 = vmatpush2.bf16.msra.mxu0 0
      %4251 = vmatprep.mubr.bf16.mxu0 0
      %4252 = vmatmul.mubr.bf16.gmra.mxu0 %v4217
      %v4253 = vpop.f32.mrf.mxu0
      %v4254 = vadd.f32 0.0, %v4253
      %v4255 = vpop.f32.mrf.mxu0
      %v4256 = vpop.f32.mrf.mxu0
      %v4257 = vpop.f32.mrf.mxu0
      %4258 = vdwg.mxu0
      %4259 = vrot.lane.b32.xlu0 %v1045, 88
      %v4260 = vpop.permute.xlu0 %4259
      %v4263 = vsel %vm1786, %v3703, 0
      %4265 = vmatprep.subr.bf16.mxu0 0
      %4266 = vmatpush1.bf16.msra.mxu0 0
      %4267 = vmatprep.subr.bf16.mxu0 0
      %4268 = vmatpush1.bf16.msra.mxu0 0
      %4269 = vmatprep.subr.bf16.mxu0 0
      %4270 = vmatpush1.bf16.msra.mxu0 0
      %4271 = vmatprep.subr.bf16.mxu0 0
      %4272 = vmatpush1.bf16.msra.mxu0 0
      %4273 = vmatprep.subr.bf16.mxu0 0
      %4274 = vmatpush1.bf16.msra.mxu0 0
      %4275 = vmatprep.subr.bf16.mxu0 0
      %4276 = vmatpush1.bf16.msra.mxu0 0
      %4277 = vmatprep.subr.bf16.mxu0 0
      %4278 = vmatpush1.bf16.msra.mxu0 0
      %4279 = vmatprep.subr.bf16.mxu0 0
      %4280 = vmatpush1.bf16.msra.mxu0 %v4260
      %4281 = vmatprep.subr.bf16.mxu0 0
      %4282 = vmatpush2.bf16.msra.mxu0 0
      %4283 = vmatprep.subr.bf16.mxu0 0
      %4284 = vmatpush2.bf16.msra.mxu0 0
      %4285 = vmatprep.subr.bf16.mxu0 0
      %4286 = vmatpush2.bf16.msra.mxu0 0
      %4287 = vmatprep.subr.bf16.mxu0 0
      %4288 = vmatpush2.bf16.msra.mxu0 0
      %4289 = vmatprep.subr.bf16.mxu0 0
      %4290 = vmatpush2.bf16.msra.mxu0 0
      %4291 = vmatprep.subr.bf16.mxu0 0
      %4292 = vmatpush2.bf16.msra.mxu0 0
      %4293 = vmatprep.subr.bf16.mxu0 0
      %4294 = vmatpush2.bf16.msra.mxu0 0
      %4295 = vmatprep.subr.bf16.mxu0 0
      %4296 = vmatpush2.bf16.msra.mxu0 0
      %4297 = vmatprep.mubr.bf16.mxu0 0
      %4298 = vmatmul.mubr.bf16.gmra.mxu0 %v4263
      %v4299 = vpop.f32.mrf.mxu0
      %v4300 = vadd.f32 0.0, %v4299
      %v4301 = vpop.f32.mrf.mxu0
      %v4302 = vpop.f32.mrf.mxu0
      %v4303 = vpop.f32.mrf.mxu0
      %4304 = vdwg.mxu0
      %4305 = vrot.lane.b32.xlu0 %v1046, 88
      %v4306 = vpop.permute.xlu0 %4305
      %v4309 = vsel %vm1786, %v3704, 0
      %4311 = vmatprep.subr.bf16.mxu0 0
      %4312 = vmatpush1.bf16.msra.mxu0 0
      %4313 = vmatprep.subr.bf16.mxu0 0
      %4314 = vmatpush1.bf16.msra.mxu0 0
      %4315 = vmatprep.subr.bf16.mxu0 0
      %4316 = vmatpush1.bf16.msra.mxu0 0
      %4317 = vmatprep.subr.bf16.mxu0 0
      %4318 = vmatpush1.bf16.msra.mxu0 0
      %4319 = vmatprep.subr.bf16.mxu0 0
      %4320 = vmatpush1.bf16.msra.mxu0 0
      %4321 = vmatprep.subr.bf16.mxu0 0
      %4322 = vmatpush1.bf16.msra.mxu0 0
      %4323 = vmatprep.subr.bf16.mxu0 0
      %4324 = vmatpush1.bf16.msra.mxu0 0
      %4325 = vmatprep.subr.bf16.mxu0 0
      %4326 = vmatpush1.bf16.msra.mxu0 %v4306
      %4327 = vmatprep.subr.bf16.mxu0 0
      %4328 = vmatpush2.bf16.msra.mxu0 0
      %4329 = vmatprep.subr.bf16.mxu0 0
      %4330 = vmatpush2.bf16.msra.mxu0 0
      %4331 = vmatprep.subr.bf16.mxu0 0
      %4332 = vmatpush2.bf16.msra.mxu0 0
      %4333 = vmatprep.subr.bf16.mxu0 0
      %4334 = vmatpush2.bf16.msra.mxu0 0
      %4335 = vmatprep.subr.bf16.mxu0 0
      %4336 = vmatpush2.bf16.msra.mxu0 0
      %4337 = vmatprep.subr.bf16.mxu0 0
      %4338 = vmatpush2.bf16.msra.mxu0 0
      %4339 = vmatprep.subr.bf16.mxu0 0
      %4340 = vmatpush2.bf16.msra.mxu0 0
      %4341 = vmatprep.subr.bf16.mxu0 0
      %4342 = vmatpush2.bf16.msra.mxu0 0
      %4343 = vmatprep.mubr.bf16.mxu0 0
      %4344 = vmatmul.mubr.bf16.gmra.mxu0 %v4309
      %v4345 = vpop.f32.mrf.mxu0
      %v4346 = vadd.f32 0.0, %v4345
      %v4347 = vpop.f32.mrf.mxu0
      %v4348 = vpop.f32.mrf.mxu0
      %v4349 = vpop.f32.mrf.mxu0
      %4350 = vdwg.mxu0
      %4351 = vrot.lane.b32.xlu0 %v1047, 88
      %v4352 = vpop.permute.xlu0 %4351
      %v4355 = vsel %vm1786, %v3705, 0
      %4357 = vmatprep.subr.bf16.mxu0 0
      %4358 = vmatpush1.bf16.msra.mxu0 0
      %4359 = vmatprep.subr.bf16.mxu0 0
      %4360 = vmatpush1.bf16.msra.mxu0 0
      %4361 = vmatprep.subr.bf16.mxu0 0
      %4362 = vmatpush1.bf16.msra.mxu0 0
      %4363 = vmatprep.subr.bf16.mxu0 0
      %4364 = vmatpush1.bf16.msra.mxu0 0
      %4365 = vmatprep.subr.bf16.mxu0 0
      %4366 = vmatpush1.bf16.msra.mxu0 0
      %4367 = vmatprep.subr.bf16.mxu0 0
      %4368 = vmatpush1.bf16.msra.mxu0 0
      %4369 = vmatprep.subr.bf16.mxu0 0
      %4370 = vmatpush1.bf16.msra.mxu0 0
      %4371 = vmatprep.subr.bf16.mxu0 0
      %4372 = vmatpush1.bf16.msra.mxu0 %v4352
      %4373 = vmatprep.subr.bf16.mxu0 0
      %4374 = vmatpush2.bf16.msra.mxu0 0
      %4375 = vmatprep.subr.bf16.mxu0 0
      %4376 = vmatpush2.bf16.msra.mxu0 0
      %4377 = vmatprep.subr.bf16.mxu0 0
      %4378 = vmatpush2.bf16.msra.mxu0 0
      %4379 = vmatprep.subr.bf16.mxu0 0
      %4380 = vmatpush2.bf16.msra.mxu0 0
      %4381 = vmatprep.subr.bf16.mxu0 0
      %4382 = vmatpush2.bf16.msra.mxu0 0
      %4383 = vmatprep.subr.bf16.mxu0 0
      %4384 = vmatpush2.bf16.msra.mxu0 0
      %4385 = vmatprep.subr.bf16.mxu0 0
      %4386 = vmatpush2.bf16.msra.mxu0 0
      %4387 = vmatprep.subr.bf16.mxu0 0
      %4388 = vmatpush2.bf16.msra.mxu0 0
      %4389 = vmatprep.mubr.bf16.mxu0 0
      %4390 = vmatmul.mubr.bf16.gmra.mxu0 %v4355
      %v4391 = vpop.f32.mrf.mxu0
      %v4392 = vadd.f32 0.0, %v4391
      %v4393 = vpop.f32.mrf.mxu0
      %v4394 = vpop.f32.mrf.mxu0
      %v4395 = vpop.f32.mrf.mxu0
      %4396 = vdwg.mxu0
      %4397 = vrot.lane.b32.xlu0 %v1048, 88
      %v4398 = vpop.permute.xlu0 %4397
      %v4401 = vsel %vm1786, %v3706, 0
      %4403 = vmatprep.subr.bf16.mxu0 0
      %4404 = vmatpush1.bf16.msra.mxu0 0
      %4405 = vmatprep.subr.bf16.mxu0 0
      %4406 = vmatpush1.bf16.msra.mxu0 0
      %4407 = vmatprep.subr.bf16.mxu0 0
      %4408 = vmatpush1.bf16.msra.mxu0 0
      %4409 = vmatprep.subr.bf16.mxu0 0
      %4410 = vmatpush1.bf16.msra.mxu0 0
      %4411 = vmatprep.subr.bf16.mxu0 0
      %4412 = vmatpush1.bf16.msra.mxu0 0
      %4413 = vmatprep.subr.bf16.mxu0 0
      %4414 = vmatpush1.bf16.msra.mxu0 0
      %4415 = vmatprep.subr.bf16.mxu0 0
      %4416 = vmatpush1.bf16.msra.mxu0 0
      %4417 = vmatprep.subr.bf16.mxu0 0
      %4418 = vmatpush1.bf16.msra.mxu0 %v4398
      %4419 = vmatprep.subr.bf16.mxu0 0
      %4420 = vmatpush2.bf16.msra.mxu0 0
      %4421 = vmatprep.subr.bf16.mxu0 0
      %4422 = vmatpush2.bf16.msra.mxu0 0
      %4423 = vmatprep.subr.bf16.mxu0 0
      %4424 = vmatpush2.bf16.msra.mxu0 0
      %4425 = vmatprep.subr.bf16.mxu0 0
      %4426 = vmatpush2.bf16.msra.mxu0 0
      %4427 = vmatprep.subr.bf16.mxu0 0
      %4428 = vmatpush2.bf16.msra.mxu0 0
      %4429 = vmatprep.subr.bf16.mxu0 0
      %4430 = vmatpush2.bf16.msra.mxu0 0
      %4431 = vmatprep.subr.bf16.mxu0 0
      %4432 = vmatpush2.bf16.msra.mxu0 0
      %4433 = vmatprep.subr.bf16.mxu0 0
      %4434 = vmatpush2.bf16.msra.mxu0 0
      %4435 = vmatprep.mubr.bf16.mxu0 0
      %4436 = vmatmul.mubr.bf16.gmra.mxu0 %v4401
      %v4437 = vpop.f32.mrf.mxu0
      %v4438 = vadd.f32 0.0, %v4437
      %v4439 = vpop.f32.mrf.mxu0
      %v4440 = vpop.f32.mrf.mxu0
      %v4441 = vpop.f32.mrf.mxu0
      %4442 = vdwg.mxu0
      %v4443 = vrcp.pop %v3645
      %v4444 = vrcp.pop %v3648
      %v4445 = vrcp.pop %v3651
      %v4446 = vrcp.pop %v3654
      %v4447 = vrcp.pop %v3657
      %v4448 = vrcp.pop %v3660
      %v4449 = vrcp.pop %v3663
      %v4450 = vrcp.pop %v3666
      %v4451 = vrcp.pop %v3669
      %v4452 = vrcp.pop %v3672
      %v4453 = vrcp.pop %v3675
      %v4454 = vrcp.pop %v3678
      %v4455 = vrcp.pop %v3681
      %v4456 = vrcp.pop %v3684
      %v4457 = vrcp.pop %v3687
      %v4458 = vrcp.pop %v3690
      %v4459 = vmul.f32 %v3748, %v4443
      %v4460 = vmul.f32 %v3794, %v4444
      %v4461 = vmul.f32 %v3840, %v4445
      %v4462 = vmul.f32 %v3886, %v4446
      %v4463 = vmul.f32 %v3932, %v4447
      %v4464 = vmul.f32 %v3978, %v4448
      %v4465 = vmul.f32 %v4024, %v4449
      %v4466 = vmul.f32 %v4070, %v4450
      %v4467 = vmul.f32 %v4116, %v4451
      %v4468 = vmul.f32 %v4162, %v4452
      %v4469 = vmul.f32 %v4208, %v4453
      %v4470 = vmul.f32 %v4254, %v4454
      %v4471 = vmul.f32 %v4300, %v4455
      %v4472 = vmul.f32 %v4346, %v4456
      %v4473 = vmul.f32 %v4392, %v4457
      %v4474 = vmul.f32 %v4438, %v4458
      %4491 = vrot.lane.b32.xlu0 %v4459, 8
      %v4492 = vpop.permute.xlu0 %4491
      %4493 = vrot.lane.b32.xlu0 %v4460, 8
      %v4494 = vpop.permute.xlu0 %4493
      %4495 = vrot.lane.b32.xlu0 %v4461, 8
      %v4496 = vpop.permute.xlu0 %4495
      %4497 = vrot.lane.b32.xlu0 %v4462, 8
      %v4498 = vpop.permute.xlu0 %4497
      %4499 = vrot.lane.b32.xlu0 %v4463, 8
      %v4500 = vpop.permute.xlu0 %4499
      %4501 = vrot.lane.b32.xlu0 %v4464, 8
      %v4502 = vpop.permute.xlu0 %4501
      %4503 = vrot.lane.b32.xlu0 %v4465, 8
      %v4504 = vpop.permute.xlu0 %4503
      %4505 = vrot.lane.b32.xlu0 %v4466, 8
      %v4506 = vpop.permute.xlu0 %4505
      %4507 = vrot.lane.b32.xlu0 %v4467, 8
      %v4508 = vpop.permute.xlu0 %4507
      %4509 = vrot.lane.b32.xlu0 %v4468, 8
      %v4510 = vpop.permute.xlu0 %4509
      %4511 = vrot.lane.b32.xlu0 %v4469, 8
      %v4512 = vpop.permute.xlu0 %4511
      %4513 = vrot.lane.b32.xlu0 %v4470, 8
      %v4514 = vpop.permute.xlu0 %4513
      %4515 = vrot.lane.b32.xlu0 %v4471, 8
      %v4516 = vpop.permute.xlu0 %4515
      %4517 = vrot.lane.b32.xlu0 %v4472, 8
      %v4518 = vpop.permute.xlu0 %4517
      %4519 = vrot.lane.b32.xlu0 %v4473, 8
      %v4520 = vpop.permute.xlu0 %4519
      %4521 = vrot.lane.b32.xlu0 %v4474, 8
      %v4522 = vpop.permute.xlu0 %4521
      %vm4539 = vcmask 130112
      %4540 = vst.msk [vmem:[#allocation2] sm:$0xff] %vm4539, %v4492
      %4541 = vst.msk [vmem:[#allocation2 + $0x8] sm:$0xff] %vm4539, %v4494
      %4542 = vst.msk [vmem:[#allocation2 + $0x10] sm:$0xff] %vm4539, %v4496
      %4543 = vst.msk [vmem:[#allocation2 + $0x18] sm:$0xff] %vm4539, %v4498
      %4544 = vst.msk [vmem:[#allocation2 + $0x20] sm:$0xff] %vm4539, %v4500
      %4545 = vst.msk [vmem:[#allocation2 + $0x28] sm:$0xff] %vm4539, %v4502
      %4546 = vst.msk [vmem:[#allocation2 + $0x30] sm:$0xff] %vm4539, %v4504
      %4547 = vst.msk [vmem:[#allocation2 + $0x38] sm:$0xff] %vm4539, %v4506
      %4548 = vst.msk [vmem:[#allocation2 + $0x40] sm:$0xff] %vm4539, %v4508
      %4549 = vst.msk [vmem:[#allocation2 + $0x48] sm:$0xff] %vm4539, %v4510
      %4550 = vst.msk [vmem:[#allocation2 + $0x50] sm:$0xff] %vm4539, %v4512
      %4551 = vst.msk [vmem:[#allocation2 + $0x58] sm:$0xff] %vm4539, %v4514
      %4552 = vst.msk [vmem:[#allocation2 + $0x60] sm:$0xff] %vm4539, %v4516
      %4553 = vst.msk [vmem:[#allocation2 + $0x68] sm:$0xff] %vm4539, %v4518
      %4554 = vst.msk [vmem:[#allocation2 + $0x70] sm:$0xff] %vm4539, %v4520
      %4555 = vst.msk [vmem:[#allocation2 + $0x78] sm:$0xff] %vm4539, %v4522
      %4556 = vrot.lane.b32.xlu0 %v1017, 112
      %v4557 = vpop.permute.xlu0 %4556
      %4558 = vrot.lane.b32.xlu0 %v1033, 112
      %v4559 = vpop.permute.xlu0 %4558
      %v4561 = vsel %vm1049, %v4557, 0
      %v4564 = vsel %vm1049, %v4559, 0
      %4566 = vmatprep.subr.bf16.mxu0 0
      %4567 = vmatpush1.bf16.xpose.msra.mxu0 0
      %4568 = vmatprep.subr.bf16.mxu0 0
      %4569 = vmatpush1.bf16.xpose.msra.mxu0 0
      %4570 = vmatprep.subr.bf16.mxu0 0
      %4571 = vmatpush1.bf16.xpose.msra.mxu0 0
      %4572 = vmatprep.subr.bf16.mxu0 0
      %4573 = vmatpush1.bf16.xpose.msra.mxu0 0
      %4574 = vmatprep.subr.bf16.mxu0 0
      %4575 = vmatpush1.bf16.xpose.msra.mxu0 0
      %4576 = vmatprep.subr.bf16.mxu0 0
      %4577 = vmatpush1.bf16.xpose.msra.mxu0 0
      %4578 = vmatprep.subr.bf16.mxu0 0
      %4579 = vmatpush1.bf16.xpose.msra.mxu0 0
      %4580 = vmatprep.subr.bf16.mxu0 0
      %4581 = vmatpush1.bf16.xpose.msra.mxu0 %v4564
      %4582 = vmatprep.subr.bf16.mxu0 0
      %4583 = vmatpush2.bf16.xpose.msra.mxu0 0
      %4584 = vmatprep.subr.bf16.mxu0 0
      %4585 = vmatpush2.bf16.xpose.msra.mxu0 0
      %4586 = vmatprep.subr.bf16.mxu0 0
      %4587 = vmatpush2.bf16.xpose.msra.mxu0 0
      %4588 = vmatprep.subr.bf16.mxu0 0
      %4589 = vmatpush2.bf16.xpose.msra.mxu0 0
      %4590 = vmatprep.subr.bf16.mxu0 0
      %4591 = vmatpush2.bf16.xpose.msra.mxu0 0
      %4592 = vmatprep.subr.bf16.mxu0 0
      %4593 = vmatpush2.bf16.xpose.msra.mxu0 0
      %4594 = vmatprep.subr.bf16.mxu0 0
      %4595 = vmatpush2.bf16.xpose.msra.mxu0 0
      %4596 = vmatprep.subr.bf16.mxu0 0
      %4597 = vmatpush2.bf16.xpose.msra.mxu0 0
      %4598 = vmatprep.mubr.bf16.mxu0 0
      %4599 = vmatmul.mubr.bf16.gmra.mxu0 %v4561
      %v4600 = vpop.f32.mrf.mxu0
      %v4601 = vadd.f32 0.0, %v4600
      %v4602 = vpop.f32.mrf.mxu0
      %v4603 = vpop.f32.mrf.mxu0
      %v4604 = vpop.f32.mrf.mxu0
      %4605 = vdwg.mxu0
      %4606 = vrot.lane.b32.xlu0 %v1018, 112
      %v4607 = vpop.permute.xlu0 %4606
      %4608 = vrot.lane.b32.xlu0 %v1034, 112
      %v4609 = vpop.permute.xlu0 %4608
      %v4611 = vsel %vm1049, %v4607, 0
      %v4614 = vsel %vm1049, %v4609, 0
      %4616 = vmatprep.subr.bf16.mxu0 0
      %4617 = vmatpush1.bf16.xpose.msra.mxu0 0
      %4618 = vmatprep.subr.bf16.mxu0 0
      %4619 = vmatpush1.bf16.xpose.msra.mxu0 0
      %4620 = vmatprep.subr.bf16.mxu0 0
      %4621 = vmatpush1.bf16.xpose.msra.mxu0 0
      %4622 = vmatprep.subr.bf16.mxu0 0
      %4623 = vmatpush1.bf16.xpose.msra.mxu0 0
      %4624 = vmatprep.subr.bf16.mxu0 0
      %4625 = vmatpush1.bf16.xpose.msra.mxu0 0
      %4626 = vmatprep.subr.bf16.mxu0 0
      %4627 = vmatpush1.bf16.xpose.msra.mxu0 0
      %4628 = vmatprep.subr.bf16.mxu0 0
      %4629 = vmatpush1.bf16.xpose.msra.mxu0 0
      %4630 = vmatprep.subr.bf16.mxu0 0
      %4631 = vmatpush1.bf16.xpose.msra.mxu0 %v4614
      %4632 = vmatprep.subr.bf16.mxu0 0
      %4633 = vmatpush2.bf16.xpose.msra.mxu0 0
      %4634 = vmatprep.subr.bf16.mxu0 0
      %4635 = vmatpush2.bf16.xpose.msra.mxu0 0
      %4636 = vmatprep.subr.bf16.mxu0 0
      %4637 = vmatpush2.bf16.xpose.msra.mxu0 0
      %4638 = vmatprep.subr.bf16.mxu0 0
      %4639 = vmatpush2.bf16.xpose.msra.mxu0 0
      %4640 = vmatprep.subr.bf16.mxu0 0
      %4641 = vmatpush2.bf16.xpose.msra.mxu0 0
      %4642 = vmatprep.subr.bf16.mxu0 0
      %4643 = vmatpush2.bf16.xpose.msra.mxu0 0
      %4644 = vmatprep.subr.bf16.mxu0 0
      %4645 = vmatpush2.bf16.xpose.msra.mxu0 0
      %4646 = vmatprep.subr.bf16.mxu0 0
      %4647 = vmatpush2.bf16.xpose.msra.mxu0 0
      %4648 = vmatprep.mubr.bf16.mxu0 0
      %4649 = vmatmul.mubr.bf16.gmra.mxu0 %v4611
      %v4650 = vpop.f32.mrf.mxu0
      %v4651 = vadd.f32 0.0, %v4650
      %v4652 = vpop.f32.mrf.mxu0
      %v4653 = vpop.f32.mrf.mxu0
      %v4654 = vpop.f32.mrf.mxu0
      %4655 = vdwg.mxu0
      %4656 = vrot.lane.b32.xlu0 %v1019, 112
      %v4657 = vpop.permute.xlu0 %4656
      %4658 = vrot.lane.b32.xlu0 %v1035, 112
      %v4659 = vpop.permute.xlu0 %4658
      %v4661 = vsel %vm1049, %v4657, 0
      %v4664 = vsel %vm1049, %v4659, 0
      %4666 = vmatprep.subr.bf16.mxu0 0
      %4667 = vmatpush1.bf16.xpose.msra.mxu0 0
      %4668 = vmatprep.subr.bf16.mxu0 0
      %4669 = vmatpush1.bf16.xpose.msra.mxu0 0
      %4670 = vmatprep.subr.bf16.mxu0 0
      %4671 = vmatpush1.bf16.xpose.msra.mxu0 0
      %4672 = vmatprep.subr.bf16.mxu0 0
      %4673 = vmatpush1.bf16.xpose.msra.mxu0 0
      %4674 = vmatprep.subr.bf16.mxu0 0
      %4675 = vmatpush1.bf16.xpose.msra.mxu0 0
      %4676 = vmatprep.subr.bf16.mxu0 0
      %4677 = vmatpush1.bf16.xpose.msra.mxu0 0
      %4678 = vmatprep.subr.bf16.mxu0 0
      %4679 = vmatpush1.bf16.xpose.msra.mxu0 0
      %4680 = vmatprep.subr.bf16.mxu0 0
      %4681 = vmatpush1.bf16.xpose.msra.mxu0 %v4664
      %4682 = vmatprep.subr.bf16.mxu0 0
      %4683 = vmatpush2.bf16.xpose.msra.mxu0 0
      %4684 = vmatprep.subr.bf16.mxu0 0
      %4685 = vmatpush2.bf16.xpose.msra.mxu0 0
      %4686 = vmatprep.subr.bf16.mxu0 0
      %4687 = vmatpush2.bf16.xpose.msra.mxu0 0
      %4688 = vmatprep.subr.bf16.mxu0 0
      %4689 = vmatpush2.bf16.xpose.msra.mxu0 0
      %4690 = vmatprep.subr.bf16.mxu0 0
      %4691 = vmatpush2.bf16.xpose.msra.mxu0 0
      %4692 = vmatprep.subr.bf16.mxu0 0
      %4693 = vmatpush2.bf16.xpose.msra.mxu0 0
      %4694 = vmatprep.subr.bf16.mxu0 0
      %4695 = vmatpush2.bf16.xpose.msra.mxu0 0
      %4696 = vmatprep.subr.bf16.mxu0 0
      %4697 = vmatpush2.bf16.xpose.msra.mxu0 0
      %4698 = vmatprep.mubr.bf16.mxu0 0
      %4699 = vmatmul.mubr.bf16.gmra.mxu0 %v4661
      %v4700 = vpop.f32.mrf.mxu0
      %v4701 = vadd.f32 0.0, %v4700
      %v4702 = vpop.f32.mrf.mxu0
      %v4703 = vpop.f32.mrf.mxu0
      %v4704 = vpop.f32.mrf.mxu0
      %4705 = vdwg.mxu0
      %4706 = vrot.lane.b32.xlu0 %v1020, 112
      %v4707 = vpop.permute.xlu0 %4706
      %4708 = vrot.lane.b32.xlu0 %v1036, 112
      %v4709 = vpop.permute.xlu0 %4708
      %v4711 = vsel %vm1049, %v4707, 0
      %v4714 = vsel %vm1049, %v4709, 0
      %4716 = vmatprep.subr.bf16.mxu0 0
      %4717 = vmatpush1.bf16.xpose.msra.mxu0 0
      %4718 = vmatprep.subr.bf16.mxu0 0
      %4719 = vmatpush1.bf16.xpose.msra.mxu0 0
      %4720 = vmatprep.subr.bf16.mxu0 0
      %4721 = vmatpush1.bf16.xpose.msra.mxu0 0
      %4722 = vmatprep.subr.bf16.mxu0 0
      %4723 = vmatpush1.bf16.xpose.msra.mxu0 0
      %4724 = vmatprep.subr.bf16.mxu0 0
      %4725 = vmatpush1.bf16.xpose.msra.mxu0 0
      %4726 = vmatprep.subr.bf16.mxu0 0
      %4727 = vmatpush1.bf16.xpose.msra.mxu0 0
      %4728 = vmatprep.subr.bf16.mxu0 0
      %4729 = vmatpush1.bf16.xpose.msra.mxu0 0
      %4730 = vmatprep.subr.bf16.mxu0 0
      %4731 = vmatpush1.bf16.xpose.msra.mxu0 %v4714
      %4732 = vmatprep.subr.bf16.mxu0 0
      %4733 = vmatpush2.bf16.xpose.msra.mxu0 0
      %4734 = vmatprep.subr.bf16.mxu0 0
      %4735 = vmatpush2.bf16.xpose.msra.mxu0 0
      %4736 = vmatprep.subr.bf16.mxu0 0
      %4737 = vmatpush2.bf16.xpose.msra.mxu0 0
      %4738 = vmatprep.subr.bf16.mxu0 0
      %4739 = vmatpush2.bf16.xpose.msra.mxu0 0
      %4740 = vmatprep.subr.bf16.mxu0 0
      %4741 = vmatpush2.bf16.xpose.msra.mxu0 0
      %4742 = vmatprep.subr.bf16.mxu0 0
      %4743 = vmatpush2.bf16.xpose.msra.mxu0 0
      %4744 = vmatprep.subr.bf16.mxu0 0
      %4745 = vmatpush2.bf16.xpose.msra.mxu0 0
      %4746 = vmatprep.subr.bf16.mxu0 0
      %4747 = vmatpush2.bf16.xpose.msra.mxu0 0
      %4748 = vmatprep.mubr.bf16.mxu0 0
      %4749 = vmatmul.mubr.bf16.gmra.mxu0 %v4711
      %v4750 = vpop.f32.mrf.mxu0
      %v4751 = vadd.f32 0.0, %v4750
      %v4752 = vpop.f32.mrf.mxu0
      %v4753 = vpop.f32.mrf.mxu0
      %v4754 = vpop.f32.mrf.mxu0
      %4755 = vdwg.mxu0
      %4756 = vrot.lane.b32.xlu0 %v1021, 112
      %v4757 = vpop.permute.xlu0 %4756
      %4758 = vrot.lane.b32.xlu0 %v1037, 112
      %v4759 = vpop.permute.xlu0 %4758
      %v4761 = vsel %vm1049, %v4757, 0
      %v4764 = vsel %vm1049, %v4759, 0
      %4766 = vmatprep.subr.bf16.mxu0 0
      %4767 = vmatpush1.bf16.xpose.msra.mxu0 0
      %4768 = vmatprep.subr.bf16.mxu0 0
      %4769 = vmatpush1.bf16.xpose.msra.mxu0 0
      %4770 = vmatprep.subr.bf16.mxu0 0
      %4771 = vmatpush1.bf16.xpose.msra.mxu0 0
      %4772 = vmatprep.subr.bf16.mxu0 0
      %4773 = vmatpush1.bf16.xpose.msra.mxu0 0
      %4774 = vmatprep.subr.bf16.mxu0 0
      %4775 = vmatpush1.bf16.xpose.msra.mxu0 0
      %4776 = vmatprep.subr.bf16.mxu0 0
      %4777 = vmatpush1.bf16.xpose.msra.mxu0 0
      %4778 = vmatprep.subr.bf16.mxu0 0
      %4779 = vmatpush1.bf16.xpose.msra.mxu0 0
      %4780 = vmatprep.subr.bf16.mxu0 0
      %4781 = vmatpush1.bf16.xpose.msra.mxu0 %v4764
      %4782 = vmatprep.subr.bf16.mxu0 0
      %4783 = vmatpush2.bf16.xpose.msra.mxu0 0
      %4784 = vmatprep.subr.bf16.mxu0 0
      %4785 = vmatpush2.bf16.xpose.msra.mxu0 0
      %4786 = vmatprep.subr.bf16.mxu0 0
      %4787 = vmatpush2.bf16.xpose.msra.mxu0 0
      %4788 = vmatprep.subr.bf16.mxu0 0
      %4789 = vmatpush2.bf16.xpose.msra.mxu0 0
      %4790 = vmatprep.subr.bf16.mxu0 0
      %4791 = vmatpush2.bf16.xpose.msra.mxu0 0
      %4792 = vmatprep.subr.bf16.mxu0 0
      %4793 = vmatpush2.bf16.xpose.msra.mxu0 0
      %4794 = vmatprep.subr.bf16.mxu0 0
      %4795 = vmatpush2.bf16.xpose.msra.mxu0 0
      %4796 = vmatprep.subr.bf16.mxu0 0
      %4797 = vmatpush2.bf16.xpose.msra.mxu0 0
      %4798 = vmatprep.mubr.bf16.mxu0 0
      %4799 = vmatmul.mubr.bf16.gmra.mxu0 %v4761
      %v4800 = vpop.f32.mrf.mxu0
      %v4801 = vadd.f32 0.0, %v4800
      %v4802 = vpop.f32.mrf.mxu0
      %v4803 = vpop.f32.mrf.mxu0
      %v4804 = vpop.f32.mrf.mxu0
      %4805 = vdwg.mxu0
      %4806 = vrot.lane.b32.xlu0 %v1022, 112
      %v4807 = vpop.permute.xlu0 %4806
      %4808 = vrot.lane.b32.xlu0 %v1038, 112
      %v4809 = vpop.permute.xlu0 %4808
      %v4811 = vsel %vm1049, %v4807, 0
      %v4814 = vsel %vm1049, %v4809, 0
      %4816 = vmatprep.subr.bf16.mxu0 0
      %4817 = vmatpush1.bf16.xpose.msra.mxu0 0
      %4818 = vmatprep.subr.bf16.mxu0 0
      %4819 = vmatpush1.bf16.xpose.msra.mxu0 0
      %4820 = vmatprep.subr.bf16.mxu0 0
      %4821 = vmatpush1.bf16.xpose.msra.mxu0 0
      %4822 = vmatprep.subr.bf16.mxu0 0
      %4823 = vmatpush1.bf16.xpose.msra.mxu0 0
      %4824 = vmatprep.subr.bf16.mxu0 0
      %4825 = vmatpush1.bf16.xpose.msra.mxu0 0
      %4826 = vmatprep.subr.bf16.mxu0 0
      %4827 = vmatpush1.bf16.xpose.msra.mxu0 0
      %4828 = vmatprep.subr.bf16.mxu0 0
      %4829 = vmatpush1.bf16.xpose.msra.mxu0 0
      %4830 = vmatprep.subr.bf16.mxu0 0
      %4831 = vmatpush1.bf16.xpose.msra.mxu0 %v4814
      %4832 = vmatprep.subr.bf16.mxu0 0
      %4833 = vmatpush2.bf16.xpose.msra.mxu0 0
      %4834 = vmatprep.subr.bf16.mxu0 0
      %4835 = vmatpush2.bf16.xpose.msra.mxu0 0
      %4836 = vmatprep.subr.bf16.mxu0 0
      %4837 = vmatpush2.bf16.xpose.msra.mxu0 0
      %4838 = vmatprep.subr.bf16.mxu0 0
      %4839 = vmatpush2.bf16.xpose.msra.mxu0 0
      %4840 = vmatprep.subr.bf16.mxu0 0
      %4841 = vmatpush2.bf16.xpose.msra.mxu0 0
      %4842 = vmatprep.subr.bf16.mxu0 0
      %4843 = vmatpush2.bf16.xpose.msra.mxu0 0
      %4844 = vmatprep.subr.bf16.mxu0 0
      %4845 = vmatpush2.bf16.xpose.msra.mxu0 0
      %4846 = vmatprep.subr.bf16.mxu0 0
      %4847 = vmatpush2.bf16.xpose.msra.mxu0 0
      %4848 = vmatprep.mubr.bf16.mxu0 0
      %4849 = vmatmul.mubr.bf16.gmra.mxu0 %v4811
      %v4850 = vpop.f32.mrf.mxu0
      %v4851 = vadd.f32 0.0, %v4850
      %v4852 = vpop.f32.mrf.mxu0
      %v4853 = vpop.f32.mrf.mxu0
      %v4854 = vpop.f32.mrf.mxu0
      %4855 = vdwg.mxu0
      %4856 = vrot.lane.b32.xlu0 %v1023, 112
      %v4857 = vpop.permute.xlu0 %4856
      %4858 = vrot.lane.b32.xlu0 %v1039, 112
      %v4859 = vpop.permute.xlu0 %4858
      %v4861 = vsel %vm1049, %v4857, 0
      %v4864 = vsel %vm1049, %v4859, 0
      %4866 = vmatprep.subr.bf16.mxu0 0
      %4867 = vmatpush1.bf16.xpose.msra.mxu0 0
      %4868 = vmatprep.subr.bf16.mxu0 0
      %4869 = vmatpush1.bf16.xpose.msra.mxu0 0
      %4870 = vmatprep.subr.bf16.mxu0 0
      %4871 = vmatpush1.bf16.xpose.msra.mxu0 0
      %4872 = vmatprep.subr.bf16.mxu0 0
      %4873 = vmatpush1.bf16.xpose.msra.mxu0 0
      %4874 = vmatprep.subr.bf16.mxu0 0
      %4875 = vmatpush1.bf16.xpose.msra.mxu0 0
      %4876 = vmatprep.subr.bf16.mxu0 0
      %4877 = vmatpush1.bf16.xpose.msra.mxu0 0
      %4878 = vmatprep.subr.bf16.mxu0 0
      %4879 = vmatpush1.bf16.xpose.msra.mxu0 0
      %4880 = vmatprep.subr.bf16.mxu0 0
      %4881 = vmatpush1.bf16.xpose.msra.mxu0 %v4864
      %4882 = vmatprep.subr.bf16.mxu0 0
      %4883 = vmatpush2.bf16.xpose.msra.mxu0 0
      %4884 = vmatprep.subr.bf16.mxu0 0
      %4885 = vmatpush2.bf16.xpose.msra.mxu0 0
      %4886 = vmatprep.subr.bf16.mxu0 0
      %4887 = vmatpush2.bf16.xpose.msra.mxu0 0
      %4888 = vmatprep.subr.bf16.mxu0 0
      %4889 = vmatpush2.bf16.xpose.msra.mxu0 0
      %4890 = vmatprep.subr.bf16.mxu0 0
      %4891 = vmatpush2.bf16.xpose.msra.mxu0 0
      %4892 = vmatprep.subr.bf16.mxu0 0
      %4893 = vmatpush2.bf16.xpose.msra.mxu0 0
      %4894 = vmatprep.subr.bf16.mxu0 0
      %4895 = vmatpush2.bf16.xpose.msra.mxu0 0
      %4896 = vmatprep.subr.bf16.mxu0 0
      %4897 = vmatpush2.bf16.xpose.msra.mxu0 0
      %4898 = vmatprep.mubr.bf16.mxu0 0
      %4899 = vmatmul.mubr.bf16.gmra.mxu0 %v4861
      %v4900 = vpop.f32.mrf.mxu0
      %v4901 = vadd.f32 0.0, %v4900
      %v4902 = vpop.f32.mrf.mxu0
      %v4903 = vpop.f32.mrf.mxu0
      %v4904 = vpop.f32.mrf.mxu0
      %4905 = vdwg.mxu0
      %4906 = vrot.lane.b32.xlu0 %v1024, 112
      %v4907 = vpop.permute.xlu0 %4906
      %4908 = vrot.lane.b32.xlu0 %v1040, 112
      %v4909 = vpop.permute.xlu0 %4908
      %v4911 = vsel %vm1049, %v4907, 0
      %v4914 = vsel %vm1049, %v4909, 0
      %4916 = vmatprep.subr.bf16.mxu0 0
      %4917 = vmatpush1.bf16.xpose.msra.mxu0 0
      %4918 = vmatprep.subr.bf16.mxu0 0
      %4919 = vmatpush1.bf16.xpose.msra.mxu0 0
      %4920 = vmatprep.subr.bf16.mxu0 0
      %4921 = vmatpush1.bf16.xpose.msra.mxu0 0
      %4922 = vmatprep.subr.bf16.mxu0 0
      %4923 = vmatpush1.bf16.xpose.msra.mxu0 0
      %4924 = vmatprep.subr.bf16.mxu0 0
      %4925 = vmatpush1.bf16.xpose.msra.mxu0 0
      %4926 = vmatprep.subr.bf16.mxu0 0
      %4927 = vmatpush1.bf16.xpose.msra.mxu0 0
      %4928 = vmatprep.subr.bf16.mxu0 0
      %4929 = vmatpush1.bf16.xpose.msra.mxu0 0
      %4930 = vmatprep.subr.bf16.mxu0 0
      %4931 = vmatpush1.bf16.xpose.msra.mxu0 %v4914
      %4932 = vmatprep.subr.bf16.mxu0 0
      %4933 = vmatpush2.bf16.xpose.msra.mxu0 0
      %4934 = vmatprep.subr.bf16.mxu0 0
      %4935 = vmatpush2.bf16.xpose.msra.mxu0 0
      %4936 = vmatprep.subr.bf16.mxu0 0
      %4937 = vmatpush2.bf16.xpose.msra.mxu0 0
      %4938 = vmatprep.subr.bf16.mxu0 0
      %4939 = vmatpush2.bf16.xpose.msra.mxu0 0
      %4940 = vmatprep.subr.bf16.mxu0 0
      %4941 = vmatpush2.bf16.xpose.msra.mxu0 0
      %4942 = vmatprep.subr.bf16.mxu0 0
      %4943 = vmatpush2.bf16.xpose.msra.mxu0 0
      %4944 = vmatprep.subr.bf16.mxu0 0
      %4945 = vmatpush2.bf16.xpose.msra.mxu0 0
      %4946 = vmatprep.subr.bf16.mxu0 0
      %4947 = vmatpush2.bf16.xpose.msra.mxu0 0
      %4948 = vmatprep.mubr.bf16.mxu0 0
      %4949 = vmatmul.mubr.bf16.gmra.mxu0 %v4911
      %v4950 = vpop.f32.mrf.mxu0
      %v4951 = vadd.f32 0.0, %v4950
      %v4952 = vpop.f32.mrf.mxu0
      %v4953 = vpop.f32.mrf.mxu0
      %v4954 = vpop.f32.mrf.mxu0
      %4955 = vdwg.mxu0
      %4956 = vrot.lane.b32.xlu0 %v1025, 112
      %v4957 = vpop.permute.xlu0 %4956
      %4958 = vrot.lane.b32.xlu0 %v1041, 112
      %v4959 = vpop.permute.xlu0 %4958
      %v4961 = vsel %vm1049, %v4957, 0
      %v4964 = vsel %vm1049, %v4959, 0
      %4966 = vmatprep.subr.bf16.mxu0 0
      %4967 = vmatpush1.bf16.xpose.msra.mxu0 0
      %4968 = vmatprep.subr.bf16.mxu0 0
      %4969 = vmatpush1.bf16.xpose.msra.mxu0 0
      %4970 = vmatprep.subr.bf16.mxu0 0
      %4971 = vmatpush1.bf16.xpose.msra.mxu0 0
      %4972 = vmatprep.subr.bf16.mxu0 0
      %4973 = vmatpush1.bf16.xpose.msra.mxu0 0
      %4974 = vmatprep.subr.bf16.mxu0 0
      %4975 = vmatpush1.bf16.xpose.msra.mxu0 0
      %4976 = vmatprep.subr.bf16.mxu0 0
      %4977 = vmatpush1.bf16.xpose.msra.mxu0 0
      %4978 = vmatprep.subr.bf16.mxu0 0
      %4979 = vmatpush1.bf16.xpose.msra.mxu0 0
      %4980 = vmatprep.subr.bf16.mxu0 0
      %4981 = vmatpush1.bf16.xpose.msra.mxu0 %v4964
      %4982 = vmatprep.subr.bf16.mxu0 0
      %4983 = vmatpush2.bf16.xpose.msra.mxu0 0
      %4984 = vmatprep.subr.bf16.mxu0 0
      %4985 = vmatpush2.bf16.xpose.msra.mxu0 0
      %4986 = vmatprep.subr.bf16.mxu0 0
      %4987 = vmatpush2.bf16.xpose.msra.mxu0 0
      %4988 = vmatprep.subr.bf16.mxu0 0
      %4989 = vmatpush2.bf16.xpose.msra.mxu0 0
      %4990 = vmatprep.subr.bf16.mxu0 0
      %4991 = vmatpush2.bf16.xpose.msra.mxu0 0
      %4992 = vmatprep.subr.bf16.mxu0 0
      %4993 = vmatpush2.bf16.xpose.msra.mxu0 0
      %4994 = vmatprep.subr.bf16.mxu0 0
      %4995 = vmatpush2.bf16.xpose.msra.mxu0 0
      %4996 = vmatprep.subr.bf16.mxu0 0
      %4997 = vmatpush2.bf16.xpose.msra.mxu0 0
      %4998 = vmatprep.mubr.bf16.mxu0 0
      %4999 = vmatmul.mubr.bf16.gmra.mxu0 %v4961
      %v5000 = vpop.f32.mrf.mxu0
      %v5001 = vadd.f32 0.0, %v5000
      %v5002 = vpop.f32.mrf.mxu0
      %v5003 = vpop.f32.mrf.mxu0
      %v5004 = vpop.f32.mrf.mxu0
      %5005 = vdwg.mxu0
      %5006 = vrot.lane.b32.xlu0 %v1026, 112
      %v5007 = vpop.permute.xlu0 %5006
      %5008 = vrot.lane.b32.xlu0 %v1042, 112
      %v5009 = vpop.permute.xlu0 %5008
      %v5011 = vsel %vm1049, %v5007, 0
      %v5014 = vsel %vm1049, %v5009, 0
      %5016 = vmatprep.subr.bf16.mxu0 0
      %5017 = vmatpush1.bf16.xpose.msra.mxu0 0
      %5018 = vmatprep.subr.bf16.mxu0 0
      %5019 = vmatpush1.bf16.xpose.msra.mxu0 0
      %5020 = vmatprep.subr.bf16.mxu0 0
      %5021 = vmatpush1.bf16.xpose.msra.mxu0 0
      %5022 = vmatprep.subr.bf16.mxu0 0
      %5023 = vmatpush1.bf16.xpose.msra.mxu0 0
      %5024 = vmatprep.subr.bf16.mxu0 0
      %5025 = vmatpush1.bf16.xpose.msra.mxu0 0
      %5026 = vmatprep.subr.bf16.mxu0 0
      %5027 = vmatpush1.bf16.xpose.msra.mxu0 0
      %5028 = vmatprep.subr.bf16.mxu0 0
      %5029 = vmatpush1.bf16.xpose.msra.mxu0 0
      %5030 = vmatprep.subr.bf16.mxu0 0
      %5031 = vmatpush1.bf16.xpose.msra.mxu0 %v5014
      %5032 = vmatprep.subr.bf16.mxu0 0
      %5033 = vmatpush2.bf16.xpose.msra.mxu0 0
      %5034 = vmatprep.subr.bf16.mxu0 0
      %5035 = vmatpush2.bf16.xpose.msra.mxu0 0
      %5036 = vmatprep.subr.bf16.mxu0 0
      %5037 = vmatpush2.bf16.xpose.msra.mxu0 0
      %5038 = vmatprep.subr.bf16.mxu0 0
      %5039 = vmatpush2.bf16.xpose.msra.mxu0 0
      %5040 = vmatprep.subr.bf16.mxu0 0
      %5041 = vmatpush2.bf16.xpose.msra.mxu0 0
      %5042 = vmatprep.subr.bf16.mxu0 0
      %5043 = vmatpush2.bf16.xpose.msra.mxu0 0
      %5044 = vmatprep.subr.bf16.mxu0 0
      %5045 = vmatpush2.bf16.xpose.msra.mxu0 0
      %5046 = vmatprep.subr.bf16.mxu0 0
      %5047 = vmatpush2.bf16.xpose.msra.mxu0 0
      %5048 = vmatprep.mubr.bf16.mxu0 0
      %5049 = vmatmul.mubr.bf16.gmra.mxu0 %v5011
      %v5050 = vpop.f32.mrf.mxu0
      %v5051 = vadd.f32 0.0, %v5050
      %v5052 = vpop.f32.mrf.mxu0
      %v5053 = vpop.f32.mrf.mxu0
      %v5054 = vpop.f32.mrf.mxu0
      %5055 = vdwg.mxu0
      %5056 = vrot.lane.b32.xlu0 %v1027, 112
      %v5057 = vpop.permute.xlu0 %5056
      %5058 = vrot.lane.b32.xlu0 %v1043, 112
      %v5059 = vpop.permute.xlu0 %5058
      %v5061 = vsel %vm1049, %v5057, 0
      %v5064 = vsel %vm1049, %v5059, 0
      %5066 = vmatprep.subr.bf16.mxu0 0
      %5067 = vmatpush1.bf16.xpose.msra.mxu0 0
      %5068 = vmatprep.subr.bf16.mxu0 0
      %5069 = vmatpush1.bf16.xpose.msra.mxu0 0
      %5070 = vmatprep.subr.bf16.mxu0 0
      %5071 = vmatpush1.bf16.xpose.msra.mxu0 0
      %5072 = vmatprep.subr.bf16.mxu0 0
      %5073 = vmatpush1.bf16.xpose.msra.mxu0 0
      %5074 = vmatprep.subr.bf16.mxu0 0
      %5075 = vmatpush1.bf16.xpose.msra.mxu0 0
      %5076 = vmatprep.subr.bf16.mxu0 0
      %5077 = vmatpush1.bf16.xpose.msra.mxu0 0
      %5078 = vmatprep.subr.bf16.mxu0 0
      %5079 = vmatpush1.bf16.xpose.msra.mxu0 0
      %5080 = vmatprep.subr.bf16.mxu0 0
      %5081 = vmatpush1.bf16.xpose.msra.mxu0 %v5064
      %5082 = vmatprep.subr.bf16.mxu0 0
      %5083 = vmatpush2.bf16.xpose.msra.mxu0 0
      %5084 = vmatprep.subr.bf16.mxu0 0
      %5085 = vmatpush2.bf16.xpose.msra.mxu0 0
      %5086 = vmatprep.subr.bf16.mxu0 0
      %5087 = vmatpush2.bf16.xpose.msra.mxu0 0
      %5088 = vmatprep.subr.bf16.mxu0 0
      %5089 = vmatpush2.bf16.xpose.msra.mxu0 0
      %5090 = vmatprep.subr.bf16.mxu0 0
      %5091 = vmatpush2.bf16.xpose.msra.mxu0 0
      %5092 = vmatprep.subr.bf16.mxu0 0
      %5093 = vmatpush2.bf16.xpose.msra.mxu0 0
      %5094 = vmatprep.subr.bf16.mxu0 0
      %5095 = vmatpush2.bf16.xpose.msra.mxu0 0
      %5096 = vmatprep.subr.bf16.mxu0 0
      %5097 = vmatpush2.bf16.xpose.msra.mxu0 0
      %5098 = vmatprep.mubr.bf16.mxu0 0
      %5099 = vmatmul.mubr.bf16.gmra.mxu0 %v5061
      %v5100 = vpop.f32.mrf.mxu0
      %v5101 = vadd.f32 0.0, %v5100
      %v5102 = vpop.f32.mrf.mxu0
      %v5103 = vpop.f32.mrf.mxu0
      %v5104 = vpop.f32.mrf.mxu0
      %5105 = vdwg.mxu0
      %5106 = vrot.lane.b32.xlu0 %v1028, 112
      %v5107 = vpop.permute.xlu0 %5106
      %5108 = vrot.lane.b32.xlu0 %v1044, 112
      %v5109 = vpop.permute.xlu0 %5108
      %v5111 = vsel %vm1049, %v5107, 0
      %v5114 = vsel %vm1049, %v5109, 0
      %5116 = vmatprep.subr.bf16.mxu0 0
      %5117 = vmatpush1.bf16.xpose.msra.mxu0 0
      %5118 = vmatprep.subr.bf16.mxu0 0
      %5119 = vmatpush1.bf16.xpose.msra.mxu0 0
      %5120 = vmatprep.subr.bf16.mxu0 0
      %5121 = vmatpush1.bf16.xpose.msra.mxu0 0
      %5122 = vmatprep.subr.bf16.mxu0 0
      %5123 = vmatpush1.bf16.xpose.msra.mxu0 0
      %5124 = vmatprep.subr.bf16.mxu0 0
      %5125 = vmatpush1.bf16.xpose.msra.mxu0 0
      %5126 = vmatprep.subr.bf16.mxu0 0
      %5127 = vmatpush1.bf16.xpose.msra.mxu0 0
      %5128 = vmatprep.subr.bf16.mxu0 0
      %5129 = vmatpush1.bf16.xpose.msra.mxu0 0
      %5130 = vmatprep.subr.bf16.mxu0 0
      %5131 = vmatpush1.bf16.xpose.msra.mxu0 %v5114
      %5132 = vmatprep.subr.bf16.mxu0 0
      %5133 = vmatpush2.bf16.xpose.msra.mxu0 0
      %5134 = vmatprep.subr.bf16.mxu0 0
      %5135 = vmatpush2.bf16.xpose.msra.mxu0 0
      %5136 = vmatprep.subr.bf16.mxu0 0
      %5137 = vmatpush2.bf16.xpose.msra.mxu0 0
      %5138 = vmatprep.subr.bf16.mxu0 0
      %5139 = vmatpush2.bf16.xpose.msra.mxu0 0
      %5140 = vmatprep.subr.bf16.mxu0 0
      %5141 = vmatpush2.bf16.xpose.msra.mxu0 0
      %5142 = vmatprep.subr.bf16.mxu0 0
      %5143 = vmatpush2.bf16.xpose.msra.mxu0 0
      %5144 = vmatprep.subr.bf16.mxu0 0
      %5145 = vmatpush2.bf16.xpose.msra.mxu0 0
      %5146 = vmatprep.subr.bf16.mxu0 0
      %5147 = vmatpush2.bf16.xpose.msra.mxu0 0
      %5148 = vmatprep.mubr.bf16.mxu0 0
      %5149 = vmatmul.mubr.bf16.gmra.mxu0 %v5111
      %v5150 = vpop.f32.mrf.mxu0
      %v5151 = vadd.f32 0.0, %v5150
      %v5152 = vpop.f32.mrf.mxu0
      %v5153 = vpop.f32.mrf.mxu0
      %v5154 = vpop.f32.mrf.mxu0
      %5155 = vdwg.mxu0
      %5156 = vrot.lane.b32.xlu0 %v1029, 112
      %v5157 = vpop.permute.xlu0 %5156
      %5158 = vrot.lane.b32.xlu0 %v1045, 112
      %v5159 = vpop.permute.xlu0 %5158
      %v5161 = vsel %vm1049, %v5157, 0
      %v5164 = vsel %vm1049, %v5159, 0
      %5166 = vmatprep.subr.bf16.mxu0 0
      %5167 = vmatpush1.bf16.xpose.msra.mxu0 0
      %5168 = vmatprep.subr.bf16.mxu0 0
      %5169 = vmatpush1.bf16.xpose.msra.mxu0 0
      %5170 = vmatprep.subr.bf16.mxu0 0
      %5171 = vmatpush1.bf16.xpose.msra.mxu0 0
      %5172 = vmatprep.subr.bf16.mxu0 0
      %5173 = vmatpush1.bf16.xpose.msra.mxu0 0
      %5174 = vmatprep.subr.bf16.mxu0 0
      %5175 = vmatpush1.bf16.xpose.msra.mxu0 0
      %5176 = vmatprep.subr.bf16.mxu0 0
      %5177 = vmatpush1.bf16.xpose.msra.mxu0 0
      %5178 = vmatprep.subr.bf16.mxu0 0
      %5179 = vmatpush1.bf16.xpose.msra.mxu0 0
      %5180 = vmatprep.subr.bf16.mxu0 0
      %5181 = vmatpush1.bf16.xpose.msra.mxu0 %v5164
      %5182 = vmatprep.subr.bf16.mxu0 0
      %5183 = vmatpush2.bf16.xpose.msra.mxu0 0
      %5184 = vmatprep.subr.bf16.mxu0 0
      %5185 = vmatpush2.bf16.xpose.msra.mxu0 0
      %5186 = vmatprep.subr.bf16.mxu0 0
      %5187 = vmatpush2.bf16.xpose.msra.mxu0 0
      %5188 = vmatprep.subr.bf16.mxu0 0
      %5189 = vmatpush2.bf16.xpose.msra.mxu0 0
      %5190 = vmatprep.subr.bf16.mxu0 0
      %5191 = vmatpush2.bf16.xpose.msra.mxu0 0
      %5192 = vmatprep.subr.bf16.mxu0 0
      %5193 = vmatpush2.bf16.xpose.msra.mxu0 0
      %5194 = vmatprep.subr.bf16.mxu0 0
      %5195 = vmatpush2.bf16.xpose.msra.mxu0 0
      %5196 = vmatprep.subr.bf16.mxu0 0
      %5197 = vmatpush2.bf16.xpose.msra.mxu0 0
      %5198 = vmatprep.mubr.bf16.mxu0 0
      %5199 = vmatmul.mubr.bf16.gmra.mxu0 %v5161
      %v5200 = vpop.f32.mrf.mxu0
      %v5201 = vadd.f32 0.0, %v5200
      %v5202 = vpop.f32.mrf.mxu0
      %v5203 = vpop.f32.mrf.mxu0
      %v5204 = vpop.f32.mrf.mxu0
      %5205 = vdwg.mxu0
      %5206 = vrot.lane.b32.xlu0 %v1030, 112
      %v5207 = vpop.permute.xlu0 %5206
      %5208 = vrot.lane.b32.xlu0 %v1046, 112
      %v5209 = vpop.permute.xlu0 %5208
      %v5211 = vsel %vm1049, %v5207, 0
      %v5214 = vsel %vm1049, %v5209, 0
      %5216 = vmatprep.subr.bf16.mxu0 0
      %5217 = vmatpush1.bf16.xpose.msra.mxu0 0
      %5218 = vmatprep.subr.bf16.mxu0 0
      %5219 = vmatpush1.bf16.xpose.msra.mxu0 0
      %5220 = vmatprep.subr.bf16.mxu0 0
      %5221 = vmatpush1.bf16.xpose.msra.mxu0 0
      %5222 = vmatprep.subr.bf16.mxu0 0
      %5223 = vmatpush1.bf16.xpose.msra.mxu0 0
      %5224 = vmatprep.subr.bf16.mxu0 0
      %5225 = vmatpush1.bf16.xpose.msra.mxu0 0
      %5226 = vmatprep.subr.bf16.mxu0 0
      %5227 = vmatpush1.bf16.xpose.msra.mxu0 0
      %5228 = vmatprep.subr.bf16.mxu0 0
      %5229 = vmatpush1.bf16.xpose.msra.mxu0 0
      %5230 = vmatprep.subr.bf16.mxu0 0
      %5231 = vmatpush1.bf16.xpose.msra.mxu0 %v5214
      %5232 = vmatprep.subr.bf16.mxu0 0
      %5233 = vmatpush2.bf16.xpose.msra.mxu0 0
      %5234 = vmatprep.subr.bf16.mxu0 0
      %5235 = vmatpush2.bf16.xpose.msra.mxu0 0
      %5236 = vmatprep.subr.bf16.mxu0 0
      %5237 = vmatpush2.bf16.xpose.msra.mxu0 0
      %5238 = vmatprep.subr.bf16.mxu0 0
      %5239 = vmatpush2.bf16.xpose.msra.mxu0 0
      %5240 = vmatprep.subr.bf16.mxu0 0
      %5241 = vmatpush2.bf16.xpose.msra.mxu0 0
      %5242 = vmatprep.subr.bf16.mxu0 0
      %5243 = vmatpush2.bf16.xpose.msra.mxu0 0
      %5244 = vmatprep.subr.bf16.mxu0 0
      %5245 = vmatpush2.bf16.xpose.msra.mxu0 0
      %5246 = vmatprep.subr.bf16.mxu0 0
      %5247 = vmatpush2.bf16.xpose.msra.mxu0 0
      %5248 = vmatprep.mubr.bf16.mxu0 0
      %5249 = vmatmul.mubr.bf16.gmra.mxu0 %v5211
      %v5250 = vpop.f32.mrf.mxu0
      %v5251 = vadd.f32 0.0, %v5250
      %v5252 = vpop.f32.mrf.mxu0
      %v5253 = vpop.f32.mrf.mxu0
      %v5254 = vpop.f32.mrf.mxu0
      %5255 = vdwg.mxu0
      %5256 = vrot.lane.b32.xlu0 %v1031, 112
      %v5257 = vpop.permute.xlu0 %5256
      %5258 = vrot.lane.b32.xlu0 %v1047, 112
      %v5259 = vpop.permute.xlu0 %5258
      %v5261 = vsel %vm1049, %v5257, 0
      %v5264 = vsel %vm1049, %v5259, 0
      %5266 = vmatprep.subr.bf16.mxu0 0
      %5267 = vmatpush1.bf16.xpose.msra.mxu0 0
      %5268 = vmatprep.subr.bf16.mxu0 0
      %5269 = vmatpush1.bf16.xpose.msra.mxu0 0
      %5270 = vmatprep.subr.bf16.mxu0 0
      %5271 = vmatpush1.bf16.xpose.msra.mxu0 0
      %5272 = vmatprep.subr.bf16.mxu0 0
      %5273 = vmatpush1.bf16.xpose.msra.mxu0 0
      %5274 = vmatprep.subr.bf16.mxu0 0
      %5275 = vmatpush1.bf16.xpose.msra.mxu0 0
      %5276 = vmatprep.subr.bf16.mxu0 0
      %5277 = vmatpush1.bf16.xpose.msra.mxu0 0
      %5278 = vmatprep.subr.bf16.mxu0 0
      %5279 = vmatpush1.bf16.xpose.msra.mxu0 0
      %5280 = vmatprep.subr.bf16.mxu0 0
      %5281 = vmatpush1.bf16.xpose.msra.mxu0 %v5264
      %5282 = vmatprep.subr.bf16.mxu0 0
      %5283 = vmatpush2.bf16.xpose.msra.mxu0 0
      %5284 = vmatprep.subr.bf16.mxu0 0
      %5285 = vmatpush2.bf16.xpose.msra.mxu0 0
      %5286 = vmatprep.subr.bf16.mxu0 0
      %5287 = vmatpush2.bf16.xpose.msra.mxu0 0
      %5288 = vmatprep.subr.bf16.mxu0 0
      %5289 = vmatpush2.bf16.xpose.msra.mxu0 0
      %5290 = vmatprep.subr.bf16.mxu0 0
      %5291 = vmatpush2.bf16.xpose.msra.mxu0 0
      %5292 = vmatprep.subr.bf16.mxu0 0
      %5293 = vmatpush2.bf16.xpose.msra.mxu0 0
      %5294 = vmatprep.subr.bf16.mxu0 0
      %5295 = vmatpush2.bf16.xpose.msra.mxu0 0
      %5296 = vmatprep.subr.bf16.mxu0 0
      %5297 = vmatpush2.bf16.xpose.msra.mxu0 0
      %5298 = vmatprep.mubr.bf16.mxu0 0
      %5299 = vmatmul.mubr.bf16.gmra.mxu0 %v5261
      %v5300 = vpop.f32.mrf.mxu0
      %v5301 = vadd.f32 0.0, %v5300
      %v5302 = vpop.f32.mrf.mxu0
      %v5303 = vpop.f32.mrf.mxu0
      %v5304 = vpop.f32.mrf.mxu0
      %5305 = vdwg.mxu0
      %5306 = vrot.lane.b32.xlu0 %v1032, 112
      %v5307 = vpop.permute.xlu0 %5306
      %5308 = vrot.lane.b32.xlu0 %v1048, 112
      %v5309 = vpop.permute.xlu0 %5308
      %v5311 = vsel %vm1049, %v5307, 0
      %v5314 = vsel %vm1049, %v5309, 0
      %5316 = vmatprep.subr.bf16.mxu0 0
      %5317 = vmatpush1.bf16.xpose.msra.mxu0 0
      %5318 = vmatprep.subr.bf16.mxu0 0
      %5319 = vmatpush1.bf16.xpose.msra.mxu0 0
      %5320 = vmatprep.subr.bf16.mxu0 0
      %5321 = vmatpush1.bf16.xpose.msra.mxu0 0
      %5322 = vmatprep.subr.bf16.mxu0 0
      %5323 = vmatpush1.bf16.xpose.msra.mxu0 0
      %5324 = vmatprep.subr.bf16.mxu0 0
      %5325 = vmatpush1.bf16.xpose.msra.mxu0 0
      %5326 = vmatprep.subr.bf16.mxu0 0
      %5327 = vmatpush1.bf16.xpose.msra.mxu0 0
      %5328 = vmatprep.subr.bf16.mxu0 0
      %5329 = vmatpush1.bf16.xpose.msra.mxu0 0
      %5330 = vmatprep.subr.bf16.mxu0 0
      %5331 = vmatpush1.bf16.xpose.msra.mxu0 %v5314
      %5332 = vmatprep.subr.bf16.mxu0 0
      %5333 = vmatpush2.bf16.xpose.msra.mxu0 0
      %5334 = vmatprep.subr.bf16.mxu0 0
      %5335 = vmatpush2.bf16.xpose.msra.mxu0 0
      %5336 = vmatprep.subr.bf16.mxu0 0
      %5337 = vmatpush2.bf16.xpose.msra.mxu0 0
      %5338 = vmatprep.subr.bf16.mxu0 0
      %5339 = vmatpush2.bf16.xpose.msra.mxu0 0
      %5340 = vmatprep.subr.bf16.mxu0 0
      %5341 = vmatpush2.bf16.xpose.msra.mxu0 0
      %5342 = vmatprep.subr.bf16.mxu0 0
      %5343 = vmatpush2.bf16.xpose.msra.mxu0 0
      %5344 = vmatprep.subr.bf16.mxu0 0
      %5345 = vmatpush2.bf16.xpose.msra.mxu0 0
      %5346 = vmatprep.subr.bf16.mxu0 0
      %5347 = vmatpush2.bf16.xpose.msra.mxu0 0
      %5348 = vmatprep.mubr.bf16.mxu0 0
      %5349 = vmatmul.mubr.bf16.gmra.mxu0 %v5311
      %v5350 = vpop.f32.mrf.mxu0
      %v5351 = vadd.f32 0.0, %v5350
      %v5352 = vpop.f32.mrf.mxu0
      %v5353 = vpop.f32.mrf.mxu0
      %v5354 = vpop.f32.mrf.mxu0
      %5355 = vdwg.mxu0
      %v5356 = vsel %vm1786, %v4601, -inf
      %5357 = vmax.xlane.f32.xlu0 %v5356
      %v5358 = vpop.xlane.xlu0 %5357
      %v5359 = vsel %vm1786, %v4651, -inf
      %5360 = vmax.xlane.f32.xlu0 %v5359
      %v5361 = vpop.xlane.xlu0 %5360
      %v5362 = vsel %vm1786, %v4701, -inf
      %5363 = vmax.xlane.f32.xlu0 %v5362
      %v5364 = vpop.xlane.xlu0 %5363
      %v5365 = vsel %vm1786, %v4751, -inf
      %5366 = vmax.xlane.f32.xlu0 %v5365
      %v5367 = vpop.xlane.xlu0 %5366
      %v5368 = vsel %vm1786, %v4801, -inf
      %5369 = vmax.xlane.f32.xlu0 %v5368
      %v5370 = vpop.xlane.xlu0 %5369
      %v5371 = vsel %vm1786, %v4851, -inf
      %5372 = vmax.xlane.f32.xlu0 %v5371
      %v5373 = vpop.xlane.xlu0 %5372
      %v5374 = vsel %vm1786, %v4901, -inf
      %5375 = vmax.xlane.f32.xlu0 %v5374
      %v5376 = vpop.xlane.xlu0 %5375
      %v5377 = vsel %vm1786, %v4951, -inf
      %5378 = vmax.xlane.f32.xlu0 %v5377
      %v5379 = vpop.xlane.xlu0 %5378
      %v5380 = vsel %vm1786, %v5001, -inf
      %5381 = vmax.xlane.f32.xlu0 %v5380
      %v5382 = vpop.xlane.xlu0 %5381
      %v5383 = vsel %vm1786, %v5051, -inf
      %5384 = vmax.xlane.f32.xlu0 %v5383
      %v5385 = vpop.xlane.xlu0 %5384
      %v5386 = vsel %vm1786, %v5101, -inf
      %5387 = vmax.xlane.f32.xlu0 %v5386
      %v5388 = vpop.xlane.xlu0 %5387
      %v5389 = vsel %vm1786, %v5151, -inf
      %5390 = vmax.xlane.f32.xlu0 %v5389
      %v5391 = vpop.xlane.xlu0 %5390
      %v5392 = vsel %vm1786, %v5201, -inf
      %5393 = vmax.xlane.f32.xlu0 %v5392
      %v5394 = vpop.xlane.xlu0 %5393
      %v5395 = vsel %vm1786, %v5251, -inf
      %5396 = vmax.xlane.f32.xlu0 %v5395
      %v5397 = vpop.xlane.xlu0 %5396
      %v5398 = vsel %vm1786, %v5301, -inf
      %5399 = vmax.xlane.f32.xlu0 %v5398
      %v5400 = vpop.xlane.xlu0 %5399
      %v5401 = vsel %vm1786, %v5351, -inf
      %5402 = vmax.xlane.f32.xlu0 %v5401
      %v5403 = vpop.xlane.xlu0 %5402
      %v5404 = vsub.f32 %v4601, %v5358
      %v5405 = vsub.f32 %v4651, %v5361
      %v5406 = vsub.f32 %v4701, %v5364
      %v5407 = vsub.f32 %v4751, %v5367
      %v5408 = vsub.f32 %v4801, %v5370
      %v5409 = vsub.f32 %v4851, %v5373
      %v5410 = vsub.f32 %v4901, %v5376
      %v5411 = vsub.f32 %v4951, %v5379
      %v5412 = vsub.f32 %v5001, %v5382
      %v5413 = vsub.f32 %v5051, %v5385
      %v5414 = vsub.f32 %v5101, %v5388
      %v5415 = vsub.f32 %v5151, %v5391
      %v5416 = vsub.f32 %v5201, %v5394
      %v5417 = vsub.f32 %v5251, %v5397
      %v5418 = vsub.f32 %v5301, %v5400
      %v5419 = vsub.f32 %v5351, %v5403
      %v5420 = vmul.f32 %v5404, 1.442695
      %v5421 = vpow.pop %v5420
      %v5422 = vmul.f32 %v5405, 1.442695
      %v5423 = vpow.pop %v5422
      %v5424 = vmul.f32 %v5406, 1.442695
      %v5425 = vpow.pop %v5424
      %v5426 = vmul.f32 %v5407, 1.442695
      %v5427 = vpow.pop %v5426
      %v5428 = vmul.f32 %v5408, 1.442695
      %v5429 = vpow.pop %v5428
      %v5430 = vmul.f32 %v5409, 1.442695
      %v5431 = vpow.pop %v5430
      %v5432 = vmul.f32 %v5410, 1.442695
      %v5433 = vpow.pop %v5432
      %v5434 = vmul.f32 %v5411, 1.442695
      %v5435 = vpow.pop %v5434
      %v5436 = vmul.f32 %v5412, 1.442695
      %v5437 = vpow.pop %v5436
      %v5438 = vmul.f32 %v5413, 1.442695
      %v5439 = vpow.pop %v5438
      %v5440 = vmul.f32 %v5414, 1.442695
      %v5441 = vpow.pop %v5440
      %v5442 = vmul.f32 %v5415, 1.442695
      %v5443 = vpow.pop %v5442
      %v5444 = vmul.f32 %v5416, 1.442695
      %v5445 = vpow.pop %v5444
      %v5446 = vmul.f32 %v5417, 1.442695
      %v5447 = vpow.pop %v5446
      %v5448 = vmul.f32 %v5418, 1.442695
      %v5449 = vpow.pop %v5448
      %v5450 = vmul.f32 %v5419, 1.442695
      %v5451 = vpow.pop %v5450
      %v5452 = vsel %vm1786, %v5421, 0.0
      %5453 = vadd.xlane.f32.xlu0 %v5452
      %v5454 = vpop.xlane.xlu0 %5453
      %v5455 = vsel %vm1786, %v5423, 0.0
      %5456 = vadd.xlane.f32.xlu0 %v5455
      %v5457 = vpop.xlane.xlu0 %5456
      %v5458 = vsel %vm1786, %v5425, 0.0
      %5459 = vadd.xlane.f32.xlu0 %v5458
      %v5460 = vpop.xlane.xlu0 %5459
      %v5461 = vsel %vm1786, %v5427, 0.0
      %5462 = vadd.xlane.f32.xlu0 %v5461
      %v5463 = vpop.xlane.xlu0 %5462
      %v5464 = vsel %vm1786, %v5429, 0.0
      %5465 = vadd.xlane.f32.xlu0 %v5464
      %v5466 = vpop.xlane.xlu0 %5465
      %v5467 = vsel %vm1786, %v5431, 0.0
      %5468 = vadd.xlane.f32.xlu0 %v5467
      %v5469 = vpop.xlane.xlu0 %5468
      %v5470 = vsel %vm1786, %v5433, 0.0
      %5471 = vadd.xlane.f32.xlu0 %v5470
      %v5472 = vpop.xlane.xlu0 %5471
      %v5473 = vsel %vm1786, %v5435, 0.0
      %5474 = vadd.xlane.f32.xlu0 %v5473
      %v5475 = vpop.xlane.xlu0 %5474
      %v5476 = vsel %vm1786, %v5437, 0.0
      %5477 = vadd.xlane.f32.xlu0 %v5476
      %v5478 = vpop.xlane.xlu0 %5477
      %v5479 = vsel %vm1786, %v5439, 0.0
      %5480 = vadd.xlane.f32.xlu0 %v5479
      %v5481 = vpop.xlane.xlu0 %5480
      %v5482 = vsel %vm1786, %v5441, 0.0
      %5483 = vadd.xlane.f32.xlu0 %v5482
      %v5484 = vpop.xlane.xlu0 %5483
      %v5485 = vsel %vm1786, %v5443, 0.0
      %5486 = vadd.xlane.f32.xlu0 %v5485
      %v5487 = vpop.xlane.xlu0 %5486
      %v5488 = vsel %vm1786, %v5445, 0.0
      %5489 = vadd.xlane.f32.xlu0 %v5488
      %v5490 = vpop.xlane.xlu0 %5489
      %v5491 = vsel %vm1786, %v5447, 0.0
      %5492 = vadd.xlane.f32.xlu0 %v5491
      %v5493 = vpop.xlane.xlu0 %5492
      %v5494 = vsel %vm1786, %v5449, 0.0
      %5495 = vadd.xlane.f32.xlu0 %v5494
      %v5496 = vpop.xlane.xlu0 %5495
      %v5497 = vsel %vm1786, %v5451, 0.0
      %5498 = vadd.xlane.f32.xlu0 %v5497
      %v5499 = vpop.xlane.xlu0 %5498
      %v5500 = vpack.c.bf16 %v5421, %v5421
      %v5501 = vpack.c.bf16 %v5423, %v5423
      %v5502 = vpack.c.bf16 %v5425, %v5425
      %v5503 = vpack.c.bf16 %v5427, %v5427
      %v5504 = vpack.c.bf16 %v5429, %v5429
      %v5505 = vpack.c.bf16 %v5431, %v5431
      %v5506 = vpack.c.bf16 %v5433, %v5433
      %v5507 = vpack.c.bf16 %v5435, %v5435
      %v5508 = vpack.c.bf16 %v5437, %v5437
      %v5509 = vpack.c.bf16 %v5439, %v5439
      %v5510 = vpack.c.bf16 %v5441, %v5441
      %v5511 = vpack.c.bf16 %v5443, %v5443
      %v5512 = vpack.c.bf16 %v5445, %v5445
      %v5513 = vpack.c.bf16 %v5447, %v5447
      %v5514 = vpack.c.bf16 %v5449, %v5449
      %v5515 = vpack.c.bf16 %v5451, %v5451
      %5516 = vrot.lane.b32.xlu0 %v1033, 80
      %v5517 = vpop.permute.xlu0 %5516
      %v5520 = vsel %vm1786, %v5500, 0
      %5522 = vmatprep.subr.bf16.mxu0 0
      %5523 = vmatpush1.bf16.msra.mxu0 0
      %5524 = vmatprep.subr.bf16.mxu0 0
      %5525 = vmatpush1.bf16.msra.mxu0 0
      %5526 = vmatprep.subr.bf16.mxu0 0
      %5527 = vmatpush1.bf16.msra.mxu0 0
      %5528 = vmatprep.subr.bf16.mxu0 0
      %5529 = vmatpush1.bf16.msra.mxu0 0
      %5530 = vmatprep.subr.bf16.mxu0 0
      %5531 = vmatpush1.bf16.msra.mxu0 0
      %5532 = vmatprep.subr.bf16.mxu0 0
      %5533 = vmatpush1.bf16.msra.mxu0 0
      %5534 = vmatprep.subr.bf16.mxu0 0
      %5535 = vmatpush1.bf16.msra.mxu0 0
      %5536 = vmatprep.subr.bf16.mxu0 0
      %5537 = vmatpush1.bf16.msra.mxu0 %v5517
      %5538 = vmatprep.subr.bf16.mxu0 0
      %5539 = vmatpush2.bf16.msra.mxu0 0
      %5540 = vmatprep.subr.bf16.mxu0 0
      %5541 = vmatpush2.bf16.msra.mxu0 0
      %5542 = vmatprep.subr.bf16.mxu0 0
      %5543 = vmatpush2.bf16.msra.mxu0 0
      %5544 = vmatprep.subr.bf16.mxu0 0
      %5545 = vmatpush2.bf16.msra.mxu0 0
      %5546 = vmatprep.subr.bf16.mxu0 0
      %5547 = vmatpush2.bf16.msra.mxu0 0
      %5548 = vmatprep.subr.bf16.mxu0 0
      %5549 = vmatpush2.bf16.msra.mxu0 0
      %5550 = vmatprep.subr.bf16.mxu0 0
      %5551 = vmatpush2.bf16.msra.mxu0 0
      %5552 = vmatprep.subr.bf16.mxu0 0
      %5553 = vmatpush2.bf16.msra.mxu0 0
      %5554 = vmatprep.mubr.bf16.mxu0 0
      %5555 = vmatmul.mubr.bf16.gmra.mxu0 %v5520
      %v5556 = vpop.f32.mrf.mxu0
      %v5557 = vadd.f32 0.0, %v5556
      %v5558 = vpop.f32.mrf.mxu0
      %v5559 = vpop.f32.mrf.mxu0
      %v5560 = vpop.f32.mrf.mxu0
      %5561 = vdwg.mxu0
      %5562 = vrot.lane.b32.xlu0 %v1034, 80
      %v5563 = vpop.permute.xlu0 %5562
      %v5566 = vsel %vm1786, %v5501, 0
      %5568 = vmatprep.subr.bf16.mxu0 0
      %5569 = vmatpush1.bf16.msra.mxu0 0
      %5570 = vmatprep.subr.bf16.mxu0 0
      %5571 = vmatpush1.bf16.msra.mxu0 0
      %5572 = vmatprep.subr.bf16.mxu0 0
      %5573 = vmatpush1.bf16.msra.mxu0 0
      %5574 = vmatprep.subr.bf16.mxu0 0
      %5575 = vmatpush1.bf16.msra.mxu0 0
      %5576 = vmatprep.subr.bf16.mxu0 0
      %5577 = vmatpush1.bf16.msra.mxu0 0
      %5578 = vmatprep.subr.bf16.mxu0 0
      %5579 = vmatpush1.bf16.msra.mxu0 0
      %5580 = vmatprep.subr.bf16.mxu0 0
      %5581 = vmatpush1.bf16.msra.mxu0 0
      %5582 = vmatprep.subr.bf16.mxu0 0
      %5583 = vmatpush1.bf16.msra.mxu0 %v5563
      %5584 = vmatprep.subr.bf16.mxu0 0
      %5585 = vmatpush2.bf16.msra.mxu0 0
      %5586 = vmatprep.subr.bf16.mxu0 0
      %5587 = vmatpush2.bf16.msra.mxu0 0
      %5588 = vmatprep.subr.bf16.mxu0 0
      %5589 = vmatpush2.bf16.msra.mxu0 0
      %5590 = vmatprep.subr.bf16.mxu0 0
      %5591 = vmatpush2.bf16.msra.mxu0 0
      %5592 = vmatprep.subr.bf16.mxu0 0
      %5593 = vmatpush2.bf16.msra.mxu0 0
      %5594 = vmatprep.subr.bf16.mxu0 0
      %5595 = vmatpush2.bf16.msra.mxu0 0
      %5596 = vmatprep.subr.bf16.mxu0 0
      %5597 = vmatpush2.bf16.msra.mxu0 0
      %5598 = vmatprep.subr.bf16.mxu0 0
      %5599 = vmatpush2.bf16.msra.mxu0 0
      %5600 = vmatprep.mubr.bf16.mxu0 0
      %5601 = vmatmul.mubr.bf16.gmra.mxu0 %v5566
      %v5602 = vpop.f32.mrf.mxu0
      %v5603 = vadd.f32 0.0, %v5602
      %v5604 = vpop.f32.mrf.mxu0
      %v5605 = vpop.f32.mrf.mxu0
      %v5606 = vpop.f32.mrf.mxu0
      %5607 = vdwg.mxu0
      %5608 = vrot.lane.b32.xlu0 %v1035, 80
      %v5609 = vpop.permute.xlu0 %5608
      %v5612 = vsel %vm1786, %v5502, 0
      %5614 = vmatprep.subr.bf16.mxu0 0
      %5615 = vmatpush1.bf16.msra.mxu0 0
      %5616 = vmatprep.subr.bf16.mxu0 0
      %5617 = vmatpush1.bf16.msra.mxu0 0
      %5618 = vmatprep.subr.bf16.mxu0 0
      %5619 = vmatpush1.bf16.msra.mxu0 0
      %5620 = vmatprep.subr.bf16.mxu0 0
      %5621 = vmatpush1.bf16.msra.mxu0 0
      %5622 = vmatprep.subr.bf16.mxu0 0
      %5623 = vmatpush1.bf16.msra.mxu0 0
      %5624 = vmatprep.subr.bf16.mxu0 0
      %5625 = vmatpush1.bf16.msra.mxu0 0
      %5626 = vmatprep.subr.bf16.mxu0 0
      %5627 = vmatpush1.bf16.msra.mxu0 0
      %5628 = vmatprep.subr.bf16.mxu0 0
      %5629 = vmatpush1.bf16.msra.mxu0 %v5609
      %5630 = vmatprep.subr.bf16.mxu0 0
      %5631 = vmatpush2.bf16.msra.mxu0 0
      %5632 = vmatprep.subr.bf16.mxu0 0
      %5633 = vmatpush2.bf16.msra.mxu0 0
      %5634 = vmatprep.subr.bf16.mxu0 0
      %5635 = vmatpush2.bf16.msra.mxu0 0
      %5636 = vmatprep.subr.bf16.mxu0 0
      %5637 = vmatpush2.bf16.msra.mxu0 0
      %5638 = vmatprep.subr.bf16.mxu0 0
      %5639 = vmatpush2.bf16.msra.mxu0 0
      %5640 = vmatprep.subr.bf16.mxu0 0
      %5641 = vmatpush2.bf16.msra.mxu0 0
      %5642 = vmatprep.subr.bf16.mxu0 0
      %5643 = vmatpush2.bf16.msra.mxu0 0
      %5644 = vmatprep.subr.bf16.mxu0 0
      %5645 = vmatpush2.bf16.msra.mxu0 0
      %5646 = vmatprep.mubr.bf16.mxu0 0
      %5647 = vmatmul.mubr.bf16.gmra.mxu0 %v5612
      %v5648 = vpop.f32.mrf.mxu0
      %v5649 = vadd.f32 0.0, %v5648
      %v5650 = vpop.f32.mrf.mxu0
      %v5651 = vpop.f32.mrf.mxu0
      %v5652 = vpop.f32.mrf.mxu0
      %5653 = vdwg.mxu0
      %5654 = vrot.lane.b32.xlu0 %v1036, 80
      %v5655 = vpop.permute.xlu0 %5654
      %v5658 = vsel %vm1786, %v5503, 0
      %5660 = vmatprep.subr.bf16.mxu0 0
      %5661 = vmatpush1.bf16.msra.mxu0 0
      %5662 = vmatprep.subr.bf16.mxu0 0
      %5663 = vmatpush1.bf16.msra.mxu0 0
      %5664 = vmatprep.subr.bf16.mxu0 0
      %5665 = vmatpush1.bf16.msra.mxu0 0
      %5666 = vmatprep.subr.bf16.mxu0 0
      %5667 = vmatpush1.bf16.msra.mxu0 0
      %5668 = vmatprep.subr.bf16.mxu0 0
      %5669 = vmatpush1.bf16.msra.mxu0 0
      %5670 = vmatprep.subr.bf16.mxu0 0
      %5671 = vmatpush1.bf16.msra.mxu0 0
      %5672 = vmatprep.subr.bf16.mxu0 0
      %5673 = vmatpush1.bf16.msra.mxu0 0
      %5674 = vmatprep.subr.bf16.mxu0 0
      %5675 = vmatpush1.bf16.msra.mxu0 %v5655
      %5676 = vmatprep.subr.bf16.mxu0 0
      %5677 = vmatpush2.bf16.msra.mxu0 0
      %5678 = vmatprep.subr.bf16.mxu0 0
      %5679 = vmatpush2.bf16.msra.mxu0 0
      %5680 = vmatprep.subr.bf16.mxu0 0
      %5681 = vmatpush2.bf16.msra.mxu0 0
      %5682 = vmatprep.subr.bf16.mxu0 0
      %5683 = vmatpush2.bf16.msra.mxu0 0
      %5684 = vmatprep.subr.bf16.mxu0 0
      %5685 = vmatpush2.bf16.msra.mxu0 0
      %5686 = vmatprep.subr.bf16.mxu0 0
      %5687 = vmatpush2.bf16.msra.mxu0 0
      %5688 = vmatprep.subr.bf16.mxu0 0
      %5689 = vmatpush2.bf16.msra.mxu0 0
      %5690 = vmatprep.subr.bf16.mxu0 0
      %5691 = vmatpush2.bf16.msra.mxu0 0
      %5692 = vmatprep.mubr.bf16.mxu0 0
      %5693 = vmatmul.mubr.bf16.gmra.mxu0 %v5658
      %v5694 = vpop.f32.mrf.mxu0
      %v5695 = vadd.f32 0.0, %v5694
      %v5696 = vpop.f32.mrf.mxu0
      %v5697 = vpop.f32.mrf.mxu0
      %v5698 = vpop.f32.mrf.mxu0
      %5699 = vdwg.mxu0
      %5700 = vrot.lane.b32.xlu0 %v1037, 80
      %v5701 = vpop.permute.xlu0 %5700
      %v5704 = vsel %vm1786, %v5504, 0
      %5706 = vmatprep.subr.bf16.mxu0 0
      %5707 = vmatpush1.bf16.msra.mxu0 0
      %5708 = vmatprep.subr.bf16.mxu0 0
      %5709 = vmatpush1.bf16.msra.mxu0 0
      %5710 = vmatprep.subr.bf16.mxu0 0
      %5711 = vmatpush1.bf16.msra.mxu0 0
      %5712 = vmatprep.subr.bf16.mxu0 0
      %5713 = vmatpush1.bf16.msra.mxu0 0
      %5714 = vmatprep.subr.bf16.mxu0 0
      %5715 = vmatpush1.bf16.msra.mxu0 0
      %5716 = vmatprep.subr.bf16.mxu0 0
      %5717 = vmatpush1.bf16.msra.mxu0 0
      %5718 = vmatprep.subr.bf16.mxu0 0
      %5719 = vmatpush1.bf16.msra.mxu0 0
      %5720 = vmatprep.subr.bf16.mxu0 0
      %5721 = vmatpush1.bf16.msra.mxu0 %v5701
      %5722 = vmatprep.subr.bf16.mxu0 0
      %5723 = vmatpush2.bf16.msra.mxu0 0
      %5724 = vmatprep.subr.bf16.mxu0 0
      %5725 = vmatpush2.bf16.msra.mxu0 0
      %5726 = vmatprep.subr.bf16.mxu0 0
      %5727 = vmatpush2.bf16.msra.mxu0 0
      %5728 = vmatprep.subr.bf16.mxu0 0
      %5729 = vmatpush2.bf16.msra.mxu0 0
      %5730 = vmatprep.subr.bf16.mxu0 0
      %5731 = vmatpush2.bf16.msra.mxu0 0
      %5732 = vmatprep.subr.bf16.mxu0 0
      %5733 = vmatpush2.bf16.msra.mxu0 0
      %5734 = vmatprep.subr.bf16.mxu0 0
      %5735 = vmatpush2.bf16.msra.mxu0 0
      %5736 = vmatprep.subr.bf16.mxu0 0
      %5737 = vmatpush2.bf16.msra.mxu0 0
      %5738 = vmatprep.mubr.bf16.mxu0 0
      %5739 = vmatmul.mubr.bf16.gmra.mxu0 %v5704
      %v5740 = vpop.f32.mrf.mxu0
      %v5741 = vadd.f32 0.0, %v5740
      %v5742 = vpop.f32.mrf.mxu0
      %v5743 = vpop.f32.mrf.mxu0
      %v5744 = vpop.f32.mrf.mxu0
      %5745 = vdwg.mxu0
      %5746 = vrot.lane.b32.xlu0 %v1038, 80
      %v5747 = vpop.permute.xlu0 %5746
      %v5750 = vsel %vm1786, %v5505, 0
      %5752 = vmatprep.subr.bf16.mxu0 0
      %5753 = vmatpush1.bf16.msra.mxu0 0
      %5754 = vmatprep.subr.bf16.mxu0 0
      %5755 = vmatpush1.bf16.msra.mxu0 0
      %5756 = vmatprep.subr.bf16.mxu0 0
      %5757 = vmatpush1.bf16.msra.mxu0 0
      %5758 = vmatprep.subr.bf16.mxu0 0
      %5759 = vmatpush1.bf16.msra.mxu0 0
      %5760 = vmatprep.subr.bf16.mxu0 0
      %5761 = vmatpush1.bf16.msra.mxu0 0
      %5762 = vmatprep.subr.bf16.mxu0 0
      %5763 = vmatpush1.bf16.msra.mxu0 0
      %5764 = vmatprep.subr.bf16.mxu0 0
      %5765 = vmatpush1.bf16.msra.mxu0 0
      %5766 = vmatprep.subr.bf16.mxu0 0
      %5767 = vmatpush1.bf16.msra.mxu0 %v5747
      %5768 = vmatprep.subr.bf16.mxu0 0
      %5769 = vmatpush2.bf16.msra.mxu0 0
      %5770 = vmatprep.subr.bf16.mxu0 0
      %5771 = vmatpush2.bf16.msra.mxu0 0
      %5772 = vmatprep.subr.bf16.mxu0 0
      %5773 = vmatpush2.bf16.msra.mxu0 0
      %5774 = vmatprep.subr.bf16.mxu0 0
      %5775 = vmatpush2.bf16.msra.mxu0 0
      %5776 = vmatprep.subr.bf16.mxu0 0
      %5777 = vmatpush2.bf16.msra.mxu0 0
      %5778 = vmatprep.subr.bf16.mxu0 0
      %5779 = vmatpush2.bf16.msra.mxu0 0
      %5780 = vmatprep.subr.bf16.mxu0 0
      %5781 = vmatpush2.bf16.msra.mxu0 0
      %5782 = vmatprep.subr.bf16.mxu0 0
      %5783 = vmatpush2.bf16.msra.mxu0 0
      %5784 = vmatprep.mubr.bf16.mxu0 0
      %5785 = vmatmul.mubr.bf16.gmra.mxu0 %v5750
      %v5786 = vpop.f32.mrf.mxu0
      %v5787 = vadd.f32 0.0, %v5786
      %v5788 = vpop.f32.mrf.mxu0
      %v5789 = vpop.f32.mrf.mxu0
      %v5790 = vpop.f32.mrf.mxu0
      %5791 = vdwg.mxu0
      %5792 = vrot.lane.b32.xlu0 %v1039, 80
      %v5793 = vpop.permute.xlu0 %5792
      %v5796 = vsel %vm1786, %v5506, 0
      %5798 = vmatprep.subr.bf16.mxu0 0
      %5799 = vmatpush1.bf16.msra.mxu0 0
      %5800 = vmatprep.subr.bf16.mxu0 0
      %5801 = vmatpush1.bf16.msra.mxu0 0
      %5802 = vmatprep.subr.bf16.mxu0 0
      %5803 = vmatpush1.bf16.msra.mxu0 0
      %5804 = vmatprep.subr.bf16.mxu0 0
      %5805 = vmatpush1.bf16.msra.mxu0 0
      %5806 = vmatprep.subr.bf16.mxu0 0
      %5807 = vmatpush1.bf16.msra.mxu0 0
      %5808 = vmatprep.subr.bf16.mxu0 0
      %5809 = vmatpush1.bf16.msra.mxu0 0
      %5810 = vmatprep.subr.bf16.mxu0 0
      %5811 = vmatpush1.bf16.msra.mxu0 0
      %5812 = vmatprep.subr.bf16.mxu0 0
      %5813 = vmatpush1.bf16.msra.mxu0 %v5793
      %5814 = vmatprep.subr.bf16.mxu0 0
      %5815 = vmatpush2.bf16.msra.mxu0 0
      %5816 = vmatprep.subr.bf16.mxu0 0
      %5817 = vmatpush2.bf16.msra.mxu0 0
      %5818 = vmatprep.subr.bf16.mxu0 0
      %5819 = vmatpush2.bf16.msra.mxu0 0
      %5820 = vmatprep.subr.bf16.mxu0 0
      %5821 = vmatpush2.bf16.msra.mxu0 0
      %5822 = vmatprep.subr.bf16.mxu0 0
      %5823 = vmatpush2.bf16.msra.mxu0 0
      %5824 = vmatprep.subr.bf16.mxu0 0
      %5825 = vmatpush2.bf16.msra.mxu0 0
      %5826 = vmatprep.subr.bf16.mxu0 0
      %5827 = vmatpush2.bf16.msra.mxu0 0
      %5828 = vmatprep.subr.bf16.mxu0 0
      %5829 = vmatpush2.bf16.msra.mxu0 0
      %5830 = vmatprep.mubr.bf16.mxu0 0
      %5831 = vmatmul.mubr.bf16.gmra.mxu0 %v5796
      %v5832 = vpop.f32.mrf.mxu0
      %v5833 = vadd.f32 0.0, %v5832
      %v5834 = vpop.f32.mrf.mxu0
      %v5835 = vpop.f32.mrf.mxu0
      %v5836 = vpop.f32.mrf.mxu0
      %5837 = vdwg.mxu0
      %5838 = vrot.lane.b32.xlu0 %v1040, 80
      %v5839 = vpop.permute.xlu0 %5838
      %v5842 = vsel %vm1786, %v5507, 0
      %5844 = vmatprep.subr.bf16.mxu0 0
      %5845 = vmatpush1.bf16.msra.mxu0 0
      %5846 = vmatprep.subr.bf16.mxu0 0
      %5847 = vmatpush1.bf16.msra.mxu0 0
      %5848 = vmatprep.subr.bf16.mxu0 0
      %5849 = vmatpush1.bf16.msra.mxu0 0
      %5850 = vmatprep.subr.bf16.mxu0 0
      %5851 = vmatpush1.bf16.msra.mxu0 0
      %5852 = vmatprep.subr.bf16.mxu0 0
      %5853 = vmatpush1.bf16.msra.mxu0 0
      %5854 = vmatprep.subr.bf16.mxu0 0
      %5855 = vmatpush1.bf16.msra.mxu0 0
      %5856 = vmatprep.subr.bf16.mxu0 0
      %5857 = vmatpush1.bf16.msra.mxu0 0
      %5858 = vmatprep.subr.bf16.mxu0 0
      %5859 = vmatpush1.bf16.msra.mxu0 %v5839
      %5860 = vmatprep.subr.bf16.mxu0 0
      %5861 = vmatpush2.bf16.msra.mxu0 0
      %5862 = vmatprep.subr.bf16.mxu0 0
      %5863 = vmatpush2.bf16.msra.mxu0 0
      %5864 = vmatprep.subr.bf16.mxu0 0
      %5865 = vmatpush2.bf16.msra.mxu0 0
      %5866 = vmatprep.subr.bf16.mxu0 0
      %5867 = vmatpush2.bf16.msra.mxu0 0
      %5868 = vmatprep.subr.bf16.mxu0 0
      %5869 = vmatpush2.bf16.msra.mxu0 0
      %5870 = vmatprep.subr.bf16.mxu0 0
      %5871 = vmatpush2.bf16.msra.mxu0 0
      %5872 = vmatprep.subr.bf16.mxu0 0
      %5873 = vmatpush2.bf16.msra.mxu0 0
      %5874 = vmatprep.subr.bf16.mxu0 0
      %5875 = vmatpush2.bf16.msra.mxu0 0
      %5876 = vmatprep.mubr.bf16.mxu0 0
      %5877 = vmatmul.mubr.bf16.gmra.mxu0 %v5842
      %v5878 = vpop.f32.mrf.mxu0
      %v5879 = vadd.f32 0.0, %v5878
      %v5880 = vpop.f32.mrf.mxu0
      %v5881 = vpop.f32.mrf.mxu0
      %v5882 = vpop.f32.mrf.mxu0
      %5883 = vdwg.mxu0
      %5884 = vrot.lane.b32.xlu0 %v1041, 80
      %v5885 = vpop.permute.xlu0 %5884
      %v5888 = vsel %vm1786, %v5508, 0
      %5890 = vmatprep.subr.bf16.mxu0 0
      %5891 = vmatpush1.bf16.msra.mxu0 0
      %5892 = vmatprep.subr.bf16.mxu0 0
      %5893 = vmatpush1.bf16.msra.mxu0 0
      %5894 = vmatprep.subr.bf16.mxu0 0
      %5895 = vmatpush1.bf16.msra.mxu0 0
      %5896 = vmatprep.subr.bf16.mxu0 0
      %5897 = vmatpush1.bf16.msra.mxu0 0
      %5898 = vmatprep.subr.bf16.mxu0 0
      %5899 = vmatpush1.bf16.msra.mxu0 0
      %5900 = vmatprep.subr.bf16.mxu0 0
      %5901 = vmatpush1.bf16.msra.mxu0 0
      %5902 = vmatprep.subr.bf16.mxu0 0
      %5903 = vmatpush1.bf16.msra.mxu0 0
      %5904 = vmatprep.subr.bf16.mxu0 0
      %5905 = vmatpush1.bf16.msra.mxu0 %v5885
      %5906 = vmatprep.subr.bf16.mxu0 0
      %5907 = vmatpush2.bf16.msra.mxu0 0
      %5908 = vmatprep.subr.bf16.mxu0 0
      %5909 = vmatpush2.bf16.msra.mxu0 0
      %5910 = vmatprep.subr.bf16.mxu0 0
      %5911 = vmatpush2.bf16.msra.mxu0 0
      %5912 = vmatprep.subr.bf16.mxu0 0
      %5913 = vmatpush2.bf16.msra.mxu0 0
      %5914 = vmatprep.subr.bf16.mxu0 0
      %5915 = vmatpush2.bf16.msra.mxu0 0
      %5916 = vmatprep.subr.bf16.mxu0 0
      %5917 = vmatpush2.bf16.msra.mxu0 0
      %5918 = vmatprep.subr.bf16.mxu0 0
      %5919 = vmatpush2.bf16.msra.mxu0 0
      %5920 = vmatprep.subr.bf16.mxu0 0
      %5921 = vmatpush2.bf16.msra.mxu0 0
      %5922 = vmatprep.mubr.bf16.mxu0 0
      %5923 = vmatmul.mubr.bf16.gmra.mxu0 %v5888
      %v5924 = vpop.f32.mrf.mxu0
      %v5925 = vadd.f32 0.0, %v5924
      %v5926 = vpop.f32.mrf.mxu0
      %v5927 = vpop.f32.mrf.mxu0
      %v5928 = vpop.f32.mrf.mxu0
      %5929 = vdwg.mxu0
      %5930 = vrot.lane.b32.xlu0 %v1042, 80
      %v5931 = vpop.permute.xlu0 %5930
      %v5934 = vsel %vm1786, %v5509, 0
      %5936 = vmatprep.subr.bf16.mxu0 0
      %5937 = vmatpush1.bf16.msra.mxu0 0
      %5938 = vmatprep.subr.bf16.mxu0 0
      %5939 = vmatpush1.bf16.msra.mxu0 0
      %5940 = vmatprep.subr.bf16.mxu0 0
      %5941 = vmatpush1.bf16.msra.mxu0 0
      %5942 = vmatprep.subr.bf16.mxu0 0
      %5943 = vmatpush1.bf16.msra.mxu0 0
      %5944 = vmatprep.subr.bf16.mxu0 0
      %5945 = vmatpush1.bf16.msra.mxu0 0
      %5946 = vmatprep.subr.bf16.mxu0 0
      %5947 = vmatpush1.bf16.msra.mxu0 0
      %5948 = vmatprep.subr.bf16.mxu0 0
      %5949 = vmatpush1.bf16.msra.mxu0 0
      %5950 = vmatprep.subr.bf16.mxu0 0
      %5951 = vmatpush1.bf16.msra.mxu0 %v5931
      %5952 = vmatprep.subr.bf16.mxu0 0
      %5953 = vmatpush2.bf16.msra.mxu0 0
      %5954 = vmatprep.subr.bf16.mxu0 0
      %5955 = vmatpush2.bf16.msra.mxu0 0
      %5956 = vmatprep.subr.bf16.mxu0 0
      %5957 = vmatpush2.bf16.msra.mxu0 0
      %5958 = vmatprep.subr.bf16.mxu0 0
      %5959 = vmatpush2.bf16.msra.mxu0 0
      %5960 = vmatprep.subr.bf16.mxu0 0
      %5961 = vmatpush2.bf16.msra.mxu0 0
      %5962 = vmatprep.subr.bf16.mxu0 0
      %5963 = vmatpush2.bf16.msra.mxu0 0
      %5964 = vmatprep.subr.bf16.mxu0 0
      %5965 = vmatpush2.bf16.msra.mxu0 0
      %5966 = vmatprep.subr.bf16.mxu0 0
      %5967 = vmatpush2.bf16.msra.mxu0 0
      %5968 = vmatprep.mubr.bf16.mxu0 0
      %5969 = vmatmul.mubr.bf16.gmra.mxu0 %v5934
      %v5970 = vpop.f32.mrf.mxu0
      %v5971 = vadd.f32 0.0, %v5970
      %v5972 = vpop.f32.mrf.mxu0
      %v5973 = vpop.f32.mrf.mxu0
      %v5974 = vpop.f32.mrf.mxu0
      %5975 = vdwg.mxu0
      %5976 = vrot.lane.b32.xlu0 %v1043, 80
      %v5977 = vpop.permute.xlu0 %5976
      %v5980 = vsel %vm1786, %v5510, 0
      %5982 = vmatprep.subr.bf16.mxu0 0
      %5983 = vmatpush1.bf16.msra.mxu0 0
      %5984 = vmatprep.subr.bf16.mxu0 0
      %5985 = vmatpush1.bf16.msra.mxu0 0
      %5986 = vmatprep.subr.bf16.mxu0 0
      %5987 = vmatpush1.bf16.msra.mxu0 0
      %5988 = vmatprep.subr.bf16.mxu0 0
      %5989 = vmatpush1.bf16.msra.mxu0 0
      %5990 = vmatprep.subr.bf16.mxu0 0
      %5991 = vmatpush1.bf16.msra.mxu0 0
      %5992 = vmatprep.subr.bf16.mxu0 0
      %5993 = vmatpush1.bf16.msra.mxu0 0
      %5994 = vmatprep.subr.bf16.mxu0 0
      %5995 = vmatpush1.bf16.msra.mxu0 0
      %5996 = vmatprep.subr.bf16.mxu0 0
      %5997 = vmatpush1.bf16.msra.mxu0 %v5977
      %5998 = vmatprep.subr.bf16.mxu0 0
      %5999 = vmatpush2.bf16.msra.mxu0 0
      %6000 = vmatprep.subr.bf16.mxu0 0
      %6001 = vmatpush2.bf16.msra.mxu0 0
      %6002 = vmatprep.subr.bf16.mxu0 0
      %6003 = vmatpush2.bf16.msra.mxu0 0
      %6004 = vmatprep.subr.bf16.mxu0 0
      %6005 = vmatpush2.bf16.msra.mxu0 0
      %6006 = vmatprep.subr.bf16.mxu0 0
      %6007 = vmatpush2.bf16.msra.mxu0 0
      %6008 = vmatprep.subr.bf16.mxu0 0
      %6009 = vmatpush2.bf16.msra.mxu0 0
      %6010 = vmatprep.subr.bf16.mxu0 0
      %6011 = vmatpush2.bf16.msra.mxu0 0
      %6012 = vmatprep.subr.bf16.mxu0 0
      %6013 = vmatpush2.bf16.msra.mxu0 0
      %6014 = vmatprep.mubr.bf16.mxu0 0
      %6015 = vmatmul.mubr.bf16.gmra.mxu0 %v5980
      %v6016 = vpop.f32.mrf.mxu0
      %v6017 = vadd.f32 0.0, %v6016
      %v6018 = vpop.f32.mrf.mxu0
      %v6019 = vpop.f32.mrf.mxu0
      %v6020 = vpop.f32.mrf.mxu0
      %6021 = vdwg.mxu0
      %6022 = vrot.lane.b32.xlu0 %v1044, 80
      %v6023 = vpop.permute.xlu0 %6022
      %v6026 = vsel %vm1786, %v5511, 0
      %6028 = vmatprep.subr.bf16.mxu0 0
      %6029 = vmatpush1.bf16.msra.mxu0 0
      %6030 = vmatprep.subr.bf16.mxu0 0
      %6031 = vmatpush1.bf16.msra.mxu0 0
      %6032 = vmatprep.subr.bf16.mxu0 0
      %6033 = vmatpush1.bf16.msra.mxu0 0
      %6034 = vmatprep.subr.bf16.mxu0 0
      %6035 = vmatpush1.bf16.msra.mxu0 0
      %6036 = vmatprep.subr.bf16.mxu0 0
      %6037 = vmatpush1.bf16.msra.mxu0 0
      %6038 = vmatprep.subr.bf16.mxu0 0
      %6039 = vmatpush1.bf16.msra.mxu0 0
      %6040 = vmatprep.subr.bf16.mxu0 0
      %6041 = vmatpush1.bf16.msra.mxu0 0
      %6042 = vmatprep.subr.bf16.mxu0 0
      %6043 = vmatpush1.bf16.msra.mxu0 %v6023
      %6044 = vmatprep.subr.bf16.mxu0 0
      %6045 = vmatpush2.bf16.msra.mxu0 0
      %6046 = vmatprep.subr.bf16.mxu0 0
      %6047 = vmatpush2.bf16.msra.mxu0 0
      %6048 = vmatprep.subr.bf16.mxu0 0
      %6049 = vmatpush2.bf16.msra.mxu0 0
      %6050 = vmatprep.subr.bf16.mxu0 0
      %6051 = vmatpush2.bf16.msra.mxu0 0
      %6052 = vmatprep.subr.bf16.mxu0 0
      %6053 = vmatpush2.bf16.msra.mxu0 0
      %6054 = vmatprep.subr.bf16.mxu0 0
      %6055 = vmatpush2.bf16.msra.mxu0 0
      %6056 = vmatprep.subr.bf16.mxu0 0
      %6057 = vmatpush2.bf16.msra.mxu0 0
      %6058 = vmatprep.subr.bf16.mxu0 0
      %6059 = vmatpush2.bf16.msra.mxu0 0
      %6060 = vmatprep.mubr.bf16.mxu0 0
      %6061 = vmatmul.mubr.bf16.gmra.mxu0 %v6026
      %v6062 = vpop.f32.mrf.mxu0
      %v6063 = vadd.f32 0.0, %v6062
      %v6064 = vpop.f32.mrf.mxu0
      %v6065 = vpop.f32.mrf.mxu0
      %v6066 = vpop.f32.mrf.mxu0
      %6067 = vdwg.mxu0
      %6068 = vrot.lane.b32.xlu0 %v1045, 80
      %v6069 = vpop.permute.xlu0 %6068
      %v6072 = vsel %vm1786, %v5512, 0
      %6074 = vmatprep.subr.bf16.mxu0 0
      %6075 = vmatpush1.bf16.msra.mxu0 0
      %6076 = vmatprep.subr.bf16.mxu0 0
      %6077 = vmatpush1.bf16.msra.mxu0 0
      %6078 = vmatprep.subr.bf16.mxu0 0
      %6079 = vmatpush1.bf16.msra.mxu0 0
      %6080 = vmatprep.subr.bf16.mxu0 0
      %6081 = vmatpush1.bf16.msra.mxu0 0
      %6082 = vmatprep.subr.bf16.mxu0 0
      %6083 = vmatpush1.bf16.msra.mxu0 0
      %6084 = vmatprep.subr.bf16.mxu0 0
      %6085 = vmatpush1.bf16.msra.mxu0 0
      %6086 = vmatprep.subr.bf16.mxu0 0
      %6087 = vmatpush1.bf16.msra.mxu0 0
      %6088 = vmatprep.subr.bf16.mxu0 0
      %6089 = vmatpush1.bf16.msra.mxu0 %v6069
      %6090 = vmatprep.subr.bf16.mxu0 0
      %6091 = vmatpush2.bf16.msra.mxu0 0
      %6092 = vmatprep.subr.bf16.mxu0 0
      %6093 = vmatpush2.bf16.msra.mxu0 0
      %6094 = vmatprep.subr.bf16.mxu0 0
      %6095 = vmatpush2.bf16.msra.mxu0 0
      %6096 = vmatprep.subr.bf16.mxu0 0
      %6097 = vmatpush2.bf16.msra.mxu0 0
      %6098 = vmatprep.subr.bf16.mxu0 0
      %6099 = vmatpush2.bf16.msra.mxu0 0
      %6100 = vmatprep.subr.bf16.mxu0 0
      %6101 = vmatpush2.bf16.msra.mxu0 0
      %6102 = vmatprep.subr.bf16.mxu0 0
      %6103 = vmatpush2.bf16.msra.mxu0 0
      %6104 = vmatprep.subr.bf16.mxu0 0
      %6105 = vmatpush2.bf16.msra.mxu0 0
      %6106 = vmatprep.mubr.bf16.mxu0 0
      %6107 = vmatmul.mubr.bf16.gmra.mxu0 %v6072
      %v6108 = vpop.f32.mrf.mxu0
      %v6109 = vadd.f32 0.0, %v6108
      %v6110 = vpop.f32.mrf.mxu0
      %v6111 = vpop.f32.mrf.mxu0
      %v6112 = vpop.f32.mrf.mxu0
      %6113 = vdwg.mxu0
      %6114 = vrot.lane.b32.xlu0 %v1046, 80
      %v6115 = vpop.permute.xlu0 %6114
      %v6118 = vsel %vm1786, %v5513, 0
      %6120 = vmatprep.subr.bf16.mxu0 0
      %6121 = vmatpush1.bf16.msra.mxu0 0
      %6122 = vmatprep.subr.bf16.mxu0 0
      %6123 = vmatpush1.bf16.msra.mxu0 0
      %6124 = vmatprep.subr.bf16.mxu0 0
      %6125 = vmatpush1.bf16.msra.mxu0 0
      %6126 = vmatprep.subr.bf16.mxu0 0
      %6127 = vmatpush1.bf16.msra.mxu0 0
      %6128 = vmatprep.subr.bf16.mxu0 0
      %6129 = vmatpush1.bf16.msra.mxu0 0
      %6130 = vmatprep.subr.bf16.mxu0 0
      %6131 = vmatpush1.bf16.msra.mxu0 0
      %6132 = vmatprep.subr.bf16.mxu0 0
      %6133 = vmatpush1.bf16.msra.mxu0 0
      %6134 = vmatprep.subr.bf16.mxu0 0
      %6135 = vmatpush1.bf16.msra.mxu0 %v6115
      %6136 = vmatprep.subr.bf16.mxu0 0
      %6137 = vmatpush2.bf16.msra.mxu0 0
      %6138 = vmatprep.subr.bf16.mxu0 0
      %6139 = vmatpush2.bf16.msra.mxu0 0
      %6140 = vmatprep.subr.bf16.mxu0 0
      %6141 = vmatpush2.bf16.msra.mxu0 0
      %6142 = vmatprep.subr.bf16.mxu0 0
      %6143 = vmatpush2.bf16.msra.mxu0 0
      %6144 = vmatprep.subr.bf16.mxu0 0
      %6145 = vmatpush2.bf16.msra.mxu0 0
      %6146 = vmatprep.subr.bf16.mxu0 0
      %6147 = vmatpush2.bf16.msra.mxu0 0
      %6148 = vmatprep.subr.bf16.mxu0 0
      %6149 = vmatpush2.bf16.msra.mxu0 0
      %6150 = vmatprep.subr.bf16.mxu0 0
      %6151 = vmatpush2.bf16.msra.mxu0 0
      %6152 = vmatprep.mubr.bf16.mxu0 0
      %6153 = vmatmul.mubr.bf16.gmra.mxu0 %v6118
      %v6154 = vpop.f32.mrf.mxu0
      %v6155 = vadd.f32 0.0, %v6154
      %v6156 = vpop.f32.mrf.mxu0
      %v6157 = vpop.f32.mrf.mxu0
      %v6158 = vpop.f32.mrf.mxu0
      %6159 = vdwg.mxu0
      %6160 = vrot.lane.b32.xlu0 %v1047, 80
      %v6161 = vpop.permute.xlu0 %6160
      %v6164 = vsel %vm1786, %v5514, 0
      %6166 = vmatprep.subr.bf16.mxu0 0
      %6167 = vmatpush1.bf16.msra.mxu0 0
      %6168 = vmatprep.subr.bf16.mxu0 0
      %6169 = vmatpush1.bf16.msra.mxu0 0
      %6170 = vmatprep.subr.bf16.mxu0 0
      %6171 = vmatpush1.bf16.msra.mxu0 0
      %6172 = vmatprep.subr.bf16.mxu0 0
      %6173 = vmatpush1.bf16.msra.mxu0 0
      %6174 = vmatprep.subr.bf16.mxu0 0
      %6175 = vmatpush1.bf16.msra.mxu0 0
      %6176 = vmatprep.subr.bf16.mxu0 0
      %6177 = vmatpush1.bf16.msra.mxu0 0
      %6178 = vmatprep.subr.bf16.mxu0 0
      %6179 = vmatpush1.bf16.msra.mxu0 0
      %6180 = vmatprep.subr.bf16.mxu0 0
      %6181 = vmatpush1.bf16.msra.mxu0 %v6161
      %6182 = vmatprep.subr.bf16.mxu0 0
      %6183 = vmatpush2.bf16.msra.mxu0 0
      %6184 = vmatprep.subr.bf16.mxu0 0
      %6185 = vmatpush2.bf16.msra.mxu0 0
      %6186 = vmatprep.subr.bf16.mxu0 0
      %6187 = vmatpush2.bf16.msra.mxu0 0
      %6188 = vmatprep.subr.bf16.mxu0 0
      %6189 = vmatpush2.bf16.msra.mxu0 0
      %6190 = vmatprep.subr.bf16.mxu0 0
      %6191 = vmatpush2.bf16.msra.mxu0 0
      %6192 = vmatprep.subr.bf16.mxu0 0
      %6193 = vmatpush2.bf16.msra.mxu0 0
      %6194 = vmatprep.subr.bf16.mxu0 0
      %6195 = vmatpush2.bf16.msra.mxu0 0
      %6196 = vmatprep.subr.bf16.mxu0 0
      %6197 = vmatpush2.bf16.msra.mxu0 0
      %6198 = vmatprep.mubr.bf16.mxu0 0
      %6199 = vmatmul.mubr.bf16.gmra.mxu0 %v6164
      %v6200 = vpop.f32.mrf.mxu0
      %v6201 = vadd.f32 0.0, %v6200
      %v6202 = vpop.f32.mrf.mxu0
      %v6203 = vpop.f32.mrf.mxu0
      %v6204 = vpop.f32.mrf.mxu0
      %6205 = vdwg.mxu0
      %6206 = vrot.lane.b32.xlu0 %v1048, 80
      %v6207 = vpop.permute.xlu0 %6206
      %v6210 = vsel %vm1786, %v5515, 0
      %6212 = vmatprep.subr.bf16.mxu0 0
      %6213 = vmatpush1.bf16.msra.mxu0 0
      %6214 = vmatprep.subr.bf16.mxu0 0
      %6215 = vmatpush1.bf16.msra.mxu0 0
      %6216 = vmatprep.subr.bf16.mxu0 0
      %6217 = vmatpush1.bf16.msra.mxu0 0
      %6218 = vmatprep.subr.bf16.mxu0 0
      %6219 = vmatpush1.bf16.msra.mxu0 0
      %6220 = vmatprep.subr.bf16.mxu0 0
      %6221 = vmatpush1.bf16.msra.mxu0 0
      %6222 = vmatprep.subr.bf16.mxu0 0
      %6223 = vmatpush1.bf16.msra.mxu0 0
      %6224 = vmatprep.subr.bf16.mxu0 0
      %6225 = vmatpush1.bf16.msra.mxu0 0
      %6226 = vmatprep.subr.bf16.mxu0 0
      %6227 = vmatpush1.bf16.msra.mxu0 %v6207
      %6228 = vmatprep.subr.bf16.mxu0 0
      %6229 = vmatpush2.bf16.msra.mxu0 0
      %6230 = vmatprep.subr.bf16.mxu0 0
      %6231 = vmatpush2.bf16.msra.mxu0 0
      %6232 = vmatprep.subr.bf16.mxu0 0
      %6233 = vmatpush2.bf16.msra.mxu0 0
      %6234 = vmatprep.subr.bf16.mxu0 0
      %6235 = vmatpush2.bf16.msra.mxu0 0
      %6236 = vmatprep.subr.bf16.mxu0 0
      %6237 = vmatpush2.bf16.msra.mxu0 0
      %6238 = vmatprep.subr.bf16.mxu0 0
      %6239 = vmatpush2.bf16.msra.mxu0 0
      %6240 = vmatprep.subr.bf16.mxu0 0
      %6241 = vmatpush2.bf16.msra.mxu0 0
      %6242 = vmatprep.subr.bf16.mxu0 0
      %6243 = vmatpush2.bf16.msra.mxu0 0
      %6244 = vmatprep.mubr.bf16.mxu0 0
      %6245 = vmatmul.mubr.bf16.gmra.mxu0 %v6210
      %v6246 = vpop.f32.mrf.mxu0
      %v6247 = vadd.f32 0.0, %v6246
      %v6248 = vpop.f32.mrf.mxu0
      %v6249 = vpop.f32.mrf.mxu0
      %v6250 = vpop.f32.mrf.mxu0
      %6251 = vdwg.mxu0
      %v6252 = vrcp.pop %v5454
      %v6253 = vrcp.pop %v5457
      %v6254 = vrcp.pop %v5460
      %v6255 = vrcp.pop %v5463
      %v6256 = vrcp.pop %v5466
      %v6257 = vrcp.pop %v5469
      %v6258 = vrcp.pop %v5472
      %v6259 = vrcp.pop %v5475
      %v6260 = vrcp.pop %v5478
      %v6261 = vrcp.pop %v5481
      %v6262 = vrcp.pop %v5484
      %v6263 = vrcp.pop %v5487
      %v6264 = vrcp.pop %v5490
      %v6265 = vrcp.pop %v5493
      %v6266 = vrcp.pop %v5496
      %v6267 = vrcp.pop %v5499
      %v6268 = vmul.f32 %v5557, %v6252
      %v6269 = vmul.f32 %v5603, %v6253
      %v6270 = vmul.f32 %v5649, %v6254
      %v6271 = vmul.f32 %v5695, %v6255
      %v6272 = vmul.f32 %v5741, %v6256
      %v6273 = vmul.f32 %v5787, %v6257
      %v6274 = vmul.f32 %v5833, %v6258
      %v6275 = vmul.f32 %v5879, %v6259
      %v6276 = vmul.f32 %v5925, %v6260
      %v6277 = vmul.f32 %v5971, %v6261
      %v6278 = vmul.f32 %v6017, %v6262
      %v6279 = vmul.f32 %v6063, %v6263
      %v6280 = vmul.f32 %v6109, %v6264
      %v6281 = vmul.f32 %v6155, %v6265
      %v6282 = vmul.f32 %v6201, %v6266
      %v6283 = vmul.f32 %v6247, %v6267
      %6300 = vrot.lane.b32.xlu0 %v6268, 16
      %v6301 = vpop.permute.xlu0 %6300
      %6302 = vrot.lane.b32.xlu0 %v6269, 16
      %v6303 = vpop.permute.xlu0 %6302
      %6304 = vrot.lane.b32.xlu0 %v6270, 16
      %v6305 = vpop.permute.xlu0 %6304
      %6306 = vrot.lane.b32.xlu0 %v6271, 16
      %v6307 = vpop.permute.xlu0 %6306
      %6308 = vrot.lane.b32.xlu0 %v6272, 16
      %v6309 = vpop.permute.xlu0 %6308
      %6310 = vrot.lane.b32.xlu0 %v6273, 16
      %v6311 = vpop.permute.xlu0 %6310
      %6312 = vrot.lane.b32.xlu0 %v6274, 16
      %v6313 = vpop.permute.xlu0 %6312
      %6314 = vrot.lane.b32.xlu0 %v6275, 16
      %v6315 = vpop.permute.xlu0 %6314
      %6316 = vrot.lane.b32.xlu0 %v6276, 16
      %v6317 = vpop.permute.xlu0 %6316
      %6318 = vrot.lane.b32.xlu0 %v6277, 16
      %v6319 = vpop.permute.xlu0 %6318
      %6320 = vrot.lane.b32.xlu0 %v6278, 16
      %v6321 = vpop.permute.xlu0 %6320
      %6322 = vrot.lane.b32.xlu0 %v6279, 16
      %v6323 = vpop.permute.xlu0 %6322
      %6324 = vrot.lane.b32.xlu0 %v6280, 16
      %v6325 = vpop.permute.xlu0 %6324
      %6326 = vrot.lane.b32.xlu0 %v6281, 16
      %v6327 = vpop.permute.xlu0 %6326
      %6328 = vrot.lane.b32.xlu0 %v6282, 16
      %v6329 = vpop.permute.xlu0 %6328
      %6330 = vrot.lane.b32.xlu0 %v6283, 16
      %v6331 = vpop.permute.xlu0 %6330
      %vm6348 = vcmask 195712
      %6349 = vst.msk [vmem:[#allocation2] sm:$0xff] %vm6348, %v6301
      %6350 = vst.msk [vmem:[#allocation2 + $0x8] sm:$0xff] %vm6348, %v6303
      %6351 = vst.msk [vmem:[#allocation2 + $0x10] sm:$0xff] %vm6348, %v6305
      %6352 = vst.msk [vmem:[#allocation2 + $0x18] sm:$0xff] %vm6348, %v6307
      %6353 = vst.msk [vmem:[#allocation2 + $0x20] sm:$0xff] %vm6348, %v6309
      %6354 = vst.msk [vmem:[#allocation2 + $0x28] sm:$0xff] %vm6348, %v6311
      %6355 = vst.msk [vmem:[#allocation2 + $0x30] sm:$0xff] %vm6348, %v6313
      %6356 = vst.msk [vmem:[#allocation2 + $0x38] sm:$0xff] %vm6348, %v6315
      %6357 = vst.msk [vmem:[#allocation2 + $0x40] sm:$0xff] %vm6348, %v6317
      %6358 = vst.msk [vmem:[#allocation2 + $0x48] sm:$0xff] %vm6348, %v6319
      %6359 = vst.msk [vmem:[#allocation2 + $0x50] sm:$0xff] %vm6348, %v6321
      %6360 = vst.msk [vmem:[#allocation2 + $0x58] sm:$0xff] %vm6348, %v6323
      %6361 = vst.msk [vmem:[#allocation2 + $0x60] sm:$0xff] %vm6348, %v6325
      %6362 = vst.msk [vmem:[#allocation2 + $0x68] sm:$0xff] %vm6348, %v6327
      %6363 = vst.msk [vmem:[#allocation2 + $0x70] sm:$0xff] %vm6348, %v6329
      %6364 = vst.msk [vmem:[#allocation2 + $0x78] sm:$0xff] %vm6348, %v6331
      %6365 = vrot.lane.b32.xlu0 %v1017, 104
      %v6366 = vpop.permute.xlu0 %6365
      %6367 = vrot.lane.b32.xlu0 %v1033, 104
      %v6368 = vpop.permute.xlu0 %6367
      %v6370 = vsel %vm1049, %v6366, 0
      %v6373 = vsel %vm1049, %v6368, 0
      %6375 = vmatprep.subr.bf16.mxu0 0
      %6376 = vmatpush1.bf16.xpose.msra.mxu0 0
      %6377 = vmatprep.subr.bf16.mxu0 0
      %6378 = vmatpush1.bf16.xpose.msra.mxu0 0
      %6379 = vmatprep.subr.bf16.mxu0 0
      %6380 = vmatpush1.bf16.xpose.msra.mxu0 0
      %6381 = vmatprep.subr.bf16.mxu0 0
      %6382 = vmatpush1.bf16.xpose.msra.mxu0 0
      %6383 = vmatprep.subr.bf16.mxu0 0
      %6384 = vmatpush1.bf16.xpose.msra.mxu0 0
      %6385 = vmatprep.subr.bf16.mxu0 0
      %6386 = vmatpush1.bf16.xpose.msra.mxu0 0
      %6387 = vmatprep.subr.bf16.mxu0 0
      %6388 = vmatpush1.bf16.xpose.msra.mxu0 0
      %6389 = vmatprep.subr.bf16.mxu0 0
      %6390 = vmatpush1.bf16.xpose.msra.mxu0 %v6373
      %6391 = vmatprep.subr.bf16.mxu0 0
      %6392 = vmatpush2.bf16.xpose.msra.mxu0 0
      %6393 = vmatprep.subr.bf16.mxu0 0
      %6394 = vmatpush2.bf16.xpose.msra.mxu0 0
      %6395 = vmatprep.subr.bf16.mxu0 0
      %6396 = vmatpush2.bf16.xpose.msra.mxu0 0
      %6397 = vmatprep.subr.bf16.mxu0 0
      %6398 = vmatpush2.bf16.xpose.msra.mxu0 0
      %6399 = vmatprep.subr.bf16.mxu0 0
      %6400 = vmatpush2.bf16.xpose.msra.mxu0 0
      %6401 = vmatprep.subr.bf16.mxu0 0
      %6402 = vmatpush2.bf16.xpose.msra.mxu0 0
      %6403 = vmatprep.subr.bf16.mxu0 0
      %6404 = vmatpush2.bf16.xpose.msra.mxu0 0
      %6405 = vmatprep.subr.bf16.mxu0 0
      %6406 = vmatpush2.bf16.xpose.msra.mxu0 0
      %6407 = vmatprep.mubr.bf16.mxu0 0
      %6408 = vmatmul.mubr.bf16.gmra.mxu0 %v6370
      %v6409 = vpop.f32.mrf.mxu0
      %v6410 = vadd.f32 0.0, %v6409
      %v6411 = vpop.f32.mrf.mxu0
      %v6412 = vpop.f32.mrf.mxu0
      %v6413 = vpop.f32.mrf.mxu0
      %6414 = vdwg.mxu0
      %6415 = vrot.lane.b32.xlu0 %v1018, 104
      %v6416 = vpop.permute.xlu0 %6415
      %6417 = vrot.lane.b32.xlu0 %v1034, 104
      %v6418 = vpop.permute.xlu0 %6417
      %v6420 = vsel %vm1049, %v6416, 0
      %v6423 = vsel %vm1049, %v6418, 0
      %6425 = vmatprep.subr.bf16.mxu0 0
      %6426 = vmatpush1.bf16.xpose.msra.mxu0 0
      %6427 = vmatprep.subr.bf16.mxu0 0
      %6428 = vmatpush1.bf16.xpose.msra.mxu0 0
      %6429 = vmatprep.subr.bf16.mxu0 0
      %6430 = vmatpush1.bf16.xpose.msra.mxu0 0
      %6431 = vmatprep.subr.bf16.mxu0 0
      %6432 = vmatpush1.bf16.xpose.msra.mxu0 0
      %6433 = vmatprep.subr.bf16.mxu0 0
      %6434 = vmatpush1.bf16.xpose.msra.mxu0 0
      %6435 = vmatprep.subr.bf16.mxu0 0
      %6436 = vmatpush1.bf16.xpose.msra.mxu0 0
      %6437 = vmatprep.subr.bf16.mxu0 0
      %6438 = vmatpush1.bf16.xpose.msra.mxu0 0
      %6439 = vmatprep.subr.bf16.mxu0 0
      %6440 = vmatpush1.bf16.xpose.msra.mxu0 %v6423
      %6441 = vmatprep.subr.bf16.mxu0 0
      %6442 = vmatpush2.bf16.xpose.msra.mxu0 0
      %6443 = vmatprep.subr.bf16.mxu0 0
      %6444 = vmatpush2.bf16.xpose.msra.mxu0 0
      %6445 = vmatprep.subr.bf16.mxu0 0
      %6446 = vmatpush2.bf16.xpose.msra.mxu0 0
      %6447 = vmatprep.subr.bf16.mxu0 0
      %6448 = vmatpush2.bf16.xpose.msra.mxu0 0
      %6449 = vmatprep.subr.bf16.mxu0 0
      %6450 = vmatpush2.bf16.xpose.msra.mxu0 0
      %6451 = vmatprep.subr.bf16.mxu0 0
      %6452 = vmatpush2.bf16.xpose.msra.mxu0 0
      %6453 = vmatprep.subr.bf16.mxu0 0
      %6454 = vmatpush2.bf16.xpose.msra.mxu0 0
      %6455 = vmatprep.subr.bf16.mxu0 0
      %6456 = vmatpush2.bf16.xpose.msra.mxu0 0
      %6457 = vmatprep.mubr.bf16.mxu0 0
      %6458 = vmatmul.mubr.bf16.gmra.mxu0 %v6420
      %v6459 = vpop.f32.mrf.mxu0
      %v6460 = vadd.f32 0.0, %v6459
      %v6461 = vpop.f32.mrf.mxu0
      %v6462 = vpop.f32.mrf.mxu0
      %v6463 = vpop.f32.mrf.mxu0
      %6464 = vdwg.mxu0
      %6465 = vrot.lane.b32.xlu0 %v1019, 104
      %v6466 = vpop.permute.xlu0 %6465
      %6467 = vrot.lane.b32.xlu0 %v1035, 104
      %v6468 = vpop.permute.xlu0 %6467
      %v6470 = vsel %vm1049, %v6466, 0
      %v6473 = vsel %vm1049, %v6468, 0
      %6475 = vmatprep.subr.bf16.mxu0 0
      %6476 = vmatpush1.bf16.xpose.msra.mxu0 0
      %6477 = vmatprep.subr.bf16.mxu0 0
      %6478 = vmatpush1.bf16.xpose.msra.mxu0 0
      %6479 = vmatprep.subr.bf16.mxu0 0
      %6480 = vmatpush1.bf16.xpose.msra.mxu0 0
      %6481 = vmatprep.subr.bf16.mxu0 0
      %6482 = vmatpush1.bf16.xpose.msra.mxu0 0
      %6483 = vmatprep.subr.bf16.mxu0 0
      %6484 = vmatpush1.bf16.xpose.msra.mxu0 0
      %6485 = vmatprep.subr.bf16.mxu0 0
      %6486 = vmatpush1.bf16.xpose.msra.mxu0 0
      %6487 = vmatprep.subr.bf16.mxu0 0
      %6488 = vmatpush1.bf16.xpose.msra.mxu0 0
      %6489 = vmatprep.subr.bf16.mxu0 0
      %6490 = vmatpush1.bf16.xpose.msra.mxu0 %v6473
      %6491 = vmatprep.subr.bf16.mxu0 0
      %6492 = vmatpush2.bf16.xpose.msra.mxu0 0
      %6493 = vmatprep.subr.bf16.mxu0 0
      %6494 = vmatpush2.bf16.xpose.msra.mxu0 0
      %6495 = vmatprep.subr.bf16.mxu0 0
      %6496 = vmatpush2.bf16.xpose.msra.mxu0 0
      %6497 = vmatprep.subr.bf16.mxu0 0
      %6498 = vmatpush2.bf16.xpose.msra.mxu0 0
      %6499 = vmatprep.subr.bf16.mxu0 0
      %6500 = vmatpush2.bf16.xpose.msra.mxu0 0
      %6501 = vmatprep.subr.bf16.mxu0 0
      %6502 = vmatpush2.bf16.xpose.msra.mxu0 0
      %6503 = vmatprep.subr.bf16.mxu0 0
      %6504 = vmatpush2.bf16.xpose.msra.mxu0 0
      %6505 = vmatprep.subr.bf16.mxu0 0
      %6506 = vmatpush2.bf16.xpose.msra.mxu0 0
      %6507 = vmatprep.mubr.bf16.mxu0 0
      %6508 = vmatmul.mubr.bf16.gmra.mxu0 %v6470
      %v6509 = vpop.f32.mrf.mxu0
      %v6510 = vadd.f32 0.0, %v6509
      %v6511 = vpop.f32.mrf.mxu0
      %v6512 = vpop.f32.mrf.mxu0
      %v6513 = vpop.f32.mrf.mxu0
      %6514 = vdwg.mxu0
      %6515 = vrot.lane.b32.xlu0 %v1020, 104
      %v6516 = vpop.permute.xlu0 %6515
      %6517 = vrot.lane.b32.xlu0 %v1036, 104
      %v6518 = vpop.permute.xlu0 %6517
      %v6520 = vsel %vm1049, %v6516, 0
      %v6523 = vsel %vm1049, %v6518, 0
      %6525 = vmatprep.subr.bf16.mxu0 0
      %6526 = vmatpush1.bf16.xpose.msra.mxu0 0
      %6527 = vmatprep.subr.bf16.mxu0 0
      %6528 = vmatpush1.bf16.xpose.msra.mxu0 0
      %6529 = vmatprep.subr.bf16.mxu0 0
      %6530 = vmatpush1.bf16.xpose.msra.mxu0 0
      %6531 = vmatprep.subr.bf16.mxu0 0
      %6532 = vmatpush1.bf16.xpose.msra.mxu0 0
      %6533 = vmatprep.subr.bf16.mxu0 0
      %6534 = vmatpush1.bf16.xpose.msra.mxu0 0
      %6535 = vmatprep.subr.bf16.mxu0 0
      %6536 = vmatpush1.bf16.xpose.msra.mxu0 0
      %6537 = vmatprep.subr.bf16.mxu0 0
      %6538 = vmatpush1.bf16.xpose.msra.mxu0 0
      %6539 = vmatprep.subr.bf16.mxu0 0
      %6540 = vmatpush1.bf16.xpose.msra.mxu0 %v6523
      %6541 = vmatprep.subr.bf16.mxu0 0
      %6542 = vmatpush2.bf16.xpose.msra.mxu0 0
      %6543 = vmatprep.subr.bf16.mxu0 0
      %6544 = vmatpush2.bf16.xpose.msra.mxu0 0
      %6545 = vmatprep.subr.bf16.mxu0 0
      %6546 = vmatpush2.bf16.xpose.msra.mxu0 0
      %6547 = vmatprep.subr.bf16.mxu0 0
      %6548 = vmatpush2.bf16.xpose.msra.mxu0 0
      %6549 = vmatprep.subr.bf16.mxu0 0
      %6550 = vmatpush2.bf16.xpose.msra.mxu0 0
      %6551 = vmatprep.subr.bf16.mxu0 0
      %6552 = vmatpush2.bf16.xpose.msra.mxu0 0
      %6553 = vmatprep.subr.bf16.mxu0 0
      %6554 = vmatpush2.bf16.xpose.msra.mxu0 0
      %6555 = vmatprep.subr.bf16.mxu0 0
      %6556 = vmatpush2.bf16.xpose.msra.mxu0 0
      %6557 = vmatprep.mubr.bf16.mxu0 0
      %6558 = vmatmul.mubr.bf16.gmra.mxu0 %v6520
      %v6559 = vpop.f32.mrf.mxu0
      %v6560 = vadd.f32 0.0, %v6559
      %v6561 = vpop.f32.mrf.mxu0
      %v6562 = vpop.f32.mrf.mxu0
      %v6563 = vpop.f32.mrf.mxu0
      %6564 = vdwg.mxu0
      %6565 = vrot.lane.b32.xlu0 %v1021, 104
      %v6566 = vpop.permute.xlu0 %6565
      %6567 = vrot.lane.b32.xlu0 %v1037, 104
      %v6568 = vpop.permute.xlu0 %6567
      %v6570 = vsel %vm1049, %v6566, 0
      %v6573 = vsel %vm1049, %v6568, 0
      %6575 = vmatprep.subr.bf16.mxu0 0
      %6576 = vmatpush1.bf16.xpose.msra.mxu0 0
      %6577 = vmatprep.subr.bf16.mxu0 0
      %6578 = vmatpush1.bf16.xpose.msra.mxu0 0
      %6579 = vmatprep.subr.bf16.mxu0 0
      %6580 = vmatpush1.bf16.xpose.msra.mxu0 0
      %6581 = vmatprep.subr.bf16.mxu0 0
      %6582 = vmatpush1.bf16.xpose.msra.mxu0 0
      %6583 = vmatprep.subr.bf16.mxu0 0
      %6584 = vmatpush1.bf16.xpose.msra.mxu0 0
      %6585 = vmatprep.subr.bf16.mxu0 0
      %6586 = vmatpush1.bf16.xpose.msra.mxu0 0
      %6587 = vmatprep.subr.bf16.mxu0 0
      %6588 = vmatpush1.bf16.xpose.msra.mxu0 0
      %6589 = vmatprep.subr.bf16.mxu0 0
      %6590 = vmatpush1.bf16.xpose.msra.mxu0 %v6573
      %6591 = vmatprep.subr.bf16.mxu0 0
      %6592 = vmatpush2.bf16.xpose.msra.mxu0 0
      %6593 = vmatprep.subr.bf16.mxu0 0
      %6594 = vmatpush2.bf16.xpose.msra.mxu0 0
      %6595 = vmatprep.subr.bf16.mxu0 0
      %6596 = vmatpush2.bf16.xpose.msra.mxu0 0
      %6597 = vmatprep.subr.bf16.mxu0 0
      %6598 = vmatpush2.bf16.xpose.msra.mxu0 0
      %6599 = vmatprep.subr.bf16.mxu0 0
      %6600 = vmatpush2.bf16.xpose.msra.mxu0 0
      %6601 = vmatprep.subr.bf16.mxu0 0
      %6602 = vmatpush2.bf16.xpose.msra.mxu0 0
      %6603 = vmatprep.subr.bf16.mxu0 0
      %6604 = vmatpush2.bf16.xpose.msra.mxu0 0
      %6605 = vmatprep.subr.bf16.mxu0 0
      %6606 = vmatpush2.bf16.xpose.msra.mxu0 0
      %6607 = vmatprep.mubr.bf16.mxu0 0
      %6608 = vmatmul.mubr.bf16.gmra.mxu0 %v6570
      %v6609 = vpop.f32.mrf.mxu0
      %v6610 = vadd.f32 0.0, %v6609
      %v6611 = vpop.f32.mrf.mxu0
      %v6612 = vpop.f32.mrf.mxu0
      %v6613 = vpop.f32.mrf.mxu0
      %6614 = vdwg.mxu0
      %6615 = vrot.lane.b32.xlu0 %v1022, 104
      %v6616 = vpop.permute.xlu0 %6615
      %6617 = vrot.lane.b32.xlu0 %v1038, 104
      %v6618 = vpop.permute.xlu0 %6617
      %v6620 = vsel %vm1049, %v6616, 0
      %v6623 = vsel %vm1049, %v6618, 0
      %6625 = vmatprep.subr.bf16.mxu0 0
      %6626 = vmatpush1.bf16.xpose.msra.mxu0 0
      %6627 = vmatprep.subr.bf16.mxu0 0
      %6628 = vmatpush1.bf16.xpose.msra.mxu0 0
      %6629 = vmatprep.subr.bf16.mxu0 0
      %6630 = vmatpush1.bf16.xpose.msra.mxu0 0
      %6631 = vmatprep.subr.bf16.mxu0 0
      %6632 = vmatpush1.bf16.xpose.msra.mxu0 0
      %6633 = vmatprep.subr.bf16.mxu0 0
      %6634 = vmatpush1.bf16.xpose.msra.mxu0 0
      %6635 = vmatprep.subr.bf16.mxu0 0
      %6636 = vmatpush1.bf16.xpose.msra.mxu0 0
      %6637 = vmatprep.subr.bf16.mxu0 0
      %6638 = vmatpush1.bf16.xpose.msra.mxu0 0
      %6639 = vmatprep.subr.bf16.mxu0 0
      %6640 = vmatpush1.bf16.xpose.msra.mxu0 %v6623
      %6641 = vmatprep.subr.bf16.mxu0 0
      %6642 = vmatpush2.bf16.xpose.msra.mxu0 0
      %6643 = vmatprep.subr.bf16.mxu0 0
      %6644 = vmatpush2.bf16.xpose.msra.mxu0 0
      %6645 = vmatprep.subr.bf16.mxu0 0
      %6646 = vmatpush2.bf16.xpose.msra.mxu0 0
      %6647 = vmatprep.subr.bf16.mxu0 0
      %6648 = vmatpush2.bf16.xpose.msra.mxu0 0
      %6649 = vmatprep.subr.bf16.mxu0 0
      %6650 = vmatpush2.bf16.xpose.msra.mxu0 0
      %6651 = vmatprep.subr.bf16.mxu0 0
      %6652 = vmatpush2.bf16.xpose.msra.mxu0 0
      %6653 = vmatprep.subr.bf16.mxu0 0
      %6654 = vmatpush2.bf16.xpose.msra.mxu0 0
      %6655 = vmatprep.subr.bf16.mxu0 0
      %6656 = vmatpush2.bf16.xpose.msra.mxu0 0
      %6657 = vmatprep.mubr.bf16.mxu0 0
      %6658 = vmatmul.mubr.bf16.gmra.mxu0 %v6620
      %v6659 = vpop.f32.mrf.mxu0
      %v6660 = vadd.f32 0.0, %v6659
      %v6661 = vpop.f32.mrf.mxu0
      %v6662 = vpop.f32.mrf.mxu0
      %v6663 = vpop.f32.mrf.mxu0
      %6664 = vdwg.mxu0
      %6665 = vrot.lane.b32.xlu0 %v1023, 104
      %v6666 = vpop.permute.xlu0 %6665
      %6667 = vrot.lane.b32.xlu0 %v1039, 104
      %v6668 = vpop.permute.xlu0 %6667
      %v6670 = vsel %vm1049, %v6666, 0
      %v6673 = vsel %vm1049, %v6668, 0
      %6675 = vmatprep.subr.bf16.mxu0 0
      %6676 = vmatpush1.bf16.xpose.msra.mxu0 0
      %6677 = vmatprep.subr.bf16.mxu0 0
      %6678 = vmatpush1.bf16.xpose.msra.mxu0 0
      %6679 = vmatprep.subr.bf16.mxu0 0
      %6680 = vmatpush1.bf16.xpose.msra.mxu0 0
      %6681 = vmatprep.subr.bf16.mxu0 0
      %6682 = vmatpush1.bf16.xpose.msra.mxu0 0
      %6683 = vmatprep.subr.bf16.mxu0 0
      %6684 = vmatpush1.bf16.xpose.msra.mxu0 0
      %6685 = vmatprep.subr.bf16.mxu0 0
      %6686 = vmatpush1.bf16.xpose.msra.mxu0 0
      %6687 = vmatprep.subr.bf16.mxu0 0
      %6688 = vmatpush1.bf16.xpose.msra.mxu0 0
      %6689 = vmatprep.subr.bf16.mxu0 0
      %6690 = vmatpush1.bf16.xpose.msra.mxu0 %v6673
      %6691 = vmatprep.subr.bf16.mxu0 0
      %6692 = vmatpush2.bf16.xpose.msra.mxu0 0
      %6693 = vmatprep.subr.bf16.mxu0 0
      %6694 = vmatpush2.bf16.xpose.msra.mxu0 0
      %6695 = vmatprep.subr.bf16.mxu0 0
      %6696 = vmatpush2.bf16.xpose.msra.mxu0 0
      %6697 = vmatprep.subr.bf16.mxu0 0
      %6698 = vmatpush2.bf16.xpose.msra.mxu0 0
      %6699 = vmatprep.subr.bf16.mxu0 0
      %6700 = vmatpush2.bf16.xpose.msra.mxu0 0
      %6701 = vmatprep.subr.bf16.mxu0 0
      %6702 = vmatpush2.bf16.xpose.msra.mxu0 0
      %6703 = vmatprep.subr.bf16.mxu0 0
      %6704 = vmatpush2.bf16.xpose.msra.mxu0 0
      %6705 = vmatprep.subr.bf16.mxu0 0
      %6706 = vmatpush2.bf16.xpose.msra.mxu0 0
      %6707 = vmatprep.mubr.bf16.mxu0 0
      %6708 = vmatmul.mubr.bf16.gmra.mxu0 %v6670
      %v6709 = vpop.f32.mrf.mxu0
      %v6710 = vadd.f32 0.0, %v6709
      %v6711 = vpop.f32.mrf.mxu0
      %v6712 = vpop.f32.mrf.mxu0
      %v6713 = vpop.f32.mrf.mxu0
      %6714 = vdwg.mxu0
      %6715 = vrot.lane.b32.xlu0 %v1024, 104
      %v6716 = vpop.permute.xlu0 %6715
      %6717 = vrot.lane.b32.xlu0 %v1040, 104
      %v6718 = vpop.permute.xlu0 %6717
      %v6720 = vsel %vm1049, %v6716, 0
      %v6723 = vsel %vm1049, %v6718, 0
      %6725 = vmatprep.subr.bf16.mxu0 0
      %6726 = vmatpush1.bf16.xpose.msra.mxu0 0
      %6727 = vmatprep.subr.bf16.mxu0 0
      %6728 = vmatpush1.bf16.xpose.msra.mxu0 0
      %6729 = vmatprep.subr.bf16.mxu0 0
      %6730 = vmatpush1.bf16.xpose.msra.mxu0 0
      %6731 = vmatprep.subr.bf16.mxu0 0
      %6732 = vmatpush1.bf16.xpose.msra.mxu0 0
      %6733 = vmatprep.subr.bf16.mxu0 0
      %6734 = vmatpush1.bf16.xpose.msra.mxu0 0
      %6735 = vmatprep.subr.bf16.mxu0 0
      %6736 = vmatpush1.bf16.xpose.msra.mxu0 0
      %6737 = vmatprep.subr.bf16.mxu0 0
      %6738 = vmatpush1.bf16.xpose.msra.mxu0 0
      %6739 = vmatprep.subr.bf16.mxu0 0
      %6740 = vmatpush1.bf16.xpose.msra.mxu0 %v6723
      %6741 = vmatprep.subr.bf16.mxu0 0
      %6742 = vmatpush2.bf16.xpose.msra.mxu0 0
      %6743 = vmatprep.subr.bf16.mxu0 0
      %6744 = vmatpush2.bf16.xpose.msra.mxu0 0
      %6745 = vmatprep.subr.bf16.mxu0 0
      %6746 = vmatpush2.bf16.xpose.msra.mxu0 0
      %6747 = vmatprep.subr.bf16.mxu0 0
      %6748 = vmatpush2.bf16.xpose.msra.mxu0 0
      %6749 = vmatprep.subr.bf16.mxu0 0
      %6750 = vmatpush2.bf16.xpose.msra.mxu0 0
      %6751 = vmatprep.subr.bf16.mxu0 0
      %6752 = vmatpush2.bf16.xpose.msra.mxu0 0
      %6753 = vmatprep.subr.bf16.mxu0 0
      %6754 = vmatpush2.bf16.xpose.msra.mxu0 0
      %6755 = vmatprep.subr.bf16.mxu0 0
      %6756 = vmatpush2.bf16.xpose.msra.mxu0 0
      %6757 = vmatprep.mubr.bf16.mxu0 0
      %6758 = vmatmul.mubr.bf16.gmra.mxu0 %v6720
      %v6759 = vpop.f32.mrf.mxu0
      %v6760 = vadd.f32 0.0, %v6759
      %v6761 = vpop.f32.mrf.mxu0
      %v6762 = vpop.f32.mrf.mxu0
      %v6763 = vpop.f32.mrf.mxu0
      %6764 = vdwg.mxu0
      %6765 = vrot.lane.b32.xlu0 %v1025, 104
      %v6766 = vpop.permute.xlu0 %6765
      %6767 = vrot.lane.b32.xlu0 %v1041, 104
      %v6768 = vpop.permute.xlu0 %6767
      %v6770 = vsel %vm1049, %v6766, 0
      %v6773 = vsel %vm1049, %v6768, 0
      %6775 = vmatprep.subr.bf16.mxu0 0
      %6776 = vmatpush1.bf16.xpose.msra.mxu0 0
      %6777 = vmatprep.subr.bf16.mxu0 0
      %6778 = vmatpush1.bf16.xpose.msra.mxu0 0
      %6779 = vmatprep.subr.bf16.mxu0 0
      %6780 = vmatpush1.bf16.xpose.msra.mxu0 0
      %6781 = vmatprep.subr.bf16.mxu0 0
      %6782 = vmatpush1.bf16.xpose.msra.mxu0 0
      %6783 = vmatprep.subr.bf16.mxu0 0
      %6784 = vmatpush1.bf16.xpose.msra.mxu0 0
      %6785 = vmatprep.subr.bf16.mxu0 0
      %6786 = vmatpush1.bf16.xpose.msra.mxu0 0
      %6787 = vmatprep.subr.bf16.mxu0 0
      %6788 = vmatpush1.bf16.xpose.msra.mxu0 0
      %6789 = vmatprep.subr.bf16.mxu0 0
      %6790 = vmatpush1.bf16.xpose.msra.mxu0 %v6773
      %6791 = vmatprep.subr.bf16.mxu0 0
      %6792 = vmatpush2.bf16.xpose.msra.mxu0 0
      %6793 = vmatprep.subr.bf16.mxu0 0
      %6794 = vmatpush2.bf16.xpose.msra.mxu0 0
      %6795 = vmatprep.subr.bf16.mxu0 0
      %6796 = vmatpush2.bf16.xpose.msra.mxu0 0
      %6797 = vmatprep.subr.bf16.mxu0 0
      %6798 = vmatpush2.bf16.xpose.msra.mxu0 0
      %6799 = vmatprep.subr.bf16.mxu0 0
      %6800 = vmatpush2.bf16.xpose.msra.mxu0 0
      %6801 = vmatprep.subr.bf16.mxu0 0
      %6802 = vmatpush2.bf16.xpose.msra.mxu0 0
      %6803 = vmatprep.subr.bf16.mxu0 0
      %6804 = vmatpush2.bf16.xpose.msra.mxu0 0
      %6805 = vmatprep.subr.bf16.mxu0 0
      %6806 = vmatpush2.bf16.xpose.msra.mxu0 0
      %6807 = vmatprep.mubr.bf16.mxu0 0
      %6808 = vmatmul.mubr.bf16.gmra.mxu0 %v6770
      %v6809 = vpop.f32.mrf.mxu0
      %v6810 = vadd.f32 0.0, %v6809
      %v6811 = vpop.f32.mrf.mxu0
      %v6812 = vpop.f32.mrf.mxu0
      %v6813 = vpop.f32.mrf.mxu0
      %6814 = vdwg.mxu0
      %6815 = vrot.lane.b32.xlu0 %v1026, 104
      %v6816 = vpop.permute.xlu0 %6815
      %6817 = vrot.lane.b32.xlu0 %v1042, 104
      %v6818 = vpop.permute.xlu0 %6817
      %v6820 = vsel %vm1049, %v6816, 0
      %v6823 = vsel %vm1049, %v6818, 0
      %6825 = vmatprep.subr.bf16.mxu0 0
      %6826 = vmatpush1.bf16.xpose.msra.mxu0 0
      %6827 = vmatprep.subr.bf16.mxu0 0
      %6828 = vmatpush1.bf16.xpose.msra.mxu0 0
      %6829 = vmatprep.subr.bf16.mxu0 0
      %6830 = vmatpush1.bf16.xpose.msra.mxu0 0
      %6831 = vmatprep.subr.bf16.mxu0 0
      %6832 = vmatpush1.bf16.xpose.msra.mxu0 0
      %6833 = vmatprep.subr.bf16.mxu0 0
      %6834 = vmatpush1.bf16.xpose.msra.mxu0 0
      %6835 = vmatprep.subr.bf16.mxu0 0
      %6836 = vmatpush1.bf16.xpose.msra.mxu0 0
      %6837 = vmatprep.subr.bf16.mxu0 0
      %6838 = vmatpush1.bf16.xpose.msra.mxu0 0
      %6839 = vmatprep.subr.bf16.mxu0 0
      %6840 = vmatpush1.bf16.xpose.msra.mxu0 %v6823
      %6841 = vmatprep.subr.bf16.mxu0 0
      %6842 = vmatpush2.bf16.xpose.msra.mxu0 0
      %6843 = vmatprep.subr.bf16.mxu0 0
      %6844 = vmatpush2.bf16.xpose.msra.mxu0 0
      %6845 = vmatprep.subr.bf16.mxu0 0
      %6846 = vmatpush2.bf16.xpose.msra.mxu0 0
      %6847 = vmatprep.subr.bf16.mxu0 0
      %6848 = vmatpush2.bf16.xpose.msra.mxu0 0
      %6849 = vmatprep.subr.bf16.mxu0 0
      %6850 = vmatpush2.bf16.xpose.msra.mxu0 0
      %6851 = vmatprep.subr.bf16.mxu0 0
      %6852 = vmatpush2.bf16.xpose.msra.mxu0 0
      %6853 = vmatprep.subr.bf16.mxu0 0
      %6854 = vmatpush2.bf16.xpose.msra.mxu0 0
      %6855 = vmatprep.subr.bf16.mxu0 0
      %6856 = vmatpush2.bf16.xpose.msra.mxu0 0
      %6857 = vmatprep.mubr.bf16.mxu0 0
      %6858 = vmatmul.mubr.bf16.gmra.mxu0 %v6820
      %v6859 = vpop.f32.mrf.mxu0
      %v6860 = vadd.f32 0.0, %v6859
      %v6861 = vpop.f32.mrf.mxu0
      %v6862 = vpop.f32.mrf.mxu0
      %v6863 = vpop.f32.mrf.mxu0
      %6864 = vdwg.mxu0
      %6865 = vrot.lane.b32.xlu0 %v1027, 104
      %v6866 = vpop.permute.xlu0 %6865
      %6867 = vrot.lane.b32.xlu0 %v1043, 104
      %v6868 = vpop.permute.xlu0 %6867
      %v6870 = vsel %vm1049, %v6866, 0
      %v6873 = vsel %vm1049, %v6868, 0
      %6875 = vmatprep.subr.bf16.mxu0 0
      %6876 = vmatpush1.bf16.xpose.msra.mxu0 0
      %6877 = vmatprep.subr.bf16.mxu0 0
      %6878 = vmatpush1.bf16.xpose.msra.mxu0 0
      %6879 = vmatprep.subr.bf16.mxu0 0
      %6880 = vmatpush1.bf16.xpose.msra.mxu0 0
      %6881 = vmatprep.subr.bf16.mxu0 0
      %6882 = vmatpush1.bf16.xpose.msra.mxu0 0
      %6883 = vmatprep.subr.bf16.mxu0 0
      %6884 = vmatpush1.bf16.xpose.msra.mxu0 0
      %6885 = vmatprep.subr.bf16.mxu0 0
      %6886 = vmatpush1.bf16.xpose.msra.mxu0 0
      %6887 = vmatprep.subr.bf16.mxu0 0
      %6888 = vmatpush1.bf16.xpose.msra.mxu0 0
      %6889 = vmatprep.subr.bf16.mxu0 0
      %6890 = vmatpush1.bf16.xpose.msra.mxu0 %v6873
      %6891 = vmatprep.subr.bf16.mxu0 0
      %6892 = vmatpush2.bf16.xpose.msra.mxu0 0
      %6893 = vmatprep.subr.bf16.mxu0 0
      %6894 = vmatpush2.bf16.xpose.msra.mxu0 0
      %6895 = vmatprep.subr.bf16.mxu0 0
      %6896 = vmatpush2.bf16.xpose.msra.mxu0 0
      %6897 = vmatprep.subr.bf16.mxu0 0
      %6898 = vmatpush2.bf16.xpose.msra.mxu0 0
      %6899 = vmatprep.subr.bf16.mxu0 0
      %6900 = vmatpush2.bf16.xpose.msra.mxu0 0
      %6901 = vmatprep.subr.bf16.mxu0 0
      %6902 = vmatpush2.bf16.xpose.msra.mxu0 0
      %6903 = vmatprep.subr.bf16.mxu0 0
      %6904 = vmatpush2.bf16.xpose.msra.mxu0 0
      %6905 = vmatprep.subr.bf16.mxu0 0
      %6906 = vmatpush2.bf16.xpose.msra.mxu0 0
      %6907 = vmatprep.mubr.bf16.mxu0 0
      %6908 = vmatmul.mubr.bf16.gmra.mxu0 %v6870
      %v6909 = vpop.f32.mrf.mxu0
      %v6910 = vadd.f32 0.0, %v6909
      %v6911 = vpop.f32.mrf.mxu0
      %v6912 = vpop.f32.mrf.mxu0
      %v6913 = vpop.f32.mrf.mxu0
      %6914 = vdwg.mxu0
      %6915 = vrot.lane.b32.xlu0 %v1028, 104
      %v6916 = vpop.permute.xlu0 %6915
      %6917 = vrot.lane.b32.xlu0 %v1044, 104
      %v6918 = vpop.permute.xlu0 %6917
      %v6920 = vsel %vm1049, %v6916, 0
      %v6923 = vsel %vm1049, %v6918, 0
      %6925 = vmatprep.subr.bf16.mxu0 0
      %6926 = vmatpush1.bf16.xpose.msra.mxu0 0
      %6927 = vmatprep.subr.bf16.mxu0 0
      %6928 = vmatpush1.bf16.xpose.msra.mxu0 0
      %6929 = vmatprep.subr.bf16.mxu0 0
      %6930 = vmatpush1.bf16.xpose.msra.mxu0 0
      %6931 = vmatprep.subr.bf16.mxu0 0
      %6932 = vmatpush1.bf16.xpose.msra.mxu0 0
      %6933 = vmatprep.subr.bf16.mxu0 0
      %6934 = vmatpush1.bf16.xpose.msra.mxu0 0
      %6935 = vmatprep.subr.bf16.mxu0 0
      %6936 = vmatpush1.bf16.xpose.msra.mxu0 0
      %6937 = vmatprep.subr.bf16.mxu0 0
      %6938 = vmatpush1.bf16.xpose.msra.mxu0 0
      %6939 = vmatprep.subr.bf16.mxu0 0
      %6940 = vmatpush1.bf16.xpose.msra.mxu0 %v6923
      %6941 = vmatprep.subr.bf16.mxu0 0
      %6942 = vmatpush2.bf16.xpose.msra.mxu0 0
      %6943 = vmatprep.subr.bf16.mxu0 0
      %6944 = vmatpush2.bf16.xpose.msra.mxu0 0
      %6945 = vmatprep.subr.bf16.mxu0 0
      %6946 = vmatpush2.bf16.xpose.msra.mxu0 0
      %6947 = vmatprep.subr.bf16.mxu0 0
      %6948 = vmatpush2.bf16.xpose.msra.mxu0 0
      %6949 = vmatprep.subr.bf16.mxu0 0
      %6950 = vmatpush2.bf16.xpose.msra.mxu0 0
      %6951 = vmatprep.subr.bf16.mxu0 0
      %6952 = vmatpush2.bf16.xpose.msra.mxu0 0
      %6953 = vmatprep.subr.bf16.mxu0 0
      %6954 = vmatpush2.bf16.xpose.msra.mxu0 0
      %6955 = vmatprep.subr.bf16.mxu0 0
      %6956 = vmatpush2.bf16.xpose.msra.mxu0 0
      %6957 = vmatprep.mubr.bf16.mxu0 0
      %6958 = vmatmul.mubr.bf16.gmra.mxu0 %v6920
      %v6959 = vpop.f32.mrf.mxu0
      %v6960 = vadd.f32 0.0, %v6959
      %v6961 = vpop.f32.mrf.mxu0
      %v6962 = vpop.f32.mrf.mxu0
      %v6963 = vpop.f32.mrf.mxu0
      %6964 = vdwg.mxu0
      %6965 = vrot.lane.b32.xlu0 %v1029, 104
      %v6966 = vpop.permute.xlu0 %6965
      %6967 = vrot.lane.b32.xlu0 %v1045, 104
      %v6968 = vpop.permute.xlu0 %6967
      %v6970 = vsel %vm1049, %v6966, 0
      %v6973 = vsel %vm1049, %v6968, 0
      %6975 = vmatprep.subr.bf16.mxu0 0
      %6976 = vmatpush1.bf16.xpose.msra.mxu0 0
      %6977 = vmatprep.subr.bf16.mxu0 0
      %6978 = vmatpush1.bf16.xpose.msra.mxu0 0
      %6979 = vmatprep.subr.bf16.mxu0 0
      %6980 = vmatpush1.bf16.xpose.msra.mxu0 0
      %6981 = vmatprep.subr.bf16.mxu0 0
      %6982 = vmatpush1.bf16.xpose.msra.mxu0 0
      %6983 = vmatprep.subr.bf16.mxu0 0
      %6984 = vmatpush1.bf16.xpose.msra.mxu0 0
      %6985 = vmatprep.subr.bf16.mxu0 0
      %6986 = vmatpush1.bf16.xpose.msra.mxu0 0
      %6987 = vmatprep.subr.bf16.mxu0 0
      %6988 = vmatpush1.bf16.xpose.msra.mxu0 0
      %6989 = vmatprep.subr.bf16.mxu0 0
      %6990 = vmatpush1.bf16.xpose.msra.mxu0 %v6973
      %6991 = vmatprep.subr.bf16.mxu0 0
      %6992 = vmatpush2.bf16.xpose.msra.mxu0 0
      %6993 = vmatprep.subr.bf16.mxu0 0
      %6994 = vmatpush2.bf16.xpose.msra.mxu0 0
      %6995 = vmatprep.subr.bf16.mxu0 0
      %6996 = vmatpush2.bf16.xpose.msra.mxu0 0
      %6997 = vmatprep.subr.bf16.mxu0 0
      %6998 = vmatpush2.bf16.xpose.msra.mxu0 0
      %6999 = vmatprep.subr.bf16.mxu0 0
      %7000 = vmatpush2.bf16.xpose.msra.mxu0 0
      %7001 = vmatprep.subr.bf16.mxu0 0
      %7002 = vmatpush2.bf16.xpose.msra.mxu0 0
      %7003 = vmatprep.subr.bf16.mxu0 0
      %7004 = vmatpush2.bf16.xpose.msra.mxu0 0
      %7005 = vmatprep.subr.bf16.mxu0 0
      %7006 = vmatpush2.bf16.xpose.msra.mxu0 0
      %7007 = vmatprep.mubr.bf16.mxu0 0
      %7008 = vmatmul.mubr.bf16.gmra.mxu0 %v6970
      %v7009 = vpop.f32.mrf.mxu0
      %v7010 = vadd.f32 0.0, %v7009
      %v7011 = vpop.f32.mrf.mxu0
      %v7012 = vpop.f32.mrf.mxu0
      %v7013 = vpop.f32.mrf.mxu0
      %7014 = vdwg.mxu0
      %7015 = vrot.lane.b32.xlu0 %v1030, 104
      %v7016 = vpop.permute.xlu0 %7015
      %7017 = vrot.lane.b32.xlu0 %v1046, 104
      %v7018 = vpop.permute.xlu0 %7017
      %v7020 = vsel %vm1049, %v7016, 0
      %v7023 = vsel %vm1049, %v7018, 0
      %7025 = vmatprep.subr.bf16.mxu0 0
      %7026 = vmatpush1.bf16.xpose.msra.mxu0 0
      %7027 = vmatprep.subr.bf16.mxu0 0
      %7028 = vmatpush1.bf16.xpose.msra.mxu0 0
      %7029 = vmatprep.subr.bf16.mxu0 0
      %7030 = vmatpush1.bf16.xpose.msra.mxu0 0
      %7031 = vmatprep.subr.bf16.mxu0 0
      %7032 = vmatpush1.bf16.xpose.msra.mxu0 0
      %7033 = vmatprep.subr.bf16.mxu0 0
      %7034 = vmatpush1.bf16.xpose.msra.mxu0 0
      %7035 = vmatprep.subr.bf16.mxu0 0
      %7036 = vmatpush1.bf16.xpose.msra.mxu0 0
      %7037 = vmatprep.subr.bf16.mxu0 0
      %7038 = vmatpush1.bf16.xpose.msra.mxu0 0
      %7039 = vmatprep.subr.bf16.mxu0 0
      %7040 = vmatpush1.bf16.xpose.msra.mxu0 %v7023
      %7041 = vmatprep.subr.bf16.mxu0 0
      %7042 = vmatpush2.bf16.xpose.msra.mxu0 0
      %7043 = vmatprep.subr.bf16.mxu0 0
      %7044 = vmatpush2.bf16.xpose.msra.mxu0 0
      %7045 = vmatprep.subr.bf16.mxu0 0
      %7046 = vmatpush2.bf16.xpose.msra.mxu0 0
      %7047 = vmatprep.subr.bf16.mxu0 0
      %7048 = vmatpush2.bf16.xpose.msra.mxu0 0
      %7049 = vmatprep.subr.bf16.mxu0 0
      %7050 = vmatpush2.bf16.xpose.msra.mxu0 0
      %7051 = vmatprep.subr.bf16.mxu0 0
      %7052 = vmatpush2.bf16.xpose.msra.mxu0 0
      %7053 = vmatprep.subr.bf16.mxu0 0
      %7054 = vmatpush2.bf16.xpose.msra.mxu0 0
      %7055 = vmatprep.subr.bf16.mxu0 0
      %7056 = vmatpush2.bf16.xpose.msra.mxu0 0
      %7057 = vmatprep.mubr.bf16.mxu0 0
      %7058 = vmatmul.mubr.bf16.gmra.mxu0 %v7020
      %v7059 = vpop.f32.mrf.mxu0
      %v7060 = vadd.f32 0.0, %v7059
      %v7061 = vpop.f32.mrf.mxu0
      %v7062 = vpop.f32.mrf.mxu0
      %v7063 = vpop.f32.mrf.mxu0
      %7064 = vdwg.mxu0
      %7065 = vrot.lane.b32.xlu0 %v1031, 104
      %v7066 = vpop.permute.xlu0 %7065
      %7067 = vrot.lane.b32.xlu0 %v1047, 104
      %v7068 = vpop.permute.xlu0 %7067
      %v7070 = vsel %vm1049, %v7066, 0
      %v7073 = vsel %vm1049, %v7068, 0
      %7075 = vmatprep.subr.bf16.mxu0 0
      %7076 = vmatpush1.bf16.xpose.msra.mxu0 0
      %7077 = vmatprep.subr.bf16.mxu0 0
      %7078 = vmatpush1.bf16.xpose.msra.mxu0 0
      %7079 = vmatprep.subr.bf16.mxu0 0
      %7080 = vmatpush1.bf16.xpose.msra.mxu0 0
      %7081 = vmatprep.subr.bf16.mxu0 0
      %7082 = vmatpush1.bf16.xpose.msra.mxu0 0
      %7083 = vmatprep.subr.bf16.mxu0 0
      %7084 = vmatpush1.bf16.xpose.msra.mxu0 0
      %7085 = vmatprep.subr.bf16.mxu0 0
      %7086 = vmatpush1.bf16.xpose.msra.mxu0 0
      %7087 = vmatprep.subr.bf16.mxu0 0
      %7088 = vmatpush1.bf16.xpose.msra.mxu0 0
      %7089 = vmatprep.subr.bf16.mxu0 0
      %7090 = vmatpush1.bf16.xpose.msra.mxu0 %v7073
      %7091 = vmatprep.subr.bf16.mxu0 0
      %7092 = vmatpush2.bf16.xpose.msra.mxu0 0
      %7093 = vmatprep.subr.bf16.mxu0 0
      %7094 = vmatpush2.bf16.xpose.msra.mxu0 0
      %7095 = vmatprep.subr.bf16.mxu0 0
      %7096 = vmatpush2.bf16.xpose.msra.mxu0 0
      %7097 = vmatprep.subr.bf16.mxu0 0
      %7098 = vmatpush2.bf16.xpose.msra.mxu0 0
      %7099 = vmatprep.subr.bf16.mxu0 0
      %7100 = vmatpush2.bf16.xpose.msra.mxu0 0
      %7101 = vmatprep.subr.bf16.mxu0 0
      %7102 = vmatpush2.bf16.xpose.msra.mxu0 0
      %7103 = vmatprep.subr.bf16.mxu0 0
      %7104 = vmatpush2.bf16.xpose.msra.mxu0 0
      %7105 = vmatprep.subr.bf16.mxu0 0
      %7106 = vmatpush2.bf16.xpose.msra.mxu0 0
      %7107 = vmatprep.mubr.bf16.mxu0 0
      %7108 = vmatmul.mubr.bf16.gmra.mxu0 %v7070
      %v7109 = vpop.f32.mrf.mxu0
      %v7110 = vadd.f32 0.0, %v7109
      %v7111 = vpop.f32.mrf.mxu0
      %v7112 = vpop.f32.mrf.mxu0
      %v7113 = vpop.f32.mrf.mxu0
      %7114 = vdwg.mxu0
      %7115 = vrot.lane.b32.xlu0 %v1032, 104
      %v7116 = vpop.permute.xlu0 %7115
      %7117 = vrot.lane.b32.xlu0 %v1048, 104
      %v7118 = vpop.permute.xlu0 %7117
      %v7120 = vsel %vm1049, %v7116, 0
      %v7123 = vsel %vm1049, %v7118, 0
      %7125 = vmatprep.subr.bf16.mxu0 0
      %7126 = vmatpush1.bf16.xpose.msra.mxu0 0
      %7127 = vmatprep.subr.bf16.mxu0 0
      %7128 = vmatpush1.bf16.xpose.msra.mxu0 0
      %7129 = vmatprep.subr.bf16.mxu0 0
      %7130 = vmatpush1.bf16.xpose.msra.mxu0 0
      %7131 = vmatprep.subr.bf16.mxu0 0
      %7132 = vmatpush1.bf16.xpose.msra.mxu0 0
      %7133 = vmatprep.subr.bf16.mxu0 0
      %7134 = vmatpush1.bf16.xpose.msra.mxu0 0
      %7135 = vmatprep.subr.bf16.mxu0 0
      %7136 = vmatpush1.bf16.xpose.msra.mxu0 0
      %7137 = vmatprep.subr.bf16.mxu0 0
      %7138 = vmatpush1.bf16.xpose.msra.mxu0 0
      %7139 = vmatprep.subr.bf16.mxu0 0
      %7140 = vmatpush1.bf16.xpose.msra.mxu0 %v7123
      %7141 = vmatprep.subr.bf16.mxu0 0
      %7142 = vmatpush2.bf16.xpose.msra.mxu0 0
      %7143 = vmatprep.subr.bf16.mxu0 0
      %7144 = vmatpush2.bf16.xpose.msra.mxu0 0
      %7145 = vmatprep.subr.bf16.mxu0 0
      %7146 = vmatpush2.bf16.xpose.msra.mxu0 0
      %7147 = vmatprep.subr.bf16.mxu0 0
      %7148 = vmatpush2.bf16.xpose.msra.mxu0 0
      %7149 = vmatprep.subr.bf16.mxu0 0
      %7150 = vmatpush2.bf16.xpose.msra.mxu0 0
      %7151 = vmatprep.subr.bf16.mxu0 0
      %7152 = vmatpush2.bf16.xpose.msra.mxu0 0
      %7153 = vmatprep.subr.bf16.mxu0 0
      %7154 = vmatpush2.bf16.xpose.msra.mxu0 0
      %7155 = vmatprep.subr.bf16.mxu0 0
      %7156 = vmatpush2.bf16.xpose.msra.mxu0 0
      %7157 = vmatprep.mubr.bf16.mxu0 0
      %7158 = vmatmul.mubr.bf16.gmra.mxu0 %v7120
      %v7159 = vpop.f32.mrf.mxu0
      %v7160 = vadd.f32 0.0, %v7159
      %v7161 = vpop.f32.mrf.mxu0
      %v7162 = vpop.f32.mrf.mxu0
      %v7163 = vpop.f32.mrf.mxu0
      %7164 = vdwg.mxu0
      %v7165 = vsel %vm1786, %v6410, -inf
      %7166 = vmax.xlane.f32.xlu0 %v7165
      %v7167 = vpop.xlane.xlu0 %7166
      %v7168 = vsel %vm1786, %v6460, -inf
      %7169 = vmax.xlane.f32.xlu0 %v7168
      %v7170 = vpop.xlane.xlu0 %7169
      %v7171 = vsel %vm1786, %v6510, -inf
      %7172 = vmax.xlane.f32.xlu0 %v7171
      %v7173 = vpop.xlane.xlu0 %7172
      %v7174 = vsel %vm1786, %v6560, -inf
      %7175 = vmax.xlane.f32.xlu0 %v7174
      %v7176 = vpop.xlane.xlu0 %7175
      %v7177 = vsel %vm1786, %v6610, -inf
      %7178 = vmax.xlane.f32.xlu0 %v7177
      %v7179 = vpop.xlane.xlu0 %7178
      %v7180 = vsel %vm1786, %v6660, -inf
      %7181 = vmax.xlane.f32.xlu0 %v7180
      %v7182 = vpop.xlane.xlu0 %7181
      %v7183 = vsel %vm1786, %v6710, -inf
      %7184 = vmax.xlane.f32.xlu0 %v7183
      %v7185 = vpop.xlane.xlu0 %7184
      %v7186 = vsel %vm1786, %v6760, -inf
      %7187 = vmax.xlane.f32.xlu0 %v7186
      %v7188 = vpop.xlane.xlu0 %7187
      %v7189 = vsel %vm1786, %v6810, -inf
      %7190 = vmax.xlane.f32.xlu0 %v7189
      %v7191 = vpop.xlane.xlu0 %7190
      %v7192 = vsel %vm1786, %v6860, -inf
      %7193 = vmax.xlane.f32.xlu0 %v7192
      %v7194 = vpop.xlane.xlu0 %7193
      %v7195 = vsel %vm1786, %v6910, -inf
      %7196 = vmax.xlane.f32.xlu0 %v7195
      %v7197 = vpop.xlane.xlu0 %7196
      %v7198 = vsel %vm1786, %v6960, -inf
      %7199 = vmax.xlane.f32.xlu0 %v7198
      %v7200 = vpop.xlane.xlu0 %7199
      %v7201 = vsel %vm1786, %v7010, -inf
      %7202 = vmax.xlane.f32.xlu0 %v7201
      %v7203 = vpop.xlane.xlu0 %7202
      %v7204 = vsel %vm1786, %v7060, -inf
      %7205 = vmax.xlane.f32.xlu0 %v7204
      %v7206 = vpop.xlane.xlu0 %7205
      %v7207 = vsel %vm1786, %v7110, -inf
      %7208 = vmax.xlane.f32.xlu0 %v7207
      %v7209 = vpop.xlane.xlu0 %7208
      %v7210 = vsel %vm1786, %v7160, -inf
      %7211 = vmax.xlane.f32.xlu0 %v7210
      %v7212 = vpop.xlane.xlu0 %7211
      %v7213 = vsub.f32 %v6410, %v7167
      %v7214 = vsub.f32 %v6460, %v7170
      %v7215 = vsub.f32 %v6510, %v7173
      %v7216 = vsub.f32 %v6560, %v7176
      %v7217 = vsub.f32 %v6610, %v7179
      %v7218 = vsub.f32 %v6660, %v7182
      %v7219 = vsub.f32 %v6710, %v7185
      %v7220 = vsub.f32 %v6760, %v7188
      %v7221 = vsub.f32 %v6810, %v7191
      %v7222 = vsub.f32 %v6860, %v7194
      %v7223 = vsub.f32 %v6910, %v7197
      %v7224 = vsub.f32 %v6960, %v7200
      %v7225 = vsub.f32 %v7010, %v7203
      %v7226 = vsub.f32 %v7060, %v7206
      %v7227 = vsub.f32 %v7110, %v7209
      %v7228 = vsub.f32 %v7160, %v7212
      %v7229 = vmul.f32 %v7213, 1.442695
      %v7230 = vpow.pop %v7229
      %v7231 = vmul.f32 %v7214, 1.442695
      %v7232 = vpow.pop %v7231
      %v7233 = vmul.f32 %v7215, 1.442695
      %v7234 = vpow.pop %v7233
      %v7235 = vmul.f32 %v7216, 1.442695
      %v7236 = vpow.pop %v7235
      %v7237 = vmul.f32 %v7217, 1.442695
      %v7238 = vpow.pop %v7237
      %v7239 = vmul.f32 %v7218, 1.442695
      %v7240 = vpow.pop %v7239
      %v7241 = vmul.f32 %v7219, 1.442695
      %v7242 = vpow.pop %v7241
      %v7243 = vmul.f32 %v7220, 1.442695
      %v7244 = vpow.pop %v7243
      %v7245 = vmul.f32 %v7221, 1.442695
      %v7246 = vpow.pop %v7245
      %v7247 = vmul.f32 %v7222, 1.442695
      %v7248 = vpow.pop %v7247
      %v7249 = vmul.f32 %v7223, 1.442695
      %v7250 = vpow.pop %v7249
      %v7251 = vmul.f32 %v7224, 1.442695
      %v7252 = vpow.pop %v7251
      %v7253 = vmul.f32 %v7225, 1.442695
      %v7254 = vpow.pop %v7253
      %v7255 = vmul.f32 %v7226, 1.442695
      %v7256 = vpow.pop %v7255
      %v7257 = vmul.f32 %v7227, 1.442695
      %v7258 = vpow.pop %v7257
      %v7259 = vmul.f32 %v7228, 1.442695
      %v7260 = vpow.pop %v7259
      %v7261 = vsel %vm1786, %v7230, 0.0
      %7262 = vadd.xlane.f32.xlu0 %v7261
      %v7263 = vpop.xlane.xlu0 %7262
      %v7264 = vsel %vm1786, %v7232, 0.0
      %7265 = vadd.xlane.f32.xlu0 %v7264
      %v7266 = vpop.xlane.xlu0 %7265
      %v7267 = vsel %vm1786, %v7234, 0.0
      %7268 = vadd.xlane.f32.xlu0 %v7267
      %v7269 = vpop.xlane.xlu0 %7268
      %v7270 = vsel %vm1786, %v7236, 0.0
      %7271 = vadd.xlane.f32.xlu0 %v7270
      %v7272 = vpop.xlane.xlu0 %7271
      %v7273 = vsel %vm1786, %v7238, 0.0
      %7274 = vadd.xlane.f32.xlu0 %v7273
      %v7275 = vpop.xlane.xlu0 %7274
      %v7276 = vsel %vm1786, %v7240, 0.0
      %7277 = vadd.xlane.f32.xlu0 %v7276
      %v7278 = vpop.xlane.xlu0 %7277
      %v7279 = vsel %vm1786, %v7242, 0.0
      %7280 = vadd.xlane.f32.xlu0 %v7279
      %v7281 = vpop.xlane.xlu0 %7280
      %v7282 = vsel %vm1786, %v7244, 0.0
      %7283 = vadd.xlane.f32.xlu0 %v7282
      %v7284 = vpop.xlane.xlu0 %7283
      %v7285 = vsel %vm1786, %v7246, 0.0
      %7286 = vadd.xlane.f32.xlu0 %v7285
      %v7287 = vpop.xlane.xlu0 %7286
      %v7288 = vsel %vm1786, %v7248, 0.0
      %7289 = vadd.xlane.f32.xlu0 %v7288
      %v7290 = vpop.xlane.xlu0 %7289
      %v7291 = vsel %vm1786, %v7250, 0.0
      %7292 = vadd.xlane.f32.xlu0 %v7291
      %v7293 = vpop.xlane.xlu0 %7292
      %v7294 = vsel %vm1786, %v7252, 0.0
      %7295 = vadd.xlane.f32.xlu0 %v7294
      %v7296 = vpop.xlane.xlu0 %7295
      %v7297 = vsel %vm1786, %v7254, 0.0
      %7298 = vadd.xlane.f32.xlu0 %v7297
      %v7299 = vpop.xlane.xlu0 %7298
      %v7300 = vsel %vm1786, %v7256, 0.0
      %7301 = vadd.xlane.f32.xlu0 %v7300
      %v7302 = vpop.xlane.xlu0 %7301
      %v7303 = vsel %vm1786, %v7258, 0.0
      %7304 = vadd.xlane.f32.xlu0 %v7303
      %v7305 = vpop.xlane.xlu0 %7304
      %v7306 = vsel %vm1786, %v7260, 0.0
      %7307 = vadd.xlane.f32.xlu0 %v7306
      %v7308 = vpop.xlane.xlu0 %7307
      %v7309 = vpack.c.bf16 %v7230, %v7230
      %v7310 = vpack.c.bf16 %v7232, %v7232
      %v7311 = vpack.c.bf16 %v7234, %v7234
      %v7312 = vpack.c.bf16 %v7236, %v7236
      %v7313 = vpack.c.bf16 %v7238, %v7238
      %v7314 = vpack.c.bf16 %v7240, %v7240
      %v7315 = vpack.c.bf16 %v7242, %v7242
      %v7316 = vpack.c.bf16 %v7244, %v7244
      %v7317 = vpack.c.bf16 %v7246, %v7246
      %v7318 = vpack.c.bf16 %v7248, %v7248
      %v7319 = vpack.c.bf16 %v7250, %v7250
      %v7320 = vpack.c.bf16 %v7252, %v7252
      %v7321 = vpack.c.bf16 %v7254, %v7254
      %v7322 = vpack.c.bf16 %v7256, %v7256
      %v7323 = vpack.c.bf16 %v7258, %v7258
      %v7324 = vpack.c.bf16 %v7260, %v7260
      %7325 = vrot.lane.b32.xlu0 %v1033, 72
      %v7326 = vpop.permute.xlu0 %7325
      %v7329 = vsel %vm1786, %v7309, 0
      %7331 = vmatprep.subr.bf16.mxu0 0
      %7332 = vmatpush1.bf16.msra.mxu0 0
      %7333 = vmatprep.subr.bf16.mxu0 0
      %7334 = vmatpush1.bf16.msra.mxu0 0
      %7335 = vmatprep.subr.bf16.mxu0 0
      %7336 = vmatpush1.bf16.msra.mxu0 0
      %7337 = vmatprep.subr.bf16.mxu0 0
      %7338 = vmatpush1.bf16.msra.mxu0 0
      %7339 = vmatprep.subr.bf16.mxu0 0
      %7340 = vmatpush1.bf16.msra.mxu0 0
      %7341 = vmatprep.subr.bf16.mxu0 0
      %7342 = vmatpush1.bf16.msra.mxu0 0
      %7343 = vmatprep.subr.bf16.mxu0 0
      %7344 = vmatpush1.bf16.msra.mxu0 0
      %7345 = vmatprep.subr.bf16.mxu0 0
      %7346 = vmatpush1.bf16.msra.mxu0 %v7326
      %7347 = vmatprep.subr.bf16.mxu0 0
      %7348 = vmatpush2.bf16.msra.mxu0 0
      %7349 = vmatprep.subr.bf16.mxu0 0
      %7350 = vmatpush2.bf16.msra.mxu0 0
      %7351 = vmatprep.subr.bf16.mxu0 0
      %7352 = vmatpush2.bf16.msra.mxu0 0
      %7353 = vmatprep.subr.bf16.mxu0 0
      %7354 = vmatpush2.bf16.msra.mxu0 0
      %7355 = vmatprep.subr.bf16.mxu0 0
      %7356 = vmatpush2.bf16.msra.mxu0 0
      %7357 = vmatprep.subr.bf16.mxu0 0
      %7358 = vmatpush2.bf16.msra.mxu0 0
      %7359 = vmatprep.subr.bf16.mxu0 0
      %7360 = vmatpush2.bf16.msra.mxu0 0
      %7361 = vmatprep.subr.bf16.mxu0 0
      %7362 = vmatpush2.bf16.msra.mxu0 0
      %7363 = vmatprep.mubr.bf16.mxu0 0
      %7364 = vmatmul.mubr.bf16.gmra.mxu0 %v7329
      %v7365 = vpop.f32.mrf.mxu0
      %v7366 = vadd.f32 0.0, %v7365
      %v7367 = vpop.f32.mrf.mxu0
      %v7368 = vpop.f32.mrf.mxu0
      %v7369 = vpop.f32.mrf.mxu0
      %7370 = vdwg.mxu0
      %7371 = vrot.lane.b32.xlu0 %v1034, 72
      %v7372 = vpop.permute.xlu0 %7371
      %v7375 = vsel %vm1786, %v7310, 0
      %7377 = vmatprep.subr.bf16.mxu0 0
      %7378 = vmatpush1.bf16.msra.mxu0 0
      %7379 = vmatprep.subr.bf16.mxu0 0
      %7380 = vmatpush1.bf16.msra.mxu0 0
      %7381 = vmatprep.subr.bf16.mxu0 0
      %7382 = vmatpush1.bf16.msra.mxu0 0
      %7383 = vmatprep.subr.bf16.mxu0 0
      %7384 = vmatpush1.bf16.msra.mxu0 0
      %7385 = vmatprep.subr.bf16.mxu0 0
      %7386 = vmatpush1.bf16.msra.mxu0 0
      %7387 = vmatprep.subr.bf16.mxu0 0
      %7388 = vmatpush1.bf16.msra.mxu0 0
      %7389 = vmatprep.subr.bf16.mxu0 0
      %7390 = vmatpush1.bf16.msra.mxu0 0
      %7391 = vmatprep.subr.bf16.mxu0 0
      %7392 = vmatpush1.bf16.msra.mxu0 %v7372
      %7393 = vmatprep.subr.bf16.mxu0 0
      %7394 = vmatpush2.bf16.msra.mxu0 0
      %7395 = vmatprep.subr.bf16.mxu0 0
      %7396 = vmatpush2.bf16.msra.mxu0 0
      %7397 = vmatprep.subr.bf16.mxu0 0
      %7398 = vmatpush2.bf16.msra.mxu0 0
      %7399 = vmatprep.subr.bf16.mxu0 0
      %7400 = vmatpush2.bf16.msra.mxu0 0
      %7401 = vmatprep.subr.bf16.mxu0 0
      %7402 = vmatpush2.bf16.msra.mxu0 0
      %7403 = vmatprep.subr.bf16.mxu0 0
      %7404 = vmatpush2.bf16.msra.mxu0 0
      %7405 = vmatprep.subr.bf16.mxu0 0
      %7406 = vmatpush2.bf16.msra.mxu0 0
      %7407 = vmatprep.subr.bf16.mxu0 0
      %7408 = vmatpush2.bf16.msra.mxu0 0
      %7409 = vmatprep.mubr.bf16.mxu0 0
      %7410 = vmatmul.mubr.bf16.gmra.mxu0 %v7375
      %v7411 = vpop.f32.mrf.mxu0
      %v7412 = vadd.f32 0.0, %v7411
      %v7413 = vpop.f32.mrf.mxu0
      %v7414 = vpop.f32.mrf.mxu0
      %v7415 = vpop.f32.mrf.mxu0
      %7416 = vdwg.mxu0
      %7417 = vrot.lane.b32.xlu0 %v1035, 72
      %v7418 = vpop.permute.xlu0 %7417
      %v7421 = vsel %vm1786, %v7311, 0
      %7423 = vmatprep.subr.bf16.mxu0 0
      %7424 = vmatpush1.bf16.msra.mxu0 0
      %7425 = vmatprep.subr.bf16.mxu0 0
      %7426 = vmatpush1.bf16.msra.mxu0 0
      %7427 = vmatprep.subr.bf16.mxu0 0
      %7428 = vmatpush1.bf16.msra.mxu0 0
      %7429 = vmatprep.subr.bf16.mxu0 0
      %7430 = vmatpush1.bf16.msra.mxu0 0
      %7431 = vmatprep.subr.bf16.mxu0 0
      %7432 = vmatpush1.bf16.msra.mxu0 0
      %7433 = vmatprep.subr.bf16.mxu0 0
      %7434 = vmatpush1.bf16.msra.mxu0 0
      %7435 = vmatprep.subr.bf16.mxu0 0
      %7436 = vmatpush1.bf16.msra.mxu0 0
      %7437 = vmatprep.subr.bf16.mxu0 0
      %7438 = vmatpush1.bf16.msra.mxu0 %v7418
      %7439 = vmatprep.subr.bf16.mxu0 0
      %7440 = vmatpush2.bf16.msra.mxu0 0
      %7441 = vmatprep.subr.bf16.mxu0 0
      %7442 = vmatpush2.bf16.msra.mxu0 0
      %7443 = vmatprep.subr.bf16.mxu0 0
      %7444 = vmatpush2.bf16.msra.mxu0 0
      %7445 = vmatprep.subr.bf16.mxu0 0
      %7446 = vmatpush2.bf16.msra.mxu0 0
      %7447 = vmatprep.subr.bf16.mxu0 0
      %7448 = vmatpush2.bf16.msra.mxu0 0
      %7449 = vmatprep.subr.bf16.mxu0 0
      %7450 = vmatpush2.bf16.msra.mxu0 0
      %7451 = vmatprep.subr.bf16.mxu0 0
      %7452 = vmatpush2.bf16.msra.mxu0 0
      %7453 = vmatprep.subr.bf16.mxu0 0
      %7454 = vmatpush2.bf16.msra.mxu0 0
      %7455 = vmatprep.mubr.bf16.mxu0 0
      %7456 = vmatmul.mubr.bf16.gmra.mxu0 %v7421
      %v7457 = vpop.f32.mrf.mxu0
      %v7458 = vadd.f32 0.0, %v7457
      %v7459 = vpop.f32.mrf.mxu0
      %v7460 = vpop.f32.mrf.mxu0
      %v7461 = vpop.f32.mrf.mxu0
      %7462 = vdwg.mxu0
      %7463 = vrot.lane.b32.xlu0 %v1036, 72
      %v7464 = vpop.permute.xlu0 %7463
      %v7467 = vsel %vm1786, %v7312, 0
      %7469 = vmatprep.subr.bf16.mxu0 0
      %7470 = vmatpush1.bf16.msra.mxu0 0
      %7471 = vmatprep.subr.bf16.mxu0 0
      %7472 = vmatpush1.bf16.msra.mxu0 0
      %7473 = vmatprep.subr.bf16.mxu0 0
      %7474 = vmatpush1.bf16.msra.mxu0 0
      %7475 = vmatprep.subr.bf16.mxu0 0
      %7476 = vmatpush1.bf16.msra.mxu0 0
      %7477 = vmatprep.subr.bf16.mxu0 0
      %7478 = vmatpush1.bf16.msra.mxu0 0
      %7479 = vmatprep.subr.bf16.mxu0 0
      %7480 = vmatpush1.bf16.msra.mxu0 0
      %7481 = vmatprep.subr.bf16.mxu0 0
      %7482 = vmatpush1.bf16.msra.mxu0 0
      %7483 = vmatprep.subr.bf16.mxu0 0
      %7484 = vmatpush1.bf16.msra.mxu0 %v7464
      %7485 = vmatprep.subr.bf16.mxu0 0
      %7486 = vmatpush2.bf16.msra.mxu0 0
      %7487 = vmatprep.subr.bf16.mxu0 0
      %7488 = vmatpush2.bf16.msra.mxu0 0
      %7489 = vmatprep.subr.bf16.mxu0 0
      %7490 = vmatpush2.bf16.msra.mxu0 0
      %7491 = vmatprep.subr.bf16.mxu0 0
      %7492 = vmatpush2.bf16.msra.mxu0 0
      %7493 = vmatprep.subr.bf16.mxu0 0
      %7494 = vmatpush2.bf16.msra.mxu0 0
      %7495 = vmatprep.subr.bf16.mxu0 0
      %7496 = vmatpush2.bf16.msra.mxu0 0
      %7497 = vmatprep.subr.bf16.mxu0 0
      %7498 = vmatpush2.bf16.msra.mxu0 0
      %7499 = vmatprep.subr.bf16.mxu0 0
      %7500 = vmatpush2.bf16.msra.mxu0 0
      %7501 = vmatprep.mubr.bf16.mxu0 0
      %7502 = vmatmul.mubr.bf16.gmra.mxu0 %v7467
      %v7503 = vpop.f32.mrf.mxu0
      %v7504 = vadd.f32 0.0, %v7503
      %v7505 = vpop.f32.mrf.mxu0
      %v7506 = vpop.f32.mrf.mxu0
      %v7507 = vpop.f32.mrf.mxu0
      %7508 = vdwg.mxu0
      %7509 = vrot.lane.b32.xlu0 %v1037, 72
      %v7510 = vpop.permute.xlu0 %7509
      %v7513 = vsel %vm1786, %v7313, 0
      %7515 = vmatprep.subr.bf16.mxu0 0
      %7516 = vmatpush1.bf16.msra.mxu0 0
      %7517 = vmatprep.subr.bf16.mxu0 0
      %7518 = vmatpush1.bf16.msra.mxu0 0
      %7519 = vmatprep.subr.bf16.mxu0 0
      %7520 = vmatpush1.bf16.msra.mxu0 0
      %7521 = vmatprep.subr.bf16.mxu0 0
      %7522 = vmatpush1.bf16.msra.mxu0 0
      %7523 = vmatprep.subr.bf16.mxu0 0
      %7524 = vmatpush1.bf16.msra.mxu0 0
      %7525 = vmatprep.subr.bf16.mxu0 0
      %7526 = vmatpush1.bf16.msra.mxu0 0
      %7527 = vmatprep.subr.bf16.mxu0 0
      %7528 = vmatpush1.bf16.msra.mxu0 0
      %7529 = vmatprep.subr.bf16.mxu0 0
      %7530 = vmatpush1.bf16.msra.mxu0 %v7510
      %7531 = vmatprep.subr.bf16.mxu0 0
      %7532 = vmatpush2.bf16.msra.mxu0 0
      %7533 = vmatprep.subr.bf16.mxu0 0
      %7534 = vmatpush2.bf16.msra.mxu0 0
      %7535 = vmatprep.subr.bf16.mxu0 0
      %7536 = vmatpush2.bf16.msra.mxu0 0
      %7537 = vmatprep.subr.bf16.mxu0 0
      %7538 = vmatpush2.bf16.msra.mxu0 0
      %7539 = vmatprep.subr.bf16.mxu0 0
      %7540 = vmatpush2.bf16.msra.mxu0 0
      %7541 = vmatprep.subr.bf16.mxu0 0
      %7542 = vmatpush2.bf16.msra.mxu0 0
      %7543 = vmatprep.subr.bf16.mxu0 0
      %7544 = vmatpush2.bf16.msra.mxu0 0
      %7545 = vmatprep.subr.bf16.mxu0 0
      %7546 = vmatpush2.bf16.msra.mxu0 0
      %7547 = vmatprep.mubr.bf16.mxu0 0
      %7548 = vmatmul.mubr.bf16.gmra.mxu0 %v7513
      %v7549 = vpop.f32.mrf.mxu0
      %v7550 = vadd.f32 0.0, %v7549
      %v7551 = vpop.f32.mrf.mxu0
      %v7552 = vpop.f32.mrf.mxu0
      %v7553 = vpop.f32.mrf.mxu0
      %7554 = vdwg.mxu0
      %7555 = vrot.lane.b32.xlu0 %v1038, 72
      %v7556 = vpop.permute.xlu0 %7555
      %v7559 = vsel %vm1786, %v7314, 0
      %7561 = vmatprep.subr.bf16.mxu0 0
      %7562 = vmatpush1.bf16.msra.mxu0 0
      %7563 = vmatprep.subr.bf16.mxu0 0
      %7564 = vmatpush1.bf16.msra.mxu0 0
      %7565 = vmatprep.subr.bf16.mxu0 0
      %7566 = vmatpush1.bf16.msra.mxu0 0
      %7567 = vmatprep.subr.bf16.mxu0 0
      %7568 = vmatpush1.bf16.msra.mxu0 0
      %7569 = vmatprep.subr.bf16.mxu0 0
      %7570 = vmatpush1.bf16.msra.mxu0 0
      %7571 = vmatprep.subr.bf16.mxu0 0
      %7572 = vmatpush1.bf16.msra.mxu0 0
      %7573 = vmatprep.subr.bf16.mxu0 0
      %7574 = vmatpush1.bf16.msra.mxu0 0
      %7575 = vmatprep.subr.bf16.mxu0 0
      %7576 = vmatpush1.bf16.msra.mxu0 %v7556
      %7577 = vmatprep.subr.bf16.mxu0 0
      %7578 = vmatpush2.bf16.msra.mxu0 0
      %7579 = vmatprep.subr.bf16.mxu0 0
      %7580 = vmatpush2.bf16.msra.mxu0 0
      %7581 = vmatprep.subr.bf16.mxu0 0
      %7582 = vmatpush2.bf16.msra.mxu0 0
      %7583 = vmatprep.subr.bf16.mxu0 0
      %7584 = vmatpush2.bf16.msra.mxu0 0
      %7585 = vmatprep.subr.bf16.mxu0 0
      %7586 = vmatpush2.bf16.msra.mxu0 0
      %7587 = vmatprep.subr.bf16.mxu0 0
      %7588 = vmatpush2.bf16.msra.mxu0 0
      %7589 = vmatprep.subr.bf16.mxu0 0
      %7590 = vmatpush2.bf16.msra.mxu0 0
      %7591 = vmatprep.subr.bf16.mxu0 0
      %7592 = vmatpush2.bf16.msra.mxu0 0
      %7593 = vmatprep.mubr.bf16.mxu0 0
      %7594 = vmatmul.mubr.bf16.gmra.mxu0 %v7559
      %v7595 = vpop.f32.mrf.mxu0
      %v7596 = vadd.f32 0.0, %v7595
      %v7597 = vpop.f32.mrf.mxu0
      %v7598 = vpop.f32.mrf.mxu0
      %v7599 = vpop.f32.mrf.mxu0
      %7600 = vdwg.mxu0
      %7601 = vrot.lane.b32.xlu0 %v1039, 72
      %v7602 = vpop.permute.xlu0 %7601
      %v7605 = vsel %vm1786, %v7315, 0
      %7607 = vmatprep.subr.bf16.mxu0 0
      %7608 = vmatpush1.bf16.msra.mxu0 0
      %7609 = vmatprep.subr.bf16.mxu0 0
      %7610 = vmatpush1.bf16.msra.mxu0 0
      %7611 = vmatprep.subr.bf16.mxu0 0
      %7612 = vmatpush1.bf16.msra.mxu0 0
      %7613 = vmatprep.subr.bf16.mxu0 0
      %7614 = vmatpush1.bf16.msra.mxu0 0
      %7615 = vmatprep.subr.bf16.mxu0 0
      %7616 = vmatpush1.bf16.msra.mxu0 0
      %7617 = vmatprep.subr.bf16.mxu0 0
      %7618 = vmatpush1.bf16.msra.mxu0 0
      %7619 = vmatprep.subr.bf16.mxu0 0
      %7620 = vmatpush1.bf16.msra.mxu0 0
      %7621 = vmatprep.subr.bf16.mxu0 0
      %7622 = vmatpush1.bf16.msra.mxu0 %v7602
      %7623 = vmatprep.subr.bf16.mxu0 0
      %7624 = vmatpush2.bf16.msra.mxu0 0
      %7625 = vmatprep.subr.bf16.mxu0 0
      %7626 = vmatpush2.bf16.msra.mxu0 0
      %7627 = vmatprep.subr.bf16.mxu0 0
      %7628 = vmatpush2.bf16.msra.mxu0 0
      %7629 = vmatprep.subr.bf16.mxu0 0
      %7630 = vmatpush2.bf16.msra.mxu0 0
      %7631 = vmatprep.subr.bf16.mxu0 0
      %7632 = vmatpush2.bf16.msra.mxu0 0
      %7633 = vmatprep.subr.bf16.mxu0 0
      %7634 = vmatpush2.bf16.msra.mxu0 0
      %7635 = vmatprep.subr.bf16.mxu0 0
      %7636 = vmatpush2.bf16.msra.mxu0 0
      %7637 = vmatprep.subr.bf16.mxu0 0
      %7638 = vmatpush2.bf16.msra.mxu0 0
      %7639 = vmatprep.mubr.bf16.mxu0 0
      %7640 = vmatmul.mubr.bf16.gmra.mxu0 %v7605
      %v7641 = vpop.f32.mrf.mxu0
      %v7642 = vadd.f32 0.0, %v7641
      %v7643 = vpop.f32.mrf.mxu0
      %v7644 = vpop.f32.mrf.mxu0
      %v7645 = vpop.f32.mrf.mxu0
      %7646 = vdwg.mxu0
      %7647 = vrot.lane.b32.xlu0 %v1040, 72
      %v7648 = vpop.permute.xlu0 %7647
      %v7651 = vsel %vm1786, %v7316, 0
      %7653 = vmatprep.subr.bf16.mxu0 0
      %7654 = vmatpush1.bf16.msra.mxu0 0
      %7655 = vmatprep.subr.bf16.mxu0 0
      %7656 = vmatpush1.bf16.msra.mxu0 0
      %7657 = vmatprep.subr.bf16.mxu0 0
      %7658 = vmatpush1.bf16.msra.mxu0 0
      %7659 = vmatprep.subr.bf16.mxu0 0
      %7660 = vmatpush1.bf16.msra.mxu0 0
      %7661 = vmatprep.subr.bf16.mxu0 0
      %7662 = vmatpush1.bf16.msra.mxu0 0
      %7663 = vmatprep.subr.bf16.mxu0 0
      %7664 = vmatpush1.bf16.msra.mxu0 0
      %7665 = vmatprep.subr.bf16.mxu0 0
      %7666 = vmatpush1.bf16.msra.mxu0 0
      %7667 = vmatprep.subr.bf16.mxu0 0
      %7668 = vmatpush1.bf16.msra.mxu0 %v7648
      %7669 = vmatprep.subr.bf16.mxu0 0
      %7670 = vmatpush2.bf16.msra.mxu0 0
      %7671 = vmatprep.subr.bf16.mxu0 0
      %7672 = vmatpush2.bf16.msra.mxu0 0
      %7673 = vmatprep.subr.bf16.mxu0 0
      %7674 = vmatpush2.bf16.msra.mxu0 0
      %7675 = vmatprep.subr.bf16.mxu0 0
      %7676 = vmatpush2.bf16.msra.mxu0 0
      %7677 = vmatprep.subr.bf16.mxu0 0
      %7678 = vmatpush2.bf16.msra.mxu0 0
      %7679 = vmatprep.subr.bf16.mxu0 0
      %7680 = vmatpush2.bf16.msra.mxu0 0
      %7681 = vmatprep.subr.bf16.mxu0 0
      %7682 = vmatpush2.bf16.msra.mxu0 0
      %7683 = vmatprep.subr.bf16.mxu0 0
      %7684 = vmatpush2.bf16.msra.mxu0 0
      %7685 = vmatprep.mubr.bf16.mxu0 0
      %7686 = vmatmul.mubr.bf16.gmra.mxu0 %v7651
      %v7687 = vpop.f32.mrf.mxu0
      %v7688 = vadd.f32 0.0, %v7687
      %v7689 = vpop.f32.mrf.mxu0
      %v7690 = vpop.f32.mrf.mxu0
      %v7691 = vpop.f32.mrf.mxu0
      %7692 = vdwg.mxu0
      %7693 = vrot.lane.b32.xlu0 %v1041, 72
      %v7694 = vpop.permute.xlu0 %7693
      %v7697 = vsel %vm1786, %v7317, 0
      %7699 = vmatprep.subr.bf16.mxu0 0
      %7700 = vmatpush1.bf16.msra.mxu0 0
      %7701 = vmatprep.subr.bf16.mxu0 0
      %7702 = vmatpush1.bf16.msra.mxu0 0
      %7703 = vmatprep.subr.bf16.mxu0 0
      %7704 = vmatpush1.bf16.msra.mxu0 0
      %7705 = vmatprep.subr.bf16.mxu0 0
      %7706 = vmatpush1.bf16.msra.mxu0 0
      %7707 = vmatprep.subr.bf16.mxu0 0
      %7708 = vmatpush1.bf16.msra.mxu0 0
      %7709 = vmatprep.subr.bf16.mxu0 0
      %7710 = vmatpush1.bf16.msra.mxu0 0
      %7711 = vmatprep.subr.bf16.mxu0 0
      %7712 = vmatpush1.bf16.msra.mxu0 0
      %7713 = vmatprep.subr.bf16.mxu0 0
      %7714 = vmatpush1.bf16.msra.mxu0 %v7694
      %7715 = vmatprep.subr.bf16.mxu0 0
      %7716 = vmatpush2.bf16.msra.mxu0 0
      %7717 = vmatprep.subr.bf16.mxu0 0
      %7718 = vmatpush2.bf16.msra.mxu0 0
      %7719 = vmatprep.subr.bf16.mxu0 0
      %7720 = vmatpush2.bf16.msra.mxu0 0
      %7721 = vmatprep.subr.bf16.mxu0 0
      %7722 = vmatpush2.bf16.msra.mxu0 0
      %7723 = vmatprep.subr.bf16.mxu0 0
      %7724 = vmatpush2.bf16.msra.mxu0 0
      %7725 = vmatprep.subr.bf16.mxu0 0
      %7726 = vmatpush2.bf16.msra.mxu0 0
      %7727 = vmatprep.subr.bf16.mxu0 0
      %7728 = vmatpush2.bf16.msra.mxu0 0
      %7729 = vmatprep.subr.bf16.mxu0 0
      %7730 = vmatpush2.bf16.msra.mxu0 0
      %7731 = vmatprep.mubr.bf16.mxu0 0
      %7732 = vmatmul.mubr.bf16.gmra.mxu0 %v7697
      %v7733 = vpop.f32.mrf.mxu0
      %v7734 = vadd.f32 0.0, %v7733
      %v7735 = vpop.f32.mrf.mxu0
      %v7736 = vpop.f32.mrf.mxu0
      %v7737 = vpop.f32.mrf.mxu0
      %7738 = vdwg.mxu0
      %7739 = vrot.lane.b32.xlu0 %v1042, 72
      %v7740 = vpop.permute.xlu0 %7739
      %v7743 = vsel %vm1786, %v7318, 0
      %7745 = vmatprep.subr.bf16.mxu0 0
      %7746 = vmatpush1.bf16.msra.mxu0 0
      %7747 = vmatprep.subr.bf16.mxu0 0
      %7748 = vmatpush1.bf16.msra.mxu0 0
      %7749 = vmatprep.subr.bf16.mxu0 0
      %7750 = vmatpush1.bf16.msra.mxu0 0
      %7751 = vmatprep.subr.bf16.mxu0 0
      %7752 = vmatpush1.bf16.msra.mxu0 0
      %7753 = vmatprep.subr.bf16.mxu0 0
      %7754 = vmatpush1.bf16.msra.mxu0 0
      %7755 = vmatprep.subr.bf16.mxu0 0
      %7756 = vmatpush1.bf16.msra.mxu0 0
      %7757 = vmatprep.subr.bf16.mxu0 0
      %7758 = vmatpush1.bf16.msra.mxu0 0
      %7759 = vmatprep.subr.bf16.mxu0 0
      %7760 = vmatpush1.bf16.msra.mxu0 %v7740
      %7761 = vmatprep.subr.bf16.mxu0 0
      %7762 = vmatpush2.bf16.msra.mxu0 0
      %7763 = vmatprep.subr.bf16.mxu0 0
      %7764 = vmatpush2.bf16.msra.mxu0 0
      %7765 = vmatprep.subr.bf16.mxu0 0
      %7766 = vmatpush2.bf16.msra.mxu0 0
      %7767 = vmatprep.subr.bf16.mxu0 0
      %7768 = vmatpush2.bf16.msra.mxu0 0
      %7769 = vmatprep.subr.bf16.mxu0 0
      %7770 = vmatpush2.bf16.msra.mxu0 0
      %7771 = vmatprep.subr.bf16.mxu0 0
      %7772 = vmatpush2.bf16.msra.mxu0 0
      %7773 = vmatprep.subr.bf16.mxu0 0
      %7774 = vmatpush2.bf16.msra.mxu0 0
      %7775 = vmatprep.subr.bf16.mxu0 0
      %7776 = vmatpush2.bf16.msra.mxu0 0
      %7777 = vmatprep.mubr.bf16.mxu0 0
      %7778 = vmatmul.mubr.bf16.gmra.mxu0 %v7743
      %v7779 = vpop.f32.mrf.mxu0
      %v7780 = vadd.f32 0.0, %v7779
      %v7781 = vpop.f32.mrf.mxu0
      %v7782 = vpop.f32.mrf.mxu0
      %v7783 = vpop.f32.mrf.mxu0
      %7784 = vdwg.mxu0
      %7785 = vrot.lane.b32.xlu0 %v1043, 72
      %v7786 = vpop.permute.xlu0 %7785
      %v7789 = vsel %vm1786, %v7319, 0
      %7791 = vmatprep.subr.bf16.mxu0 0
      %7792 = vmatpush1.bf16.msra.mxu0 0
      %7793 = vmatprep.subr.bf16.mxu0 0
      %7794 = vmatpush1.bf16.msra.mxu0 0
      %7795 = vmatprep.subr.bf16.mxu0 0
      %7796 = vmatpush1.bf16.msra.mxu0 0
      %7797 = vmatprep.subr.bf16.mxu0 0
      %7798 = vmatpush1.bf16.msra.mxu0 0
      %7799 = vmatprep.subr.bf16.mxu0 0
      %7800 = vmatpush1.bf16.msra.mxu0 0
      %7801 = vmatprep.subr.bf16.mxu0 0
      %7802 = vmatpush1.bf16.msra.mxu0 0
      %7803 = vmatprep.subr.bf16.mxu0 0
      %7804 = vmatpush1.bf16.msra.mxu0 0
      %7805 = vmatprep.subr.bf16.mxu0 0
      %7806 = vmatpush1.bf16.msra.mxu0 %v7786
      %7807 = vmatprep.subr.bf16.mxu0 0
      %7808 = vmatpush2.bf16.msra.mxu0 0
      %7809 = vmatprep.subr.bf16.mxu0 0
      %7810 = vmatpush2.bf16.msra.mxu0 0
      %7811 = vmatprep.subr.bf16.mxu0 0
      %7812 = vmatpush2.bf16.msra.mxu0 0
      %7813 = vmatprep.subr.bf16.mxu0 0
      %7814 = vmatpush2.bf16.msra.mxu0 0
      %7815 = vmatprep.subr.bf16.mxu0 0
      %7816 = vmatpush2.bf16.msra.mxu0 0
      %7817 = vmatprep.subr.bf16.mxu0 0
      %7818 = vmatpush2.bf16.msra.mxu0 0
      %7819 = vmatprep.subr.bf16.mxu0 0
      %7820 = vmatpush2.bf16.msra.mxu0 0
      %7821 = vmatprep.subr.bf16.mxu0 0
      %7822 = vmatpush2.bf16.msra.mxu0 0
      %7823 = vmatprep.mubr.bf16.mxu0 0
      %7824 = vmatmul.mubr.bf16.gmra.mxu0 %v7789
      %v7825 = vpop.f32.mrf.mxu0
      %v7826 = vadd.f32 0.0, %v7825
      %v7827 = vpop.f32.mrf.mxu0
      %v7828 = vpop.f32.mrf.mxu0
      %v7829 = vpop.f32.mrf.mxu0
      %7830 = vdwg.mxu0
      %7831 = vrot.lane.b32.xlu0 %v1044, 72
      %v7832 = vpop.permute.xlu0 %7831
      %v7835 = vsel %vm1786, %v7320, 0
      %7837 = vmatprep.subr.bf16.mxu0 0
      %7838 = vmatpush1.bf16.msra.mxu0 0
      %7839 = vmatprep.subr.bf16.mxu0 0
      %7840 = vmatpush1.bf16.msra.mxu0 0
      %7841 = vmatprep.subr.bf16.mxu0 0
      %7842 = vmatpush1.bf16.msra.mxu0 0
      %7843 = vmatprep.subr.bf16.mxu0 0
      %7844 = vmatpush1.bf16.msra.mxu0 0
      %7845 = vmatprep.subr.bf16.mxu0 0
      %7846 = vmatpush1.bf16.msra.mxu0 0
      %7847 = vmatprep.subr.bf16.mxu0 0
      %7848 = vmatpush1.bf16.msra.mxu0 0
      %7849 = vmatprep.subr.bf16.mxu0 0
      %7850 = vmatpush1.bf16.msra.mxu0 0
      %7851 = vmatprep.subr.bf16.mxu0 0
      %7852 = vmatpush1.bf16.msra.mxu0 %v7832
      %7853 = vmatprep.subr.bf16.mxu0 0
      %7854 = vmatpush2.bf16.msra.mxu0 0
      %7855 = vmatprep.subr.bf16.mxu0 0
      %7856 = vmatpush2.bf16.msra.mxu0 0
      %7857 = vmatprep.subr.bf16.mxu0 0
      %7858 = vmatpush2.bf16.msra.mxu0 0
      %7859 = vmatprep.subr.bf16.mxu0 0
      %7860 = vmatpush2.bf16.msra.mxu0 0
      %7861 = vmatprep.subr.bf16.mxu0 0
      %7862 = vmatpush2.bf16.msra.mxu0 0
      %7863 = vmatprep.subr.bf16.mxu0 0
      %7864 = vmatpush2.bf16.msra.mxu0 0
      %7865 = vmatprep.subr.bf16.mxu0 0
      %7866 = vmatpush2.bf16.msra.mxu0 0
      %7867 = vmatprep.subr.bf16.mxu0 0
      %7868 = vmatpush2.bf16.msra.mxu0 0
      %7869 = vmatprep.mubr.bf16.mxu0 0
      %7870 = vmatmul.mubr.bf16.gmra.mxu0 %v7835
      %v7871 = vpop.f32.mrf.mxu0
      %v7872 = vadd.f32 0.0, %v7871
      %v7873 = vpop.f32.mrf.mxu0
      %v7874 = vpop.f32.mrf.mxu0
      %v7875 = vpop.f32.mrf.mxu0
      %7876 = vdwg.mxu0
      %7877 = vrot.lane.b32.xlu0 %v1045, 72
      %v7878 = vpop.permute.xlu0 %7877
      %v7881 = vsel %vm1786, %v7321, 0
      %7883 = vmatprep.subr.bf16.mxu0 0
      %7884 = vmatpush1.bf16.msra.mxu0 0
      %7885 = vmatprep.subr.bf16.mxu0 0
      %7886 = vmatpush1.bf16.msra.mxu0 0
      %7887 = vmatprep.subr.bf16.mxu0 0
      %7888 = vmatpush1.bf16.msra.mxu0 0
      %7889 = vmatprep.subr.bf16.mxu0 0
      %7890 = vmatpush1.bf16.msra.mxu0 0
      %7891 = vmatprep.subr.bf16.mxu0 0
      %7892 = vmatpush1.bf16.msra.mxu0 0
      %7893 = vmatprep.subr.bf16.mxu0 0
      %7894 = vmatpush1.bf16.msra.mxu0 0
      %7895 = vmatprep.subr.bf16.mxu0 0
      %7896 = vmatpush1.bf16.msra.mxu0 0
      %7897 = vmatprep.subr.bf16.mxu0 0
      %7898 = vmatpush1.bf16.msra.mxu0 %v7878
      %7899 = vmatprep.subr.bf16.mxu0 0
      %7900 = vmatpush2.bf16.msra.mxu0 0
      %7901 = vmatprep.subr.bf16.mxu0 0
      %7902 = vmatpush2.bf16.msra.mxu0 0
      %7903 = vmatprep.subr.bf16.mxu0 0
      %7904 = vmatpush2.bf16.msra.mxu0 0
      %7905 = vmatprep.subr.bf16.mxu0 0
      %7906 = vmatpush2.bf16.msra.mxu0 0
      %7907 = vmatprep.subr.bf16.mxu0 0
      %7908 = vmatpush2.bf16.msra.mxu0 0
      %7909 = vmatprep.subr.bf16.mxu0 0
      %7910 = vmatpush2.bf16.msra.mxu0 0
      %7911 = vmatprep.subr.bf16.mxu0 0
      %7912 = vmatpush2.bf16.msra.mxu0 0
      %7913 = vmatprep.subr.bf16.mxu0 0
      %7914 = vmatpush2.bf16.msra.mxu0 0
      %7915 = vmatprep.mubr.bf16.mxu0 0
      %7916 = vmatmul.mubr.bf16.gmra.mxu0 %v7881
      %v7917 = vpop.f32.mrf.mxu0
      %v7918 = vadd.f32 0.0, %v7917
      %v7919 = vpop.f32.mrf.mxu0
      %v7920 = vpop.f32.mrf.mxu0
      %v7921 = vpop.f32.mrf.mxu0
      %7922 = vdwg.mxu0
      %7923 = vrot.lane.b32.xlu0 %v1046, 72
      %v7924 = vpop.permute.xlu0 %7923
      %v7927 = vsel %vm1786, %v7322, 0
      %7929 = vmatprep.subr.bf16.mxu0 0
      %7930 = vmatpush1.bf16.msra.mxu0 0
      %7931 = vmatprep.subr.bf16.mxu0 0
      %7932 = vmatpush1.bf16.msra.mxu0 0
      %7933 = vmatprep.subr.bf16.mxu0 0
      %7934 = vmatpush1.bf16.msra.mxu0 0
      %7935 = vmatprep.subr.bf16.mxu0 0
      %7936 = vmatpush1.bf16.msra.mxu0 0
      %7937 = vmatprep.subr.bf16.mxu0 0
      %7938 = vmatpush1.bf16.msra.mxu0 0
      %7939 = vmatprep.subr.bf16.mxu0 0
      %7940 = vmatpush1.bf16.msra.mxu0 0
      %7941 = vmatprep.subr.bf16.mxu0 0
      %7942 = vmatpush1.bf16.msra.mxu0 0
      %7943 = vmatprep.subr.bf16.mxu0 0
      %7944 = vmatpush1.bf16.msra.mxu0 %v7924
      %7945 = vmatprep.subr.bf16.mxu0 0
      %7946 = vmatpush2.bf16.msra.mxu0 0
      %7947 = vmatprep.subr.bf16.mxu0 0
      %7948 = vmatpush2.bf16.msra.mxu0 0
      %7949 = vmatprep.subr.bf16.mxu0 0
      %7950 = vmatpush2.bf16.msra.mxu0 0
      %7951 = vmatprep.subr.bf16.mxu0 0
      %7952 = vmatpush2.bf16.msra.mxu0 0
      %7953 = vmatprep.subr.bf16.mxu0 0
      %7954 = vmatpush2.bf16.msra.mxu0 0
      %7955 = vmatprep.subr.bf16.mxu0 0
      %7956 = vmatpush2.bf16.msra.mxu0 0
      %7957 = vmatprep.subr.bf16.mxu0 0
      %7958 = vmatpush2.bf16.msra.mxu0 0
      %7959 = vmatprep.subr.bf16.mxu0 0
      %7960 = vmatpush2.bf16.msra.mxu0 0
      %7961 = vmatprep.mubr.bf16.mxu0 0
      %7962 = vmatmul.mubr.bf16.gmra.mxu0 %v7927
      %v7963 = vpop.f32.mrf.mxu0
      %v7964 = vadd.f32 0.0, %v7963
      %v7965 = vpop.f32.mrf.mxu0
      %v7966 = vpop.f32.mrf.mxu0
      %v7967 = vpop.f32.mrf.mxu0
      %7968 = vdwg.mxu0
      %7969 = vrot.lane.b32.xlu0 %v1047, 72
      %v7970 = vpop.permute.xlu0 %7969
      %v7973 = vsel %vm1786, %v7323, 0
      %7975 = vmatprep.subr.bf16.mxu0 0
      %7976 = vmatpush1.bf16.msra.mxu0 0
      %7977 = vmatprep.subr.bf16.mxu0 0
      %7978 = vmatpush1.bf16.msra.mxu0 0
      %7979 = vmatprep.subr.bf16.mxu0 0
      %7980 = vmatpush1.bf16.msra.mxu0 0
      %7981 = vmatprep.subr.bf16.mxu0 0
      %7982 = vmatpush1.bf16.msra.mxu0 0
      %7983 = vmatprep.subr.bf16.mxu0 0
      %7984 = vmatpush1.bf16.msra.mxu0 0
      %7985 = vmatprep.subr.bf16.mxu0 0
      %7986 = vmatpush1.bf16.msra.mxu0 0
      %7987 = vmatprep.subr.bf16.mxu0 0
      %7988 = vmatpush1.bf16.msra.mxu0 0
      %7989 = vmatprep.subr.bf16.mxu0 0
      %7990 = vmatpush1.bf16.msra.mxu0 %v7970
      %7991 = vmatprep.subr.bf16.mxu0 0
      %7992 = vmatpush2.bf16.msra.mxu0 0
      %7993 = vmatprep.subr.bf16.mxu0 0
      %7994 = vmatpush2.bf16.msra.mxu0 0
      %7995 = vmatprep.subr.bf16.mxu0 0
      %7996 = vmatpush2.bf16.msra.mxu0 0
      %7997 = vmatprep.subr.bf16.mxu0 0
      %7998 = vmatpush2.bf16.msra.mxu0 0
      %7999 = vmatprep.subr.bf16.mxu0 0
      %8000 = vmatpush2.bf16.msra.mxu0 0
      %8001 = vmatprep.subr.bf16.mxu0 0
      %8002 = vmatpush2.bf16.msra.mxu0 0
      %8003 = vmatprep.subr.bf16.mxu0 0
      %8004 = vmatpush2.bf16.msra.mxu0 0
      %8005 = vmatprep.subr.bf16.mxu0 0
      %8006 = vmatpush2.bf16.msra.mxu0 0
      %8007 = vmatprep.mubr.bf16.mxu0 0
      %8008 = vmatmul.mubr.bf16.gmra.mxu0 %v7973
      %v8009 = vpop.f32.mrf.mxu0
      %v8010 = vadd.f32 0.0, %v8009
      %v8011 = vpop.f32.mrf.mxu0
      %v8012 = vpop.f32.mrf.mxu0
      %v8013 = vpop.f32.mrf.mxu0
      %8014 = vdwg.mxu0
      %8015 = vrot.lane.b32.xlu0 %v1048, 72
      %v8016 = vpop.permute.xlu0 %8015
      %v8019 = vsel %vm1786, %v7324, 0
      %8021 = vmatprep.subr.bf16.mxu0 0
      %8022 = vmatpush1.bf16.msra.mxu0 0
      %8023 = vmatprep.subr.bf16.mxu0 0
      %8024 = vmatpush1.bf16.msra.mxu0 0
      %8025 = vmatprep.subr.bf16.mxu0 0
      %8026 = vmatpush1.bf16.msra.mxu0 0
      %8027 = vmatprep.subr.bf16.mxu0 0
      %8028 = vmatpush1.bf16.msra.mxu0 0
      %8029 = vmatprep.subr.bf16.mxu0 0
      %8030 = vmatpush1.bf16.msra.mxu0 0
      %8031 = vmatprep.subr.bf16.mxu0 0
      %8032 = vmatpush1.bf16.msra.mxu0 0
      %8033 = vmatprep.subr.bf16.mxu0 0
      %8034 = vmatpush1.bf16.msra.mxu0 0
      %8035 = vmatprep.subr.bf16.mxu0 0
      %8036 = vmatpush1.bf16.msra.mxu0 %v8016
      %8037 = vmatprep.subr.bf16.mxu0 0
      %8038 = vmatpush2.bf16.msra.mxu0 0
      %8039 = vmatprep.subr.bf16.mxu0 0
      %8040 = vmatpush2.bf16.msra.mxu0 0
      %8041 = vmatprep.subr.bf16.mxu0 0
      %8042 = vmatpush2.bf16.msra.mxu0 0
      %8043 = vmatprep.subr.bf16.mxu0 0
      %8044 = vmatpush2.bf16.msra.mxu0 0
      %8045 = vmatprep.subr.bf16.mxu0 0
      %8046 = vmatpush2.bf16.msra.mxu0 0
      %8047 = vmatprep.subr.bf16.mxu0 0
      %8048 = vmatpush2.bf16.msra.mxu0 0
      %8049 = vmatprep.subr.bf16.mxu0 0
      %8050 = vmatpush2.bf16.msra.mxu0 0
      %8051 = vmatprep.subr.bf16.mxu0 0
      %8052 = vmatpush2.bf16.msra.mxu0 0
      %8053 = vmatprep.mubr.bf16.mxu0 0
      %8054 = vmatmul.mubr.bf16.gmra.mxu0 %v8019
      %v8055 = vpop.f32.mrf.mxu0
      %v8056 = vadd.f32 0.0, %v8055
      %v8057 = vpop.f32.mrf.mxu0
      %v8058 = vpop.f32.mrf.mxu0
      %v8059 = vpop.f32.mrf.mxu0
      %8060 = vdwg.mxu0
      %v8061 = vrcp.pop %v7263
      %v8062 = vrcp.pop %v7266
      %v8063 = vrcp.pop %v7269
      %v8064 = vrcp.pop %v7272
      %v8065 = vrcp.pop %v7275
      %v8066 = vrcp.pop %v7278
      %v8067 = vrcp.pop %v7281
      %v8068 = vrcp.pop %v7284
      %v8069 = vrcp.pop %v7287
      %v8070 = vrcp.pop %v7290
      %v8071 = vrcp.pop %v7293
      %v8072 = vrcp.pop %v7296
      %v8073 = vrcp.pop %v7299
      %v8074 = vrcp.pop %v7302
      %v8075 = vrcp.pop %v7305
      %v8076 = vrcp.pop %v7308
      %v8077 = vmul.f32 %v7366, %v8061
      %v8078 = vmul.f32 %v7412, %v8062
      %v8079 = vmul.f32 %v7458, %v8063
      %v8080 = vmul.f32 %v7504, %v8064
      %v8081 = vmul.f32 %v7550, %v8065
      %v8082 = vmul.f32 %v7596, %v8066
      %v8083 = vmul.f32 %v7642, %v8067
      %v8084 = vmul.f32 %v7688, %v8068
      %v8085 = vmul.f32 %v7734, %v8069
      %v8086 = vmul.f32 %v7780, %v8070
      %v8087 = vmul.f32 %v7826, %v8071
      %v8088 = vmul.f32 %v7872, %v8072
      %v8089 = vmul.f32 %v7918, %v8073
      %v8090 = vmul.f32 %v7964, %v8074
      %v8091 = vmul.f32 %v8010, %v8075
      %v8092 = vmul.f32 %v8056, %v8076
      %8109 = vrot.lane.b32.xlu0 %v8077, 24
      %v8110 = vpop.permute.xlu0 %8109
      %8111 = vrot.lane.b32.xlu0 %v8078, 24
      %v8112 = vpop.permute.xlu0 %8111
      %8113 = vrot.lane.b32.xlu0 %v8079, 24
      %v8114 = vpop.permute.xlu0 %8113
      %8115 = vrot.lane.b32.xlu0 %v8080, 24
      %v8116 = vpop.permute.xlu0 %8115
      %8117 = vrot.lane.b32.xlu0 %v8081, 24
      %v8118 = vpop.permute.xlu0 %8117
      %8119 = vrot.lane.b32.xlu0 %v8082, 24
      %v8120 = vpop.permute.xlu0 %8119
      %8121 = vrot.lane.b32.xlu0 %v8083, 24
      %v8122 = vpop.permute.xlu0 %8121
      %8123 = vrot.lane.b32.xlu0 %v8084, 24
      %v8124 = vpop.permute.xlu0 %8123
      %8125 = vrot.lane.b32.xlu0 %v8085, 24
      %v8126 = vpop.permute.xlu0 %8125
      %8127 = vrot.lane.b32.xlu0 %v8086, 24
      %v8128 = vpop.permute.xlu0 %8127
      %8129 = vrot.lane.b32.xlu0 %v8087, 24
      %v8130 = vpop.permute.xlu0 %8129
      %8131 = vrot.lane.b32.xlu0 %v8088, 24
      %v8132 = vpop.permute.xlu0 %8131
      %8133 = vrot.lane.b32.xlu0 %v8089, 24
      %v8134 = vpop.permute.xlu0 %8133
      %8135 = vrot.lane.b32.xlu0 %v8090, 24
      %v8136 = vpop.permute.xlu0 %8135
      %8137 = vrot.lane.b32.xlu0 %v8091, 24
      %v8138 = vpop.permute.xlu0 %8137
      %8139 = vrot.lane.b32.xlu0 %v8092, 24
      %v8140 = vpop.permute.xlu0 %8139
      %vm8157 = vcmask 261312
      %8158 = vst.msk [vmem:[#allocation2] sm:$0xff] %vm8157, %v8110
      %8159 = vst.msk [vmem:[#allocation2 + $0x8] sm:$0xff] %vm8157, %v8112
      %8160 = vst.msk [vmem:[#allocation2 + $0x10] sm:$0xff] %vm8157, %v8114
      %8161 = vst.msk [vmem:[#allocation2 + $0x18] sm:$0xff] %vm8157, %v8116
      %8162 = vst.msk [vmem:[#allocation2 + $0x20] sm:$0xff] %vm8157, %v8118
      %8163 = vst.msk [vmem:[#allocation2 + $0x28] sm:$0xff] %vm8157, %v8120
      %8164 = vst.msk [vmem:[#allocation2 + $0x30] sm:$0xff] %vm8157, %v8122
      %8165 = vst.msk [vmem:[#allocation2 + $0x38] sm:$0xff] %vm8157, %v8124
      %8166 = vst.msk [vmem:[#allocation2 + $0x40] sm:$0xff] %vm8157, %v8126
      %8167 = vst.msk [vmem:[#allocation2 + $0x48] sm:$0xff] %vm8157, %v8128
      %8168 = vst.msk [vmem:[#allocation2 + $0x50] sm:$0xff] %vm8157, %v8130
      %8169 = vst.msk [vmem:[#allocation2 + $0x58] sm:$0xff] %vm8157, %v8132
      %8170 = vst.msk [vmem:[#allocation2 + $0x60] sm:$0xff] %vm8157, %v8134
      %8171 = vst.msk [vmem:[#allocation2 + $0x68] sm:$0xff] %vm8157, %v8136
      %8172 = vst.msk [vmem:[#allocation2 + $0x70] sm:$0xff] %vm8157, %v8138
      %8173 = vst.msk [vmem:[#allocation2 + $0x78] sm:$0xff] %vm8157, %v8140
      %v8174 = vld [vmem:[#allocation2] sm:$0xff]
      %v8175 = vld [vmem:[#allocation2 + $0x8] sm:$0xff]
      %v8176 = vld [vmem:[#allocation2 + $0x10] sm:$0xff]
      %v8177 = vld [vmem:[#allocation2 + $0x18] sm:$0xff]
      %v8178 = vld [vmem:[#allocation2 + $0x20] sm:$0xff]
      %v8179 = vld [vmem:[#allocation2 + $0x28] sm:$0xff]
      %v8180 = vld [vmem:[#allocation2 + $0x30] sm:$0xff]
      %v8181 = vld [vmem:[#allocation2 + $0x38] sm:$0xff]
      %v8182 = vld [vmem:[#allocation2 + $0x40] sm:$0xff]
      %v8183 = vld [vmem:[#allocation2 + $0x48] sm:$0xff]
      %v8184 = vld [vmem:[#allocation2 + $0x50] sm:$0xff]
      %v8185 = vld [vmem:[#allocation2 + $0x58] sm:$0xff]
      %v8186 = vld [vmem:[#allocation2 + $0x60] sm:$0xff]
      %v8187 = vld [vmem:[#allocation2 + $0x68] sm:$0xff]
      %v8188 = vld [vmem:[#allocation2 + $0x70] sm:$0xff]
      %v8189 = vld [vmem:[#allocation2 + $0x78] sm:$0xff]
      %v8190 = vpack.c.bf16 %v8175, %v8174
      %v8191 = vpack.c.bf16 %v8177, %v8176
      %v8192 = vpack.c.bf16 %v8179, %v8178
      %v8193 = vpack.c.bf16 %v8181, %v8180
      %v8194 = vpack.c.bf16 %v8183, %v8182
      %v8195 = vpack.c.bf16 %v8185, %v8184
      %v8196 = vpack.c.bf16 %v8187, %v8186
      %v8197 = vpack.c.bf16 %v8189, %v8188
      %v8198 = vld [vmem:[%s6] sm:$0xf]
      %v8199 = vld [vmem:[%s6 + $0x4] sm:$0xf]
      %v8200 = vld [vmem:[%s6 + $0x8] sm:$0xf]
      %v8201 = vld [vmem:[%s6 + $0xc] sm:$0xf]
      %v8202 = vld [vmem:[%s7] sm:$0x1]
      %v8204 = vlaneseq
      %v8205 = vshrl.u32 %v8204, 7
      %v8206 = vsub.s32 0, %v8205
      %v8207 = vrot.slane %v8202, %v8206
      %v8213 = vunpack.c.l.b16 %v8198
      %v8214 = vunpack.c.l.b16 %v8199
      %v8215 = vunpack.c.l.b16 %v8200
      %v8216 = vunpack.c.l.b16 %v8201
      %v8217 = vpack.c.b16 %v8214, %v8213
      %v8218 = vpack.c.b16 %v8216, %v8215
      %v8222 = vsel %vm551, %v8190, 0
      %v8225 = vsel %vm551, %v8191, 0
      %v8228 = vsel %vm551, %v8192, 0
      %v8231 = vsel %vm551, %v8193, 0
      %v8234 = vsel %vm551, %v8194, 0
      %v8237 = vsel %vm551, %v8195, 0
      %v8240 = vsel %vm551, %v8196, 0
      %v8243 = vsel %vm551, %v8197, 0
      %8245 = vmatprep.subr.bf16.mxu0 0
      %8246 = vmatpush1.bf16.msra.mxu0 0
      %8247 = vmatprep.subr.bf16.mxu0 0
      %8248 = vmatpush1.bf16.msra.mxu0 0
      %8249 = vmatprep.subr.bf16.mxu0 0
      %8250 = vmatpush1.bf16.msra.mxu0 0
      %8251 = vmatprep.subr.bf16.mxu0 0
      %8252 = vmatpush1.bf16.msra.mxu0 0
      %8253 = vmatprep.subr.bf16.mxu0 0
      %8254 = vmatpush1.bf16.msra.mxu0 0
      %8255 = vmatprep.subr.bf16.mxu0 0
      %8256 = vmatpush1.bf16.msra.mxu0 0
      %8257 = vmatprep.subr.bf16.mxu0 0
      %8258 = vmatpush1.bf16.msra.mxu0 %v8218
      %8259 = vmatprep.subr.bf16.mxu0 0
      %8260 = vmatpush1.bf16.msra.mxu0 %v8217
      %8261 = vmatprep.subr.bf16.mxu0 0
      %8262 = vmatpush2.bf16.msra.mxu0 0
      %8263 = vmatprep.subr.bf16.mxu0 0
      %8264 = vmatpush2.bf16.msra.mxu0 0
      %8265 = vmatprep.subr.bf16.mxu0 0
      %8266 = vmatpush2.bf16.msra.mxu0 0
      %8267 = vmatprep.subr.bf16.mxu0 0
      %8268 = vmatpush2.bf16.msra.mxu0 0
      %8269 = vmatprep.subr.bf16.mxu0 0
      %8270 = vmatpush2.bf16.msra.mxu0 0
      %8271 = vmatprep.subr.bf16.mxu0 0
      %8272 = vmatpush2.bf16.msra.mxu0 0
      %8273 = vmatprep.subr.bf16.mxu0 0
      %8274 = vmatpush2.bf16.msra.mxu0 0
      %8275 = vmatprep.subr.bf16.mxu0 0
      %8276 = vmatpush2.bf16.msra.mxu0 0
      %8277 = vmatprep.mubr.bf16.mxu0 0
      %8278 = vmatmul.mubr.bf16.gmra.mxu0 %v8222
      %v8279 = vpop.f32.mrf.mxu0
      %v8280 = vadd.f32 %v8207, %v8279
      %v8281 = vpop.f32.mrf.mxu0
      %v8282 = vpop.f32.mrf.mxu0
      %v8283 = vadd.f32 %v8207, %v8282
      %v8284 = vpop.f32.mrf.mxu0
      %8285 = vmatprep.mubr.bf16.mxu0 0
      %8286 = vmatmul.mubr.bf16.gmra.mxu0 %v8225
      %v8287 = vpop.f32.mrf.mxu0
      %v8288 = vadd.f32 %v8207, %v8287
      %v8289 = vpop.f32.mrf.mxu0
      %v8290 = vpop.f32.mrf.mxu0
      %v8291 = vadd.f32 %v8207, %v8290
      %v8292 = vpop.f32.mrf.mxu0
      %8293 = vmatprep.mubr.bf16.mxu0 0
      %8294 = vmatmul.mubr.bf16.gmra.mxu0 %v8228
      %v8295 = vpop.f32.mrf.mxu0
      %v8296 = vadd.f32 %v8207, %v8295
      %v8297 = vpop.f32.mrf.mxu0
      %v8298 = vpop.f32.mrf.mxu0
      %v8299 = vadd.f32 %v8207, %v8298
      %v8300 = vpop.f32.mrf.mxu0
      %8301 = vmatprep.mubr.bf16.mxu0 0
      %8302 = vmatmul.mubr.bf16.gmra.mxu0 %v8231
      %v8303 = vpop.f32.mrf.mxu0
      %v8304 = vadd.f32 %v8207, %v8303
      %v8305 = vpop.f32.mrf.mxu0
      %v8306 = vpop.f32.mrf.mxu0
      %v8307 = vadd.f32 %v8207, %v8306
      %v8308 = vpop.f32.mrf.mxu0
      %8309 = vmatprep.mubr.bf16.mxu0 0
      %8310 = vmatmul.mubr.bf16.gmra.mxu0 %v8234
      %v8311 = vpop.f32.mrf.mxu0
      %v8312 = vadd.f32 %v8207, %v8311
      %v8313 = vpop.f32.mrf.mxu0
      %v8314 = vpop.f32.mrf.mxu0
      %v8315 = vadd.f32 %v8207, %v8314
      %v8316 = vpop.f32.mrf.mxu0
      %8317 = vmatprep.mubr.bf16.mxu0 0
      %8318 = vmatmul.mubr.bf16.gmra.mxu0 %v8237
      %v8319 = vpop.f32.mrf.mxu0
      %v8320 = vadd.f32 %v8207, %v8319
      %v8321 = vpop.f32.mrf.mxu0
      %v8322 = vpop.f32.mrf.mxu0
      %v8323 = vadd.f32 %v8207, %v8322
      %v8324 = vpop.f32.mrf.mxu0
      %8325 = vmatprep.mubr.bf16.mxu0 0
      %8326 = vmatmul.mubr.bf16.gmra.mxu0 %v8240
      %v8327 = vpop.f32.mrf.mxu0
      %v8328 = vadd.f32 %v8207, %v8327
      %v8329 = vpop.f32.mrf.mxu0
      %v8330 = vpop.f32.mrf.mxu0
      %v8331 = vadd.f32 %v8207, %v8330
      %v8332 = vpop.f32.mrf.mxu0
      %8333 = vmatprep.mubr.bf16.mxu0 0
      %8334 = vmatmul.mubr.bf16.gmra.mxu0 %v8243
      %v8335 = vpop.f32.mrf.mxu0
      %v8336 = vadd.f32 %v8207, %v8335
      %v8337 = vpop.f32.mrf.mxu0
      %v8338 = vpop.f32.mrf.mxu0
      %v8339 = vadd.f32 %v8207, %v8338
      %v8340 = vpop.f32.mrf.mxu0
      %8341 = vdwg.mxu0
      %v8342 = vpack.c.bf16 %v8283, %v8280
      %v8343 = vpack.c.bf16 %v8291, %v8288
      %v8344 = vpack.c.bf16 %v8299, %v8296
      %v8345 = vpack.c.bf16 %v8307, %v8304
      %v8346 = vpack.c.bf16 %v8315, %v8312
      %v8347 = vpack.c.bf16 %v8323, %v8320
      %v8348 = vpack.c.bf16 %v8331, %v8328
      %v8349 = vpack.c.bf16 %v8339, %v8336
      %v8350 = vld [vmem:[%s8] sm:$0xf]
      %v8351 = vld [vmem:[%s8 + $0x4] sm:$0xf]
      %v8352 = vld [vmem:[%s8 + $0x8] sm:$0xf]
      %v8353 = vld [vmem:[%s8 + $0xc] sm:$0xf]
      %v8354 = vld [vmem:[%s9] sm:$0x1]
      %v8356 = vlaneseq
      %v8357 = vshrl.u32 %v8356, 7
      %v8358 = vsub.s32 0, %v8357
      %v8359 = vrot.slane %v8354, %v8358
      %v8365 = vunpack.c.l.b16 %v8350
      %v8366 = vunpack.c.l.b16 %v8351
      %v8367 = vunpack.c.l.b16 %v8352
      %v8368 = vunpack.c.l.b16 %v8353
      %v8369 = vpack.c.b16 %v8366, %v8365
      %v8370 = vpack.c.b16 %v8368, %v8367
      %v8374 = vsel %vm551, %v8342, 0
      %v8377 = vsel %vm551, %v8343, 0
      %v8380 = vsel %vm551, %v8344, 0
      %v8383 = vsel %vm551, %v8345, 0
      %v8386 = vsel %vm551, %v8346, 0
      %v8389 = vsel %vm551, %v8347, 0
      %v8392 = vsel %vm551, %v8348, 0
      %v8395 = vsel %vm551, %v8349, 0
      %8397 = vmatprep.subr.bf16.mxu0 0
      %8398 = vmatpush1.bf16.msra.mxu0 0
      %8399 = vmatprep.subr.bf16.mxu0 0
      %8400 = vmatpush1.bf16.msra.mxu0 0
      %8401 = vmatprep.subr.bf16.mxu0 0
      %8402 = vmatpush1.bf16.msra.mxu0 0
      %8403 = vmatprep.subr.bf16.mxu0 0
      %8404 = vmatpush1.bf16.msra.mxu0 0
      %8405 = vmatprep.subr.bf16.mxu0 0
      %8406 = vmatpush1.bf16.msra.mxu0 0
      %8407 = vmatprep.subr.bf16.mxu0 0
      %8408 = vmatpush1.bf16.msra.mxu0 0
      %8409 = vmatprep.subr.bf16.mxu0 0
      %8410 = vmatpush1.bf16.msra.mxu0 %v8370
      %8411 = vmatprep.subr.bf16.mxu0 0
      %8412 = vmatpush1.bf16.msra.mxu0 %v8369
      %8413 = vmatprep.subr.bf16.mxu0 0
      %8414 = vmatpush2.bf16.msra.mxu0 0
      %8415 = vmatprep.subr.bf16.mxu0 0
      %8416 = vmatpush2.bf16.msra.mxu0 0
      %8417 = vmatprep.subr.bf16.mxu0 0
      %8418 = vmatpush2.bf16.msra.mxu0 0
      %8419 = vmatprep.subr.bf16.mxu0 0
      %8420 = vmatpush2.bf16.msra.mxu0 0
      %8421 = vmatprep.subr.bf16.mxu0 0
      %8422 = vmatpush2.bf16.msra.mxu0 0
      %8423 = vmatprep.subr.bf16.mxu0 0
      %8424 = vmatpush2.bf16.msra.mxu0 0
      %8425 = vmatprep.subr.bf16.mxu0 0
      %8426 = vmatpush2.bf16.msra.mxu0 0
      %8427 = vmatprep.subr.bf16.mxu0 0
      %8428 = vmatpush2.bf16.msra.mxu0 0
      %8429 = vmatprep.mubr.bf16.mxu0 0
      %8430 = vmatmul.mubr.bf16.gmra.mxu0 %v8374
      %v8431 = vpop.f32.mrf.mxu0
      %v8432 = vadd.f32 %v8359, %v8431
      %v8433 = vpop.f32.mrf.mxu0
      %v8434 = vpop.f32.mrf.mxu0
      %v8435 = vadd.f32 %v8359, %v8434
      %v8436 = vpop.f32.mrf.mxu0
      %8437 = vmatprep.mubr.bf16.mxu0 0
      %8438 = vmatmul.mubr.bf16.gmra.mxu0 %v8377
      %v8439 = vpop.f32.mrf.mxu0
      %v8440 = vadd.f32 %v8359, %v8439
      %v8441 = vpop.f32.mrf.mxu0
      %v8442 = vpop.f32.mrf.mxu0
      %v8443 = vadd.f32 %v8359, %v8442
      %v8444 = vpop.f32.mrf.mxu0
      %8445 = vmatprep.mubr.bf16.mxu0 0
      %8446 = vmatmul.mubr.bf16.gmra.mxu0 %v8380
      %v8447 = vpop.f32.mrf.mxu0
      %v8448 = vadd.f32 %v8359, %v8447
      %v8449 = vpop.f32.mrf.mxu0
      %v8450 = vpop.f32.mrf.mxu0
      %v8451 = vadd.f32 %v8359, %v8450
      %v8452 = vpop.f32.mrf.mxu0
      %8453 = vmatprep.mubr.bf16.mxu0 0
      %8454 = vmatmul.mubr.bf16.gmra.mxu0 %v8383
      %v8455 = vpop.f32.mrf.mxu0
      %v8456 = vadd.f32 %v8359, %v8455
      %v8457 = vpop.f32.mrf.mxu0
      %v8458 = vpop.f32.mrf.mxu0
      %v8459 = vadd.f32 %v8359, %v8458
      %v8460 = vpop.f32.mrf.mxu0
      %8461 = vmatprep.mubr.bf16.mxu0 0
      %8462 = vmatmul.mubr.bf16.gmra.mxu0 %v8386
      %v8463 = vpop.f32.mrf.mxu0
      %v8464 = vadd.f32 %v8359, %v8463
      %v8465 = vpop.f32.mrf.mxu0
      %v8466 = vpop.f32.mrf.mxu0
      %v8467 = vadd.f32 %v8359, %v8466
      %v8468 = vpop.f32.mrf.mxu0
      %8469 = vmatprep.mubr.bf16.mxu0 0
      %8470 = vmatmul.mubr.bf16.gmra.mxu0 %v8389
      %v8471 = vpop.f32.mrf.mxu0
      %v8472 = vadd.f32 %v8359, %v8471
      %v8473 = vpop.f32.mrf.mxu0
      %v8474 = vpop.f32.mrf.mxu0
      %v8475 = vadd.f32 %v8359, %v8474
      %v8476 = vpop.f32.mrf.mxu0
      %8477 = vmatprep.mubr.bf16.mxu0 0
      %8478 = vmatmul.mubr.bf16.gmra.mxu0 %v8392
      %v8479 = vpop.f32.mrf.mxu0
      %v8480 = vadd.f32 %v8359, %v8479
      %v8481 = vpop.f32.mrf.mxu0
      %v8482 = vpop.f32.mrf.mxu0
      %v8483 = vadd.f32 %v8359, %v8482
      %v8484 = vpop.f32.mrf.mxu0
      %8485 = vmatprep.mubr.bf16.mxu0 0
      %8486 = vmatmul.mubr.bf16.gmra.mxu0 %v8395
      %v8487 = vpop.f32.mrf.mxu0
      %v8488 = vadd.f32 %v8359, %v8487
      %v8489 = vpop.f32.mrf.mxu0
      %v8490 = vpop.f32.mrf.mxu0
      %v8491 = vadd.f32 %v8359, %v8490
      %v8492 = vpop.f32.mrf.mxu0
      %8493 = vdwg.mxu0
      %v8494 = vmax.f32 %v8432, 0.0
      %v8495 = vmax.f32 %v8435, 0.0
      %v8496 = vmax.f32 %v8440, 0.0
      %v8497 = vmax.f32 %v8443, 0.0
      %v8498 = vmax.f32 %v8448, 0.0
      %v8499 = vmax.f32 %v8451, 0.0
      %v8500 = vmax.f32 %v8456, 0.0
      %v8501 = vmax.f32 %v8459, 0.0
      %v8502 = vmax.f32 %v8464, 0.0
      %v8503 = vmax.f32 %v8467, 0.0
      %v8504 = vmax.f32 %v8472, 0.0
      %v8505 = vmax.f32 %v8475, 0.0
      %v8506 = vmax.f32 %v8480, 0.0
      %v8507 = vmax.f32 %v8483, 0.0
      %v8508 = vmax.f32 %v8488, 0.0
      %v8509 = vmax.f32 %v8491, 0.0
      %v8510 = vpack.c.bf16 %v8495, %v8494
      %v8511 = vpack.c.bf16 %v8497, %v8496
      %v8512 = vpack.c.bf16 %v8499, %v8498
      %v8513 = vpack.c.bf16 %v8501, %v8500
      %v8514 = vpack.c.bf16 %v8503, %v8502
      %v8515 = vpack.c.bf16 %v8505, %v8504
      %v8516 = vpack.c.bf16 %v8507, %v8506
      %v8517 = vpack.c.bf16 %v8509, %v8508
      %v8518 = vld [vmem:[%s10] sm:$0xf]
      %v8519 = vld [vmem:[%s10 + $0x4] sm:$0xf]
      %v8520 = vld [vmem:[%s10 + $0x8] sm:$0xf]
      %v8521 = vld [vmem:[%s10 + $0xc] sm:$0xf]
      %v8522 = vld [vmem:[%s10 + $0x10] sm:$0xf]
      %v8523 = vld [vmem:[%s10 + $0x14] sm:$0xf]
      %v8524 = vld [vmem:[%s10 + $0x18] sm:$0xf]
      %v8525 = vld [vmem:[%s10 + $0x1c] sm:$0xf]
      %v8526 = vld [vmem:[%s11] sm:$0x1]
      %v8528 = vlaneseq
      %v8529 = vshrl.u32 %v8528, 7
      %v8530 = vsub.s32 0, %v8529
      %v8531 = vrot.slane %v8526, %v8530
      %v8541 = vunpack.c.l.b16 %v8518
      %v8542 = vunpack.c.l.b16 %v8519
      %v8543 = vunpack.c.l.b16 %v8520
      %v8544 = vunpack.c.l.b16 %v8521
      %v8545 = vunpack.c.l.b16 %v8522
      %v8546 = vunpack.c.l.b16 %v8523
      %v8547 = vunpack.c.l.b16 %v8524
      %v8548 = vunpack.c.l.b16 %v8525
      %v8549 = vpack.c.b16 %v8542, %v8541
      %v8550 = vpack.c.b16 %v8544, %v8543
      %v8551 = vpack.c.b16 %v8546, %v8545
      %v8552 = vpack.c.b16 %v8548, %v8547
      %vm8557 = vcmask 523264
      %v8559 = vsel %vm8557, %v8510, 0
      %v8562 = vsel %vm8557, %v8511, 0
      %v8565 = vsel %vm8557, %v8512, 0
      %v8568 = vsel %vm8557, %v8513, 0
      %v8571 = vsel %vm8557, %v8514, 0
      %v8574 = vsel %vm8557, %v8515, 0
      %v8577 = vsel %vm8557, %v8516, 0
      %v8580 = vsel %vm8557, %v8517, 0
      %8582 = vmatprep.subr.bf16.mxu0 0
      %8583 = vmatpush1.bf16.msra.mxu0 0
      %8584 = vmatprep.subr.bf16.mxu0 0
      %8585 = vmatpush1.bf16.msra.mxu0 0
      %8586 = vmatprep.subr.bf16.mxu0 0
      %8587 = vmatpush1.bf16.msra.mxu0 0
      %8588 = vmatprep.subr.bf16.mxu0 0
      %8589 = vmatpush1.bf16.msra.mxu0 0
      %8590 = vmatprep.subr.bf16.mxu0 0
      %8591 = vmatpush1.bf16.msra.mxu0 %v8552
      %8592 = vmatprep.subr.bf16.mxu0 0
      %8593 = vmatpush1.bf16.msra.mxu0 %v8551
      %8594 = vmatprep.subr.bf16.mxu0 0
      %8595 = vmatpush1.bf16.msra.mxu0 %v8550
      %8596 = vmatprep.subr.bf16.mxu0 0
      %8597 = vmatpush1.bf16.msra.mxu0 %v8549
      %8598 = vmatprep.subr.bf16.mxu0 0
      %8599 = vmatpush2.bf16.msra.mxu0 0
      %8600 = vmatprep.subr.bf16.mxu0 0
      %8601 = vmatpush2.bf16.msra.mxu0 0
      %8602 = vmatprep.subr.bf16.mxu0 0
      %8603 = vmatpush2.bf16.msra.mxu0 0
      %8604 = vmatprep.subr.bf16.mxu0 0
      %8605 = vmatpush2.bf16.msra.mxu0 0
      %8606 = vmatprep.subr.bf16.mxu0 0
      %8607 = vmatpush2.bf16.msra.mxu0 0
      %8608 = vmatprep.subr.bf16.mxu0 0
      %8609 = vmatpush2.bf16.msra.mxu0 0
      %8610 = vmatprep.subr.bf16.mxu0 0
      %8611 = vmatpush2.bf16.msra.mxu0 0
      %8612 = vmatprep.subr.bf16.mxu0 0
      %8613 = vmatpush2.bf16.msra.mxu0 0
      %8614 = vmatprep.mubr.bf16.mxu0 0
      %8615 = vmatmul.mubr.bf16.gmra.mxu0 %v8559
      %v8616 = vpop.f32.mrf.mxu0
      %v8617 = vadd.f32 %v8531, %v8616
      %v8618 = vpop.f32.mrf.mxu0
      %v8619 = vpop.f32.mrf.mxu0
      %v8620 = vadd.f32 %v8531, %v8619
      %v8621 = vpop.f32.mrf.mxu0
      %8622 = vmatprep.mubr.bf16.mxu0 0
      %8623 = vmatmul.mubr.bf16.gmra.mxu0 %v8562
      %v8624 = vpop.f32.mrf.mxu0
      %v8625 = vadd.f32 %v8531, %v8624
      %v8626 = vpop.f32.mrf.mxu0
      %v8627 = vpop.f32.mrf.mxu0
      %v8628 = vadd.f32 %v8531, %v8627
      %v8629 = vpop.f32.mrf.mxu0
      %8630 = vmatprep.mubr.bf16.mxu0 0
      %8631 = vmatmul.mubr.bf16.gmra.mxu0 %v8565
      %v8632 = vpop.f32.mrf.mxu0
      %v8633 = vadd.f32 %v8531, %v8632
      %v8634 = vpop.f32.mrf.mxu0
      %v8635 = vpop.f32.mrf.mxu0
      %v8636 = vadd.f32 %v8531, %v8635
      %v8637 = vpop.f32.mrf.mxu0
      %8638 = vmatprep.mubr.bf16.mxu0 0
      %8639 = vmatmul.mubr.bf16.gmra.mxu0 %v8568
      %v8640 = vpop.f32.mrf.mxu0
      %v8641 = vadd.f32 %v8531, %v8640
      %v8642 = vpop.f32.mrf.mxu0
      %v8643 = vpop.f32.mrf.mxu0
      %v8644 = vadd.f32 %v8531, %v8643
      %v8645 = vpop.f32.mrf.mxu0
      %8646 = vmatprep.mubr.bf16.mxu0 0
      %8647 = vmatmul.mubr.bf16.gmra.mxu0 %v8571
      %v8648 = vpop.f32.mrf.mxu0
      %v8649 = vadd.f32 %v8531, %v8648
      %v8650 = vpop.f32.mrf.mxu0
      %v8651 = vpop.f32.mrf.mxu0
      %v8652 = vadd.f32 %v8531, %v8651
      %v8653 = vpop.f32.mrf.mxu0
      %8654 = vmatprep.mubr.bf16.mxu0 0
      %8655 = vmatmul.mubr.bf16.gmra.mxu0 %v8574
      %v8656 = vpop.f32.mrf.mxu0
      %v8657 = vadd.f32 %v8531, %v8656
      %v8658 = vpop.f32.mrf.mxu0
      %v8659 = vpop.f32.mrf.mxu0
      %v8660 = vadd.f32 %v8531, %v8659
      %v8661 = vpop.f32.mrf.mxu0
      %8662 = vmatprep.mubr.bf16.mxu0 0
      %8663 = vmatmul.mubr.bf16.gmra.mxu0 %v8577
      %v8664 = vpop.f32.mrf.mxu0
      %v8665 = vadd.f32 %v8531, %v8664
      %v8666 = vpop.f32.mrf.mxu0
      %v8667 = vpop.f32.mrf.mxu0
      %v8668 = vadd.f32 %v8531, %v8667
      %v8669 = vpop.f32.mrf.mxu0
      %8670 = vmatprep.mubr.bf16.mxu0 0
      %8671 = vmatmul.mubr.bf16.gmra.mxu0 %v8580
      %v8672 = vpop.f32.mrf.mxu0
      %v8673 = vadd.f32 %v8531, %v8672
      %v8674 = vpop.f32.mrf.mxu0
      %v8675 = vpop.f32.mrf.mxu0
      %v8676 = vadd.f32 %v8531, %v8675
      %v8677 = vpop.f32.mrf.mxu0
      %8678 = vdwg.mxu0
      %8679 = vst.msk [vmem:[%s437] sm:$0xff] %vm551, %v8617
      %8680 = vst.msk [vmem:[%s437 + $0x8] sm:$0xff] %vm551, %v8620
      %8681 = vst.msk [vmem:[%s437 + $0x10] sm:$0xff] %vm551, %v8625
      %8682 = vst.msk [vmem:[%s437 + $0x18] sm:$0xff] %vm551, %v8628
      %8683 = vst.msk [vmem:[%s437 + $0x20] sm:$0xff] %vm551, %v8633
      %8684 = vst.msk [vmem:[%s437 + $0x28] sm:$0xff] %vm551, %v8636
      %8685 = vst.msk [vmem:[%s437 + $0x30] sm:$0xff] %vm551, %v8641
      %8686 = vst.msk [vmem:[%s437 + $0x38] sm:$0xff] %vm551, %v8644
      %8687 = vst.msk [vmem:[%s437 + $0x40] sm:$0xff] %vm551, %v8649
      %8688 = vst.msk [vmem:[%s437 + $0x48] sm:$0xff] %vm551, %v8652
      %8689 = vst.msk [vmem:[%s437 + $0x50] sm:$0xff] %vm551, %v8657
      %8690 = vst.msk [vmem:[%s437 + $0x58] sm:$0xff] %vm551, %v8660
      %8691 = vst.msk [vmem:[%s437 + $0x60] sm:$0xff] %vm551, %v8665
      %8692 = vst.msk [vmem:[%s437 + $0x68] sm:$0xff] %vm551, %v8668
      %8693 = vst.msk [vmem:[%s437 + $0x70] sm:$0xff] %vm551, %v8673
      %8694 = vst.msk [vmem:[%s437 + $0x78] sm:$0xff] %vm551, %v8676
      %s8695 = smul.u32 16, %s23
      %p8696 = scmp.lt.s32.totalorder %s8695, 31
      %s8697 = scalar_select %p8696, %s8695, 31
      %s8698 = smul.addr %s8697, 8
      %s8699 = scalar_lea.vmem %s12, %s8698
      // Predicated region
      $region69: #{tpu_custom_call.1} parent=67 // pred_check
        %p8700 = pneg %p303
      $region70: #{tpu_custom_call.1} parent=67 // pred_check_branch
        %8702 = sbr.rel (%p8700) target = $region72
      $region71: #{tpu_custom_call.1} parent=67 // pred_region
        %s8703 = smul.u32 16, %s23
      $region72: #{tpu_custom_call.1} parent=67 // pred_fallthru
        _
    $region68: #{tpu_custom_call.1} parent=5 // pred_fallthru
      _
    %p8704 = scmp.le.s32.totalorder 2, %s18
    // Predicated region
    $region73: #{tpu_custom_call.1} parent=5 // pred_check
      %p8705 = pneg %p8704
    $region74: #{tpu_custom_call.1} parent=5 // pred_check_branch
      %8707 = sbr.rel (%p8705) target = $region76
    $region75: #{tpu_custom_call.1} parent=5 // pred_region
      %s8708 = ssub.s32 %s18, 2
      // Predicated region
      $region77: #{tpu_custom_call.1} parent=75 // pred_check
        %p8709 = pneg %p309
      $region78: #{tpu_custom_call.1} parent=75 // pred_check_branch
        %8711 = sbr.rel (%p8709) target = $region80
      $region79: #{tpu_custom_call.1} parent=75 // pred_region
        %s8712 = smul.u32 16, %s24
        %p8713 = scmp.lt.s32.totalorder %s8712, 31
        %s8714 = scalar_select %p8713, %s8712, 31
        %s8715 = smul.addr %s8714, 8
        %s8716 = scalar_lea.vmem %s12, %s8715
      $region80: #{tpu_custom_call.1} parent=75 // pred_fallthru
        _
    $region76: #{tpu_custom_call.1} parent=5 // pred_fallthru
      _
  $region6: #{tpu_custom_call.1} parent=0 // loop_footer
    %s22 = sadd.s32 1, %s18
  $region7: #{tpu_custom_call.1} parent=0 // loop_footer_branch
    %17 = sbr.rel target = $region3
  $region8: #{tpu_custom_call.1} parent=0 // loop_exit
    _

</llo_original>
